<compile_context>
chip_gen: v6e
topology: v6e:2x2x1
jax: 0.10.0
libtpu: 0.0.40
codegen_flags: <defaults>
</compile_context>

<pallas_src>
import jax
import jax.numpy as jnp
from jax.experimental import pallas as pl
from jax.experimental.pallas import tpu as pltpu

IN_DIM = 3 * 52          # 156
PAD_IN = 256             # 156 padded up to a lane multiple
DIMS = [IN_DIM, 1024, 512, 512, 256, IN_DIM, 1]
TB = 128                 # batch tile (use 256 on v6e/v7x for throughput)


def dqn_kernel(x_ref, w0_ref, b0_ref,
               w1_hbm, b1_ref, w2_hbm, b2_ref, w3_hbm, b3_ref,
               w4_hbm, b4_ref, w5_hbm, b5_ref,
               out_ref,
               xp_ref, w1_ref, w2_ref, w3_ref, w4_ref, w5_ref, sem):
    first = pl.program_id(0) == 0

    # First grid step: zero the pad lanes of the x staging buffer and kick off
    # the HBM->VMEM weight streams.  Scratch persists across batch tiles, so
    # later steps reuse the already-resident weights.
    @pl.when(first)
    def _():
        xp_ref[...] = jnp.zeros_like(xp_ref)
        pltpu.make_async_copy(w1_hbm, w1_ref, sem.at[0]).start()
        pltpu.make_async_copy(w2_hbm, w2_ref, sem.at[1]).start()
        pltpu.make_async_copy(w3_hbm, w3_ref, sem.at[2]).start()
        pltpu.make_async_copy(w4_hbm, w4_ref, sem.at[3]).start()
        pltpu.make_async_copy(w5_hbm, w5_ref, sem.at[4]).start()

    # Pad the 156-wide input tile to 256 lanes in-kernel (lanes 156..255 stay 0).
    xp_ref[:, :IN_DIM] = x_ref[...]
    x = xp_ref[...]                                   # (TB, 256) bf16

    # Layer 0: 256(pad of 156) -> 1024, ReLU   (w0 arrived via BlockSpec)
    h = jnp.dot(x, w0_ref[...], preferred_element_type=jnp.float32) + b0_ref[...]
    h = jnp.maximum(h, 0.0).astype(jnp.bfloat16)

    # Layer 1: 1024 -> 512, ReLU   (wait overlaps with layer-0 compute above)
    @pl.when(first)
    def _():
        pltpu.make_async_copy(w1_hbm, w1_ref, sem.at[0]).wait()
    h = jnp.dot(h, w1_ref[...], preferred_element_type=jnp.float32) + b1_ref[...]
    h = jnp.maximum(h, 0.0).astype(jnp.bfloat16)

    # Layer 2: 512 -> 512, ReLU
    @pl.when(first)
    def _():
        pltpu.make_async_copy(w2_hbm, w2_ref, sem.at[1]).wait()
    h = jnp.dot(h, w2_ref[...], preferred_element_type=jnp.float32) + b2_ref[...]
    h = jnp.maximum(h, 0.0).astype(jnp.bfloat16)

    # Layer 3: 512 -> 256, ReLU
    @pl.when(first)
    def _():
        pltpu.make_async_copy(w3_hbm, w3_ref, sem.at[2]).wait()
    h = jnp.dot(h, w3_ref[...], preferred_element_type=jnp.float32) + b3_ref[...]
    h = jnp.maximum(h, 0.0).astype(jnp.bfloat16)

    # Layer 4: 256 -> 256(pad of 156), ReLU (padded cols have 0 weight/bias -> 0)
    @pl.when(first)
    def _():
        pltpu.make_async_copy(w4_hbm, w4_ref, sem.at[3]).wait()
    h = jnp.dot(h, w4_ref[...], preferred_element_type=jnp.float32) + b4_ref[...]
    h = jnp.maximum(h, 0.0)                           # keep f32 for the head

    # Head: 256(pad of 156) -> 1 as VPU mul + lane reduction (avoid N=1 matmul)
    @pl.when(first)
    def _():
        pltpu.make_async_copy(w5_hbm, w5_ref, sem.at[4]).wait()
    w5 = w5_ref[...].astype(jnp.float32)              # (1, 256)
    out = jnp.sum(h * w5, axis=-1, keepdims=True) + b5_ref[...]
    out_ref[...] = out.astype(out_ref.dtype)


def dqn_forward(x, prepped_params):
    """x: (B, 156) f32; prepped_params: padded/bf16 params from prepare_params."""
    batch = x.shape[0]
    x_bf = x.astype(jnp.bfloat16)
    w0, b0, w1, b1, w2, b2, w3, b3, w4, b4, w5, b5 = prepped_params

    def resident(p):
        # Constant index_map -> fetched once, stays VMEM-resident across tiles.
        return pl.BlockSpec(p.shape, lambda i: (0, 0))

    hbm = pl.BlockSpec(memory_space=pl.ANY)           # streamed manually in-kernel

    in_specs = [
        pl.BlockSpec((TB, IN_DIM), lambda i: (i, 0)), # x tile (unpadded)
        resident(w0), resident(b0),
        hbm, resident(b1),
        hbm, resident(b2),
        hbm, resident(b3),
        hbm, resident(b4),
        hbm, resident(b5),
    ]

    scratch_shapes = [
        pltpu.VMEM((TB, PAD_IN), jnp.bfloat16),       # padded-x staging
        pltpu.VMEM((1024, 512), jnp.bfloat16),        # w1
        pltpu.VMEM((512, 512), jnp.bfloat16),         # w2
        pltpu.VMEM((512, 256), jnp.bfloat16),         # w3
        pltpu.VMEM((256, PAD_IN), jnp.bfloat16),      # w4 (cols padded)
        pltpu.VMEM((1, PAD_IN), jnp.bfloat16),        # w5 (padded head row)
        pltpu.SemaphoreType.DMA((5,)),
    ]

    out = pl.pallas_call(
        dqn_kernel,
        out_shape=jax.ShapeDtypeStruct((batch, 1), jnp.float32),
        grid=(pl.cdiv(batch, TB),),
        in_specs=in_specs,
        out_specs=pl.BlockSpec((TB, 1), lambda i: (i, 0)),
        scratch_shapes=scratch_shapes,
        compiler_params=pltpu.CompilerParams(
            dimension_semantics=("arbitrary",)),
    )(x_bf, w0, b0, w1, b1, w2, b2, w3, b3, w4, b4, w5, b5)
    return out


def init_params(key):
    """Deterministic f32 init matching the nn.Linear shapes of DQN."""
    params = []
    for i in range(len(DIMS) - 1):
        fan_in, fan_out = DIMS[i], DIMS[i + 1]
        key, wk, bk = jax.random.split(key, 3)
        bound = 1.0 / jnp.sqrt(jnp.float32(fan_in))
        w = jax.random.uniform(wk, (fan_in, fan_out), jnp.float32, -bound, bound)
        b = jax.random.uniform(bk, (1, fan_out), jnp.float32, -bound, bound)
        params.extend([w, b])
    return params


def prepare_params(params):
    """Pad 156-wide dims to 256 and cast weights to bf16 (biases stay f32)."""
    w0, b0, w1, b1, w2, b2, w3, b3, w4, b4, w5, b5 = params
    w0p = jnp.zeros((PAD_IN, 1024), jnp.float32).at[:IN_DIM, :].set(w0)
    w4p = jnp.zeros((256, PAD_IN), jnp.float32).at[:, :IN_DIM].set(w4)
    b4p = jnp.zeros((1, PAD_IN), jnp.float32).at[:, :IN_DIM].set(b4)
    w5p = jnp.zeros((1, PAD_IN), jnp.float32).at[:, :IN_DIM].set(w5[:, 0])
    bf = jnp.bfloat16
    return [w0p.astype(bf), b0,
            w1.astype(bf), b1,
            w2.astype(bf), b2,
            w3.astype(bf), b3,
            w4p.astype(bf), b4p,
            w5p.astype(bf), b5]


def dqn_reference(x, params):
    """Plain-JAX reference mirroring the kernel's bf16 rounding (f32 accum)."""
    h = x.astype(jnp.bfloat16).astype(jnp.float32)
    for i in range(0, 10, 2):
        w = params[i].astype(jnp.bfloat16).astype(jnp.float32)
        h = jnp.maximum(h @ w + params[i + 1], 0.0)
        if i < 8:                                     # kernel keeps layer-4 out f32
            h = h.astype(jnp.bfloat16).astype(jnp.float32)
    w5 = params[10].astype(jnp.bfloat16).astype(jnp.float32)
    return h @ w5 + params[11]


if __name__ == "__main__":
    key = jax.random.PRNGKey(0)
    pkey, xkey = jax.random.split(key)
    params = init_params(pkey)
    prepped = prepare_params(params)

    batch = 2
    # state: first 52 = hand, next 52 = seen cards, last 52 = one-hot action
    x = jax.random.uniform(xkey, (batch, IN_DIM), jnp.float32)

    out = dqn_forward(x, prepped)
    out = jax.block_until_ready(out)

    ref = dqn_reference(x, params)
    assert out.shape == (batch, 1), out.shape
    assert jnp.allclose(out, ref, atol=2e-3, rtol=2e-3), (out, ref)

    print("KERNEL_OK")
</pallas_src>

<mosaic_0001>
module attributes {stable_mosaic.version = 11 : i64} {
  func.func @dqn_kernel(%arg0: i32, %arg1: memref<128x156xbf16, #tpu.memory_space<vmem>>, %arg2: memref<256x1024xbf16, #tpu.memory_space<vmem>>, %arg3: memref<1x1024xf32, #tpu.memory_space<vmem>>, %arg4: memref<1024x512xbf16, #tpu.memory_space<any>>, %arg5: memref<1x512xf32, #tpu.memory_space<vmem>>, %arg6: memref<512x512xbf16, #tpu.memory_space<any>>, %arg7: memref<1x512xf32, #tpu.memory_space<vmem>>, %arg8: memref<512x256xbf16, #tpu.memory_space<any>>, %arg9: memref<1x256xf32, #tpu.memory_space<vmem>>, %arg10: memref<256x256xbf16, #tpu.memory_space<any>>, %arg11: memref<1x256xf32, #tpu.memory_space<vmem>>, %arg12: memref<1x256xbf16, #tpu.memory_space<any>>, %arg13: memref<1x1xf32, #tpu.memory_space<vmem>>, %arg14: memref<128x1xf32, #tpu.memory_space<vmem>>, %arg15: memref<128x256xbf16, #tpu.memory_space<vmem>>, %arg16: memref<1024x512xbf16, #tpu.memory_space<vmem>>, %arg17: memref<512x512xbf16, #tpu.memory_space<vmem>>, %arg18: memref<512x256xbf16, #tpu.memory_space<vmem>>, %arg19: memref<256x256xbf16, #tpu.memory_space<vmem>>, %arg20: memref<1x256xbf16, #tpu.memory_space<vmem>>, %arg21: memref<5x!tpu.dma_semaphore, #tpu.memory_space<semaphore_mem>>) attributes {dimension_semantics = [#tpu.dimension_semantics<arbitrary>], iteration_bounds = array<i64: 1>, scalar_prefetch = 0 : i64, scratch_operands = 7 : i64, tpu.core_type = #tpu.core_type<tc>, window_params = [{transform_indices = @transform_0, window_bounds = array<i64: 128, 156>}, {pipeline_mode = #tpu.pipeline_mode<synchronous>, transform_indices = @transform_1, window_bounds = array<i64: 256, 1024>}, {pipeline_mode = #tpu.pipeline_mode<synchronous>, transform_indices = @transform_2, window_bounds = array<i64: 1, 1024>}, {}, {pipeline_mode = #tpu.pipeline_mode<synchronous>, transform_indices = @transform_4, window_bounds = array<i64: 1, 512>}, {}, {pipeline_mode = #tpu.pipeline_mode<synchronous>, transform_indices = @transform_6, window_bounds = array<i64: 1, 512>}, {}, {pipeline_mode = #tpu.pipeline_mode<synchronous>, transform_indices = @transform_8, window_bounds = array<i64: 1, 256>}, {}, {pipeline_mode = #tpu.pipeline_mode<synchronous>, transform_indices = @transform_10, window_bounds = array<i64: 1, 256>}, {}, {pipeline_mode = #tpu.pipeline_mode<synchronous>, transform_indices = @transform_12, window_bounds = array<i64: 1, 1>}, {transform_indices = @transform_13, window_bounds = array<i64: 128, 1>}]} {
    %c0_i32 = arith.constant 0 : i32
    %0 = arith.cmpi eq, %arg0, %c0_i32 : i32
    %1 = arith.extui %0 : i1 to i32
    %c0_i32_0 = arith.constant 0 : i32
    %2 = arith.cmpi ne, %1, %c0_i32_0 : i32
    scf.if %2 {
      %cst_47 = arith.constant 0.000000e+00 : bf16
      %65 = vector.broadcast %cst_47 : bf16 to vector<128x256xbf16>
      %c0_48 = arith.constant 0 : index
      %c0_49 = arith.constant 0 : index
      %66 = vector.load %arg15[%c0_48, %c0_49] : memref<128x256xbf16, #tpu.memory_space<vmem>>, vector<128x256xbf16>
      tpu.vector_store %arg15[%c0_48, %c0_49], %65 {strides = array<i32>} : memref<128x256xbf16, #tpu.memory_space<vmem>>, vector<128x256xbf16>,
      %c0_i32_50 = arith.constant 0 : i32
      %67 = tpu.memref_slice %arg21[%c0_i32_50] : memref<5x!tpu.dma_semaphore, #tpu.memory_space<semaphore_mem>> -> memref<1x!tpu.dma_semaphore, #tpu.memory_space<semaphore_mem>>
      %68 = tpu.memref_squeeze %67 : memref<1x!tpu.dma_semaphore, #tpu.memory_space<semaphore_mem>> -> memref<!tpu.dma_semaphore, #tpu.memory_space<semaphore_mem>>
      tpu.enqueue_dma source(%arg4 : memref<1024x512xbf16, #tpu.memory_space<any>>) target(%arg16 : memref<1024x512xbf16, #tpu.memory_space<vmem>>) target_semaphore(%68 : memref<!tpu.dma_semaphore, #tpu.memory_space<semaphore_mem>>)
      %c1_i32 = arith.constant 1 : i32
      %69 = tpu.memref_slice %arg21[%c1_i32] : memref<5x!tpu.dma_semaphore, #tpu.memory_space<semaphore_mem>> -> memref<1x!tpu.dma_semaphore, #tpu.memory_space<semaphore_mem>>
      %70 = tpu.memref_squeeze %69 : memref<1x!tpu.dma_semaphore, #tpu.memory_space<semaphore_mem>> -> memref<!tpu.dma_semaphore, #tpu.memory_space<semaphore_mem>>
      tpu.enqueue_dma source(%arg6 : memref<512x512xbf16, #tpu.memory_space<any>>) target(%arg17 : memref<512x512xbf16, #tpu.memory_space<vmem>>) target_semaphore(%70 : memref<!tpu.dma_semaphore, #tpu.memory_space<semaphore_mem>>)
      %c2_i32 = arith.constant 2 : i32
      %71 = tpu.memref_slice %arg21[%c2_i32] : memref<5x!tpu.dma_semaphore, #tpu.memory_space<semaphore_mem>> -> memref<1x!tpu.dma_semaphore, #tpu.memory_space<semaphore_mem>>
      %72 = tpu.memref_squeeze %71 : memref<1x!tpu.dma_semaphore, #tpu.memory_space<semaphore_mem>> -> memref<!tpu.dma_semaphore, #tpu.memory_space<semaphore_mem>>
      tpu.enqueue_dma source(%arg8 : memref<512x256xbf16, #tpu.memory_space<any>>) target(%arg18 : memref<512x256xbf16, #tpu.memory_space<vmem>>) target_semaphore(%72 : memref<!tpu.dma_semaphore, #tpu.memory_space<semaphore_mem>>)
      %c3_i32 = arith.constant 3 : i32
      %73 = tpu.memref_slice %arg21[%c3_i32] : memref<5x!tpu.dma_semaphore, #tpu.memory_space<semaphore_mem>> -> memref<1x!tpu.dma_semaphore, #tpu.memory_space<semaphore_mem>>
      %74 = tpu.memref_squeeze %73 : memref<1x!tpu.dma_semaphore, #tpu.memory_space<semaphore_mem>> -> memref<!tpu.dma_semaphore, #tpu.memory_space<semaphore_mem>>
      tpu.enqueue_dma source(%arg10 : memref<256x256xbf16, #tpu.memory_space<any>>) target(%arg19 : memref<256x256xbf16, #tpu.memory_space<vmem>>) target_semaphore(%74 : memref<!tpu.dma_semaphore, #tpu.memory_space<semaphore_mem>>)
      %c4_i32 = arith.constant 4 : i32
      %75 = tpu.memref_slice %arg21[%c4_i32] : memref<5x!tpu.dma_semaphore, #tpu.memory_space<semaphore_mem>> -> memref<1x!tpu.dma_semaphore, #tpu.memory_space<semaphore_mem>>
      %76 = tpu.memref_squeeze %75 : memref<1x!tpu.dma_semaphore, #tpu.memory_space<semaphore_mem>> -> memref<!tpu.dma_semaphore, #tpu.memory_space<semaphore_mem>>
      tpu.enqueue_dma source(%arg12 : memref<1x256xbf16, #tpu.memory_space<any>>) target(%arg20 : memref<1x256xbf16, #tpu.memory_space<vmem>>) target_semaphore(%76 : memref<!tpu.dma_semaphore, #tpu.memory_space<semaphore_mem>>)
    } else {
    }
    %c0 = arith.constant 0 : index
    %c0_1 = arith.constant 0 : index
    %3 = vector.load %arg1[%c0, %c0_1] : memref<128x156xbf16, #tpu.memory_space<vmem>>, vector<128x156xbf16>
    %c0_2 = arith.constant 0 : index
    %c0_3 = arith.constant 0 : index
    %4 = vector.load %arg15[%c0_2, %c0_3] : memref<128x256xbf16, #tpu.memory_space<vmem>>, vector<128x156xbf16>
    tpu.vector_store %arg15[%c0_2, %c0_3], %3 {strides = array<i32>} : memref<128x256xbf16, #tpu.memory_space<vmem>>, vector<128x156xbf16>,
    %c0_4 = arith.constant 0 : index
    %c0_5 = arith.constant 0 : index
    %5 = vector.load %arg15[%c0_4, %c0_5] : memref<128x256xbf16, #tpu.memory_space<vmem>>, vector<128x256xbf16>
    %c0_6 = arith.constant 0 : index
    %c0_7 = arith.constant 0 : index
    %6 = vector.load %arg2[%c0_6, %c0_7] : memref<256x1024xbf16, #tpu.memory_space<vmem>>, vector<256x1024xbf16>
    %cst = arith.constant dense<0.000000e+00> : vector<128x1024xf32>
    %7 = tpu.matmul %5, %6, %cst {dimension_numbers = #tpu.dot_dimension_numbers<[1], [0], [0], [1], [0, 0, 1, 1], [], []>} : vector<128x256xbf16>, vector<256x1024xbf16>, vector<128x1024xf32> -> vector<128x1024xf32>
    %c0_8 = arith.constant 0 : index
    %c0_9 = arith.constant 0 : index
    %8 = vector.load %arg3[%c0_8, %c0_9] : memref<1x1024xf32, #tpu.memory_space<vmem>>, vector<1x1024xf32>
    %9 = vector.broadcast %8 : vector<1x1024xf32> to vector<128x1024xf32>
    %10 = arith.addf %7, %9 : vector<128x1024xf32>
    %cst_10 = arith.constant 0.000000e+00 : f32
    %11 = vector.broadcast %cst_10 : f32 to vector<128x1024xf32>
    %12 = arith.maximumf %10, %11 : vector<128x1024xf32>
    %13 = arith.truncf %12 : vector<128x1024xf32> to vector<128x1024xbf16>
    %14 = arith.extui %0 : i1 to i32
    %c0_i32_11 = arith.constant 0 : i32
    %15 = arith.cmpi ne, %14, %c0_i32_11 : i32
    scf.if %15 {
      %c0_i32_47 = arith.constant 0 : i32
      %65 = tpu.memref_slice %arg21[%c0_i32_47] : memref<5x!tpu.dma_semaphore, #tpu.memory_space<semaphore_mem>> -> memref<1x!tpu.dma_semaphore, #tpu.memory_space<semaphore_mem>>
      %66 = tpu.memref_squeeze %65 : memref<1x!tpu.dma_semaphore, #tpu.memory_space<semaphore_mem>> -> memref<!tpu.dma_semaphore, #tpu.memory_space<semaphore_mem>>
      tpu.wait_dma2 semaphore(%66 : memref<!tpu.dma_semaphore, #tpu.memory_space<semaphore_mem>>) src(%arg4 : memref<1024x512xbf16, #tpu.memory_space<any>>) dst(%arg16 : memref<1024x512xbf16, #tpu.memory_space<vmem>>)
    } else {
    }
    %c0_12 = arith.constant 0 : index
    %c0_13 = arith.constant 0 : index
    %16 = vector.load %arg16[%c0_12, %c0_13] : memref<1024x512xbf16, #tpu.memory_space<vmem>>, vector<1024x512xbf16>
    %cst_14 = arith.constant dense<0.000000e+00> : vector<128x512xf32>
    %17 = tpu.matmul %13, %16, %cst_14 {dimension_numbers = #tpu.dot_dimension_numbers<[1], [0], [0], [1], [0, 0, 1, 1], [], []>} : vector<128x1024xbf16>, vector<1024x512xbf16>, vector<128x512xf32> -> vector<128x512xf32>
    %c0_15 = arith.constant 0 : index
    %c0_16 = arith.constant 0 : index
    %18 = vector.load %arg5[%c0_15, %c0_16] : memref<1x512xf32, #tpu.memory_space<vmem>>, vector<1x512xf32>
    %19 = vector.broadcast %18 : vector<1x512xf32> to vector<128x512xf32>
    %20 = arith.addf %17, %19 : vector<128x512xf32>
    %cst_17 = arith.constant 0.000000e+00 : f32
    %21 = vector.broadcast %cst_17 : f32 to vector<128x512xf32>
    %22 = arith.maximumf %20, %21 : vector<128x512xf32>
    %23 = arith.truncf %22 : vector<128x512xf32> to vector<128x512xbf16>
    %24 = arith.extui %0 : i1 to i32
    %c0_i32_18 = arith.constant 0 : i32
    %25 = arith.cmpi ne, %24, %c0_i32_18 : i32
    scf.if %25 {
      %c1_i32 = arith.constant 1 : i32
      %65 = tpu.memref_slice %arg21[%c1_i32] : memref<5x!tpu.dma_semaphore, #tpu.memory_space<semaphore_mem>> -> memref<1x!tpu.dma_semaphore, #tpu.memory_space<semaphore_mem>>
      %66 = tpu.memref_squeeze %65 : memref<1x!tpu.dma_semaphore, #tpu.memory_space<semaphore_mem>> -> memref<!tpu.dma_semaphore, #tpu.memory_space<semaphore_mem>>
      tpu.wait_dma2 semaphore(%66 : memref<!tpu.dma_semaphore, #tpu.memory_space<semaphore_mem>>) src(%arg6 : memref<512x512xbf16, #tpu.memory_space<any>>) dst(%arg17 : memref<512x512xbf16, #tpu.memory_space<vmem>>)
    } else {
    }
    %c0_19 = arith.constant 0 : index
    %c0_20 = arith.constant 0 : index
    %26 = vector.load %arg17[%c0_19, %c0_20] : memref<512x512xbf16, #tpu.memory_space<vmem>>, vector<512x512xbf16>
    %cst_21 = arith.constant dense<0.000000e+00> : vector<128x512xf32>
    %27 = tpu.matmul %23, %26, %cst_21 {dimension_numbers = #tpu.dot_dimension_numbers<[1], [0], [0], [1], [0, 0, 1, 1], [], []>} : vector<128x512xbf16>, vector<512x512xbf16>, vector<128x512xf32> -> vector<128x512xf32>
    %c0_22 = arith.constant 0 : index
    %c0_23 = arith.constant 0 : index
    %28 = vector.load %arg7[%c0_22, %c0_23] : memref<1x512xf32, #tpu.memory_space<vmem>>, vector<1x512xf32>
    %29 = vector.broadcast %28 : vector<1x512xf32> to vector<128x512xf32>
    %30 = arith.addf %27, %29 : vector<128x512xf32>
    %cst_24 = arith.constant 0.000000e+00 : f32
    %31 = vector.broadcast %cst_24 : f32 to vector<128x512xf32>
    %32 = arith.maximumf %30, %31 : vector<128x512xf32>
    %33 = arith.truncf %32 : vector<128x512xf32> to vector<128x512xbf16>
    %34 = arith.extui %0 : i1 to i32
    %c0_i32_25 = arith.constant 0 : i32
    %35 = arith.cmpi ne, %34, %c0_i32_25 : i32
    scf.if %35 {
      %c2_i32 = arith.constant 2 : i32
      %65 = tpu.memref_slice %arg21[%c2_i32] : memref<5x!tpu.dma_semaphore, #tpu.memory_space<semaphore_mem>> -> memref<1x!tpu.dma_semaphore, #tpu.memory_space<semaphore_mem>>
      %66 = tpu.memref_squeeze %65 : memref<1x!tpu.dma_semaphore, #tpu.memory_space<semaphore_mem>> -> memref<!tpu.dma_semaphore, #tpu.memory_space<semaphore_mem>>
      tpu.wait_dma2 semaphore(%66 : memref<!tpu.dma_semaphore, #tpu.memory_space<semaphore_mem>>) src(%arg8 : memref<512x256xbf16, #tpu.memory_space<any>>) dst(%arg18 : memref<512x256xbf16, #tpu.memory_space<vmem>>)
    } else {
    }
    %c0_26 = arith.constant 0 : index
    %c0_27 = arith.constant 0 : index
    %36 = vector.load %arg18[%c0_26, %c0_27] : memref<512x256xbf16, #tpu.memory_space<vmem>>, vector<512x256xbf16>
    %cst_28 = arith.constant dense<0.000000e+00> : vector<128x256xf32>
    %37 = tpu.matmul %33, %36, %cst_28 {dimension_numbers = #tpu.dot_dimension_numbers<[1], [0], [0], [1], [0, 0, 1, 1], [], []>} : vector<128x512xbf16>, vector<512x256xbf16>, vector<128x256xf32> -> vector<128x256xf32>
    %c0_29 = arith.constant 0 : index
    %c0_30 = arith.constant 0 : index
    %38 = vector.load %arg9[%c0_29, %c0_30] : memref<1x256xf32, #tpu.memory_space<vmem>>, vector<1x256xf32>
    %39 = vector.broadcast %38 : vector<1x256xf32> to vector<128x256xf32>
    %40 = arith.addf %37, %39 : vector<128x256xf32>
    %cst_31 = arith.constant 0.000000e+00 : f32
    %41 = vector.broadcast %cst_31 : f32 to vector<128x256xf32>
    %42 = arith.maximumf %40, %41 : vector<128x256xf32>
    %43 = arith.truncf %42 : vector<128x256xf32> to vector<128x256xbf16>
    %44 = arith.extui %0 : i1 to i32
    %c0_i32_32 = arith.constant 0 : i32
    %45 = arith.cmpi ne, %44, %c0_i32_32 : i32
    scf.if %45 {
      %c3_i32 = arith.constant 3 : i32
      %65 = tpu.memref_slice %arg21[%c3_i32] : memref<5x!tpu.dma_semaphore, #tpu.memory_space<semaphore_mem>> -> memref<1x!tpu.dma_semaphore, #tpu.memory_space<semaphore_mem>>
      %66 = tpu.memref_squeeze %65 : memref<1x!tpu.dma_semaphore, #tpu.memory_space<semaphore_mem>> -> memref<!tpu.dma_semaphore, #tpu.memory_space<semaphore_mem>>
      tpu.wait_dma2 semaphore(%66 : memref<!tpu.dma_semaphore, #tpu.memory_space<semaphore_mem>>) src(%arg10 : memref<256x256xbf16, #tpu.memory_space<any>>) dst(%arg19 : memref<256x256xbf16, #tpu.memory_space<vmem>>)
    } else {
    }
    %c0_33 = arith.constant 0 : index
    %c0_34 = arith.constant 0 : index
    %46 = vector.load %arg19[%c0_33, %c0_34] : memref<256x256xbf16, #tpu.memory_space<vmem>>, vector<256x256xbf16>
    %cst_35 = arith.constant dense<0.000000e+00> : vector<128x256xf32>
    %47 = tpu.matmul %43, %46, %cst_35 {dimension_numbers = #tpu.dot_dimension_numbers<[1], [0], [0], [1], [0, 0, 1, 1], [], []>} : vector<128x256xbf16>, vector<256x256xbf16>, vector<128x256xf32> -> vector<128x256xf32>
    %c0_36 = arith.constant 0 : index
    %c0_37 = arith.constant 0 : index
    %48 = vector.load %arg11[%c0_36, %c0_37] : memref<1x256xf32, #tpu.memory_space<vmem>>, vector<1x256xf32>
    %49 = vector.broadcast %48 : vector<1x256xf32> to vector<128x256xf32>
    %50 = arith.addf %47, %49 : vector<128x256xf32>
    %cst_38 = arith.constant 0.000000e+00 : f32
    %51 = vector.broadcast %cst_38 : f32 to vector<128x256xf32>
    %52 = arith.maximumf %50, %51 : vector<128x256xf32>
    %53 = arith.extui %0 : i1 to i32
    %c0_i32_39 = arith.constant 0 : i32
    %54 = arith.cmpi ne, %53, %c0_i32_39 : i32
    scf.if %54 {
      %c4_i32 = arith.constant 4 : i32
      %65 = tpu.memref_slice %arg21[%c4_i32] : memref<5x!tpu.dma_semaphore, #tpu.memory_space<semaphore_mem>> -> memref<1x!tpu.dma_semaphore, #tpu.memory_space<semaphore_mem>>
      %66 = tpu.memref_squeeze %65 : memref<1x!tpu.dma_semaphore, #tpu.memory_space<semaphore_mem>> -> memref<!tpu.dma_semaphore, #tpu.memory_space<semaphore_mem>>
      tpu.wait_dma2 semaphore(%66 : memref<!tpu.dma_semaphore, #tpu.memory_space<semaphore_mem>>) src(%arg12 : memref<1x256xbf16, #tpu.memory_space<any>>) dst(%arg20 : memref<1x256xbf16, #tpu.memory_space<vmem>>)
    } else {
    }
    %c0_40 = arith.constant 0 : index
    %c0_41 = arith.constant 0 : index
    %55 = vector.load %arg20[%c0_40, %c0_41] : memref<1x256xbf16, #tpu.memory_space<vmem>>, vector<1x256xbf16>
    %56 = arith.extf %55 : vector<1x256xbf16> to vector<1x256xf32>
    %57 = vector.broadcast %56 : vector<1x256xf32> to vector<128x256xf32>
    %58 = arith.mulf %52, %57 : vector<128x256xf32>
    %cst_42 = arith.constant dense<0.000000e+00> : vector<128xf32>
    %59 = vector.multi_reduction <add>, %58, %cst_42 [1] : vector<128x256xf32> to vector<128xf32>
    %60 = vector.shape_cast %59 : vector<128xf32> to vector<128x1xf32>
    %c0_43 = arith.constant 0 : index
    %c0_44 = arith.constant 0 : index
    %61 = vector.load %arg13[%c0_43, %c0_44] : memref<1x1xf32, #tpu.memory_space<vmem>>, vector<1x1xf32>
    %62 = vector.broadcast %61 : vector<1x1xf32> to vector<128x1xf32>
    %63 = arith.addf %60, %62 : vector<128x1xf32>
    %c0_45 = arith.constant 0 : index
    %c0_46 = arith.constant 0 : index
    %64 = vector.load %arg14[%c0_45, %c0_46] : memref<128x1xf32, #tpu.memory_space<vmem>>, vector<128x1xf32>
    tpu.vector_store %arg14[%c0_45, %c0_46], %63 {strides = array<i32>} : memref<128x1xf32, #tpu.memory_space<vmem>>, vector<128x1xf32>,
    return
  }
  func.func @transform_0(%arg0: i32) -> (i32, i32) {
    %c0_i32 = arith.constant 0 : i32
    %c0_i32_0 = arith.constant 0 : i32
    return %arg0, %c0_i32 : i32, i32
  }
  func.func @transform_1(%arg0: i32) -> (i32, i32) {
    %c0_i32 = arith.constant 0 : i32
    %c0_i32_0 = arith.constant 0 : i32
    %c0_i32_1 = arith.constant 0 : i32
    return %c0_i32, %c0_i32_0 : i32, i32
  }
  func.func @transform_2(%arg0: i32) -> (i32, i32) {
    %c0_i32 = arith.constant 0 : i32
    %c0_i32_0 = arith.constant 0 : i32
    %c0_i32_1 = arith.constant 0 : i32
    return %c0_i32, %c0_i32_0 : i32, i32
  }
  func.func @transform_4(%arg0: i32) -> (i32, i32) {
    %c0_i32 = arith.constant 0 : i32
    %c0_i32_0 = arith.constant 0 : i32
    %c0_i32_1 = arith.constant 0 : i32
    return %c0_i32, %c0_i32_0 : i32, i32
  }
  func.func @transform_6(%arg0: i32) -> (i32, i32) {
    %c0_i32 = arith.constant 0 : i32
    %c0_i32_0 = arith.constant 0 : i32
    %c0_i32_1 = arith.constant 0 : i32
    return %c0_i32, %c0_i32_0 : i32, i32
  }
  func.func @transform_8(%arg0: i32) -> (i32, i32) {
    %c0_i32 = arith.constant 0 : i32
    %c0_i32_0 = arith.constant 0 : i32
    %c0_i32_1 = arith.constant 0 : i32
    return %c0_i32, %c0_i32_0 : i32, i32
  }
  func.func @transform_10(%arg0: i32) -> (i32, i32) {
    %c0_i32 = arith.constant 0 : i32
    %c0_i32_0 = arith.constant 0 : i32
    %c0_i32_1 = arith.constant 0 : i32
    return %c0_i32, %c0_i32_0 : i32, i32
  }
  func.func @transform_12(%arg0: i32) -> (i32, i32) {
    %c0_i32 = arith.constant 0 : i32
    %c0_i32_0 = arith.constant 0 : i32
    %c0_i32_1 = arith.constant 0 : i32
    return %c0_i32, %c0_i32_0 : i32, i32
  }
  func.func @transform_13(%arg0: i32) -> (i32, i32) {
    %c0_i32 = arith.constant 0 : i32
    %c0_i32_0 = arith.constant 0 : i32
    return %arg0, %c0_i32 : i32, i32
  }
}

</mosaic_0001>

<llo_original>
// kernel: tpu_custom_call.1
$region0: #{tpu_custom_call.1}
  #allocation0 [shape = 'u32[]', space=smem, size = 0x4, offset = 0x4, fixed_abs, tag = 'smem constant byte address 0x4 - core index']
  #allocation1 [shape = 'u32[144,128]{1,0:T(1,128)}', space=vmem, size = 0x12000, scoped, tag = 'internal scratch']
  #allocation2 [shape = 'bf16[128,256]{1,0:T(8,128)(2,1)}', space=vmem, size = 0x10000, scoped, tag = 'scratch operand']
  #allocation3 [shape = 'bf16[1024,512]{1,0:T(8,128)(2,1)}', space=vmem, size = 0x100000, scoped, tag = 'scratch operand']
  #allocation4 [shape = 'bf16[512,512]{1,0:T(8,128)(2,1)}', space=vmem, size = 0x80000, scoped, tag = 'scratch operand']
  #allocation5 [shape = 'bf16[512,256]{1,0:T(8,128)(2,1)}', space=vmem, size = 0x40000, scoped, tag = 'scratch operand']
  #allocation6 [shape = 'bf16[256,256]{1,0:T(8,128)(2,1)}', space=vmem, size = 0x20000, scoped, tag = 'scratch operand']
  #allocation7 [shape = 'bf16[1,256]{1,0:T(2,128)(2,1)}', space=vmem, size = 0x400, scoped, tag = 'scratch operand']
  #allocation8 [shape = 's32[5]{0}', space=sflag, size = 0x14, scoped, tag = 'scratch operand']
  #allocation9 [shape = 'f32[1,1]{1,0:T(1,128)S(1)}', space=vmem, size = 0x200, scoped, tag = 'scoped memory for tpu_custom_call.1']
  #allocation16 [shape = 's32[]', space=sflag, size = 0x4, offset = 0, fixed_abs, tag = 'sflag constant byte address 0x0 - dummy sync flag']
  #allocation17 [shape = 's32[]', space=sflag, size = 0x4, offset = 0, fixed_abs, tag = 'sflag constant byte address 0x0 - dummy sync flag']
  #allocation18 [shape = 'u32[]', space=smem, size = 0x4, offset = 0x44, fixed_abs, tag = 'smem constant byte address 0x44 - assertion arg 0']
  #allocation19 [shape = 'u32[]', space=smem, size = 0x4, offset = 0x48, fixed_abs, tag = 'smem constant byte address 0x48 - assertion arg 1']
  #allocation20 [shape = 's32[]', space=sflag, size = 0x4, offset = 0, fixed_abs, tag = 'sflag constant byte address 0x0 - dummy sync flag']
  #allocation21 [shape = 's32[]', space=sflag, size = 0x4, offset = 0, fixed_abs, tag = 'sflag constant byte address 0x0 - dummy sync flag']
  #allocation22 [shape = 's32[]', space=sflag, size = 0x4, offset = 0, fixed_abs, tag = 'sflag constant byte address 0x0 - dummy sync flag']
  #allocation23 [shape = 's32[]', space=sflag, size = 0x4, offset = 0, fixed_abs, tag = 'sflag constant byte address 0x0 - dummy sync flag']
  #allocation24 [shape = 's32[]', space=sflag, size = 0x4, offset = 0, fixed_abs, tag = 'sflag constant byte address 0x0 - dummy sync flag']
  #allocation25 [shape = 's32[]', space=sflag, size = 0x4, offset = 0, fixed_abs, tag = 'sflag constant byte address 0x0 - dummy sync flag']
  #allocation26 [shape = 's32[]', space=sflag, size = 0x4, offset = 0, fixed_abs, tag = 'sflag constant byte address 0x0 - dummy sync flag']
  %s0 = inlined_call_operand.hbm [shape: bf16[2,156], index: 0, kind: input, shape index: {}]
  %s1 = inlined_call_operand.hbm [shape: bf16[256,1024], index: 1, kind: input, shape index: {}]
  %s2 = inlined_call_operand.hbm [shape: f32[1,1024], index: 2, kind: input, shape index: {}]
  %s3 = inlined_call_operand.hbm [shape: bf16[1024,512], index: 3, kind: input, shape index: {}]
  %s4 = inlined_call_operand.vmem [shape: f32[1,512], index: 4, kind: input, shape index: {}]
  %s5 = inlined_call_operand.hbm [shape: bf16[512,512], index: 5, kind: input, shape index: {}]
  %s6 = inlined_call_operand.vmem [shape: f32[1,512], index: 6, kind: input, shape index: {}]
  %s7 = inlined_call_operand.hbm [shape: bf16[512,256], index: 7, kind: input, shape index: {}]
  %s8 = inlined_call_operand.vmem [shape: f32[1,256], index: 8, kind: input, shape index: {}]
  %s9 = inlined_call_operand.hbm [shape: bf16[256,256], index: 9, kind: input, shape index: {}]
  %s10 = inlined_call_operand.vmem [shape: f32[1,256], index: 10, kind: input, shape index: {}]
  %s11 = inlined_call_operand.vmem [shape: bf16[1,256], index: 11, kind: input, shape index: {}]
  %s12 = inlined_call_operand.<no memory space> [shape: f32[1,1], index: 12, kind: input, shape index: {}]
  %s13 = inlined_call_operand.vmem [shape: f32[2,1], index: 13, kind: output, shape index: {}]
  %s14 = sld [smem:[#allocation0]]
  $region154: #{tpu_custom_call.1} parent=0
    _
  %s16 = ssub.s32 1, %s14
  %s17 = scalar_select 0, %s16, %s14
  %v18 = vstv %s12
  %19 = vst [vmem:[#allocation9] sm:$0x1] %v18
  $region1: #{tpu_custom_call.1} parent=0
    #allocation10 [shape = 'u8[65536]{0}', space=vmem, size = 0x10000, scoped, tag = 'input window, operand 0, single buffered']
    #allocation11 [shape = 's32[1]{0}', space=sflag, size = 0x4, scoped, tag = 'scoped memory for tpu_custom_call.1']
    #allocation12 [shape = 'u8[524288]{0}', space=vmem, size = 0x80000, scoped, tag = 'input window, operand 1, single buffered']
    #allocation13 [shape = 's32[1]{0}', space=sflag, size = 0x4, scoped, tag = 'scoped memory for tpu_custom_call.1']
    #allocation14 [shape = 'u8[4096]{0}', space=vmem, size = 0x1000, scoped, tag = 'input window, operand 2, single buffered']
    #allocation15 [shape = 'u8[65536]{0}', space=vmem, size = 0x10000, scoped, tag = 'output window, operand 0, single buffered']
    %20 = vsyncpa [#allocation11], 0
    %21 = vsyncpa [#allocation13], 0
    // Predicated region
    $region2: #{tpu_custom_call.1} parent=1 // pred_check
      _
    $region3: #{tpu_custom_call.1} parent=1 // pred_check_branch
      %23 = sbr.rel (0) target = $region5
    $region4: #{tpu_custom_call.1} parent=1 // pred_region
      %s25 = ssub.s32 2048, 32
      %26 = vsyncadd [#allocation11], %s25
      %s27 = sshll.u32 [#allocation10], 4
      %s28 = int_to_ptr.vmem [resolvable:$true] %s27
      %33 = dma.hbm_to_vmem [thread:$0]  %s0, 32, %s28, [#allocation11], 32, 32, 2
    $region5: #{tpu_custom_call.1} parent=1 // pred_fallthru
      _
    // Predicated region
    $region6: #{tpu_custom_call.1} parent=1 // pred_check
      _
    $region7: #{tpu_custom_call.1} parent=1 // pred_check_branch
      %35 = sbr.rel (0) target = $region9
    $region8: #{tpu_custom_call.1} parent=1 // pred_region
      %s37 = ssub.s32 16384, 16384
      %38 = vsyncadd [#allocation13], %s37
      %s39 = sshll.u32 [#allocation12], 4
      %s40 = int_to_ptr.vmem [resolvable:$true] %s39
      %45 = dma.hbm_to_vmem [thread:$0]  %s1, 16384, %s40, [#allocation13], 512, 512, 32
    $region9: #{tpu_custom_call.1} parent=1 // pred_fallthru
      _
    // Predicated region
    $region10: #{tpu_custom_call.1} parent=1 // pred_check
      _
    $region11: #{tpu_custom_call.1} parent=1 // pred_check_branch
      %47 = sbr.rel (0) target = $region13
    $region12: #{tpu_custom_call.1} parent=1 // pred_region
      %s49 = ssub.s32 128, 128
      %50 = vsyncadd [#allocation13], %s49
      %s52 = sshll.u32 [#allocation14], 4
      %s53 = int_to_ptr.vmem [resolvable:$true] %s52
      %55 = dma.hbm_to_vmem [thread:$0]  %s2, 128, %s53, [#allocation13]
    $region13: #{tpu_custom_call.1} parent=1 // pred_fallthru
      _
    // Predicated region
    $region14: #{tpu_custom_call.1} parent=1 // pred_check
      _
    $region15: #{tpu_custom_call.1} parent=1 // pred_check_branch
      %57 = sbr.rel (0) target = $region17
    $region16: #{tpu_custom_call.1} parent=1 // pred_region
      _
    $region17: #{tpu_custom_call.1} parent=1 // pred_fallthru
      _
    // Predicated region
    $region18: #{tpu_custom_call.1} parent=1 // pred_check
      _
    $region19: #{tpu_custom_call.1} parent=1 // pred_check_branch
      %59 = sbr.rel (0) target = $region21
    $region20: #{tpu_custom_call.1} parent=1 // pred_region
      _
    $region21: #{tpu_custom_call.1} parent=1 // pred_fallthru
      _
    // Predicated region
    $region22: #{tpu_custom_call.1} parent=1 // pred_check
      _
    $region23: #{tpu_custom_call.1} parent=1 // pred_check_branch
      %61 = sbr.rel (0) target = $region25
    $region24: #{tpu_custom_call.1} parent=1 // pred_region
      _
    $region25: #{tpu_custom_call.1} parent=1 // pred_fallthru
      _
    // Predicated region
    $region26: #{tpu_custom_call.1} parent=1 // pred_check
      _
    $region27: #{tpu_custom_call.1} parent=1 // pred_check_branch
      %63 = sbr.rel (0) target = $region29
    $region28: #{tpu_custom_call.1} parent=1 // pred_region
      _
    $region29: #{tpu_custom_call.1} parent=1 // pred_fallthru
      _
    // Predicated region
    $region30: #{tpu_custom_call.1} parent=1 // pred_check
      _
    $region31: #{tpu_custom_call.1} parent=1 // pred_check_branch
      %65 = sbr.rel (0) target = $region33
    $region32: #{tpu_custom_call.1} parent=1 // pred_region
      _
    $region33: #{tpu_custom_call.1} parent=1 // pred_fallthru
      _
    // Predicated region
    $region34: #{tpu_custom_call.1} parent=1 // pred_check
      _
    $region35: #{tpu_custom_call.1} parent=1 // pred_check_branch
      %67 = sbr.rel (0) target = $region37
    $region36: #{tpu_custom_call.1} parent=1 // pred_region
      %68 = dma.done [#allocation11], 2048
    $region37: #{tpu_custom_call.1} parent=1 // pred_fallthru
      _
    // Predicated region
    $region38: #{tpu_custom_call.1} parent=1 // pred_check
      _
    $region39: #{tpu_custom_call.1} parent=1 // pred_check_branch
      %70 = sbr.rel (0) target = $region41
    $region40: #{tpu_custom_call.1} parent=1 // pred_region
      %71 = dma.done [#allocation13], 16384
    $region41: #{tpu_custom_call.1} parent=1 // pred_fallthru
      _
    // Predicated region
    $region42: #{tpu_custom_call.1} parent=1 // pred_check
      _
    $region43: #{tpu_custom_call.1} parent=1 // pred_check_branch
      %73 = sbr.rel (0) target = $region45
    $region44: #{tpu_custom_call.1} parent=1 // pred_region
      %74 = dma.done [#allocation13], 128
    $region45: #{tpu_custom_call.1} parent=1 // pred_fallthru
      _
    %p76 = scmp.eq.s32.totalorder 0, 0
    // Predicated region
    $region46: #{tpu_custom_call.1} parent=1 // pred_check
      %p77 = pneg %p76
    $region47: #{tpu_custom_call.1} parent=1 // pred_check_branch
      %79 = sbr.rel (%p77) target = $region49
    $region48: #{tpu_custom_call.1} parent=1 // pred_region
      %80 = vst [vmem:[#allocation2] sm:$0xff] 0
      %81 = vst [vmem:[#allocation2 + $0x8] sm:$0xff] 0
      %82 = vst [vmem:[#allocation2 + $0x10] sm:$0xff] 0
      %83 = vst [vmem:[#allocation2 + $0x18] sm:$0xff] 0
      %84 = vst [vmem:[#allocation2 + $0x20] sm:$0xff] 0
      %85 = vst [vmem:[#allocation2 + $0x28] sm:$0xff] 0
      %86 = vst [vmem:[#allocation2 + $0x30] sm:$0xff] 0
      %87 = vst [vmem:[#allocation2 + $0x38] sm:$0xff] 0
      %88 = vst [vmem:[#allocation2 + $0x40] sm:$0xff] 0
      %89 = vst [vmem:[#allocation2 + $0x48] sm:$0xff] 0
      %90 = vst [vmem:[#allocation2 + $0x50] sm:$0xff] 0
      %91 = vst [vmem:[#allocation2 + $0x58] sm:$0xff] 0
      %92 = vst [vmem:[#allocation2 + $0x60] sm:$0xff] 0
      %93 = vst [vmem:[#allocation2 + $0x68] sm:$0xff] 0
      %94 = vst [vmem:[#allocation2 + $0x70] sm:$0xff] 0
      %95 = vst [vmem:[#allocation2 + $0x78] sm:$0xff] 0
      // Predicated region
      $region50: #{tpu_custom_call.1} parent=48 // pred_check
        _
      $region51: #{tpu_custom_call.1} parent=48 // pred_check_branch
        %97 = sbr.rel target = $region53
      $region52: #{tpu_custom_call.1} parent=48 // pred_region
        %98 = sst [smem:[#allocation18]] [#allocation17]
        %99 = sst [smem:[#allocation19]] [#allocation16]
      $region53: #{tpu_custom_call.1} parent=48 // pred_fallthru
        _
      %101 = shalt.err (0)
      %s103 = sshll.u32 [#allocation3], 4
      %s104 = int_to_ptr.vmem [resolvable:$true] %s103
      %106 = dma.hbm_to_vmem [thread:$0]  %s3, 32768, %s104, [#allocation8]
      %s107 = scalar_lea.sflag [#allocation8], 1
      // Predicated region
      $region54: #{tpu_custom_call.1} parent=48 // pred_check
        _
      $region55: #{tpu_custom_call.1} parent=48 // pred_check_branch
        %109 = sbr.rel target = $region57
      $region56: #{tpu_custom_call.1} parent=48 // pred_region
        %110 = sst [smem:[#allocation18]] [#allocation21]
        %111 = sst [smem:[#allocation19]] [#allocation20]
      $region57: #{tpu_custom_call.1} parent=48 // pred_fallthru
        _
      %113 = shalt.err (0)
      %s115 = sshll.u32 [#allocation4], 4
      %s116 = int_to_ptr.vmem [resolvable:$true] %s115
      %118 = dma.hbm_to_vmem [thread:$0]  %s5, 16384, %s116, %s107
      %s119 = scalar_lea.sflag [#allocation8], 2
      // Predicated region
      $region58: #{tpu_custom_call.1} parent=48 // pred_check
        _
      $region59: #{tpu_custom_call.1} parent=48 // pred_check_branch
        %121 = sbr.rel target = $region61
      $region60: #{tpu_custom_call.1} parent=48 // pred_region
        %122 = sst [smem:[#allocation18]] [#allocation23]
        %123 = sst [smem:[#allocation19]] [#allocation22]
      $region61: #{tpu_custom_call.1} parent=48 // pred_fallthru
        _
      %125 = shalt.err (0)
      %s127 = sshll.u32 [#allocation5], 4
      %s128 = int_to_ptr.vmem [resolvable:$true] %s127
      %130 = dma.hbm_to_vmem [thread:$0]  %s7, 8192, %s128, %s119
      %s131 = scalar_lea.sflag [#allocation8], 3
      // Predicated region
      $region62: #{tpu_custom_call.1} parent=48 // pred_check
        _
      $region63: #{tpu_custom_call.1} parent=48 // pred_check_branch
        %133 = sbr.rel target = $region65
      $region64: #{tpu_custom_call.1} parent=48 // pred_region
        %134 = sst [smem:[#allocation18]] [#allocation25]
        %135 = sst [smem:[#allocation19]] [#allocation24]
      $region65: #{tpu_custom_call.1} parent=48 // pred_fallthru
        _
      %137 = shalt.err (0)
      %s139 = sshll.u32 [#allocation6], 4
      %s140 = int_to_ptr.vmem [resolvable:$true] %s139
      %142 = dma.hbm_to_vmem [thread:$0]  %s9, 4096, %s140, %s131
      %s143 = scalar_lea.sflag [#allocation8], 4
      %p145 = scmp.lt.u32.totalorder 2, 8
      %p146 = pneg %p145
      // Predicated region
      $region66: #{tpu_custom_call.1} parent=48 // pred_check
        _
      $region67: #{tpu_custom_call.1} parent=48 // pred_check_branch
        %148 = sbr.rel (%p145) target = $region69
      $region68: #{tpu_custom_call.1} parent=48 // pred_region
        %s164 = sand.u32 2, 7
        %p165 = scmp.eq.s32.totalorder %s164, 0
        %p166 = pneg %p165
        // Predicated region
        $region81: #{tpu_custom_call.1} parent=68 // pred_check
          _
        $region82: #{tpu_custom_call.1} parent=68 // pred_check_branch
          %168 = sbr.rel (%p165) target = $region84
        $region83: #{tpu_custom_call.1} parent=68 // pred_region
          %s169 = sand.u32 2, 7
          %s170 = ssub.s32 2, %s169
          %s171 = scalar_lea.vmem %s11, %s170
          %s172 = ssub.s32 2, %s169
          %s173 = scalar_lea.vmem [#allocation7], %s172
          %s174 = sshll.u32 1, %s169
          %s175 = ssub.s32 %s174, 1
          loop: start=0, step=1, limit=1
          $region85: #{tpu_custom_call.1} parent=83 // loop_pre_header
            _
          $region86: #{tpu_custom_call.1} parent=83 // loop_header
            %s177 = sphi 0, %s181
            %p178 = scmp.ge.s32.totalorder %s177, 1
            %s182 = sphi %s171, %s171
            %s183 = sphi %s173, %s173
          $region87: #{tpu_custom_call.1} parent=83 // loop_header_branch
            %180 = sbr.rel (%p178) target = $region91
          $region88: #{tpu_custom_call.1} parent=83 // loop_body
            %v184 = vld [vmem:[%s182] sm:%s175]
            %185 = vst [vmem:[%s183] sm:%s175] %v184
          $region89: #{tpu_custom_call.1} parent=83 // loop_footer
            %s181 = sadd.s32 1, %s177
          $region90: #{tpu_custom_call.1} parent=83 // loop_footer_branch
            %176 = sbr.rel target = $region86
          $region91: #{tpu_custom_call.1} parent=83 // loop_exit
            _
        $region84: #{tpu_custom_call.1} parent=68 // pred_fallthru
          _
      $region69: #{tpu_custom_call.1} parent=48 // pred_fallthru
        _
      // Predicated region
      $region70: #{tpu_custom_call.1} parent=48 // pred_check
        %p149 = pneg %p145
      $region71: #{tpu_custom_call.1} parent=48 // pred_check_branch
        %151 = sbr.rel (%p149) target = $region73
      $region72: #{tpu_custom_call.1} parent=48 // pred_region
        %s152 = sshll.u32 1, 2
        %s153 = ssub.s32 %s152, 1
        loop: start=0, step=1, limit=1
        $region74: #{tpu_custom_call.1} parent=72 // loop_pre_header
          _
        $region75: #{tpu_custom_call.1} parent=72 // loop_header
          %s155 = sphi 0, %s159
          %p156 = scmp.ge.s32.totalorder %s155, 1
          %s160 = sphi %s11, %s11
          %s161 = sphi [#allocation7], [#allocation7]
        $region76: #{tpu_custom_call.1} parent=72 // loop_header_branch
          %158 = sbr.rel (%p156) target = $region80
        $region77: #{tpu_custom_call.1} parent=72 // loop_body
          %v162 = vld [vmem:[%s160] sm:%s153]
          %163 = vst [vmem:[%s161] sm:%s153] %v162
        $region78: #{tpu_custom_call.1} parent=72 // loop_footer
          %s159 = sadd.s32 1, %s155
        $region79: #{tpu_custom_call.1} parent=72 // loop_footer_branch
          %154 = sbr.rel target = $region75
        $region80: #{tpu_custom_call.1} parent=72 // loop_exit
          _
      $region73: #{tpu_custom_call.1} parent=48 // pred_fallthru
        _
      // Predicated region
      $region92: #{tpu_custom_call.1} parent=48 // pred_check
        _
      $region93: #{tpu_custom_call.1} parent=48 // pred_check_branch
        %188 = sbr.rel (0) target = $region95
      $region94: #{tpu_custom_call.1} parent=48 // pred_region
        %189 = vsyncadd %s143, 32
      $region95: #{tpu_custom_call.1} parent=48 // pred_fallthru
        _
    $region49: #{tpu_custom_call.1} parent=1 // pred_fallthru
      _
    %v190 = vld [vmem:[#allocation10] sm:$0x3]
    %v191 = vld [vmem:[#allocation10 + $0x2] sm:$0x3]
    %v192 = vld [vmem:[#allocation10 + $0x4] sm:$0x3]
    %v193 = vld [vmem:[#allocation10 + $0x6] sm:$0x3]
    %v194 = vld [vmem:[#allocation10 + $0x8] sm:$0x3]
    %v195 = vld [vmem:[#allocation10 + $0xa] sm:$0x3]
    %v196 = vld [vmem:[#allocation10 + $0xc] sm:$0x3]
    %v197 = vld [vmem:[#allocation10 + $0xe] sm:$0x3]
    %v198 = vld [vmem:[#allocation10 + $0x10] sm:$0x3]
    %v199 = vld [vmem:[#allocation10 + $0x12] sm:$0x3]
    %v200 = vld [vmem:[#allocation10 + $0x14] sm:$0x3]
    %v201 = vld [vmem:[#allocation10 + $0x16] sm:$0x3]
    %v202 = vld [vmem:[#allocation10 + $0x18] sm:$0x3]
    %v203 = vld [vmem:[#allocation10 + $0x1a] sm:$0x3]
    %v204 = vld [vmem:[#allocation10 + $0x1c] sm:$0x3]
    %v205 = vld [vmem:[#allocation10 + $0x1e] sm:$0x3]
    %v206 = vld [vmem:[#allocation10 + $0x20] sm:$0x3]
    %v207 = vld [vmem:[#allocation10 + $0x22] sm:$0x3]
    %v208 = vld [vmem:[#allocation10 + $0x24] sm:$0x3]
    %v209 = vld [vmem:[#allocation10 + $0x26] sm:$0x3]
    %v210 = vld [vmem:[#allocation10 + $0x28] sm:$0x3]
    %v211 = vld [vmem:[#allocation10 + $0x2a] sm:$0x3]
    %v212 = vld [vmem:[#allocation10 + $0x2c] sm:$0x3]
    %v213 = vld [vmem:[#allocation10 + $0x2e] sm:$0x3]
    %v214 = vld [vmem:[#allocation10 + $0x30] sm:$0x3]
    %v215 = vld [vmem:[#allocation10 + $0x32] sm:$0x3]
    %v216 = vld [vmem:[#allocation10 + $0x34] sm:$0x3]
    %v217 = vld [vmem:[#allocation10 + $0x36] sm:$0x3]
    %v218 = vld [vmem:[#allocation10 + $0x38] sm:$0x3]
    %v219 = vld [vmem:[#allocation10 + $0x3a] sm:$0x3]
    %v220 = vld [vmem:[#allocation10 + $0x3c] sm:$0x3]
    %v221 = vld [vmem:[#allocation10 + $0x3e] sm:$0x3]
    %v222 = vld [vmem:[#allocation10 + $0x40] sm:$0x3]
    %v223 = vld [vmem:[#allocation10 + $0x42] sm:$0x3]
    %v224 = vld [vmem:[#allocation10 + $0x44] sm:$0x3]
    %v225 = vld [vmem:[#allocation10 + $0x46] sm:$0x3]
    %v226 = vld [vmem:[#allocation10 + $0x48] sm:$0x3]
    %v227 = vld [vmem:[#allocation10 + $0x4a] sm:$0x3]
    %v228 = vld [vmem:[#allocation10 + $0x4c] sm:$0x3]
    %v229 = vld [vmem:[#allocation10 + $0x4e] sm:$0x3]
    %v230 = vld [vmem:[#allocation10 + $0x50] sm:$0x3]
    %v231 = vld [vmem:[#allocation10 + $0x52] sm:$0x3]
    %v232 = vld [vmem:[#allocation10 + $0x54] sm:$0x3]
    %v233 = vld [vmem:[#allocation10 + $0x56] sm:$0x3]
    %v234 = vld [vmem:[#allocation10 + $0x58] sm:$0x3]
    %v235 = vld [vmem:[#allocation10 + $0x5a] sm:$0x3]
    %v236 = vld [vmem:[#allocation10 + $0x5c] sm:$0x3]
    %v237 = vld [vmem:[#allocation10 + $0x5e] sm:$0x3]
    %v238 = vld [vmem:[#allocation10 + $0x60] sm:$0x3]
    %v239 = vld [vmem:[#allocation10 + $0x62] sm:$0x3]
    %v240 = vld [vmem:[#allocation10 + $0x64] sm:$0x3]
    %v241 = vld [vmem:[#allocation10 + $0x66] sm:$0x3]
    %v242 = vld [vmem:[#allocation10 + $0x68] sm:$0x3]
    %v243 = vld [vmem:[#allocation10 + $0x6a] sm:$0x3]
    %v244 = vld [vmem:[#allocation10 + $0x6c] sm:$0x3]
    %v245 = vld [vmem:[#allocation10 + $0x6e] sm:$0x3]
    %v246 = vld [vmem:[#allocation10 + $0x70] sm:$0x3]
    %v247 = vld [vmem:[#allocation10 + $0x72] sm:$0x3]
    %v248 = vld [vmem:[#allocation10 + $0x74] sm:$0x3]
    %v249 = vld [vmem:[#allocation10 + $0x76] sm:$0x3]
    %v250 = vld [vmem:[#allocation10 + $0x78] sm:$0x3]
    %v251 = vld [vmem:[#allocation10 + $0x7a] sm:$0x3]
    %v252 = vld [vmem:[#allocation10 + $0x7c] sm:$0x3]
    %v253 = vld [vmem:[#allocation10 + $0x7e] sm:$0x3]
    %v318 = vcombine.low %v190, %v192
    %v319 = vcombine.low %v191, %v193
    %v321 = vunpack.c.l.s4 1935823168
    %v322 = vunpack.c.0.s8 %v321
    %v323 = vlaneseq
    %v324 = vshrl.u32 %v323, 7
    %v325 = vsub.s32 %v322, %v324
    %v326 = vrot.slane %v318, %v325
    %v328 = vunpack.c.l.s4 1935823168
    %v329 = vunpack.c.0.s8 %v328
    %v330 = vlaneseq
    %v331 = vshrl.u32 %v330, 7
    %v332 = vsub.s32 %v329, %v331
    %v333 = vrot.slane %v319, %v332
    %v334 = vcombine.low %v326, %v333
    %v336 = vunpack.c.l.s4 1935823168
    %v337 = vunpack.c.0.s8 %v336
    %v338 = vlaneseq
    %v339 = vshrl.u32 %v338, 7
    %v340 = vsub.s32 %v337, %v339
    %v341 = vrot.slane %v334, %v340
    %v342 = vcombine.low %v194, %v196
    %v343 = vcombine.low %v195, %v197
    %v345 = vunpack.c.l.s4 1935823168
    %v346 = vunpack.c.0.s8 %v345
    %v347 = vlaneseq
    %v348 = vshrl.u32 %v347, 7
    %v349 = vsub.s32 %v346, %v348
    %v350 = vrot.slane %v342, %v349
    %v352 = vunpack.c.l.s4 1935823168
    %v353 = vunpack.c.0.s8 %v352
    %v354 = vlaneseq
    %v355 = vshrl.u32 %v354, 7
    %v356 = vsub.s32 %v353, %v355
    %v357 = vrot.slane %v343, %v356
    %v358 = vcombine.low %v350, %v357
    %v360 = vunpack.c.l.s4 1935823168
    %v361 = vunpack.c.0.s8 %v360
    %v362 = vlaneseq
    %v363 = vshrl.u32 %v362, 7
    %v364 = vsub.s32 %v361, %v363
    %v365 = vrot.slane %v358, %v364
    %v366 = vcombine.low %v198, %v200
    %v367 = vcombine.low %v199, %v201
    %v369 = vunpack.c.l.s4 1935823168
    %v370 = vunpack.c.0.s8 %v369
    %v371 = vlaneseq
    %v372 = vshrl.u32 %v371, 7
    %v373 = vsub.s32 %v370, %v372
    %v374 = vrot.slane %v366, %v373
    %v376 = vunpack.c.l.s4 1935823168
    %v377 = vunpack.c.0.s8 %v376
    %v378 = vlaneseq
    %v379 = vshrl.u32 %v378, 7
    %v380 = vsub.s32 %v377, %v379
    %v381 = vrot.slane %v367, %v380
    %v382 = vcombine.low %v374, %v381
    %v384 = vunpack.c.l.s4 1935823168
    %v385 = vunpack.c.0.s8 %v384
    %v386 = vlaneseq
    %v387 = vshrl.u32 %v386, 7
    %v388 = vsub.s32 %v385, %v387
    %v389 = vrot.slane %v382, %v388
    %v390 = vcombine.low %v202, %v204
    %v391 = vcombine.low %v203, %v205
    %v393 = vunpack.c.l.s4 1935823168
    %v394 = vunpack.c.0.s8 %v393
    %v395 = vlaneseq
    %v396 = vshrl.u32 %v395, 7
    %v397 = vsub.s32 %v394, %v396
    %v398 = vrot.slane %v390, %v397
    %v400 = vunpack.c.l.s4 1935823168
    %v401 = vunpack.c.0.s8 %v400
    %v402 = vlaneseq
    %v403 = vshrl.u32 %v402, 7
    %v404 = vsub.s32 %v401, %v403
    %v405 = vrot.slane %v391, %v404
    %v406 = vcombine.low %v398, %v405
    %v408 = vunpack.c.l.s4 1935823168
    %v409 = vunpack.c.0.s8 %v408
    %v410 = vlaneseq
    %v411 = vshrl.u32 %v410, 7
    %v412 = vsub.s32 %v409, %v411
    %v413 = vrot.slane %v406, %v412
    %v414 = vcombine.low %v206, %v208
    %v415 = vcombine.low %v207, %v209
    %v417 = vunpack.c.l.s4 1935823168
    %v418 = vunpack.c.0.s8 %v417
    %v419 = vlaneseq
    %v420 = vshrl.u32 %v419, 7
    %v421 = vsub.s32 %v418, %v420
    %v422 = vrot.slane %v414, %v421
    %v424 = vunpack.c.l.s4 1935823168
    %v425 = vunpack.c.0.s8 %v424
    %v426 = vlaneseq
    %v427 = vshrl.u32 %v426, 7
    %v428 = vsub.s32 %v425, %v427
    %v429 = vrot.slane %v415, %v428
    %v430 = vcombine.low %v422, %v429
    %v432 = vunpack.c.l.s4 1935823168
    %v433 = vunpack.c.0.s8 %v432
    %v434 = vlaneseq
    %v435 = vshrl.u32 %v434, 7
    %v436 = vsub.s32 %v433, %v435
    %v437 = vrot.slane %v430, %v436
    %v438 = vcombine.low %v210, %v212
    %v439 = vcombine.low %v211, %v213
    %v441 = vunpack.c.l.s4 1935823168
    %v442 = vunpack.c.0.s8 %v441
    %v443 = vlaneseq
    %v444 = vshrl.u32 %v443, 7
    %v445 = vsub.s32 %v442, %v444
    %v446 = vrot.slane %v438, %v445
    %v448 = vunpack.c.l.s4 1935823168
    %v449 = vunpack.c.0.s8 %v448
    %v450 = vlaneseq
    %v451 = vshrl.u32 %v450, 7
    %v452 = vsub.s32 %v449, %v451
    %v453 = vrot.slane %v439, %v452
    %v454 = vcombine.low %v446, %v453
    %v456 = vunpack.c.l.s4 1935823168
    %v457 = vunpack.c.0.s8 %v456
    %v458 = vlaneseq
    %v459 = vshrl.u32 %v458, 7
    %v460 = vsub.s32 %v457, %v459
    %v461 = vrot.slane %v454, %v460
    %v462 = vcombine.low %v214, %v216
    %v463 = vcombine.low %v215, %v217
    %v465 = vunpack.c.l.s4 1935823168
    %v466 = vunpack.c.0.s8 %v465
    %v467 = vlaneseq
    %v468 = vshrl.u32 %v467, 7
    %v469 = vsub.s32 %v466, %v468
    %v470 = vrot.slane %v462, %v469
    %v472 = vunpack.c.l.s4 1935823168
    %v473 = vunpack.c.0.s8 %v472
    %v474 = vlaneseq
    %v475 = vshrl.u32 %v474, 7
    %v476 = vsub.s32 %v473, %v475
    %v477 = vrot.slane %v463, %v476
    %v478 = vcombine.low %v470, %v477
    %v480 = vunpack.c.l.s4 1935823168
    %v481 = vunpack.c.0.s8 %v480
    %v482 = vlaneseq
    %v483 = vshrl.u32 %v482, 7
    %v484 = vsub.s32 %v481, %v483
    %v485 = vrot.slane %v478, %v484
    %v486 = vcombine.low %v218, %v220
    %v487 = vcombine.low %v219, %v221
    %v489 = vunpack.c.l.s4 1935823168
    %v490 = vunpack.c.0.s8 %v489
    %v491 = vlaneseq
    %v492 = vshrl.u32 %v491, 7
    %v493 = vsub.s32 %v490, %v492
    %v494 = vrot.slane %v486, %v493
    %v496 = vunpack.c.l.s4 1935823168
    %v497 = vunpack.c.0.s8 %v496
    %v498 = vlaneseq
    %v499 = vshrl.u32 %v498, 7
    %v500 = vsub.s32 %v497, %v499
    %v501 = vrot.slane %v487, %v500
    %v502 = vcombine.low %v494, %v501
    %v504 = vunpack.c.l.s4 1935823168
    %v505 = vunpack.c.0.s8 %v504
    %v506 = vlaneseq
    %v507 = vshrl.u32 %v506, 7
    %v508 = vsub.s32 %v505, %v507
    %v509 = vrot.slane %v502, %v508
    %v510 = vcombine.low %v222, %v224
    %v511 = vcombine.low %v223, %v225
    %v513 = vunpack.c.l.s4 1935823168
    %v514 = vunpack.c.0.s8 %v513
    %v515 = vlaneseq
    %v516 = vshrl.u32 %v515, 7
    %v517 = vsub.s32 %v514, %v516
    %v518 = vrot.slane %v510, %v517
    %v520 = vunpack.c.l.s4 1935823168
    %v521 = vunpack.c.0.s8 %v520
    %v522 = vlaneseq
    %v523 = vshrl.u32 %v522, 7
    %v524 = vsub.s32 %v521, %v523
    %v525 = vrot.slane %v511, %v524
    %v526 = vcombine.low %v518, %v525
    %v528 = vunpack.c.l.s4 1935823168
    %v529 = vunpack.c.0.s8 %v528
    %v530 = vlaneseq
    %v531 = vshrl.u32 %v530, 7
    %v532 = vsub.s32 %v529, %v531
    %v533 = vrot.slane %v526, %v532
    %v534 = vcombine.low %v226, %v228
    %v535 = vcombine.low %v227, %v229
    %v537 = vunpack.c.l.s4 1935823168
    %v538 = vunpack.c.0.s8 %v537
    %v539 = vlaneseq
    %v540 = vshrl.u32 %v539, 7
    %v541 = vsub.s32 %v538, %v540
    %v542 = vrot.slane %v534, %v541
    %v544 = vunpack.c.l.s4 1935823168
    %v545 = vunpack.c.0.s8 %v544
    %v546 = vlaneseq
    %v547 = vshrl.u32 %v546, 7
    %v548 = vsub.s32 %v545, %v547
    %v549 = vrot.slane %v535, %v548
    %v550 = vcombine.low %v542, %v549
    %v552 = vunpack.c.l.s4 1935823168
    %v553 = vunpack.c.0.s8 %v552
    %v554 = vlaneseq
    %v555 = vshrl.u32 %v554, 7
    %v556 = vsub.s32 %v553, %v555
    %v557 = vrot.slane %v550, %v556
    %v558 = vcombine.low %v230, %v232
    %v559 = vcombine.low %v231, %v233
    %v561 = vunpack.c.l.s4 1935823168
    %v562 = vunpack.c.0.s8 %v561
    %v563 = vlaneseq
    %v564 = vshrl.u32 %v563, 7
    %v565 = vsub.s32 %v562, %v564
    %v566 = vrot.slane %v558, %v565
    %v568 = vunpack.c.l.s4 1935823168
    %v569 = vunpack.c.0.s8 %v568
    %v570 = vlaneseq
    %v571 = vshrl.u32 %v570, 7
    %v572 = vsub.s32 %v569, %v571
    %v573 = vrot.slane %v559, %v572
    %v574 = vcombine.low %v566, %v573
    %v576 = vunpack.c.l.s4 1935823168
    %v577 = vunpack.c.0.s8 %v576
    %v578 = vlaneseq
    %v579 = vshrl.u32 %v578, 7
    %v580 = vsub.s32 %v577, %v579
    %v581 = vrot.slane %v574, %v580
    %v582 = vcombine.low %v234, %v236
    %v583 = vcombine.low %v235, %v237
    %v585 = vunpack.c.l.s4 1935823168
    %v586 = vunpack.c.0.s8 %v585
    %v587 = vlaneseq
    %v588 = vshrl.u32 %v587, 7
    %v589 = vsub.s32 %v586, %v588
    %v590 = vrot.slane %v582, %v589
    %v592 = vunpack.c.l.s4 1935823168
    %v593 = vunpack.c.0.s8 %v592
    %v594 = vlaneseq
    %v595 = vshrl.u32 %v594, 7
    %v596 = vsub.s32 %v593, %v595
    %v597 = vrot.slane %v583, %v596
    %v598 = vcombine.low %v590, %v597
    %v600 = vunpack.c.l.s4 1935823168
    %v601 = vunpack.c.0.s8 %v600
    %v602 = vlaneseq
    %v603 = vshrl.u32 %v602, 7
    %v604 = vsub.s32 %v601, %v603
    %v605 = vrot.slane %v598, %v604
    %v606 = vcombine.low %v238, %v240
    %v607 = vcombine.low %v239, %v241
    %v609 = vunpack.c.l.s4 1935823168
    %v610 = vunpack.c.0.s8 %v609
    %v611 = vlaneseq
    %v612 = vshrl.u32 %v611, 7
    %v613 = vsub.s32 %v610, %v612
    %v614 = vrot.slane %v606, %v613
    %v616 = vunpack.c.l.s4 1935823168
    %v617 = vunpack.c.0.s8 %v616
    %v618 = vlaneseq
    %v619 = vshrl.u32 %v618, 7
    %v620 = vsub.s32 %v617, %v619
    %v621 = vrot.slane %v607, %v620
    %v622 = vcombine.low %v614, %v621
    %v624 = vunpack.c.l.s4 1935823168
    %v625 = vunpack.c.0.s8 %v624
    %v626 = vlaneseq
    %v627 = vshrl.u32 %v626, 7
    %v628 = vsub.s32 %v625, %v627
    %v629 = vrot.slane %v622, %v628
    %v630 = vcombine.low %v242, %v244
    %v631 = vcombine.low %v243, %v245
    %v633 = vunpack.c.l.s4 1935823168
    %v634 = vunpack.c.0.s8 %v633
    %v635 = vlaneseq
    %v636 = vshrl.u32 %v635, 7
    %v637 = vsub.s32 %v634, %v636
    %v638 = vrot.slane %v630, %v637
    %v640 = vunpack.c.l.s4 1935823168
    %v641 = vunpack.c.0.s8 %v640
    %v642 = vlaneseq
    %v643 = vshrl.u32 %v642, 7
    %v644 = vsub.s32 %v641, %v643
    %v645 = vrot.slane %v631, %v644
    %v646 = vcombine.low %v638, %v645
    %v648 = vunpack.c.l.s4 1935823168
    %v649 = vunpack.c.0.s8 %v648
    %v650 = vlaneseq
    %v651 = vshrl.u32 %v650, 7
    %v652 = vsub.s32 %v649, %v651
    %v653 = vrot.slane %v646, %v652
    %v654 = vcombine.low %v246, %v248
    %v655 = vcombine.low %v247, %v249
    %v657 = vunpack.c.l.s4 1935823168
    %v658 = vunpack.c.0.s8 %v657
    %v659 = vlaneseq
    %v660 = vshrl.u32 %v659, 7
    %v661 = vsub.s32 %v658, %v660
    %v662 = vrot.slane %v654, %v661
    %v664 = vunpack.c.l.s4 1935823168
    %v665 = vunpack.c.0.s8 %v664
    %v666 = vlaneseq
    %v667 = vshrl.u32 %v666, 7
    %v668 = vsub.s32 %v665, %v667
    %v669 = vrot.slane %v655, %v668
    %v670 = vcombine.low %v662, %v669
    %v672 = vunpack.c.l.s4 1935823168
    %v673 = vunpack.c.0.s8 %v672
    %v674 = vlaneseq
    %v675 = vshrl.u32 %v674, 7
    %v676 = vsub.s32 %v673, %v675
    %v677 = vrot.slane %v670, %v676
    %v678 = vcombine.low %v250, %v252
    %v679 = vcombine.low %v251, %v253
    %v681 = vunpack.c.l.s4 1935823168
    %v682 = vunpack.c.0.s8 %v681
    %v683 = vlaneseq
    %v684 = vshrl.u32 %v683, 7
    %v685 = vsub.s32 %v682, %v684
    %v686 = vrot.slane %v678, %v685
    %v688 = vunpack.c.l.s4 1935823168
    %v689 = vunpack.c.0.s8 %v688
    %v690 = vlaneseq
    %v691 = vshrl.u32 %v690, 7
    %v692 = vsub.s32 %v689, %v691
    %v693 = vrot.slane %v679, %v692
    %v694 = vcombine.low %v686, %v693
    %v696 = vunpack.c.l.s4 1935823168
    %v697 = vunpack.c.0.s8 %v696
    %v698 = vlaneseq
    %v699 = vshrl.u32 %v698, 7
    %v700 = vsub.s32 %v697, %v699
    %v701 = vrot.slane %v694, %v700
    %vm718 = vcmask 1043456
    %vm719 = vcmask 228356
    %vm720 = vmor %vm719, %vm718
    %721 = vst.msk [vmem:[#allocation2] sm:$0xff] %vm720, %v341
    %722 = vst.msk [vmem:[#allocation2 + $0x8] sm:$0xff] %vm720, %v365
    %723 = vst.msk [vmem:[#allocation2 + $0x10] sm:$0xff] %vm720, %v389
    %724 = vst.msk [vmem:[#allocation2 + $0x18] sm:$0xff] %vm720, %v413
    %725 = vst.msk [vmem:[#allocation2 + $0x20] sm:$0xff] %vm720, %v437
    %726 = vst.msk [vmem:[#allocation2 + $0x28] sm:$0xff] %vm720, %v461
    %727 = vst.msk [vmem:[#allocation2 + $0x30] sm:$0xff] %vm720, %v485
    %728 = vst.msk [vmem:[#allocation2 + $0x38] sm:$0xff] %vm720, %v509
    %729 = vst.msk [vmem:[#allocation2 + $0x40] sm:$0xff] %vm720, %v533
    %730 = vst.msk [vmem:[#allocation2 + $0x48] sm:$0xff] %vm720, %v557
    %731 = vst.msk [vmem:[#allocation2 + $0x50] sm:$0xff] %vm720, %v581
    %732 = vst.msk [vmem:[#allocation2 + $0x58] sm:$0xff] %vm720, %v605
    %733 = vst.msk [vmem:[#allocation2 + $0x60] sm:$0xff] %vm720, %v629
    %734 = vst.msk [vmem:[#allocation2 + $0x68] sm:$0xff] %vm720, %v653
    %735 = vst.msk [vmem:[#allocation2 + $0x70] sm:$0xff] %vm720, %v677
    %736 = vst.msk [vmem:[#allocation2 + $0x78] sm:$0xff] %vm720, %v701
    %v737 = vld [vmem:[#allocation2] sm:$0xff]
    %v738 = vld [vmem:[#allocation2 + $0x8] sm:$0xff]
    %v739 = vld [vmem:[#allocation2 + $0x10] sm:$0xff]
    %v740 = vld [vmem:[#allocation2 + $0x18] sm:$0xff]
    %v741 = vld [vmem:[#allocation2 + $0x20] sm:$0xff]
    %v742 = vld [vmem:[#allocation2 + $0x28] sm:$0xff]
    %v743 = vld [vmem:[#allocation2 + $0x30] sm:$0xff]
    %v744 = vld [vmem:[#allocation2 + $0x38] sm:$0xff]
    %v745 = vld [vmem:[#allocation2 + $0x40] sm:$0xff]
    %v746 = vld [vmem:[#allocation2 + $0x48] sm:$0xff]
    %v747 = vld [vmem:[#allocation2 + $0x50] sm:$0xff]
    %v748 = vld [vmem:[#allocation2 + $0x58] sm:$0xff]
    %v749 = vld [vmem:[#allocation2 + $0x60] sm:$0xff]
    %v750 = vld [vmem:[#allocation2 + $0x68] sm:$0xff]
    %v751 = vld [vmem:[#allocation2 + $0x70] sm:$0xff]
    %v752 = vld [vmem:[#allocation2 + $0x78] sm:$0xff]
    %v753 = vld [vmem:[#allocation12] sm:$0xff]
    %v754 = vld [vmem:[#allocation12 + $0x8] sm:$0xff]
    %v755 = vld [vmem:[#allocation12 + $0x10] sm:$0xff]
    %v756 = vld [vmem:[#allocation12 + $0x18] sm:$0xff]
    %v757 = vld [vmem:[#allocation12 + $0x20] sm:$0xff]
    %v758 = vld [vmem:[#allocation12 + $0x28] sm:$0xff]
    %v759 = vld [vmem:[#allocation12 + $0x30] sm:$0xff]
    %v760 = vld [vmem:[#allocation12 + $0x38] sm:$0xff]
    %v761 = vld [vmem:[#allocation12 + $0x40] sm:$0xff]
    %v762 = vld [vmem:[#allocation12 + $0x48] sm:$0xff]
    %v763 = vld [vmem:[#allocation12 + $0x50] sm:$0xff]
    %v764 = vld [vmem:[#allocation12 + $0x58] sm:$0xff]
    %v765 = vld [vmem:[#allocation12 + $0x60] sm:$0xff]
    %v766 = vld [vmem:[#allocation12 + $0x68] sm:$0xff]
    %v767 = vld [vmem:[#allocation12 + $0x70] sm:$0xff]
    %v768 = vld [vmem:[#allocation12 + $0x78] sm:$0xff]
    %v769 = vld [vmem:[#allocation12 + $0x80] sm:$0xff]
    %v770 = vld [vmem:[#allocation12 + $0x88] sm:$0xff]
    %v771 = vld [vmem:[#allocation12 + $0x90] sm:$0xff]
    %v772 = vld [vmem:[#allocation12 + $0x98] sm:$0xff]
    %v773 = vld [vmem:[#allocation12 + $0xa0] sm:$0xff]
    %v774 = vld [vmem:[#allocation12 + $0xa8] sm:$0xff]
    %v775 = vld [vmem:[#allocation12 + $0xb0] sm:$0xff]
    %v776 = vld [vmem:[#allocation12 + $0xb8] sm:$0xff]
    %v777 = vld [vmem:[#allocation12 + $0xc0] sm:$0xff]
    %v778 = vld [vmem:[#allocation12 + $0xc8] sm:$0xff]
    %v779 = vld [vmem:[#allocation12 + $0xd0] sm:$0xff]
    %v780 = vld [vmem:[#allocation12 + $0xd8] sm:$0xff]
    %v781 = vld [vmem:[#allocation12 + $0xe0] sm:$0xff]
    %v782 = vld [vmem:[#allocation12 + $0xe8] sm:$0xff]
    %v783 = vld [vmem:[#allocation12 + $0xf0] sm:$0xff]
    %v784 = vld [vmem:[#allocation12 + $0xf8] sm:$0xff]
    %v785 = vld [vmem:[#allocation12 + $0x100] sm:$0xff]
    %v786 = vld [vmem:[#allocation12 + $0x108] sm:$0xff]
    %v787 = vld [vmem:[#allocation12 + $0x110] sm:$0xff]
    %v788 = vld [vmem:[#allocation12 + $0x118] sm:$0xff]
    %v789 = vld [vmem:[#allocation12 + $0x120] sm:$0xff]
    %v790 = vld [vmem:[#allocation12 + $0x128] sm:$0xff]
    %v791 = vld [vmem:[#allocation12 + $0x130] sm:$0xff]
    %v792 = vld [vmem:[#allocation12 + $0x138] sm:$0xff]
    %v793 = vld [vmem:[#allocation12 + $0x140] sm:$0xff]
    %v794 = vld [vmem:[#allocation12 + $0x148] sm:$0xff]
    %v795 = vld [vmem:[#allocation12 + $0x150] sm:$0xff]
    %v796 = vld [vmem:[#allocation12 + $0x158] sm:$0xff]
    %v797 = vld [vmem:[#allocation12 + $0x160] sm:$0xff]
    %v798 = vld [vmem:[#allocation12 + $0x168] sm:$0xff]
    %v799 = vld [vmem:[#allocation12 + $0x170] sm:$0xff]
    %v800 = vld [vmem:[#allocation12 + $0x178] sm:$0xff]
    %v801 = vld [vmem:[#allocation12 + $0x180] sm:$0xff]
    %v802 = vld [vmem:[#allocation12 + $0x188] sm:$0xff]
    %v803 = vld [vmem:[#allocation12 + $0x190] sm:$0xff]
    %v804 = vld [vmem:[#allocation12 + $0x198] sm:$0xff]
    %v805 = vld [vmem:[#allocation12 + $0x1a0] sm:$0xff]
    %v806 = vld [vmem:[#allocation12 + $0x1a8] sm:$0xff]
    %v807 = vld [vmem:[#allocation12 + $0x1b0] sm:$0xff]
    %v808 = vld [vmem:[#allocation12 + $0x1b8] sm:$0xff]
    %v809 = vld [vmem:[#allocation12 + $0x1c0] sm:$0xff]
    %v810 = vld [vmem:[#allocation12 + $0x1c8] sm:$0xff]
    %v811 = vld [vmem:[#allocation12 + $0x1d0] sm:$0xff]
    %v812 = vld [vmem:[#allocation12 + $0x1d8] sm:$0xff]
    %v813 = vld [vmem:[#allocation12 + $0x1e0] sm:$0xff]
    %v814 = vld [vmem:[#allocation12 + $0x1e8] sm:$0xff]
    %v815 = vld [vmem:[#allocation12 + $0x1f0] sm:$0xff]
    %v816 = vld [vmem:[#allocation12 + $0x1f8] sm:$0xff]
    %v817 = vld [vmem:[#allocation12 + $0x200] sm:$0xff]
    %v818 = vld [vmem:[#allocation12 + $0x208] sm:$0xff]
    %v819 = vld [vmem:[#allocation12 + $0x210] sm:$0xff]
    %v820 = vld [vmem:[#allocation12 + $0x218] sm:$0xff]
    %v821 = vld [vmem:[#allocation12 + $0x220] sm:$0xff]
    %v822 = vld [vmem:[#allocation12 + $0x228] sm:$0xff]
    %v823 = vld [vmem:[#allocation12 + $0x230] sm:$0xff]
    %v824 = vld [vmem:[#allocation12 + $0x238] sm:$0xff]
    %v825 = vld [vmem:[#allocation12 + $0x240] sm:$0xff]
    %v826 = vld [vmem:[#allocation12 + $0x248] sm:$0xff]
    %v827 = vld [vmem:[#allocation12 + $0x250] sm:$0xff]
    %v828 = vld [vmem:[#allocation12 + $0x258] sm:$0xff]
    %v829 = vld [vmem:[#allocation12 + $0x260] sm:$0xff]
    %v830 = vld [vmem:[#allocation12 + $0x268] sm:$0xff]
    %v831 = vld [vmem:[#allocation12 + $0x270] sm:$0xff]
    %v832 = vld [vmem:[#allocation12 + $0x278] sm:$0xff]
    %v833 = vld [vmem:[#allocation12 + $0x280] sm:$0xff]
    %v834 = vld [vmem:[#allocation12 + $0x288] sm:$0xff]
    %v835 = vld [vmem:[#allocation12 + $0x290] sm:$0xff]
    %v836 = vld [vmem:[#allocation12 + $0x298] sm:$0xff]
    %v837 = vld [vmem:[#allocation12 + $0x2a0] sm:$0xff]
    %v838 = vld [vmem:[#allocation12 + $0x2a8] sm:$0xff]
    %v839 = vld [vmem:[#allocation12 + $0x2b0] sm:$0xff]
    %v840 = vld [vmem:[#allocation12 + $0x2b8] sm:$0xff]
    %v841 = vld [vmem:[#allocation12 + $0x2c0] sm:$0xff]
    %v842 = vld [vmem:[#allocation12 + $0x2c8] sm:$0xff]
    %v843 = vld [vmem:[#allocation12 + $0x2d0] sm:$0xff]
    %v844 = vld [vmem:[#allocation12 + $0x2d8] sm:$0xff]
    %v845 = vld [vmem:[#allocation12 + $0x2e0] sm:$0xff]
    %v846 = vld [vmem:[#allocation12 + $0x2e8] sm:$0xff]
    %v847 = vld [vmem:[#allocation12 + $0x2f0] sm:$0xff]
    %v848 = vld [vmem:[#allocation12 + $0x2f8] sm:$0xff]
    %v849 = vld [vmem:[#allocation12 + $0x300] sm:$0xff]
    %v850 = vld [vmem:[#allocation12 + $0x308] sm:$0xff]
    %v851 = vld [vmem:[#allocation12 + $0x310] sm:$0xff]
    %v852 = vld [vmem:[#allocation12 + $0x318] sm:$0xff]
    %v853 = vld [vmem:[#allocation12 + $0x320] sm:$0xff]
    %v854 = vld [vmem:[#allocation12 + $0x328] sm:$0xff]
    %v855 = vld [vmem:[#allocation12 + $0x330] sm:$0xff]
    %v856 = vld [vmem:[#allocation12 + $0x338] sm:$0xff]
    %v857 = vld [vmem:[#allocation12 + $0x340] sm:$0xff]
    %v858 = vld [vmem:[#allocation12 + $0x348] sm:$0xff]
    %v859 = vld [vmem:[#allocation12 + $0x350] sm:$0xff]
    %v860 = vld [vmem:[#allocation12 + $0x358] sm:$0xff]
    %v861 = vld [vmem:[#allocation12 + $0x360] sm:$0xff]
    %v862 = vld [vmem:[#allocation12 + $0x368] sm:$0xff]
    %v863 = vld [vmem:[#allocation12 + $0x370] sm:$0xff]
    %v864 = vld [vmem:[#allocation12 + $0x378] sm:$0xff]
    %v865 = vld [vmem:[#allocation12 + $0x380] sm:$0xff]
    %v866 = vld [vmem:[#allocation12 + $0x388] sm:$0xff]
    %v867 = vld [vmem:[#allocation12 + $0x390] sm:$0xff]
    %v868 = vld [vmem:[#allocation12 + $0x398] sm:$0xff]
    %v869 = vld [vmem:[#allocation12 + $0x3a0] sm:$0xff]
    %v870 = vld [vmem:[#allocation12 + $0x3a8] sm:$0xff]
    %v871 = vld [vmem:[#allocation12 + $0x3b0] sm:$0xff]
    %v872 = vld [vmem:[#allocation12 + $0x3b8] sm:$0xff]
    %v873 = vld [vmem:[#allocation12 + $0x3c0] sm:$0xff]
    %v874 = vld [vmem:[#allocation12 + $0x3c8] sm:$0xff]
    %v875 = vld [vmem:[#allocation12 + $0x3d0] sm:$0xff]
    %v876 = vld [vmem:[#allocation12 + $0x3d8] sm:$0xff]
    %v877 = vld [vmem:[#allocation12 + $0x3e0] sm:$0xff]
    %v878 = vld [vmem:[#allocation12 + $0x3e8] sm:$0xff]
    %v879 = vld [vmem:[#allocation12 + $0x3f0] sm:$0xff]
    %v880 = vld [vmem:[#allocation12 + $0x3f8] sm:$0xff]
    %v881 = vld [vmem:[#allocation14] sm:$0xff]
    %v883 = vlaneseq
    %v884 = vshrl.u32 %v883, 7
    %v885 = vsub.s32 0, %v884
    %v886 = vrot.slane %v881, %v885
    %v887 = vlaneseq
    %v888 = vshrl.u32 %v887, 7
    %v889 = vsub.s32 1, %v888
    %v890 = vrot.slane %v881, %v889
    %v891 = vlaneseq
    %v892 = vshrl.u32 %v891, 7
    %v893 = vsub.s32 2, %v892
    %v894 = vrot.slane %v881, %v893
    %v895 = vlaneseq
    %v896 = vshrl.u32 %v895, 7
    %v897 = vsub.s32 3, %v896
    %v898 = vrot.slane %v881, %v897
    %v899 = vlaneseq
    %v900 = vshrl.u32 %v899, 7
    %v901 = vsub.s32 4, %v900
    %v902 = vrot.slane %v881, %v901
    %v903 = vlaneseq
    %v904 = vshrl.u32 %v903, 7
    %v905 = vsub.s32 5, %v904
    %v906 = vrot.slane %v881, %v905
    %v907 = vlaneseq
    %v908 = vshrl.u32 %v907, 7
    %v909 = vsub.s32 6, %v908
    %v910 = vrot.slane %v881, %v909
    %v911 = vlaneseq
    %v912 = vshrl.u32 %v911, 7
    %v913 = vsub.s32 7, %v912
    %v914 = vrot.slane %v881, %v913
    %v939 = vunpack.c.l.b16 %v737
    %v940 = vunpack.c.h.b16 %v737
    %v941 = vunpack.c.l.b16 %v738
    %v942 = vunpack.c.h.b16 %v738
    %v943 = vunpack.c.l.b16 %v739
    %v944 = vunpack.c.h.b16 %v739
    %v945 = vunpack.c.l.b16 %v740
    %v946 = vunpack.c.h.b16 %v740
    %v947 = vunpack.c.l.b16 %v741
    %v948 = vunpack.c.h.b16 %v741
    %v949 = vunpack.c.l.b16 %v742
    %v950 = vunpack.c.h.b16 %v742
    %v951 = vunpack.c.l.b16 %v743
    %v952 = vunpack.c.h.b16 %v743
    %v953 = vunpack.c.l.b16 %v744
    %v954 = vunpack.c.h.b16 %v744
    %v955 = vunpack.c.l.b16 %v745
    %v956 = vunpack.c.h.b16 %v745
    %v957 = vunpack.c.l.b16 %v746
    %v958 = vunpack.c.h.b16 %v746
    %v959 = vunpack.c.l.b16 %v747
    %v960 = vunpack.c.h.b16 %v747
    %v961 = vunpack.c.l.b16 %v748
    %v962 = vunpack.c.h.b16 %v748
    %v963 = vunpack.c.l.b16 %v749
    %v964 = vunpack.c.h.b16 %v749
    %v965 = vunpack.c.l.b16 %v750
    %v966 = vunpack.c.h.b16 %v750
    %v967 = vunpack.c.l.b16 %v751
    %v968 = vunpack.c.h.b16 %v751
    %v969 = vunpack.c.l.b16 %v752
    %v970 = vunpack.c.h.b16 %v752
    %v971 = vpack.c.b16 %v941, %v939
    %v972 = vpack.c.b16 %v942, %v940
    %v973 = vpack.c.b16 %v945, %v943
    %v974 = vpack.c.b16 %v946, %v944
    %v975 = vpack.c.b16 %v949, %v947
    %v976 = vpack.c.b16 %v950, %v948
    %v977 = vpack.c.b16 %v953, %v951
    %v978 = vpack.c.b16 %v954, %v952
    %v979 = vpack.c.b16 %v957, %v955
    %v980 = vpack.c.b16 %v958, %v956
    %v981 = vpack.c.b16 %v961, %v959
    %v982 = vpack.c.b16 %v962, %v960
    %v983 = vpack.c.b16 %v965, %v963
    %v984 = vpack.c.b16 %v966, %v964
    %v985 = vpack.c.b16 %v969, %v967
    %v986 = vpack.c.b16 %v970, %v968
    %v1131 = vunpack.c.l.b16 %v753
    %v1132 = vunpack.c.h.b16 %v753
    %v1133 = vunpack.c.l.b16 %v754
    %v1134 = vunpack.c.h.b16 %v754
    %v1135 = vunpack.c.l.b16 %v755
    %v1136 = vunpack.c.h.b16 %v755
    %v1137 = vunpack.c.l.b16 %v756
    %v1138 = vunpack.c.h.b16 %v756
    %v1139 = vunpack.c.l.b16 %v757
    %v1140 = vunpack.c.h.b16 %v757
    %v1141 = vunpack.c.l.b16 %v758
    %v1142 = vunpack.c.h.b16 %v758
    %v1143 = vunpack.c.l.b16 %v759
    %v1144 = vunpack.c.h.b16 %v759
    %v1145 = vunpack.c.l.b16 %v760
    %v1146 = vunpack.c.h.b16 %v760
    %v1147 = vunpack.c.l.b16 %v761
    %v1148 = vunpack.c.h.b16 %v761
    %v1149 = vunpack.c.l.b16 %v762
    %v1150 = vunpack.c.h.b16 %v762
    %v1151 = vunpack.c.l.b16 %v763
    %v1152 = vunpack.c.h.b16 %v763
    %v1153 = vunpack.c.l.b16 %v764
    %v1154 = vunpack.c.h.b16 %v764
    %v1155 = vunpack.c.l.b16 %v765
    %v1156 = vunpack.c.h.b16 %v765
    %v1157 = vunpack.c.l.b16 %v766
    %v1158 = vunpack.c.h.b16 %v766
    %v1159 = vunpack.c.l.b16 %v767
    %v1160 = vunpack.c.h.b16 %v767
    %v1161 = vunpack.c.l.b16 %v768
    %v1162 = vunpack.c.h.b16 %v768
    %v1163 = vunpack.c.l.b16 %v769
    %v1164 = vunpack.c.h.b16 %v769
    %v1165 = vunpack.c.l.b16 %v770
    %v1166 = vunpack.c.h.b16 %v770
    %v1167 = vunpack.c.l.b16 %v771
    %v1168 = vunpack.c.h.b16 %v771
    %v1169 = vunpack.c.l.b16 %v772
    %v1170 = vunpack.c.h.b16 %v772
    %v1171 = vunpack.c.l.b16 %v773
    %v1172 = vunpack.c.h.b16 %v773
    %v1173 = vunpack.c.l.b16 %v774
    %v1174 = vunpack.c.h.b16 %v774
    %v1175 = vunpack.c.l.b16 %v775
    %v1176 = vunpack.c.h.b16 %v775
    %v1177 = vunpack.c.l.b16 %v776
    %v1178 = vunpack.c.h.b16 %v776
    %v1179 = vunpack.c.l.b16 %v777
    %v1180 = vunpack.c.h.b16 %v777
    %v1181 = vunpack.c.l.b16 %v778
    %v1182 = vunpack.c.h.b16 %v778
    %v1183 = vunpack.c.l.b16 %v779
    %v1184 = vunpack.c.h.b16 %v779
    %v1185 = vunpack.c.l.b16 %v780
    %v1186 = vunpack.c.h.b16 %v780
    %v1187 = vunpack.c.l.b16 %v781
    %v1188 = vunpack.c.h.b16 %v781
    %v1189 = vunpack.c.l.b16 %v782
    %v1190 = vunpack.c.h.b16 %v782
    %v1191 = vunpack.c.l.b16 %v783
    %v1192 = vunpack.c.h.b16 %v783
    %v1193 = vunpack.c.l.b16 %v784
    %v1194 = vunpack.c.h.b16 %v784
    %v1195 = vunpack.c.l.b16 %v785
    %v1196 = vunpack.c.h.b16 %v785
    %v1197 = vunpack.c.l.b16 %v786
    %v1198 = vunpack.c.h.b16 %v786
    %v1199 = vunpack.c.l.b16 %v787
    %v1200 = vunpack.c.h.b16 %v787
    %v1201 = vunpack.c.l.b16 %v788
    %v1202 = vunpack.c.h.b16 %v788
    %v1203 = vunpack.c.l.b16 %v789
    %v1204 = vunpack.c.h.b16 %v789
    %v1205 = vunpack.c.l.b16 %v790
    %v1206 = vunpack.c.h.b16 %v790
    %v1207 = vunpack.c.l.b16 %v791
    %v1208 = vunpack.c.h.b16 %v791
    %v1209 = vunpack.c.l.b16 %v792
    %v1210 = vunpack.c.h.b16 %v792
    %v1211 = vunpack.c.l.b16 %v793
    %v1212 = vunpack.c.h.b16 %v793
    %v1213 = vunpack.c.l.b16 %v794
    %v1214 = vunpack.c.h.b16 %v794
    %v1215 = vunpack.c.l.b16 %v795
    %v1216 = vunpack.c.h.b16 %v795
    %v1217 = vunpack.c.l.b16 %v796
    %v1218 = vunpack.c.h.b16 %v796
    %v1219 = vunpack.c.l.b16 %v797
    %v1220 = vunpack.c.h.b16 %v797
    %v1221 = vunpack.c.l.b16 %v798
    %v1222 = vunpack.c.h.b16 %v798
    %v1223 = vunpack.c.l.b16 %v799
    %v1224 = vunpack.c.h.b16 %v799
    %v1225 = vunpack.c.l.b16 %v800
    %v1226 = vunpack.c.h.b16 %v800
    %v1227 = vunpack.c.l.b16 %v801
    %v1228 = vunpack.c.h.b16 %v801
    %v1229 = vunpack.c.l.b16 %v802
    %v1230 = vunpack.c.h.b16 %v802
    %v1231 = vunpack.c.l.b16 %v803
    %v1232 = vunpack.c.h.b16 %v803
    %v1233 = vunpack.c.l.b16 %v804
    %v1234 = vunpack.c.h.b16 %v804
    %v1235 = vunpack.c.l.b16 %v805
    %v1236 = vunpack.c.h.b16 %v805
    %v1237 = vunpack.c.l.b16 %v806
    %v1238 = vunpack.c.h.b16 %v806
    %v1239 = vunpack.c.l.b16 %v807
    %v1240 = vunpack.c.h.b16 %v807
    %v1241 = vunpack.c.l.b16 %v808
    %v1242 = vunpack.c.h.b16 %v808
    %v1243 = vunpack.c.l.b16 %v809
    %v1244 = vunpack.c.h.b16 %v809
    %v1245 = vunpack.c.l.b16 %v810
    %v1246 = vunpack.c.h.b16 %v810
    %v1247 = vunpack.c.l.b16 %v811
    %v1248 = vunpack.c.h.b16 %v811
    %v1249 = vunpack.c.l.b16 %v812
    %v1250 = vunpack.c.h.b16 %v812
    %v1251 = vunpack.c.l.b16 %v813
    %v1252 = vunpack.c.h.b16 %v813
    %v1253 = vunpack.c.l.b16 %v814
    %v1254 = vunpack.c.h.b16 %v814
    %v1255 = vunpack.c.l.b16 %v815
    %v1256 = vunpack.c.h.b16 %v815
    %v1257 = vunpack.c.l.b16 %v816
    %v1258 = vunpack.c.h.b16 %v816
    %v1259 = vunpack.c.l.b16 %v817
    %v1260 = vunpack.c.h.b16 %v817
    %v1261 = vunpack.c.l.b16 %v818
    %v1262 = vunpack.c.h.b16 %v818
    %v1263 = vunpack.c.l.b16 %v819
    %v1264 = vunpack.c.h.b16 %v819
    %v1265 = vunpack.c.l.b16 %v820
    %v1266 = vunpack.c.h.b16 %v820
    %v1267 = vunpack.c.l.b16 %v821
    %v1268 = vunpack.c.h.b16 %v821
    %v1269 = vunpack.c.l.b16 %v822
    %v1270 = vunpack.c.h.b16 %v822
    %v1271 = vunpack.c.l.b16 %v823
    %v1272 = vunpack.c.h.b16 %v823
    %v1273 = vunpack.c.l.b16 %v824
    %v1274 = vunpack.c.h.b16 %v824
    %v1275 = vunpack.c.l.b16 %v825
    %v1276 = vunpack.c.h.b16 %v825
    %v1277 = vunpack.c.l.b16 %v826
    %v1278 = vunpack.c.h.b16 %v826
    %v1279 = vunpack.c.l.b16 %v827
    %v1280 = vunpack.c.h.b16 %v827
    %v1281 = vunpack.c.l.b16 %v828
    %v1282 = vunpack.c.h.b16 %v828
    %v1283 = vunpack.c.l.b16 %v829
    %v1284 = vunpack.c.h.b16 %v829
    %v1285 = vunpack.c.l.b16 %v830
    %v1286 = vunpack.c.h.b16 %v830
    %v1287 = vunpack.c.l.b16 %v831
    %v1288 = vunpack.c.h.b16 %v831
    %v1289 = vunpack.c.l.b16 %v832
    %v1290 = vunpack.c.h.b16 %v832
    %v1291 = vunpack.c.l.b16 %v833
    %v1292 = vunpack.c.h.b16 %v833
    %v1293 = vunpack.c.l.b16 %v834
    %v1294 = vunpack.c.h.b16 %v834
    %v1295 = vunpack.c.l.b16 %v835
    %v1296 = vunpack.c.h.b16 %v835
    %v1297 = vunpack.c.l.b16 %v836
    %v1298 = vunpack.c.h.b16 %v836
    %v1299 = vunpack.c.l.b16 %v837
    %v1300 = vunpack.c.h.b16 %v837
    %v1301 = vunpack.c.l.b16 %v838
    %v1302 = vunpack.c.h.b16 %v838
    %v1303 = vunpack.c.l.b16 %v839
    %v1304 = vunpack.c.h.b16 %v839
    %v1305 = vunpack.c.l.b16 %v840
    %v1306 = vunpack.c.h.b16 %v840
    %v1307 = vunpack.c.l.b16 %v841
    %v1308 = vunpack.c.h.b16 %v841
    %v1309 = vunpack.c.l.b16 %v842
    %v1310 = vunpack.c.h.b16 %v842
    %v1311 = vunpack.c.l.b16 %v843
    %v1312 = vunpack.c.h.b16 %v843
    %v1313 = vunpack.c.l.b16 %v844
    %v1314 = vunpack.c.h.b16 %v844
    %v1315 = vunpack.c.l.b16 %v845
    %v1316 = vunpack.c.h.b16 %v845
    %v1317 = vunpack.c.l.b16 %v846
    %v1318 = vunpack.c.h.b16 %v846
    %v1319 = vunpack.c.l.b16 %v847
    %v1320 = vunpack.c.h.b16 %v847
    %v1321 = vunpack.c.l.b16 %v848
    %v1322 = vunpack.c.h.b16 %v848
    %v1323 = vunpack.c.l.b16 %v849
    %v1324 = vunpack.c.h.b16 %v849
    %v1325 = vunpack.c.l.b16 %v850
    %v1326 = vunpack.c.h.b16 %v850
    %v1327 = vunpack.c.l.b16 %v851
    %v1328 = vunpack.c.h.b16 %v851
    %v1329 = vunpack.c.l.b16 %v852
    %v1330 = vunpack.c.h.b16 %v852
    %v1331 = vunpack.c.l.b16 %v853
    %v1332 = vunpack.c.h.b16 %v853
    %v1333 = vunpack.c.l.b16 %v854
    %v1334 = vunpack.c.h.b16 %v854
    %v1335 = vunpack.c.l.b16 %v855
    %v1336 = vunpack.c.h.b16 %v855
    %v1337 = vunpack.c.l.b16 %v856
    %v1338 = vunpack.c.h.b16 %v856
    %v1339 = vunpack.c.l.b16 %v857
    %v1340 = vunpack.c.h.b16 %v857
    %v1341 = vunpack.c.l.b16 %v858
    %v1342 = vunpack.c.h.b16 %v858
    %v1343 = vunpack.c.l.b16 %v859
    %v1344 = vunpack.c.h.b16 %v859
    %v1345 = vunpack.c.l.b16 %v860
    %v1346 = vunpack.c.h.b16 %v860
    %v1347 = vunpack.c.l.b16 %v861
    %v1348 = vunpack.c.h.b16 %v861
    %v1349 = vunpack.c.l.b16 %v862
    %v1350 = vunpack.c.h.b16 %v862
    %v1351 = vunpack.c.l.b16 %v863
    %v1352 = vunpack.c.h.b16 %v863
    %v1353 = vunpack.c.l.b16 %v864
    %v1354 = vunpack.c.h.b16 %v864
    %v1355 = vunpack.c.l.b16 %v865
    %v1356 = vunpack.c.h.b16 %v865
    %v1357 = vunpack.c.l.b16 %v866
    %v1358 = vunpack.c.h.b16 %v866
    %v1359 = vunpack.c.l.b16 %v867
    %v1360 = vunpack.c.h.b16 %v867
    %v1361 = vunpack.c.l.b16 %v868
    %v1362 = vunpack.c.h.b16 %v868
    %v1363 = vunpack.c.l.b16 %v869
    %v1364 = vunpack.c.h.b16 %v869
    %v1365 = vunpack.c.l.b16 %v870
    %v1366 = vunpack.c.h.b16 %v870
    %v1367 = vunpack.c.l.b16 %v871
    %v1368 = vunpack.c.h.b16 %v871
    %v1369 = vunpack.c.l.b16 %v872
    %v1370 = vunpack.c.h.b16 %v872
    %v1371 = vunpack.c.l.b16 %v873
    %v1372 = vunpack.c.h.b16 %v873
    %v1373 = vunpack.c.l.b16 %v874
    %v1374 = vunpack.c.h.b16 %v874
    %v1375 = vunpack.c.l.b16 %v875
    %v1376 = vunpack.c.h.b16 %v875
    %v1377 = vunpack.c.l.b16 %v876
    %v1378 = vunpack.c.h.b16 %v876
    %v1379 = vunpack.c.l.b16 %v877
    %v1380 = vunpack.c.h.b16 %v877
    %v1381 = vunpack.c.l.b16 %v878
    %v1382 = vunpack.c.h.b16 %v878
    %v1383 = vunpack.c.l.b16 %v879
    %v1384 = vunpack.c.h.b16 %v879
    %v1385 = vunpack.c.l.b16 %v880
    %v1386 = vunpack.c.h.b16 %v880
    %v1387 = vpack.c.b16 %v1139, %v1131
    %v1388 = vpack.c.b16 %v1140, %v1132
    %v1389 = vpack.c.b16 %v1141, %v1133
    %v1390 = vpack.c.b16 %v1142, %v1134
    %v1391 = vpack.c.b16 %v1143, %v1135
    %v1392 = vpack.c.b16 %v1144, %v1136
    %v1393 = vpack.c.b16 %v1145, %v1137
    %v1394 = vpack.c.b16 %v1146, %v1138
    %v1395 = vpack.c.b16 %v1155, %v1147
    %v1396 = vpack.c.b16 %v1156, %v1148
    %v1397 = vpack.c.b16 %v1157, %v1149
    %v1398 = vpack.c.b16 %v1158, %v1150
    %v1399 = vpack.c.b16 %v1159, %v1151
    %v1400 = vpack.c.b16 %v1160, %v1152
    %v1401 = vpack.c.b16 %v1161, %v1153
    %v1402 = vpack.c.b16 %v1162, %v1154
    %v1403 = vpack.c.b16 %v1171, %v1163
    %v1404 = vpack.c.b16 %v1172, %v1164
    %v1405 = vpack.c.b16 %v1173, %v1165
    %v1406 = vpack.c.b16 %v1174, %v1166
    %v1407 = vpack.c.b16 %v1175, %v1167
    %v1408 = vpack.c.b16 %v1176, %v1168
    %v1409 = vpack.c.b16 %v1177, %v1169
    %v1410 = vpack.c.b16 %v1178, %v1170
    %v1411 = vpack.c.b16 %v1187, %v1179
    %v1412 = vpack.c.b16 %v1188, %v1180
    %v1413 = vpack.c.b16 %v1189, %v1181
    %v1414 = vpack.c.b16 %v1190, %v1182
    %v1415 = vpack.c.b16 %v1191, %v1183
    %v1416 = vpack.c.b16 %v1192, %v1184
    %v1417 = vpack.c.b16 %v1193, %v1185
    %v1418 = vpack.c.b16 %v1194, %v1186
    %v1419 = vpack.c.b16 %v1203, %v1195
    %v1420 = vpack.c.b16 %v1204, %v1196
    %v1421 = vpack.c.b16 %v1205, %v1197
    %v1422 = vpack.c.b16 %v1206, %v1198
    %v1423 = vpack.c.b16 %v1207, %v1199
    %v1424 = vpack.c.b16 %v1208, %v1200
    %v1425 = vpack.c.b16 %v1209, %v1201
    %v1426 = vpack.c.b16 %v1210, %v1202
    %v1427 = vpack.c.b16 %v1219, %v1211
    %v1428 = vpack.c.b16 %v1220, %v1212
    %v1429 = vpack.c.b16 %v1221, %v1213
    %v1430 = vpack.c.b16 %v1222, %v1214
    %v1431 = vpack.c.b16 %v1223, %v1215
    %v1432 = vpack.c.b16 %v1224, %v1216
    %v1433 = vpack.c.b16 %v1225, %v1217
    %v1434 = vpack.c.b16 %v1226, %v1218
    %v1435 = vpack.c.b16 %v1235, %v1227
    %v1436 = vpack.c.b16 %v1236, %v1228
    %v1437 = vpack.c.b16 %v1237, %v1229
    %v1438 = vpack.c.b16 %v1238, %v1230
    %v1439 = vpack.c.b16 %v1239, %v1231
    %v1440 = vpack.c.b16 %v1240, %v1232
    %v1441 = vpack.c.b16 %v1241, %v1233
    %v1442 = vpack.c.b16 %v1242, %v1234
    %v1443 = vpack.c.b16 %v1251, %v1243
    %v1444 = vpack.c.b16 %v1252, %v1244
    %v1445 = vpack.c.b16 %v1253, %v1245
    %v1446 = vpack.c.b16 %v1254, %v1246
    %v1447 = vpack.c.b16 %v1255, %v1247
    %v1448 = vpack.c.b16 %v1256, %v1248
    %v1449 = vpack.c.b16 %v1257, %v1249
    %v1450 = vpack.c.b16 %v1258, %v1250
    %v1451 = vpack.c.b16 %v1267, %v1259
    %v1452 = vpack.c.b16 %v1268, %v1260
    %v1453 = vpack.c.b16 %v1269, %v1261
    %v1454 = vpack.c.b16 %v1270, %v1262
    %v1455 = vpack.c.b16 %v1271, %v1263
    %v1456 = vpack.c.b16 %v1272, %v1264
    %v1457 = vpack.c.b16 %v1273, %v1265
    %v1458 = vpack.c.b16 %v1274, %v1266
    %v1459 = vpack.c.b16 %v1283, %v1275
    %v1460 = vpack.c.b16 %v1284, %v1276
    %v1461 = vpack.c.b16 %v1285, %v1277
    %v1462 = vpack.c.b16 %v1286, %v1278
    %v1463 = vpack.c.b16 %v1287, %v1279
    %v1464 = vpack.c.b16 %v1288, %v1280
    %v1465 = vpack.c.b16 %v1289, %v1281
    %v1466 = vpack.c.b16 %v1290, %v1282
    %v1467 = vpack.c.b16 %v1299, %v1291
    %v1468 = vpack.c.b16 %v1300, %v1292
    %v1469 = vpack.c.b16 %v1301, %v1293
    %v1470 = vpack.c.b16 %v1302, %v1294
    %v1471 = vpack.c.b16 %v1303, %v1295
    %v1472 = vpack.c.b16 %v1304, %v1296
    %v1473 = vpack.c.b16 %v1305, %v1297
    %v1474 = vpack.c.b16 %v1306, %v1298
    %v1475 = vpack.c.b16 %v1315, %v1307
    %v1476 = vpack.c.b16 %v1316, %v1308
    %v1477 = vpack.c.b16 %v1317, %v1309
    %v1478 = vpack.c.b16 %v1318, %v1310
    %v1479 = vpack.c.b16 %v1319, %v1311
    %v1480 = vpack.c.b16 %v1320, %v1312
    %v1481 = vpack.c.b16 %v1321, %v1313
    %v1482 = vpack.c.b16 %v1322, %v1314
    %v1483 = vpack.c.b16 %v1331, %v1323
    %v1484 = vpack.c.b16 %v1332, %v1324
    %v1485 = vpack.c.b16 %v1333, %v1325
    %v1486 = vpack.c.b16 %v1334, %v1326
    %v1487 = vpack.c.b16 %v1335, %v1327
    %v1488 = vpack.c.b16 %v1336, %v1328
    %v1489 = vpack.c.b16 %v1337, %v1329
    %v1490 = vpack.c.b16 %v1338, %v1330
    %v1491 = vpack.c.b16 %v1347, %v1339
    %v1492 = vpack.c.b16 %v1348, %v1340
    %v1493 = vpack.c.b16 %v1349, %v1341
    %v1494 = vpack.c.b16 %v1350, %v1342
    %v1495 = vpack.c.b16 %v1351, %v1343
    %v1496 = vpack.c.b16 %v1352, %v1344
    %v1497 = vpack.c.b16 %v1353, %v1345
    %v1498 = vpack.c.b16 %v1354, %v1346
    %v1499 = vpack.c.b16 %v1363, %v1355
    %v1500 = vpack.c.b16 %v1364, %v1356
    %v1501 = vpack.c.b16 %v1365, %v1357
    %v1502 = vpack.c.b16 %v1366, %v1358
    %v1503 = vpack.c.b16 %v1367, %v1359
    %v1504 = vpack.c.b16 %v1368, %v1360
    %v1505 = vpack.c.b16 %v1369, %v1361
    %v1506 = vpack.c.b16 %v1370, %v1362
    %v1507 = vpack.c.b16 %v1379, %v1371
    %v1508 = vpack.c.b16 %v1380, %v1372
    %v1509 = vpack.c.b16 %v1381, %v1373
    %v1510 = vpack.c.b16 %v1382, %v1374
    %v1511 = vpack.c.b16 %v1383, %v1375
    %v1512 = vpack.c.b16 %v1384, %v1376
    %v1513 = vpack.c.b16 %v1385, %v1377
    %v1514 = vpack.c.b16 %v1386, %v1378
    %1643 = vmatprep.subr.bf16.mxu0 %v1444
    %1644 = vmatpush1.bf16.msra.mxu0 %v1443
    %1645 = vmatprep.subr.bf16.mxu0 %v1436
    %1646 = vmatpush1.bf16.msra.mxu0 %v1435
    %1647 = vmatprep.subr.bf16.mxu0 %v1428
    %1648 = vmatpush1.bf16.msra.mxu0 %v1427
    %1649 = vmatprep.subr.bf16.mxu0 %v1420
    %1650 = vmatpush1.bf16.msra.mxu0 %v1419
    %1651 = vmatprep.subr.bf16.mxu0 %v1412
    %1652 = vmatpush1.bf16.msra.mxu0 %v1411
    %1653 = vmatprep.subr.bf16.mxu0 %v1404
    %1654 = vmatpush1.bf16.msra.mxu0 %v1403
    %1655 = vmatprep.subr.bf16.mxu0 %v1396
    %1656 = vmatpush1.bf16.msra.mxu0 %v1395
    %1657 = vmatprep.subr.bf16.mxu0 %v1388
    %1658 = vmatpush1.bf16.msra.mxu0 %v1387
    %1659 = vmatprep.subr.bf16.mxu0 %v1508
    %1660 = vmatpush2.bf16.msra.mxu0 %v1507
    %1661 = vmatprep.subr.bf16.mxu0 %v1500
    %1662 = vmatpush2.bf16.msra.mxu0 %v1499
    %1663 = vmatprep.subr.bf16.mxu0 %v1492
    %1664 = vmatpush2.bf16.msra.mxu0 %v1491
    %1665 = vmatprep.subr.bf16.mxu0 %v1484
    %1666 = vmatpush2.bf16.msra.mxu0 %v1483
    %1667 = vmatprep.subr.bf16.mxu0 %v1476
    %1668 = vmatpush2.bf16.msra.mxu0 %v1475
    %1669 = vmatprep.subr.bf16.mxu0 %v1468
    %1670 = vmatpush2.bf16.msra.mxu0 %v1467
    %1671 = vmatprep.subr.bf16.mxu0 %v1460
    %1672 = vmatpush2.bf16.msra.mxu0 %v1459
    %1673 = vmatprep.subr.bf16.mxu0 %v1452
    %1674 = vmatpush2.bf16.msra.mxu0 %v1451
    %1675 = vmatprep.mubr.bf16.mxu0 %v972
    %1676 = vmatmul.mubr.bf16.gmra.mxu0 %v971
    %v1677 = vpop.f32.mrf.mxu0
    %v1678 = vadd.f32 %v886, %v1677
    %v1679 = vpop.f32.mrf.mxu0
    %v1680 = vadd.f32 %v890, %v1679
    %v1681 = vpop.f32.mrf.mxu0
    %v1682 = vadd.f32 %v886, %v1681
    %v1683 = vpop.f32.mrf.mxu0
    %v1684 = vadd.f32 %v890, %v1683
    %1685 = vmatprep.mubr.bf16.mxu0 %v974
    %1686 = vmatmul.mubr.bf16.gmra.mxu0 %v973
    %v1687 = vpop.f32.mrf.mxu0
    %v1688 = vadd.f32 %v886, %v1687
    %v1689 = vpop.f32.mrf.mxu0
    %v1690 = vadd.f32 %v890, %v1689
    %v1691 = vpop.f32.mrf.mxu0
    %v1692 = vadd.f32 %v886, %v1691
    %v1693 = vpop.f32.mrf.mxu0
    %v1694 = vadd.f32 %v890, %v1693
    %1695 = vmatprep.mubr.bf16.mxu0 %v976
    %1696 = vmatmul.mubr.bf16.gmra.mxu0 %v975
    %v1697 = vpop.f32.mrf.mxu0
    %v1698 = vadd.f32 %v886, %v1697
    %v1699 = vpop.f32.mrf.mxu0
    %v1700 = vadd.f32 %v890, %v1699
    %v1701 = vpop.f32.mrf.mxu0
    %v1702 = vadd.f32 %v886, %v1701
    %v1703 = vpop.f32.mrf.mxu0
    %v1704 = vadd.f32 %v890, %v1703
    %1705 = vmatprep.mubr.bf16.mxu0 %v978
    %1706 = vmatmul.mubr.bf16.gmra.mxu0 %v977
    %v1707 = vpop.f32.mrf.mxu0
    %v1708 = vadd.f32 %v886, %v1707
    %v1709 = vpop.f32.mrf.mxu0
    %v1710 = vadd.f32 %v890, %v1709
    %v1711 = vpop.f32.mrf.mxu0
    %v1712 = vadd.f32 %v886, %v1711
    %v1713 = vpop.f32.mrf.mxu0
    %v1714 = vadd.f32 %v890, %v1713
    %1715 = vmatprep.mubr.bf16.mxu0 %v980
    %1716 = vmatmul.mubr.bf16.gmra.mxu0 %v979
    %v1717 = vpop.f32.mrf.mxu0
    %v1718 = vadd.f32 %v886, %v1717
    %v1719 = vpop.f32.mrf.mxu0
    %v1720 = vadd.f32 %v890, %v1719
    %v1721 = vpop.f32.mrf.mxu0
    %v1722 = vadd.f32 %v886, %v1721
    %v1723 = vpop.f32.mrf.mxu0
    %v1724 = vadd.f32 %v890, %v1723
    %1725 = vmatprep.mubr.bf16.mxu0 %v982
    %1726 = vmatmul.mubr.bf16.gmra.mxu0 %v981
    %v1727 = vpop.f32.mrf.mxu0
    %v1728 = vadd.f32 %v886, %v1727
    %v1729 = vpop.f32.mrf.mxu0
    %v1730 = vadd.f32 %v890, %v1729
    %v1731 = vpop.f32.mrf.mxu0
    %v1732 = vadd.f32 %v886, %v1731
    %v1733 = vpop.f32.mrf.mxu0
    %v1734 = vadd.f32 %v890, %v1733
    %1735 = vmatprep.mubr.bf16.mxu0 %v984
    %1736 = vmatmul.mubr.bf16.gmra.mxu0 %v983
    %v1737 = vpop.f32.mrf.mxu0
    %v1738 = vadd.f32 %v886, %v1737
    %v1739 = vpop.f32.mrf.mxu0
    %v1740 = vadd.f32 %v890, %v1739
    %v1741 = vpop.f32.mrf.mxu0
    %v1742 = vadd.f32 %v886, %v1741
    %v1743 = vpop.f32.mrf.mxu0
    %v1744 = vadd.f32 %v890, %v1743
    %1745 = vmatprep.mubr.bf16.mxu0 %v986
    %1746 = vmatmul.mubr.bf16.gmra.mxu0 %v985
    %v1747 = vpop.f32.mrf.mxu0
    %v1748 = vadd.f32 %v886, %v1747
    %v1749 = vpop.f32.mrf.mxu0
    %v1750 = vadd.f32 %v890, %v1749
    %v1751 = vpop.f32.mrf.mxu0
    %v1752 = vadd.f32 %v886, %v1751
    %v1753 = vpop.f32.mrf.mxu0
    %v1754 = vadd.f32 %v890, %v1753
    %1755 = vdwg.mxu0
    %1756 = vmatprep.subr.bf16.mxu0 %v1446
    %1757 = vmatpush1.bf16.msra.mxu0 %v1445
    %1758 = vmatprep.subr.bf16.mxu0 %v1438
    %1759 = vmatpush1.bf16.msra.mxu0 %v1437
    %1760 = vmatprep.subr.bf16.mxu0 %v1430
    %1761 = vmatpush1.bf16.msra.mxu0 %v1429
    %1762 = vmatprep.subr.bf16.mxu0 %v1422
    %1763 = vmatpush1.bf16.msra.mxu0 %v1421
    %1764 = vmatprep.subr.bf16.mxu0 %v1414
    %1765 = vmatpush1.bf16.msra.mxu0 %v1413
    %1766 = vmatprep.subr.bf16.mxu0 %v1406
    %1767 = vmatpush1.bf16.msra.mxu0 %v1405
    %1768 = vmatprep.subr.bf16.mxu0 %v1398
    %1769 = vmatpush1.bf16.msra.mxu0 %v1397
    %1770 = vmatprep.subr.bf16.mxu0 %v1390
    %1771 = vmatpush1.bf16.msra.mxu0 %v1389
    %1772 = vmatprep.subr.bf16.mxu0 %v1510
    %1773 = vmatpush2.bf16.msra.mxu0 %v1509
    %1774 = vmatprep.subr.bf16.mxu0 %v1502
    %1775 = vmatpush2.bf16.msra.mxu0 %v1501
    %1776 = vmatprep.subr.bf16.mxu0 %v1494
    %1777 = vmatpush2.bf16.msra.mxu0 %v1493
    %1778 = vmatprep.subr.bf16.mxu0 %v1486
    %1779 = vmatpush2.bf16.msra.mxu0 %v1485
    %1780 = vmatprep.subr.bf16.mxu0 %v1478
    %1781 = vmatpush2.bf16.msra.mxu0 %v1477
    %1782 = vmatprep.subr.bf16.mxu0 %v1470
    %1783 = vmatpush2.bf16.msra.mxu0 %v1469
    %1784 = vmatprep.subr.bf16.mxu0 %v1462
    %1785 = vmatpush2.bf16.msra.mxu0 %v1461
    %1786 = vmatprep.subr.bf16.mxu0 %v1454
    %1787 = vmatpush2.bf16.msra.mxu0 %v1453
    %1788 = vmatprep.mubr.bf16.mxu0 %v972
    %1789 = vmatmul.mubr.bf16.gmra.mxu0 %v971
    %v1790 = vpop.f32.mrf.mxu0
    %v1791 = vadd.f32 %v894, %v1790
    %v1792 = vpop.f32.mrf.mxu0
    %v1793 = vadd.f32 %v898, %v1792
    %v1794 = vpop.f32.mrf.mxu0
    %v1795 = vadd.f32 %v894, %v1794
    %v1796 = vpop.f32.mrf.mxu0
    %v1797 = vadd.f32 %v898, %v1796
    %1798 = vmatprep.mubr.bf16.mxu0 %v974
    %1799 = vmatmul.mubr.bf16.gmra.mxu0 %v973
    %v1800 = vpop.f32.mrf.mxu0
    %v1801 = vadd.f32 %v894, %v1800
    %v1802 = vpop.f32.mrf.mxu0
    %v1803 = vadd.f32 %v898, %v1802
    %v1804 = vpop.f32.mrf.mxu0
    %v1805 = vadd.f32 %v894, %v1804
    %v1806 = vpop.f32.mrf.mxu0
    %v1807 = vadd.f32 %v898, %v1806
    %1808 = vmatprep.mubr.bf16.mxu0 %v976
    %1809 = vmatmul.mubr.bf16.gmra.mxu0 %v975
    %v1810 = vpop.f32.mrf.mxu0
    %v1811 = vadd.f32 %v894, %v1810
    %v1812 = vpop.f32.mrf.mxu0
    %v1813 = vadd.f32 %v898, %v1812
    %v1814 = vpop.f32.mrf.mxu0
    %v1815 = vadd.f32 %v894, %v1814
    %v1816 = vpop.f32.mrf.mxu0
    %v1817 = vadd.f32 %v898, %v1816
    %1818 = vmatprep.mubr.bf16.mxu0 %v978
    %1819 = vmatmul.mubr.bf16.gmra.mxu0 %v977
    %v1820 = vpop.f32.mrf.mxu0
    %v1821 = vadd.f32 %v894, %v1820
    %v1822 = vpop.f32.mrf.mxu0
    %v1823 = vadd.f32 %v898, %v1822
    %v1824 = vpop.f32.mrf.mxu0
    %v1825 = vadd.f32 %v894, %v1824
    %v1826 = vpop.f32.mrf.mxu0
    %v1827 = vadd.f32 %v898, %v1826
    %1828 = vmatprep.mubr.bf16.mxu0 %v980
    %1829 = vmatmul.mubr.bf16.gmra.mxu0 %v979
    %v1830 = vpop.f32.mrf.mxu0
    %v1831 = vadd.f32 %v894, %v1830
    %v1832 = vpop.f32.mrf.mxu0
    %v1833 = vadd.f32 %v898, %v1832
    %v1834 = vpop.f32.mrf.mxu0
    %v1835 = vadd.f32 %v894, %v1834
    %v1836 = vpop.f32.mrf.mxu0
    %v1837 = vadd.f32 %v898, %v1836
    %1838 = vmatprep.mubr.bf16.mxu0 %v982
    %1839 = vmatmul.mubr.bf16.gmra.mxu0 %v981
    %v1840 = vpop.f32.mrf.mxu0
    %v1841 = vadd.f32 %v894, %v1840
    %v1842 = vpop.f32.mrf.mxu0
    %v1843 = vadd.f32 %v898, %v1842
    %v1844 = vpop.f32.mrf.mxu0
    %v1845 = vadd.f32 %v894, %v1844
    %v1846 = vpop.f32.mrf.mxu0
    %v1847 = vadd.f32 %v898, %v1846
    %1848 = vmatprep.mubr.bf16.mxu0 %v984
    %1849 = vmatmul.mubr.bf16.gmra.mxu0 %v983
    %v1850 = vpop.f32.mrf.mxu0
    %v1851 = vadd.f32 %v894, %v1850
    %v1852 = vpop.f32.mrf.mxu0
    %v1853 = vadd.f32 %v898, %v1852
    %v1854 = vpop.f32.mrf.mxu0
    %v1855 = vadd.f32 %v894, %v1854
    %v1856 = vpop.f32.mrf.mxu0
    %v1857 = vadd.f32 %v898, %v1856
    %1858 = vmatprep.mubr.bf16.mxu0 %v986
    %1859 = vmatmul.mubr.bf16.gmra.mxu0 %v985
    %v1860 = vpop.f32.mrf.mxu0
    %v1861 = vadd.f32 %v894, %v1860
    %v1862 = vpop.f32.mrf.mxu0
    %v1863 = vadd.f32 %v898, %v1862
    %v1864 = vpop.f32.mrf.mxu0
    %v1865 = vadd.f32 %v894, %v1864
    %v1866 = vpop.f32.mrf.mxu0
    %v1867 = vadd.f32 %v898, %v1866
    %1868 = vdwg.mxu0
    %1869 = vmatprep.subr.bf16.mxu0 %v1448
    %1870 = vmatpush1.bf16.msra.mxu0 %v1447
    %1871 = vmatprep.subr.bf16.mxu0 %v1440
    %1872 = vmatpush1.bf16.msra.mxu0 %v1439
    %1873 = vmatprep.subr.bf16.mxu0 %v1432
    %1874 = vmatpush1.bf16.msra.mxu0 %v1431
    %1875 = vmatprep.subr.bf16.mxu0 %v1424
    %1876 = vmatpush1.bf16.msra.mxu0 %v1423
    %1877 = vmatprep.subr.bf16.mxu0 %v1416
    %1878 = vmatpush1.bf16.msra.mxu0 %v1415
    %1879 = vmatprep.subr.bf16.mxu0 %v1408
    %1880 = vmatpush1.bf16.msra.mxu0 %v1407
    %1881 = vmatprep.subr.bf16.mxu0 %v1400
    %1882 = vmatpush1.bf16.msra.mxu0 %v1399
    %1883 = vmatprep.subr.bf16.mxu0 %v1392
    %1884 = vmatpush1.bf16.msra.mxu0 %v1391
    %1885 = vmatprep.subr.bf16.mxu0 %v1512
    %1886 = vmatpush2.bf16.msra.mxu0 %v1511
    %1887 = vmatprep.subr.bf16.mxu0 %v1504
    %1888 = vmatpush2.bf16.msra.mxu0 %v1503
    %1889 = vmatprep.subr.bf16.mxu0 %v1496
    %1890 = vmatpush2.bf16.msra.mxu0 %v1495
    %1891 = vmatprep.subr.bf16.mxu0 %v1488
    %1892 = vmatpush2.bf16.msra.mxu0 %v1487
    %1893 = vmatprep.subr.bf16.mxu0 %v1480
    %1894 = vmatpush2.bf16.msra.mxu0 %v1479
    %1895 = vmatprep.subr.bf16.mxu0 %v1472
    %1896 = vmatpush2.bf16.msra.mxu0 %v1471
    %1897 = vmatprep.subr.bf16.mxu0 %v1464
    %1898 = vmatpush2.bf16.msra.mxu0 %v1463
    %1899 = vmatprep.subr.bf16.mxu0 %v1456
    %1900 = vmatpush2.bf16.msra.mxu0 %v1455
    %1901 = vmatprep.mubr.bf16.mxu0 %v972
    %1902 = vmatmul.mubr.bf16.gmra.mxu0 %v971
    %v1903 = vpop.f32.mrf.mxu0
    %v1904 = vadd.f32 %v902, %v1903
    %v1905 = vpop.f32.mrf.mxu0
    %v1906 = vadd.f32 %v906, %v1905
    %v1907 = vpop.f32.mrf.mxu0
    %v1908 = vadd.f32 %v902, %v1907
    %v1909 = vpop.f32.mrf.mxu0
    %v1910 = vadd.f32 %v906, %v1909
    %1911 = vmatprep.mubr.bf16.mxu0 %v974
    %1912 = vmatmul.mubr.bf16.gmra.mxu0 %v973
    %v1913 = vpop.f32.mrf.mxu0
    %v1914 = vadd.f32 %v902, %v1913
    %v1915 = vpop.f32.mrf.mxu0
    %v1916 = vadd.f32 %v906, %v1915
    %v1917 = vpop.f32.mrf.mxu0
    %v1918 = vadd.f32 %v902, %v1917
    %v1919 = vpop.f32.mrf.mxu0
    %v1920 = vadd.f32 %v906, %v1919
    %1921 = vmatprep.mubr.bf16.mxu0 %v976
    %1922 = vmatmul.mubr.bf16.gmra.mxu0 %v975
    %v1923 = vpop.f32.mrf.mxu0
    %v1924 = vadd.f32 %v902, %v1923
    %v1925 = vpop.f32.mrf.mxu0
    %v1926 = vadd.f32 %v906, %v1925
    %v1927 = vpop.f32.mrf.mxu0
    %v1928 = vadd.f32 %v902, %v1927
    %v1929 = vpop.f32.mrf.mxu0
    %v1930 = vadd.f32 %v906, %v1929
    %1931 = vmatprep.mubr.bf16.mxu0 %v978
    %1932 = vmatmul.mubr.bf16.gmra.mxu0 %v977
    %v1933 = vpop.f32.mrf.mxu0
    %v1934 = vadd.f32 %v902, %v1933
    %v1935 = vpop.f32.mrf.mxu0
    %v1936 = vadd.f32 %v906, %v1935
    %v1937 = vpop.f32.mrf.mxu0
    %v1938 = vadd.f32 %v902, %v1937
    %v1939 = vpop.f32.mrf.mxu0
    %v1940 = vadd.f32 %v906, %v1939
    %1941 = vmatprep.mubr.bf16.mxu0 %v980
    %1942 = vmatmul.mubr.bf16.gmra.mxu0 %v979
    %v1943 = vpop.f32.mrf.mxu0
    %v1944 = vadd.f32 %v902, %v1943
    %v1945 = vpop.f32.mrf.mxu0
    %v1946 = vadd.f32 %v906, %v1945
    %v1947 = vpop.f32.mrf.mxu0
    %v1948 = vadd.f32 %v902, %v1947
    %v1949 = vpop.f32.mrf.mxu0
    %v1950 = vadd.f32 %v906, %v1949
    %1951 = vmatprep.mubr.bf16.mxu0 %v982
    %1952 = vmatmul.mubr.bf16.gmra.mxu0 %v981
    %v1953 = vpop.f32.mrf.mxu0
    %v1954 = vadd.f32 %v902, %v1953
    %v1955 = vpop.f32.mrf.mxu0
    %v1956 = vadd.f32 %v906, %v1955
    %v1957 = vpop.f32.mrf.mxu0
    %v1958 = vadd.f32 %v902, %v1957
    %v1959 = vpop.f32.mrf.mxu0
    %v1960 = vadd.f32 %v906, %v1959
    %1961 = vmatprep.mubr.bf16.mxu0 %v984
    %1962 = vmatmul.mubr.bf16.gmra.mxu0 %v983
    %v1963 = vpop.f32.mrf.mxu0
    %v1964 = vadd.f32 %v902, %v1963
    %v1965 = vpop.f32.mrf.mxu0
    %v1966 = vadd.f32 %v906, %v1965
    %v1967 = vpop.f32.mrf.mxu0
    %v1968 = vadd.f32 %v902, %v1967
    %v1969 = vpop.f32.mrf.mxu0
    %v1970 = vadd.f32 %v906, %v1969
    %1971 = vmatprep.mubr.bf16.mxu0 %v986
    %1972 = vmatmul.mubr.bf16.gmra.mxu0 %v985
    %v1973 = vpop.f32.mrf.mxu0
    %v1974 = vadd.f32 %v902, %v1973
    %v1975 = vpop.f32.mrf.mxu0
    %v1976 = vadd.f32 %v906, %v1975
    %v1977 = vpop.f32.mrf.mxu0
    %v1978 = vadd.f32 %v902, %v1977
    %v1979 = vpop.f32.mrf.mxu0
    %v1980 = vadd.f32 %v906, %v1979
    %1981 = vdwg.mxu0
    %1982 = vmatprep.subr.bf16.mxu0 %v1450
    %1983 = vmatpush1.bf16.msra.mxu0 %v1449
    %1984 = vmatprep.subr.bf16.mxu0 %v1442
    %1985 = vmatpush1.bf16.msra.mxu0 %v1441
    %1986 = vmatprep.subr.bf16.mxu0 %v1434
    %1987 = vmatpush1.bf16.msra.mxu0 %v1433
    %1988 = vmatprep.subr.bf16.mxu0 %v1426
    %1989 = vmatpush1.bf16.msra.mxu0 %v1425
    %1990 = vmatprep.subr.bf16.mxu0 %v1418
    %1991 = vmatpush1.bf16.msra.mxu0 %v1417
    %1992 = vmatprep.subr.bf16.mxu0 %v1410
    %1993 = vmatpush1.bf16.msra.mxu0 %v1409
    %1994 = vmatprep.subr.bf16.mxu0 %v1402
    %1995 = vmatpush1.bf16.msra.mxu0 %v1401
    %1996 = vmatprep.subr.bf16.mxu0 %v1394
    %1997 = vmatpush1.bf16.msra.mxu0 %v1393
    %1998 = vmatprep.subr.bf16.mxu0 %v1514
    %1999 = vmatpush2.bf16.msra.mxu0 %v1513
    %2000 = vmatprep.subr.bf16.mxu0 %v1506
    %2001 = vmatpush2.bf16.msra.mxu0 %v1505
    %2002 = vmatprep.subr.bf16.mxu0 %v1498
    %2003 = vmatpush2.bf16.msra.mxu0 %v1497
    %2004 = vmatprep.subr.bf16.mxu0 %v1490
    %2005 = vmatpush2.bf16.msra.mxu0 %v1489
    %2006 = vmatprep.subr.bf16.mxu0 %v1482
    %2007 = vmatpush2.bf16.msra.mxu0 %v1481
    %2008 = vmatprep.subr.bf16.mxu0 %v1474
    %2009 = vmatpush2.bf16.msra.mxu0 %v1473
    %2010 = vmatprep.subr.bf16.mxu0 %v1466
    %2011 = vmatpush2.bf16.msra.mxu0 %v1465
    %2012 = vmatprep.subr.bf16.mxu0 %v1458
    %2013 = vmatpush2.bf16.msra.mxu0 %v1457
    %2014 = vmatprep.mubr.bf16.mxu0 %v972
    %2015 = vmatmul.mubr.bf16.gmra.mxu0 %v971
    %v2016 = vpop.f32.mrf.mxu0
    %v2017 = vadd.f32 %v910, %v2016
    %v2018 = vpop.f32.mrf.mxu0
    %v2019 = vadd.f32 %v914, %v2018
    %v2020 = vpop.f32.mrf.mxu0
    %v2021 = vadd.f32 %v910, %v2020
    %v2022 = vpop.f32.mrf.mxu0
    %v2023 = vadd.f32 %v914, %v2022
    %2024 = vmatprep.mubr.bf16.mxu0 %v974
    %2025 = vmatmul.mubr.bf16.gmra.mxu0 %v973
    %v2026 = vpop.f32.mrf.mxu0
    %v2027 = vadd.f32 %v910, %v2026
    %v2028 = vpop.f32.mrf.mxu0
    %v2029 = vadd.f32 %v914, %v2028
    %v2030 = vpop.f32.mrf.mxu0
    %v2031 = vadd.f32 %v910, %v2030
    %v2032 = vpop.f32.mrf.mxu0
    %v2033 = vadd.f32 %v914, %v2032
    %2034 = vmatprep.mubr.bf16.mxu0 %v976
    %2035 = vmatmul.mubr.bf16.gmra.mxu0 %v975
    %v2036 = vpop.f32.mrf.mxu0
    %v2037 = vadd.f32 %v910, %v2036
    %v2038 = vpop.f32.mrf.mxu0
    %v2039 = vadd.f32 %v914, %v2038
    %v2040 = vpop.f32.mrf.mxu0
    %v2041 = vadd.f32 %v910, %v2040
    %v2042 = vpop.f32.mrf.mxu0
    %v2043 = vadd.f32 %v914, %v2042
    %2044 = vmatprep.mubr.bf16.mxu0 %v978
    %2045 = vmatmul.mubr.bf16.gmra.mxu0 %v977
    %v2046 = vpop.f32.mrf.mxu0
    %v2047 = vadd.f32 %v910, %v2046
    %v2048 = vpop.f32.mrf.mxu0
    %v2049 = vadd.f32 %v914, %v2048
    %v2050 = vpop.f32.mrf.mxu0
    %v2051 = vadd.f32 %v910, %v2050
    %v2052 = vpop.f32.mrf.mxu0
    %v2053 = vadd.f32 %v914, %v2052
    %2054 = vmatprep.mubr.bf16.mxu0 %v980
    %2055 = vmatmul.mubr.bf16.gmra.mxu0 %v979
    %v2056 = vpop.f32.mrf.mxu0
    %v2057 = vadd.f32 %v910, %v2056
    %v2058 = vpop.f32.mrf.mxu0
    %v2059 = vadd.f32 %v914, %v2058
    %v2060 = vpop.f32.mrf.mxu0
    %v2061 = vadd.f32 %v910, %v2060
    %v2062 = vpop.f32.mrf.mxu0
    %v2063 = vadd.f32 %v914, %v2062
    %2064 = vmatprep.mubr.bf16.mxu0 %v982
    %2065 = vmatmul.mubr.bf16.gmra.mxu0 %v981
    %v2066 = vpop.f32.mrf.mxu0
    %v2067 = vadd.f32 %v910, %v2066
    %v2068 = vpop.f32.mrf.mxu0
    %v2069 = vadd.f32 %v914, %v2068
    %v2070 = vpop.f32.mrf.mxu0
    %v2071 = vadd.f32 %v910, %v2070
    %v2072 = vpop.f32.mrf.mxu0
    %v2073 = vadd.f32 %v914, %v2072
    %2074 = vmatprep.mubr.bf16.mxu0 %v984
    %2075 = vmatmul.mubr.bf16.gmra.mxu0 %v983
    %v2076 = vpop.f32.mrf.mxu0
    %v2077 = vadd.f32 %v910, %v2076
    %v2078 = vpop.f32.mrf.mxu0
    %v2079 = vadd.f32 %v914, %v2078
    %v2080 = vpop.f32.mrf.mxu0
    %v2081 = vadd.f32 %v910, %v2080
    %v2082 = vpop.f32.mrf.mxu0
    %v2083 = vadd.f32 %v914, %v2082
    %2084 = vmatprep.mubr.bf16.mxu0 %v986
    %2085 = vmatmul.mubr.bf16.gmra.mxu0 %v985
    %v2086 = vpop.f32.mrf.mxu0
    %v2087 = vadd.f32 %v910, %v2086
    %v2088 = vpop.f32.mrf.mxu0
    %v2089 = vadd.f32 %v914, %v2088
    %v2090 = vpop.f32.mrf.mxu0
    %v2091 = vadd.f32 %v910, %v2090
    %v2092 = vpop.f32.mrf.mxu0
    %v2093 = vadd.f32 %v914, %v2092
    %2094 = vdwg.mxu0
    %v2095 = vmax.f32 %v1678, 0.0
    %v2096 = vmax.f32 %v1680, 0.0
    %v2097 = vmax.f32 %v1791, 0.0
    %v2098 = vmax.f32 %v1793, 0.0
    %v2099 = vmax.f32 %v1904, 0.0
    %v2100 = vmax.f32 %v1906, 0.0
    %v2101 = vmax.f32 %v2017, 0.0
    %v2102 = vmax.f32 %v2019, 0.0
    %v2103 = vmax.f32 %v1682, 0.0
    %v2104 = vmax.f32 %v1684, 0.0
    %v2105 = vmax.f32 %v1795, 0.0
    %v2106 = vmax.f32 %v1797, 0.0
    %v2107 = vmax.f32 %v1908, 0.0
    %v2108 = vmax.f32 %v1910, 0.0
    %v2109 = vmax.f32 %v2021, 0.0
    %v2110 = vmax.f32 %v2023, 0.0
    %v2111 = vmax.f32 %v1688, 0.0
    %v2112 = vmax.f32 %v1690, 0.0
    %v2113 = vmax.f32 %v1801, 0.0
    %v2114 = vmax.f32 %v1803, 0.0
    %v2115 = vmax.f32 %v1914, 0.0
    %v2116 = vmax.f32 %v1916, 0.0
    %v2117 = vmax.f32 %v2027, 0.0
    %v2118 = vmax.f32 %v2029, 0.0
    %v2119 = vmax.f32 %v1692, 0.0
    %v2120 = vmax.f32 %v1694, 0.0
    %v2121 = vmax.f32 %v1805, 0.0
    %v2122 = vmax.f32 %v1807, 0.0
    %v2123 = vmax.f32 %v1918, 0.0
    %v2124 = vmax.f32 %v1920, 0.0
    %v2125 = vmax.f32 %v2031, 0.0
    %v2126 = vmax.f32 %v2033, 0.0
    %v2127 = vmax.f32 %v1698, 0.0
    %v2128 = vmax.f32 %v1700, 0.0
    %v2129 = vmax.f32 %v1811, 0.0
    %v2130 = vmax.f32 %v1813, 0.0
    %v2131 = vmax.f32 %v1924, 0.0
    %v2132 = vmax.f32 %v1926, 0.0
    %v2133 = vmax.f32 %v2037, 0.0
    %v2134 = vmax.f32 %v2039, 0.0
    %v2135 = vmax.f32 %v1702, 0.0
    %v2136 = vmax.f32 %v1704, 0.0
    %v2137 = vmax.f32 %v1815, 0.0
    %v2138 = vmax.f32 %v1817, 0.0
    %v2139 = vmax.f32 %v1928, 0.0
    %v2140 = vmax.f32 %v1930, 0.0
    %v2141 = vmax.f32 %v2041, 0.0
    %v2142 = vmax.f32 %v2043, 0.0
    %v2143 = vmax.f32 %v1708, 0.0
    %v2144 = vmax.f32 %v1710, 0.0
    %v2145 = vmax.f32 %v1821, 0.0
    %v2146 = vmax.f32 %v1823, 0.0
    %v2147 = vmax.f32 %v1934, 0.0
    %v2148 = vmax.f32 %v1936, 0.0
    %v2149 = vmax.f32 %v2047, 0.0
    %v2150 = vmax.f32 %v2049, 0.0
    %v2151 = vmax.f32 %v1712, 0.0
    %v2152 = vmax.f32 %v1714, 0.0
    %v2153 = vmax.f32 %v1825, 0.0
    %v2154 = vmax.f32 %v1827, 0.0
    %v2155 = vmax.f32 %v1938, 0.0
    %v2156 = vmax.f32 %v1940, 0.0
    %v2157 = vmax.f32 %v2051, 0.0
    %v2158 = vmax.f32 %v2053, 0.0
    %v2159 = vmax.f32 %v1718, 0.0
    %v2160 = vmax.f32 %v1720, 0.0
    %v2161 = vmax.f32 %v1831, 0.0
    %v2162 = vmax.f32 %v1833, 0.0
    %v2163 = vmax.f32 %v1944, 0.0
    %v2164 = vmax.f32 %v1946, 0.0
    %v2165 = vmax.f32 %v2057, 0.0
    %v2166 = vmax.f32 %v2059, 0.0
    %v2167 = vmax.f32 %v1722, 0.0
    %v2168 = vmax.f32 %v1724, 0.0
    %v2169 = vmax.f32 %v1835, 0.0
    %v2170 = vmax.f32 %v1837, 0.0
    %v2171 = vmax.f32 %v1948, 0.0
    %v2172 = vmax.f32 %v1950, 0.0
    %v2173 = vmax.f32 %v2061, 0.0
    %v2174 = vmax.f32 %v2063, 0.0
    %v2175 = vmax.f32 %v1728, 0.0
    %v2176 = vmax.f32 %v1730, 0.0
    %v2177 = vmax.f32 %v1841, 0.0
    %v2178 = vmax.f32 %v1843, 0.0
    %v2179 = vmax.f32 %v1954, 0.0
    %v2180 = vmax.f32 %v1956, 0.0
    %v2181 = vmax.f32 %v2067, 0.0
    %v2182 = vmax.f32 %v2069, 0.0
    %v2183 = vmax.f32 %v1732, 0.0
    %v2184 = vmax.f32 %v1734, 0.0
    %v2185 = vmax.f32 %v1845, 0.0
    %v2186 = vmax.f32 %v1847, 0.0
    %v2187 = vmax.f32 %v1958, 0.0
    %v2188 = vmax.f32 %v1960, 0.0
    %v2189 = vmax.f32 %v2071, 0.0
    %v2190 = vmax.f32 %v2073, 0.0
    %v2191 = vmax.f32 %v1738, 0.0
    %v2192 = vmax.f32 %v1740, 0.0
    %v2193 = vmax.f32 %v1851, 0.0
    %v2194 = vmax.f32 %v1853, 0.0
    %v2195 = vmax.f32 %v1964, 0.0
    %v2196 = vmax.f32 %v1966, 0.0
    %v2197 = vmax.f32 %v2077, 0.0
    %v2198 = vmax.f32 %v2079, 0.0
    %v2199 = vmax.f32 %v1742, 0.0
    %v2200 = vmax.f32 %v1744, 0.0
    %v2201 = vmax.f32 %v1855, 0.0
    %v2202 = vmax.f32 %v1857, 0.0
    %v2203 = vmax.f32 %v1968, 0.0
    %v2204 = vmax.f32 %v1970, 0.0
    %v2205 = vmax.f32 %v2081, 0.0
    %v2206 = vmax.f32 %v2083, 0.0
    %v2207 = vmax.f32 %v1748, 0.0
    %v2208 = vmax.f32 %v1750, 0.0
    %v2209 = vmax.f32 %v1861, 0.0
    %v2210 = vmax.f32 %v1863, 0.0
    %v2211 = vmax.f32 %v1974, 0.0
    %v2212 = vmax.f32 %v1976, 0.0
    %v2213 = vmax.f32 %v2087, 0.0
    %v2214 = vmax.f32 %v2089, 0.0
    %v2215 = vmax.f32 %v1752, 0.0
    %v2216 = vmax.f32 %v1754, 0.0
    %v2217 = vmax.f32 %v1865, 0.0
    %v2218 = vmax.f32 %v1867, 0.0
    %v2219 = vmax.f32 %v1978, 0.0
    %v2220 = vmax.f32 %v1980, 0.0
    %v2221 = vmax.f32 %v2091, 0.0
    %v2222 = vmax.f32 %v2093, 0.0
    %v2223 = vpack.c.bf16 %v2103, %v2095
    %v2224 = vpack.c.bf16 %v2104, %v2096
    %v2225 = vpack.c.bf16 %v2105, %v2097
    %v2226 = vpack.c.bf16 %v2106, %v2098
    %v2227 = vpack.c.bf16 %v2107, %v2099
    %v2228 = vpack.c.bf16 %v2108, %v2100
    %v2229 = vpack.c.bf16 %v2109, %v2101
    %v2230 = vpack.c.bf16 %v2110, %v2102
    %v2231 = vpack.c.bf16 %v2119, %v2111
    %v2232 = vpack.c.bf16 %v2120, %v2112
    %v2233 = vpack.c.bf16 %v2121, %v2113
    %v2234 = vpack.c.bf16 %v2122, %v2114
    %v2235 = vpack.c.bf16 %v2123, %v2115
    %v2236 = vpack.c.bf16 %v2124, %v2116
    %v2237 = vpack.c.bf16 %v2125, %v2117
    %v2238 = vpack.c.bf16 %v2126, %v2118
    %v2239 = vpack.c.bf16 %v2135, %v2127
    %v2240 = vpack.c.bf16 %v2136, %v2128
    %v2241 = vpack.c.bf16 %v2137, %v2129
    %v2242 = vpack.c.bf16 %v2138, %v2130
    %v2243 = vpack.c.bf16 %v2139, %v2131
    %v2244 = vpack.c.bf16 %v2140, %v2132
    %v2245 = vpack.c.bf16 %v2141, %v2133
    %v2246 = vpack.c.bf16 %v2142, %v2134
    %v2247 = vpack.c.bf16 %v2151, %v2143
    %v2248 = vpack.c.bf16 %v2152, %v2144
    %v2249 = vpack.c.bf16 %v2153, %v2145
    %v2250 = vpack.c.bf16 %v2154, %v2146
    %v2251 = vpack.c.bf16 %v2155, %v2147
    %v2252 = vpack.c.bf16 %v2156, %v2148
    %v2253 = vpack.c.bf16 %v2157, %v2149
    %v2254 = vpack.c.bf16 %v2158, %v2150
    %v2255 = vpack.c.bf16 %v2167, %v2159
    %v2256 = vpack.c.bf16 %v2168, %v2160
    %v2257 = vpack.c.bf16 %v2169, %v2161
    %v2258 = vpack.c.bf16 %v2170, %v2162
    %v2259 = vpack.c.bf16 %v2171, %v2163
    %v2260 = vpack.c.bf16 %v2172, %v2164
    %v2261 = vpack.c.bf16 %v2173, %v2165
    %v2262 = vpack.c.bf16 %v2174, %v2166
    %v2263 = vpack.c.bf16 %v2183, %v2175
    %v2264 = vpack.c.bf16 %v2184, %v2176
    %v2265 = vpack.c.bf16 %v2185, %v2177
    %v2266 = vpack.c.bf16 %v2186, %v2178
    %v2267 = vpack.c.bf16 %v2187, %v2179
    %v2268 = vpack.c.bf16 %v2188, %v2180
    %v2269 = vpack.c.bf16 %v2189, %v2181
    %v2270 = vpack.c.bf16 %v2190, %v2182
    %v2271 = vpack.c.bf16 %v2199, %v2191
    %v2272 = vpack.c.bf16 %v2200, %v2192
    %v2273 = vpack.c.bf16 %v2201, %v2193
    %v2274 = vpack.c.bf16 %v2202, %v2194
    %v2275 = vpack.c.bf16 %v2203, %v2195
    %v2276 = vpack.c.bf16 %v2204, %v2196
    %v2277 = vpack.c.bf16 %v2205, %v2197
    %v2278 = vpack.c.bf16 %v2206, %v2198
    %v2279 = vpack.c.bf16 %v2215, %v2207
    %v2280 = vpack.c.bf16 %v2216, %v2208
    %v2281 = vpack.c.bf16 %v2217, %v2209
    %v2282 = vpack.c.bf16 %v2218, %v2210
    %v2283 = vpack.c.bf16 %v2219, %v2211
    %v2284 = vpack.c.bf16 %v2220, %v2212
    %v2285 = vpack.c.bf16 %v2221, %v2213
    %v2286 = vpack.c.bf16 %v2222, %v2214
    // Predicated region
    $region96: #{tpu_custom_call.1} parent=1 // pred_check
      %p2287 = pneg %p76
    $region97: #{tpu_custom_call.1} parent=1 // pred_check_branch
      %2289 = sbr.rel (%p2287) target = $region99
    $region98: #{tpu_custom_call.1} parent=1 // pred_region
      %s2290 = smul.u32 4, 128
      %s2291 = smul.u32 %s2290, 4
      %s2292 = sshll.u32 %s2291, 4
      %2293 = dma.done [#allocation8], %s2292
    $region99: #{tpu_custom_call.1} parent=1 // pred_fallthru
      _
    %v2294 = vld [vmem:[#allocation3] sm:$0xff]
    %v2295 = vld [vmem:[#allocation3 + $0x8] sm:$0xff]
    %v2296 = vld [vmem:[#allocation3 + $0x10] sm:$0xff]
    %v2297 = vld [vmem:[#allocation3 + $0x18] sm:$0xff]
    %v2298 = vld [vmem:[#allocation3 + $0x20] sm:$0xff]
    %v2299 = vld [vmem:[#allocation3 + $0x28] sm:$0xff]
    %v2300 = vld [vmem:[#allocation3 + $0x30] sm:$0xff]
    %v2301 = vld [vmem:[#allocation3 + $0x38] sm:$0xff]
    %v2302 = vld [vmem:[#allocation3 + $0x40] sm:$0xff]
    %v2303 = vld [vmem:[#allocation3 + $0x48] sm:$0xff]
    %v2304 = vld [vmem:[#allocation3 + $0x50] sm:$0xff]
    %v2305 = vld [vmem:[#allocation3 + $0x58] sm:$0xff]
    %v2306 = vld [vmem:[#allocation3 + $0x60] sm:$0xff]
    %v2307 = vld [vmem:[#allocation3 + $0x68] sm:$0xff]
    %v2308 = vld [vmem:[#allocation3 + $0x70] sm:$0xff]
    %v2309 = vld [vmem:[#allocation3 + $0x78] sm:$0xff]
    %v2310 = vld [vmem:[#allocation3 + $0x80] sm:$0xff]
    %v2311 = vld [vmem:[#allocation3 + $0x88] sm:$0xff]
    %v2312 = vld [vmem:[#allocation3 + $0x90] sm:$0xff]
    %v2313 = vld [vmem:[#allocation3 + $0x98] sm:$0xff]
    %v2314 = vld [vmem:[#allocation3 + $0xa0] sm:$0xff]
    %v2315 = vld [vmem:[#allocation3 + $0xa8] sm:$0xff]
    %v2316 = vld [vmem:[#allocation3 + $0xb0] sm:$0xff]
    %v2317 = vld [vmem:[#allocation3 + $0xb8] sm:$0xff]
    %v2318 = vld [vmem:[#allocation3 + $0xc0] sm:$0xff]
    %v2319 = vld [vmem:[#allocation3 + $0xc8] sm:$0xff]
    %v2320 = vld [vmem:[#allocation3 + $0xd0] sm:$0xff]
    %v2321 = vld [vmem:[#allocation3 + $0xd8] sm:$0xff]
    %v2322 = vld [vmem:[#allocation3 + $0xe0] sm:$0xff]
    %v2323 = vld [vmem:[#allocation3 + $0xe8] sm:$0xff]
    %v2324 = vld [vmem:[#allocation3 + $0xf0] sm:$0xff]
    %v2325 = vld [vmem:[#allocation3 + $0xf8] sm:$0xff]
    %v2326 = vld [vmem:[#allocation3 + $0x100] sm:$0xff]
    %v2327 = vld [vmem:[#allocation3 + $0x108] sm:$0xff]
    %v2328 = vld [vmem:[#allocation3 + $0x110] sm:$0xff]
    %v2329 = vld [vmem:[#allocation3 + $0x118] sm:$0xff]
    %v2330 = vld [vmem:[#allocation3 + $0x120] sm:$0xff]
    %v2331 = vld [vmem:[#allocation3 + $0x128] sm:$0xff]
    %v2332 = vld [vmem:[#allocation3 + $0x130] sm:$0xff]
    %v2333 = vld [vmem:[#allocation3 + $0x138] sm:$0xff]
    %v2334 = vld [vmem:[#allocation3 + $0x140] sm:$0xff]
    %v2335 = vld [vmem:[#allocation3 + $0x148] sm:$0xff]
    %v2336 = vld [vmem:[#allocation3 + $0x150] sm:$0xff]
    %v2337 = vld [vmem:[#allocation3 + $0x158] sm:$0xff]
    %v2338 = vld [vmem:[#allocation3 + $0x160] sm:$0xff]
    %v2339 = vld [vmem:[#allocation3 + $0x168] sm:$0xff]
    %v2340 = vld [vmem:[#allocation3 + $0x170] sm:$0xff]
    %v2341 = vld [vmem:[#allocation3 + $0x178] sm:$0xff]
    %v2342 = vld [vmem:[#allocation3 + $0x180] sm:$0xff]
    %v2343 = vld [vmem:[#allocation3 + $0x188] sm:$0xff]
    %v2344 = vld [vmem:[#allocation3 + $0x190] sm:$0xff]
    %v2345 = vld [vmem:[#allocation3 + $0x198] sm:$0xff]
    %v2346 = vld [vmem:[#allocation3 + $0x1a0] sm:$0xff]
    %v2347 = vld [vmem:[#allocation3 + $0x1a8] sm:$0xff]
    %v2348 = vld [vmem:[#allocation3 + $0x1b0] sm:$0xff]
    %v2349 = vld [vmem:[#allocation3 + $0x1b8] sm:$0xff]
    %v2350 = vld [vmem:[#allocation3 + $0x1c0] sm:$0xff]
    %v2351 = vld [vmem:[#allocation3 + $0x1c8] sm:$0xff]
    %v2352 = vld [vmem:[#allocation3 + $0x1d0] sm:$0xff]
    %v2353 = vld [vmem:[#allocation3 + $0x1d8] sm:$0xff]
    %v2354 = vld [vmem:[#allocation3 + $0x1e0] sm:$0xff]
    %v2355 = vld [vmem:[#allocation3 + $0x1e8] sm:$0xff]
    %v2356 = vld [vmem:[#allocation3 + $0x1f0] sm:$0xff]
    %v2357 = vld [vmem:[#allocation3 + $0x1f8] sm:$0xff]
    %v2358 = vld [vmem:[#allocation3 + $0x200] sm:$0xff]
    %v2359 = vld [vmem:[#allocation3 + $0x208] sm:$0xff]
    %v2360 = vld [vmem:[#allocation3 + $0x210] sm:$0xff]
    %v2361 = vld [vmem:[#allocation3 + $0x218] sm:$0xff]
    %v2362 = vld [vmem:[#allocation3 + $0x220] sm:$0xff]
    %v2363 = vld [vmem:[#allocation3 + $0x228] sm:$0xff]
    %v2364 = vld [vmem:[#allocation3 + $0x230] sm:$0xff]
    %v2365 = vld [vmem:[#allocation3 + $0x238] sm:$0xff]
    %v2366 = vld [vmem:[#allocation3 + $0x240] sm:$0xff]
    %v2367 = vld [vmem:[#allocation3 + $0x248] sm:$0xff]
    %v2368 = vld [vmem:[#allocation3 + $0x250] sm:$0xff]
    %v2369 = vld [vmem:[#allocation3 + $0x258] sm:$0xff]
    %v2370 = vld [vmem:[#allocation3 + $0x260] sm:$0xff]
    %v2371 = vld [vmem:[#allocation3 + $0x268] sm:$0xff]
    %v2372 = vld [vmem:[#allocation3 + $0x270] sm:$0xff]
    %v2373 = vld [vmem:[#allocation3 + $0x278] sm:$0xff]
    %v2374 = vld [vmem:[#allocation3 + $0x280] sm:$0xff]
    %v2375 = vld [vmem:[#allocation3 + $0x288] sm:$0xff]
    %v2376 = vld [vmem:[#allocation3 + $0x290] sm:$0xff]
    %v2377 = vld [vmem:[#allocation3 + $0x298] sm:$0xff]
    %v2378 = vld [vmem:[#allocation3 + $0x2a0] sm:$0xff]
    %v2379 = vld [vmem:[#allocation3 + $0x2a8] sm:$0xff]
    %v2380 = vld [vmem:[#allocation3 + $0x2b0] sm:$0xff]
    %v2381 = vld [vmem:[#allocation3 + $0x2b8] sm:$0xff]
    %v2382 = vld [vmem:[#allocation3 + $0x2c0] sm:$0xff]
    %v2383 = vld [vmem:[#allocation3 + $0x2c8] sm:$0xff]
    %v2384 = vld [vmem:[#allocation3 + $0x2d0] sm:$0xff]
    %v2385 = vld [vmem:[#allocation3 + $0x2d8] sm:$0xff]
    %v2386 = vld [vmem:[#allocation3 + $0x2e0] sm:$0xff]
    %v2387 = vld [vmem:[#allocation3 + $0x2e8] sm:$0xff]
    %v2388 = vld [vmem:[#allocation3 + $0x2f0] sm:$0xff]
    %v2389 = vld [vmem:[#allocation3 + $0x2f8] sm:$0xff]
    %v2390 = vld [vmem:[#allocation3 + $0x300] sm:$0xff]
    %v2391 = vld [vmem:[#allocation3 + $0x308] sm:$0xff]
    %v2392 = vld [vmem:[#allocation3 + $0x310] sm:$0xff]
    %v2393 = vld [vmem:[#allocation3 + $0x318] sm:$0xff]
    %v2394 = vld [vmem:[#allocation3 + $0x320] sm:$0xff]
    %v2395 = vld [vmem:[#allocation3 + $0x328] sm:$0xff]
    %v2396 = vld [vmem:[#allocation3 + $0x330] sm:$0xff]
    %v2397 = vld [vmem:[#allocation3 + $0x338] sm:$0xff]
    %v2398 = vld [vmem:[#allocation3 + $0x340] sm:$0xff]
    %v2399 = vld [vmem:[#allocation3 + $0x348] sm:$0xff]
    %v2400 = vld [vmem:[#allocation3 + $0x350] sm:$0xff]
    %v2401 = vld [vmem:[#allocation3 + $0x358] sm:$0xff]
    %v2402 = vld [vmem:[#allocation3 + $0x360] sm:$0xff]
    %v2403 = vld [vmem:[#allocation3 + $0x368] sm:$0xff]
    %v2404 = vld [vmem:[#allocation3 + $0x370] sm:$0xff]
    %v2405 = vld [vmem:[#allocation3 + $0x378] sm:$0xff]
    %v2406 = vld [vmem:[#allocation3 + $0x380] sm:$0xff]
    %v2407 = vld [vmem:[#allocation3 + $0x388] sm:$0xff]
    %v2408 = vld [vmem:[#allocation3 + $0x390] sm:$0xff]
    %v2409 = vld [vmem:[#allocation3 + $0x398] sm:$0xff]
    %v2410 = vld [vmem:[#allocation3 + $0x3a0] sm:$0xff]
    %v2411 = vld [vmem:[#allocation3 + $0x3a8] sm:$0xff]
    %v2412 = vld [vmem:[#allocation3 + $0x3b0] sm:$0xff]
    %v2413 = vld [vmem:[#allocation3 + $0x3b8] sm:$0xff]
    %v2414 = vld [vmem:[#allocation3 + $0x3c0] sm:$0xff]
    %v2415 = vld [vmem:[#allocation3 + $0x3c8] sm:$0xff]
    %v2416 = vld [vmem:[#allocation3 + $0x3d0] sm:$0xff]
    %v2417 = vld [vmem:[#allocation3 + $0x3d8] sm:$0xff]
    %v2418 = vld [vmem:[#allocation3 + $0x3e0] sm:$0xff]
    %v2419 = vld [vmem:[#allocation3 + $0x3e8] sm:$0xff]
    %v2420 = vld [vmem:[#allocation3 + $0x3f0] sm:$0xff]
    %v2421 = vld [vmem:[#allocation3 + $0x3f8] sm:$0xff]
    %v2422 = vld [vmem:[#allocation3 + $0x400] sm:$0xff]
    %v2423 = vld [vmem:[#allocation3 + $0x408] sm:$0xff]
    %v2424 = vld [vmem:[#allocation3 + $0x410] sm:$0xff]
    %v2425 = vld [vmem:[#allocation3 + $0x418] sm:$0xff]
    %v2426 = vld [vmem:[#allocation3 + $0x420] sm:$0xff]
    %v2427 = vld [vmem:[#allocation3 + $0x428] sm:$0xff]
    %v2428 = vld [vmem:[#allocation3 + $0x430] sm:$0xff]
    %v2429 = vld [vmem:[#allocation3 + $0x438] sm:$0xff]
    %v2430 = vld [vmem:[#allocation3 + $0x440] sm:$0xff]
    %v2431 = vld [vmem:[#allocation3 + $0x448] sm:$0xff]
    %v2432 = vld [vmem:[#allocation3 + $0x450] sm:$0xff]
    %v2433 = vld [vmem:[#allocation3 + $0x458] sm:$0xff]
    %v2434 = vld [vmem:[#allocation3 + $0x460] sm:$0xff]
    %v2435 = vld [vmem:[#allocation3 + $0x468] sm:$0xff]
    %v2436 = vld [vmem:[#allocation3 + $0x470] sm:$0xff]
    %v2437 = vld [vmem:[#allocation3 + $0x478] sm:$0xff]
    %v2438 = vld [vmem:[#allocation3 + $0x480] sm:$0xff]
    %v2439 = vld [vmem:[#allocation3 + $0x488] sm:$0xff]
    %v2440 = vld [vmem:[#allocation3 + $0x490] sm:$0xff]
    %v2441 = vld [vmem:[#allocation3 + $0x498] sm:$0xff]
    %v2442 = vld [vmem:[#allocation3 + $0x4a0] sm:$0xff]
    %v2443 = vld [vmem:[#allocation3 + $0x4a8] sm:$0xff]
    %v2444 = vld [vmem:[#allocation3 + $0x4b0] sm:$0xff]
    %v2445 = vld [vmem:[#allocation3 + $0x4b8] sm:$0xff]
    %v2446 = vld [vmem:[#allocation3 + $0x4c0] sm:$0xff]
    %v2447 = vld [vmem:[#allocation3 + $0x4c8] sm:$0xff]
    %v2448 = vld [vmem:[#allocation3 + $0x4d0] sm:$0xff]
    %v2449 = vld [vmem:[#allocation3 + $0x4d8] sm:$0xff]
    %v2450 = vld [vmem:[#allocation3 + $0x4e0] sm:$0xff]
    %v2451 = vld [vmem:[#allocation3 + $0x4e8] sm:$0xff]
    %v2452 = vld [vmem:[#allocation3 + $0x4f0] sm:$0xff]
    %v2453 = vld [vmem:[#allocation3 + $0x4f8] sm:$0xff]
    %v2454 = vld [vmem:[#allocation3 + $0x500] sm:$0xff]
    %v2455 = vld [vmem:[#allocation3 + $0x508] sm:$0xff]
    %v2456 = vld [vmem:[#allocation3 + $0x510] sm:$0xff]
    %v2457 = vld [vmem:[#allocation3 + $0x518] sm:$0xff]
    %v2458 = vld [vmem:[#allocation3 + $0x520] sm:$0xff]
    %v2459 = vld [vmem:[#allocation3 + $0x528] sm:$0xff]
    %v2460 = vld [vmem:[#allocation3 + $0x530] sm:$0xff]
    %v2461 = vld [vmem:[#allocation3 + $0x538] sm:$0xff]
    %v2462 = vld [vmem:[#allocation3 + $0x540] sm:$0xff]
    %v2463 = vld [vmem:[#allocation3 + $0x548] sm:$0xff]
    %v2464 = vld [vmem:[#allocation3 + $0x550] sm:$0xff]
    %v2465 = vld [vmem:[#allocation3 + $0x558] sm:$0xff]
    %v2466 = vld [vmem:[#allocation3 + $0x560] sm:$0xff]
    %v2467 = vld [vmem:[#allocation3 + $0x568] sm:$0xff]
    %v2468 = vld [vmem:[#allocation3 + $0x570] sm:$0xff]
    %v2469 = vld [vmem:[#allocation3 + $0x578] sm:$0xff]
    %v2470 = vld [vmem:[#allocation3 + $0x580] sm:$0xff]
    %v2471 = vld [vmem:[#allocation3 + $0x588] sm:$0xff]
    %v2472 = vld [vmem:[#allocation3 + $0x590] sm:$0xff]
    %v2473 = vld [vmem:[#allocation3 + $0x598] sm:$0xff]
    %v2474 = vld [vmem:[#allocation3 + $0x5a0] sm:$0xff]
    %v2475 = vld [vmem:[#allocation3 + $0x5a8] sm:$0xff]
    %v2476 = vld [vmem:[#allocation3 + $0x5b0] sm:$0xff]
    %v2477 = vld [vmem:[#allocation3 + $0x5b8] sm:$0xff]
    %v2478 = vld [vmem:[#allocation3 + $0x5c0] sm:$0xff]
    %v2479 = vld [vmem:[#allocation3 + $0x5c8] sm:$0xff]
    %v2480 = vld [vmem:[#allocation3 + $0x5d0] sm:$0xff]
    %v2481 = vld [vmem:[#allocation3 + $0x5d8] sm:$0xff]
    %v2482 = vld [vmem:[#allocation3 + $0x5e0] sm:$0xff]
    %v2483 = vld [vmem:[#allocation3 + $0x5e8] sm:$0xff]
    %v2484 = vld [vmem:[#allocation3 + $0x5f0] sm:$0xff]
    %v2485 = vld [vmem:[#allocation3 + $0x5f8] sm:$0xff]
    %v2486 = vld [vmem:[#allocation3 + $0x600] sm:$0xff]
    %v2487 = vld [vmem:[#allocation3 + $0x608] sm:$0xff]
    %v2488 = vld [vmem:[#allocation3 + $0x610] sm:$0xff]
    %v2489 = vld [vmem:[#allocation3 + $0x618] sm:$0xff]
    %v2490 = vld [vmem:[#allocation3 + $0x620] sm:$0xff]
    %v2491 = vld [vmem:[#allocation3 + $0x628] sm:$0xff]
    %v2492 = vld [vmem:[#allocation3 + $0x630] sm:$0xff]
    %v2493 = vld [vmem:[#allocation3 + $0x638] sm:$0xff]
    %v2494 = vld [vmem:[#allocation3 + $0x640] sm:$0xff]
    %v2495 = vld [vmem:[#allocation3 + $0x648] sm:$0xff]
    %v2496 = vld [vmem:[#allocation3 + $0x650] sm:$0xff]
    %v2497 = vld [vmem:[#allocation3 + $0x658] sm:$0xff]
    %v2498 = vld [vmem:[#allocation3 + $0x660] sm:$0xff]
    %v2499 = vld [vmem:[#allocation3 + $0x668] sm:$0xff]
    %v2500 = vld [vmem:[#allocation3 + $0x670] sm:$0xff]
    %v2501 = vld [vmem:[#allocation3 + $0x678] sm:$0xff]
    %v2502 = vld [vmem:[#allocation3 + $0x680] sm:$0xff]
    %v2503 = vld [vmem:[#allocation3 + $0x688] sm:$0xff]
    %v2504 = vld [vmem:[#allocation3 + $0x690] sm:$0xff]
    %v2505 = vld [vmem:[#allocation3 + $0x698] sm:$0xff]
    %v2506 = vld [vmem:[#allocation3 + $0x6a0] sm:$0xff]
    %v2507 = vld [vmem:[#allocation3 + $0x6a8] sm:$0xff]
    %v2508 = vld [vmem:[#allocation3 + $0x6b0] sm:$0xff]
    %v2509 = vld [vmem:[#allocation3 + $0x6b8] sm:$0xff]
    %v2510 = vld [vmem:[#allocation3 + $0x6c0] sm:$0xff]
    %v2511 = vld [vmem:[#allocation3 + $0x6c8] sm:$0xff]
    %v2512 = vld [vmem:[#allocation3 + $0x6d0] sm:$0xff]
    %v2513 = vld [vmem:[#allocation3 + $0x6d8] sm:$0xff]
    %v2514 = vld [vmem:[#allocation3 + $0x6e0] sm:$0xff]
    %v2515 = vld [vmem:[#allocation3 + $0x6e8] sm:$0xff]
    %v2516 = vld [vmem:[#allocation3 + $0x6f0] sm:$0xff]
    %v2517 = vld [vmem:[#allocation3 + $0x6f8] sm:$0xff]
    %v2518 = vld [vmem:[#allocation3 + $0x700] sm:$0xff]
    %v2519 = vld [vmem:[#allocation3 + $0x708] sm:$0xff]
    %v2520 = vld [vmem:[#allocation3 + $0x710] sm:$0xff]
    %v2521 = vld [vmem:[#allocation3 + $0x718] sm:$0xff]
    %v2522 = vld [vmem:[#allocation3 + $0x720] sm:$0xff]
    %v2523 = vld [vmem:[#allocation3 + $0x728] sm:$0xff]
    %v2524 = vld [vmem:[#allocation3 + $0x730] sm:$0xff]
    %v2525 = vld [vmem:[#allocation3 + $0x738] sm:$0xff]
    %v2526 = vld [vmem:[#allocation3 + $0x740] sm:$0xff]
    %v2527 = vld [vmem:[#allocation3 + $0x748] sm:$0xff]
    %v2528 = vld [vmem:[#allocation3 + $0x750] sm:$0xff]
    %v2529 = vld [vmem:[#allocation3 + $0x758] sm:$0xff]
    %v2530 = vld [vmem:[#allocation3 + $0x760] sm:$0xff]
    %v2531 = vld [vmem:[#allocation3 + $0x768] sm:$0xff]
    %v2532 = vld [vmem:[#allocation3 + $0x770] sm:$0xff]
    %v2533 = vld [vmem:[#allocation3 + $0x778] sm:$0xff]
    %v2534 = vld [vmem:[#allocation3 + $0x780] sm:$0xff]
    %v2535 = vld [vmem:[#allocation3 + $0x788] sm:$0xff]
    %v2536 = vld [vmem:[#allocation3 + $0x790] sm:$0xff]
    %v2537 = vld [vmem:[#allocation3 + $0x798] sm:$0xff]
    %v2538 = vld [vmem:[#allocation3 + $0x7a0] sm:$0xff]
    %v2539 = vld [vmem:[#allocation3 + $0x7a8] sm:$0xff]
    %v2540 = vld [vmem:[#allocation3 + $0x7b0] sm:$0xff]
    %v2541 = vld [vmem:[#allocation3 + $0x7b8] sm:$0xff]
    %v2542 = vld [vmem:[#allocation3 + $0x7c0] sm:$0xff]
    %v2543 = vld [vmem:[#allocation3 + $0x7c8] sm:$0xff]
    %v2544 = vld [vmem:[#allocation3 + $0x7d0] sm:$0xff]
    %v2545 = vld [vmem:[#allocation3 + $0x7d8] sm:$0xff]
    %v2546 = vld [vmem:[#allocation3 + $0x7e0] sm:$0xff]
    %v2547 = vld [vmem:[#allocation3 + $0x7e8] sm:$0xff]
    %v2548 = vld [vmem:[#allocation3 + $0x7f0] sm:$0xff]
    %v2549 = vld [vmem:[#allocation3 + $0x7f8] sm:$0xff]
    %v2550 = vld [vmem:[%s4] sm:$0xf]
    %v2552 = vlaneseq
    %v2553 = vshrl.u32 %v2552, 7
    %v2554 = vsub.s32 0, %v2553
    %v2555 = vrot.slane %v2550, %v2554
    %v2556 = vlaneseq
    %v2557 = vshrl.u32 %v2556, 7
    %v2558 = vsub.s32 1, %v2557
    %v2559 = vrot.slane %v2550, %v2558
    %v2560 = vlaneseq
    %v2561 = vshrl.u32 %v2560, 7
    %v2562 = vsub.s32 2, %v2561
    %v2563 = vrot.slane %v2550, %v2562
    %v2564 = vlaneseq
    %v2565 = vshrl.u32 %v2564, 7
    %v2566 = vsub.s32 3, %v2565
    %v2567 = vrot.slane %v2550, %v2566
    %v2828 = vunpack.c.l.b16 %v2294
    %v2829 = vunpack.c.h.b16 %v2294
    %v2830 = vunpack.c.l.b16 %v2295
    %v2831 = vunpack.c.h.b16 %v2295
    %v2832 = vunpack.c.l.b16 %v2296
    %v2833 = vunpack.c.h.b16 %v2296
    %v2834 = vunpack.c.l.b16 %v2297
    %v2835 = vunpack.c.h.b16 %v2297
    %v2836 = vunpack.c.l.b16 %v2298
    %v2837 = vunpack.c.h.b16 %v2298
    %v2838 = vunpack.c.l.b16 %v2299
    %v2839 = vunpack.c.h.b16 %v2299
    %v2840 = vunpack.c.l.b16 %v2300
    %v2841 = vunpack.c.h.b16 %v2300
    %v2842 = vunpack.c.l.b16 %v2301
    %v2843 = vunpack.c.h.b16 %v2301
    %v2844 = vunpack.c.l.b16 %v2302
    %v2845 = vunpack.c.h.b16 %v2302
    %v2846 = vunpack.c.l.b16 %v2303
    %v2847 = vunpack.c.h.b16 %v2303
    %v2848 = vunpack.c.l.b16 %v2304
    %v2849 = vunpack.c.h.b16 %v2304
    %v2850 = vunpack.c.l.b16 %v2305
    %v2851 = vunpack.c.h.b16 %v2305
    %v2852 = vunpack.c.l.b16 %v2306
    %v2853 = vunpack.c.h.b16 %v2306
    %v2854 = vunpack.c.l.b16 %v2307
    %v2855 = vunpack.c.h.b16 %v2307
    %v2856 = vunpack.c.l.b16 %v2308
    %v2857 = vunpack.c.h.b16 %v2308
    %v2858 = vunpack.c.l.b16 %v2309
    %v2859 = vunpack.c.h.b16 %v2309
    %v2860 = vunpack.c.l.b16 %v2310
    %v2861 = vunpack.c.h.b16 %v2310
    %v2862 = vunpack.c.l.b16 %v2311
    %v2863 = vunpack.c.h.b16 %v2311
    %v2864 = vunpack.c.l.b16 %v2312
    %v2865 = vunpack.c.h.b16 %v2312
    %v2866 = vunpack.c.l.b16 %v2313
    %v2867 = vunpack.c.h.b16 %v2313
    %v2868 = vunpack.c.l.b16 %v2314
    %v2869 = vunpack.c.h.b16 %v2314
    %v2870 = vunpack.c.l.b16 %v2315
    %v2871 = vunpack.c.h.b16 %v2315
    %v2872 = vunpack.c.l.b16 %v2316
    %v2873 = vunpack.c.h.b16 %v2316
    %v2874 = vunpack.c.l.b16 %v2317
    %v2875 = vunpack.c.h.b16 %v2317
    %v2876 = vunpack.c.l.b16 %v2318
    %v2877 = vunpack.c.h.b16 %v2318
    %v2878 = vunpack.c.l.b16 %v2319
    %v2879 = vunpack.c.h.b16 %v2319
    %v2880 = vunpack.c.l.b16 %v2320
    %v2881 = vunpack.c.h.b16 %v2320
    %v2882 = vunpack.c.l.b16 %v2321
    %v2883 = vunpack.c.h.b16 %v2321
    %v2884 = vunpack.c.l.b16 %v2322
    %v2885 = vunpack.c.h.b16 %v2322
    %v2886 = vunpack.c.l.b16 %v2323
    %v2887 = vunpack.c.h.b16 %v2323
    %v2888 = vunpack.c.l.b16 %v2324
    %v2889 = vunpack.c.h.b16 %v2324
    %v2890 = vunpack.c.l.b16 %v2325
    %v2891 = vunpack.c.h.b16 %v2325
    %v2892 = vunpack.c.l.b16 %v2326
    %v2893 = vunpack.c.h.b16 %v2326
    %v2894 = vunpack.c.l.b16 %v2327
    %v2895 = vunpack.c.h.b16 %v2327
    %v2896 = vunpack.c.l.b16 %v2328
    %v2897 = vunpack.c.h.b16 %v2328
    %v2898 = vunpack.c.l.b16 %v2329
    %v2899 = vunpack.c.h.b16 %v2329
    %v2900 = vunpack.c.l.b16 %v2330
    %v2901 = vunpack.c.h.b16 %v2330
    %v2902 = vunpack.c.l.b16 %v2331
    %v2903 = vunpack.c.h.b16 %v2331
    %v2904 = vunpack.c.l.b16 %v2332
    %v2905 = vunpack.c.h.b16 %v2332
    %v2906 = vunpack.c.l.b16 %v2333
    %v2907 = vunpack.c.h.b16 %v2333
    %v2908 = vunpack.c.l.b16 %v2334
    %v2909 = vunpack.c.h.b16 %v2334
    %v2910 = vunpack.c.l.b16 %v2335
    %v2911 = vunpack.c.h.b16 %v2335
    %v2912 = vunpack.c.l.b16 %v2336
    %v2913 = vunpack.c.h.b16 %v2336
    %v2914 = vunpack.c.l.b16 %v2337
    %v2915 = vunpack.c.h.b16 %v2337
    %v2916 = vunpack.c.l.b16 %v2338
    %v2917 = vunpack.c.h.b16 %v2338
    %v2918 = vunpack.c.l.b16 %v2339
    %v2919 = vunpack.c.h.b16 %v2339
    %v2920 = vunpack.c.l.b16 %v2340
    %v2921 = vunpack.c.h.b16 %v2340
    %v2922 = vunpack.c.l.b16 %v2341
    %v2923 = vunpack.c.h.b16 %v2341
    %v2924 = vunpack.c.l.b16 %v2342
    %v2925 = vunpack.c.h.b16 %v2342
    %v2926 = vunpack.c.l.b16 %v2343
    %v2927 = vunpack.c.h.b16 %v2343
    %v2928 = vunpack.c.l.b16 %v2344
    %v2929 = vunpack.c.h.b16 %v2344
    %v2930 = vunpack.c.l.b16 %v2345
    %v2931 = vunpack.c.h.b16 %v2345
    %v2932 = vunpack.c.l.b16 %v2346
    %v2933 = vunpack.c.h.b16 %v2346
    %v2934 = vunpack.c.l.b16 %v2347
    %v2935 = vunpack.c.h.b16 %v2347
    %v2936 = vunpack.c.l.b16 %v2348
    %v2937 = vunpack.c.h.b16 %v2348
    %v2938 = vunpack.c.l.b16 %v2349
    %v2939 = vunpack.c.h.b16 %v2349
    %v2940 = vunpack.c.l.b16 %v2350
    %v2941 = vunpack.c.h.b16 %v2350
    %v2942 = vunpack.c.l.b16 %v2351
    %v2943 = vunpack.c.h.b16 %v2351
    %v2944 = vunpack.c.l.b16 %v2352
    %v2945 = vunpack.c.h.b16 %v2352
    %v2946 = vunpack.c.l.b16 %v2353
    %v2947 = vunpack.c.h.b16 %v2353
    %v2948 = vunpack.c.l.b16 %v2354
    %v2949 = vunpack.c.h.b16 %v2354
    %v2950 = vunpack.c.l.b16 %v2355
    %v2951 = vunpack.c.h.b16 %v2355
    %v2952 = vunpack.c.l.b16 %v2356
    %v2953 = vunpack.c.h.b16 %v2356
    %v2954 = vunpack.c.l.b16 %v2357
    %v2955 = vunpack.c.h.b16 %v2357
    %v2956 = vunpack.c.l.b16 %v2358
    %v2957 = vunpack.c.h.b16 %v2358
    %v2958 = vunpack.c.l.b16 %v2359
    %v2959 = vunpack.c.h.b16 %v2359
    %v2960 = vunpack.c.l.b16 %v2360
    %v2961 = vunpack.c.h.b16 %v2360
    %v2962 = vunpack.c.l.b16 %v2361
    %v2963 = vunpack.c.h.b16 %v2361
    %v2964 = vunpack.c.l.b16 %v2362
    %v2965 = vunpack.c.h.b16 %v2362
    %v2966 = vunpack.c.l.b16 %v2363
    %v2967 = vunpack.c.h.b16 %v2363
    %v2968 = vunpack.c.l.b16 %v2364
    %v2969 = vunpack.c.h.b16 %v2364
    %v2970 = vunpack.c.l.b16 %v2365
    %v2971 = vunpack.c.h.b16 %v2365
    %v2972 = vunpack.c.l.b16 %v2366
    %v2973 = vunpack.c.h.b16 %v2366
    %v2974 = vunpack.c.l.b16 %v2367
    %v2975 = vunpack.c.h.b16 %v2367
    %v2976 = vunpack.c.l.b16 %v2368
    %v2977 = vunpack.c.h.b16 %v2368
    %v2978 = vunpack.c.l.b16 %v2369
    %v2979 = vunpack.c.h.b16 %v2369
    %v2980 = vunpack.c.l.b16 %v2370
    %v2981 = vunpack.c.h.b16 %v2370
    %v2982 = vunpack.c.l.b16 %v2371
    %v2983 = vunpack.c.h.b16 %v2371
    %v2984 = vunpack.c.l.b16 %v2372
    %v2985 = vunpack.c.h.b16 %v2372
    %v2986 = vunpack.c.l.b16 %v2373
    %v2987 = vunpack.c.h.b16 %v2373
    %v2988 = vunpack.c.l.b16 %v2374
    %v2989 = vunpack.c.h.b16 %v2374
    %v2990 = vunpack.c.l.b16 %v2375
    %v2991 = vunpack.c.h.b16 %v2375
    %v2992 = vunpack.c.l.b16 %v2376
    %v2993 = vunpack.c.h.b16 %v2376
    %v2994 = vunpack.c.l.b16 %v2377
    %v2995 = vunpack.c.h.b16 %v2377
    %v2996 = vunpack.c.l.b16 %v2378
    %v2997 = vunpack.c.h.b16 %v2378
    %v2998 = vunpack.c.l.b16 %v2379
    %v2999 = vunpack.c.h.b16 %v2379
    %v3000 = vunpack.c.l.b16 %v2380
    %v3001 = vunpack.c.h.b16 %v2380
    %v3002 = vunpack.c.l.b16 %v2381
    %v3003 = vunpack.c.h.b16 %v2381
    %v3004 = vunpack.c.l.b16 %v2382
    %v3005 = vunpack.c.h.b16 %v2382
    %v3006 = vunpack.c.l.b16 %v2383
    %v3007 = vunpack.c.h.b16 %v2383
    %v3008 = vunpack.c.l.b16 %v2384
    %v3009 = vunpack.c.h.b16 %v2384
    %v3010 = vunpack.c.l.b16 %v2385
    %v3011 = vunpack.c.h.b16 %v2385
    %v3012 = vunpack.c.l.b16 %v2386
    %v3013 = vunpack.c.h.b16 %v2386
    %v3014 = vunpack.c.l.b16 %v2387
    %v3015 = vunpack.c.h.b16 %v2387
    %v3016 = vunpack.c.l.b16 %v2388
    %v3017 = vunpack.c.h.b16 %v2388
    %v3018 = vunpack.c.l.b16 %v2389
    %v3019 = vunpack.c.h.b16 %v2389
    %v3020 = vunpack.c.l.b16 %v2390
    %v3021 = vunpack.c.h.b16 %v2390
    %v3022 = vunpack.c.l.b16 %v2391
    %v3023 = vunpack.c.h.b16 %v2391
    %v3024 = vunpack.c.l.b16 %v2392
    %v3025 = vunpack.c.h.b16 %v2392
    %v3026 = vunpack.c.l.b16 %v2393
    %v3027 = vunpack.c.h.b16 %v2393
    %v3028 = vunpack.c.l.b16 %v2394
    %v3029 = vunpack.c.h.b16 %v2394
    %v3030 = vunpack.c.l.b16 %v2395
    %v3031 = vunpack.c.h.b16 %v2395
    %v3032 = vunpack.c.l.b16 %v2396
    %v3033 = vunpack.c.h.b16 %v2396
    %v3034 = vunpack.c.l.b16 %v2397
    %v3035 = vunpack.c.h.b16 %v2397
    %v3036 = vunpack.c.l.b16 %v2398
    %v3037 = vunpack.c.h.b16 %v2398
    %v3038 = vunpack.c.l.b16 %v2399
    %v3039 = vunpack.c.h.b16 %v2399
    %v3040 = vunpack.c.l.b16 %v2400
    %v3041 = vunpack.c.h.b16 %v2400
    %v3042 = vunpack.c.l.b16 %v2401
    %v3043 = vunpack.c.h.b16 %v2401
    %v3044 = vunpack.c.l.b16 %v2402
    %v3045 = vunpack.c.h.b16 %v2402
    %v3046 = vunpack.c.l.b16 %v2403
    %v3047 = vunpack.c.h.b16 %v2403
    %v3048 = vunpack.c.l.b16 %v2404
    %v3049 = vunpack.c.h.b16 %v2404
    %v3050 = vunpack.c.l.b16 %v2405
    %v3051 = vunpack.c.h.b16 %v2405
    %v3052 = vunpack.c.l.b16 %v2406
    %v3053 = vunpack.c.h.b16 %v2406
    %v3054 = vunpack.c.l.b16 %v2407
    %v3055 = vunpack.c.h.b16 %v2407
    %v3056 = vunpack.c.l.b16 %v2408
    %v3057 = vunpack.c.h.b16 %v2408
    %v3058 = vunpack.c.l.b16 %v2409
    %v3059 = vunpack.c.h.b16 %v2409
    %v3060 = vunpack.c.l.b16 %v2410
    %v3061 = vunpack.c.h.b16 %v2410
    %v3062 = vunpack.c.l.b16 %v2411
    %v3063 = vunpack.c.h.b16 %v2411
    %v3064 = vunpack.c.l.b16 %v2412
    %v3065 = vunpack.c.h.b16 %v2412
    %v3066 = vunpack.c.l.b16 %v2413
    %v3067 = vunpack.c.h.b16 %v2413
    %v3068 = vunpack.c.l.b16 %v2414
    %v3069 = vunpack.c.h.b16 %v2414
    %v3070 = vunpack.c.l.b16 %v2415
    %v3071 = vunpack.c.h.b16 %v2415
    %v3072 = vunpack.c.l.b16 %v2416
    %v3073 = vunpack.c.h.b16 %v2416
    %v3074 = vunpack.c.l.b16 %v2417
    %v3075 = vunpack.c.h.b16 %v2417
    %v3076 = vunpack.c.l.b16 %v2418
    %v3077 = vunpack.c.h.b16 %v2418
    %v3078 = vunpack.c.l.b16 %v2419
    %v3079 = vunpack.c.h.b16 %v2419
    %v3080 = vunpack.c.l.b16 %v2420
    %v3081 = vunpack.c.h.b16 %v2420
    %v3082 = vunpack.c.l.b16 %v2421
    %v3083 = vunpack.c.h.b16 %v2421
    %v3084 = vunpack.c.l.b16 %v2422
    %v3085 = vunpack.c.h.b16 %v2422
    %v3086 = vunpack.c.l.b16 %v2423
    %v3087 = vunpack.c.h.b16 %v2423
    %v3088 = vunpack.c.l.b16 %v2424
    %v3089 = vunpack.c.h.b16 %v2424
    %v3090 = vunpack.c.l.b16 %v2425
    %v3091 = vunpack.c.h.b16 %v2425
    %v3092 = vunpack.c.l.b16 %v2426
    %v3093 = vunpack.c.h.b16 %v2426
    %v3094 = vunpack.c.l.b16 %v2427
    %v3095 = vunpack.c.h.b16 %v2427
    %v3096 = vunpack.c.l.b16 %v2428
    %v3097 = vunpack.c.h.b16 %v2428
    %v3098 = vunpack.c.l.b16 %v2429
    %v3099 = vunpack.c.h.b16 %v2429
    %v3100 = vunpack.c.l.b16 %v2430
    %v3101 = vunpack.c.h.b16 %v2430
    %v3102 = vunpack.c.l.b16 %v2431
    %v3103 = vunpack.c.h.b16 %v2431
    %v3104 = vunpack.c.l.b16 %v2432
    %v3105 = vunpack.c.h.b16 %v2432
    %v3106 = vunpack.c.l.b16 %v2433
    %v3107 = vunpack.c.h.b16 %v2433
    %v3108 = vunpack.c.l.b16 %v2434
    %v3109 = vunpack.c.h.b16 %v2434
    %v3110 = vunpack.c.l.b16 %v2435
    %v3111 = vunpack.c.h.b16 %v2435
    %v3112 = vunpack.c.l.b16 %v2436
    %v3113 = vunpack.c.h.b16 %v2436
    %v3114 = vunpack.c.l.b16 %v2437
    %v3115 = vunpack.c.h.b16 %v2437
    %v3116 = vunpack.c.l.b16 %v2438
    %v3117 = vunpack.c.h.b16 %v2438
    %v3118 = vunpack.c.l.b16 %v2439
    %v3119 = vunpack.c.h.b16 %v2439
    %v3120 = vunpack.c.l.b16 %v2440
    %v3121 = vunpack.c.h.b16 %v2440
    %v3122 = vunpack.c.l.b16 %v2441
    %v3123 = vunpack.c.h.b16 %v2441
    %v3124 = vunpack.c.l.b16 %v2442
    %v3125 = vunpack.c.h.b16 %v2442
    %v3126 = vunpack.c.l.b16 %v2443
    %v3127 = vunpack.c.h.b16 %v2443
    %v3128 = vunpack.c.l.b16 %v2444
    %v3129 = vunpack.c.h.b16 %v2444
    %v3130 = vunpack.c.l.b16 %v2445
    %v3131 = vunpack.c.h.b16 %v2445
    %v3132 = vunpack.c.l.b16 %v2446
    %v3133 = vunpack.c.h.b16 %v2446
    %v3134 = vunpack.c.l.b16 %v2447
    %v3135 = vunpack.c.h.b16 %v2447
    %v3136 = vunpack.c.l.b16 %v2448
    %v3137 = vunpack.c.h.b16 %v2448
    %v3138 = vunpack.c.l.b16 %v2449
    %v3139 = vunpack.c.h.b16 %v2449
    %v3140 = vunpack.c.l.b16 %v2450
    %v3141 = vunpack.c.h.b16 %v2450
    %v3142 = vunpack.c.l.b16 %v2451
    %v3143 = vunpack.c.h.b16 %v2451
    %v3144 = vunpack.c.l.b16 %v2452
    %v3145 = vunpack.c.h.b16 %v2452
    %v3146 = vunpack.c.l.b16 %v2453
    %v3147 = vunpack.c.h.b16 %v2453
    %v3148 = vunpack.c.l.b16 %v2454
    %v3149 = vunpack.c.h.b16 %v2454
    %v3150 = vunpack.c.l.b16 %v2455
    %v3151 = vunpack.c.h.b16 %v2455
    %v3152 = vunpack.c.l.b16 %v2456
    %v3153 = vunpack.c.h.b16 %v2456
    %v3154 = vunpack.c.l.b16 %v2457
    %v3155 = vunpack.c.h.b16 %v2457
    %v3156 = vunpack.c.l.b16 %v2458
    %v3157 = vunpack.c.h.b16 %v2458
    %v3158 = vunpack.c.l.b16 %v2459
    %v3159 = vunpack.c.h.b16 %v2459
    %v3160 = vunpack.c.l.b16 %v2460
    %v3161 = vunpack.c.h.b16 %v2460
    %v3162 = vunpack.c.l.b16 %v2461
    %v3163 = vunpack.c.h.b16 %v2461
    %v3164 = vunpack.c.l.b16 %v2462
    %v3165 = vunpack.c.h.b16 %v2462
    %v3166 = vunpack.c.l.b16 %v2463
    %v3167 = vunpack.c.h.b16 %v2463
    %v3168 = vunpack.c.l.b16 %v2464
    %v3169 = vunpack.c.h.b16 %v2464
    %v3170 = vunpack.c.l.b16 %v2465
    %v3171 = vunpack.c.h.b16 %v2465
    %v3172 = vunpack.c.l.b16 %v2466
    %v3173 = vunpack.c.h.b16 %v2466
    %v3174 = vunpack.c.l.b16 %v2467
    %v3175 = vunpack.c.h.b16 %v2467
    %v3176 = vunpack.c.l.b16 %v2468
    %v3177 = vunpack.c.h.b16 %v2468
    %v3178 = vunpack.c.l.b16 %v2469
    %v3179 = vunpack.c.h.b16 %v2469
    %v3180 = vunpack.c.l.b16 %v2470
    %v3181 = vunpack.c.h.b16 %v2470
    %v3182 = vunpack.c.l.b16 %v2471
    %v3183 = vunpack.c.h.b16 %v2471
    %v3184 = vunpack.c.l.b16 %v2472
    %v3185 = vunpack.c.h.b16 %v2472
    %v3186 = vunpack.c.l.b16 %v2473
    %v3187 = vunpack.c.h.b16 %v2473
    %v3188 = vunpack.c.l.b16 %v2474
    %v3189 = vunpack.c.h.b16 %v2474
    %v3190 = vunpack.c.l.b16 %v2475
    %v3191 = vunpack.c.h.b16 %v2475
    %v3192 = vunpack.c.l.b16 %v2476
    %v3193 = vunpack.c.h.b16 %v2476
    %v3194 = vunpack.c.l.b16 %v2477
    %v3195 = vunpack.c.h.b16 %v2477
    %v3196 = vunpack.c.l.b16 %v2478
    %v3197 = vunpack.c.h.b16 %v2478
    %v3198 = vunpack.c.l.b16 %v2479
    %v3199 = vunpack.c.h.b16 %v2479
    %v3200 = vunpack.c.l.b16 %v2480
    %v3201 = vunpack.c.h.b16 %v2480
    %v3202 = vunpack.c.l.b16 %v2481
    %v3203 = vunpack.c.h.b16 %v2481
    %v3204 = vunpack.c.l.b16 %v2482
    %v3205 = vunpack.c.h.b16 %v2482
    %v3206 = vunpack.c.l.b16 %v2483
    %v3207 = vunpack.c.h.b16 %v2483
    %v3208 = vunpack.c.l.b16 %v2484
    %v3209 = vunpack.c.h.b16 %v2484
    %v3210 = vunpack.c.l.b16 %v2485
    %v3211 = vunpack.c.h.b16 %v2485
    %v3212 = vunpack.c.l.b16 %v2486
    %v3213 = vunpack.c.h.b16 %v2486
    %v3214 = vunpack.c.l.b16 %v2487
    %v3215 = vunpack.c.h.b16 %v2487
    %v3216 = vunpack.c.l.b16 %v2488
    %v3217 = vunpack.c.h.b16 %v2488
    %v3218 = vunpack.c.l.b16 %v2489
    %v3219 = vunpack.c.h.b16 %v2489
    %v3220 = vunpack.c.l.b16 %v2490
    %v3221 = vunpack.c.h.b16 %v2490
    %v3222 = vunpack.c.l.b16 %v2491
    %v3223 = vunpack.c.h.b16 %v2491
    %v3224 = vunpack.c.l.b16 %v2492
    %v3225 = vunpack.c.h.b16 %v2492
    %v3226 = vunpack.c.l.b16 %v2493
    %v3227 = vunpack.c.h.b16 %v2493
    %v3228 = vunpack.c.l.b16 %v2494
    %v3229 = vunpack.c.h.b16 %v2494
    %v3230 = vunpack.c.l.b16 %v2495
    %v3231 = vunpack.c.h.b16 %v2495
    %v3232 = vunpack.c.l.b16 %v2496
    %v3233 = vunpack.c.h.b16 %v2496
    %v3234 = vunpack.c.l.b16 %v2497
    %v3235 = vunpack.c.h.b16 %v2497
    %v3236 = vunpack.c.l.b16 %v2498
    %v3237 = vunpack.c.h.b16 %v2498
    %v3238 = vunpack.c.l.b16 %v2499
    %v3239 = vunpack.c.h.b16 %v2499
    %v3240 = vunpack.c.l.b16 %v2500
    %v3241 = vunpack.c.h.b16 %v2500
    %v3242 = vunpack.c.l.b16 %v2501
    %v3243 = vunpack.c.h.b16 %v2501
    %v3244 = vunpack.c.l.b16 %v2502
    %v3245 = vunpack.c.h.b16 %v2502
    %v3246 = vunpack.c.l.b16 %v2503
    %v3247 = vunpack.c.h.b16 %v2503
    %v3248 = vunpack.c.l.b16 %v2504
    %v3249 = vunpack.c.h.b16 %v2504
    %v3250 = vunpack.c.l.b16 %v2505
    %v3251 = vunpack.c.h.b16 %v2505
    %v3252 = vunpack.c.l.b16 %v2506
    %v3253 = vunpack.c.h.b16 %v2506
    %v3254 = vunpack.c.l.b16 %v2507
    %v3255 = vunpack.c.h.b16 %v2507
    %v3256 = vunpack.c.l.b16 %v2508
    %v3257 = vunpack.c.h.b16 %v2508
    %v3258 = vunpack.c.l.b16 %v2509
    %v3259 = vunpack.c.h.b16 %v2509
    %v3260 = vunpack.c.l.b16 %v2510
    %v3261 = vunpack.c.h.b16 %v2510
    %v3262 = vunpack.c.l.b16 %v2511
    %v3263 = vunpack.c.h.b16 %v2511
    %v3264 = vunpack.c.l.b16 %v2512
    %v3265 = vunpack.c.h.b16 %v2512
    %v3266 = vunpack.c.l.b16 %v2513
    %v3267 = vunpack.c.h.b16 %v2513
    %v3268 = vunpack.c.l.b16 %v2514
    %v3269 = vunpack.c.h.b16 %v2514
    %v3270 = vunpack.c.l.b16 %v2515
    %v3271 = vunpack.c.h.b16 %v2515
    %v3272 = vunpack.c.l.b16 %v2516
    %v3273 = vunpack.c.h.b16 %v2516
    %v3274 = vunpack.c.l.b16 %v2517
    %v3275 = vunpack.c.h.b16 %v2517
    %v3276 = vunpack.c.l.b16 %v2518
    %v3277 = vunpack.c.h.b16 %v2518
    %v3278 = vunpack.c.l.b16 %v2519
    %v3279 = vunpack.c.h.b16 %v2519
    %v3280 = vunpack.c.l.b16 %v2520
    %v3281 = vunpack.c.h.b16 %v2520
    %v3282 = vunpack.c.l.b16 %v2521
    %v3283 = vunpack.c.h.b16 %v2521
    %v3284 = vunpack.c.l.b16 %v2522
    %v3285 = vunpack.c.h.b16 %v2522
    %v3286 = vunpack.c.l.b16 %v2523
    %v3287 = vunpack.c.h.b16 %v2523
    %v3288 = vunpack.c.l.b16 %v2524
    %v3289 = vunpack.c.h.b16 %v2524
    %v3290 = vunpack.c.l.b16 %v2525
    %v3291 = vunpack.c.h.b16 %v2525
    %v3292 = vunpack.c.l.b16 %v2526
    %v3293 = vunpack.c.h.b16 %v2526
    %v3294 = vunpack.c.l.b16 %v2527
    %v3295 = vunpack.c.h.b16 %v2527
    %v3296 = vunpack.c.l.b16 %v2528
    %v3297 = vunpack.c.h.b16 %v2528
    %v3298 = vunpack.c.l.b16 %v2529
    %v3299 = vunpack.c.h.b16 %v2529
    %v3300 = vunpack.c.l.b16 %v2530
    %v3301 = vunpack.c.h.b16 %v2530
    %v3302 = vunpack.c.l.b16 %v2531
    %v3303 = vunpack.c.h.b16 %v2531
    %v3304 = vunpack.c.l.b16 %v2532
    %v3305 = vunpack.c.h.b16 %v2532
    %v3306 = vunpack.c.l.b16 %v2533
    %v3307 = vunpack.c.h.b16 %v2533
    %v3308 = vunpack.c.l.b16 %v2534
    %v3309 = vunpack.c.h.b16 %v2534
    %v3310 = vunpack.c.l.b16 %v2535
    %v3311 = vunpack.c.h.b16 %v2535
    %v3312 = vunpack.c.l.b16 %v2536
    %v3313 = vunpack.c.h.b16 %v2536
    %v3314 = vunpack.c.l.b16 %v2537
    %v3315 = vunpack.c.h.b16 %v2537
    %v3316 = vunpack.c.l.b16 %v2538
    %v3317 = vunpack.c.h.b16 %v2538
    %v3318 = vunpack.c.l.b16 %v2539
    %v3319 = vunpack.c.h.b16 %v2539
    %v3320 = vunpack.c.l.b16 %v2540
    %v3321 = vunpack.c.h.b16 %v2540
    %v3322 = vunpack.c.l.b16 %v2541
    %v3323 = vunpack.c.h.b16 %v2541
    %v3324 = vunpack.c.l.b16 %v2542
    %v3325 = vunpack.c.h.b16 %v2542
    %v3326 = vunpack.c.l.b16 %v2543
    %v3327 = vunpack.c.h.b16 %v2543
    %v3328 = vunpack.c.l.b16 %v2544
    %v3329 = vunpack.c.h.b16 %v2544
    %v3330 = vunpack.c.l.b16 %v2545
    %v3331 = vunpack.c.h.b16 %v2545
    %v3332 = vunpack.c.l.b16 %v2546
    %v3333 = vunpack.c.h.b16 %v2546
    %v3334 = vunpack.c.l.b16 %v2547
    %v3335 = vunpack.c.h.b16 %v2547
    %v3336 = vunpack.c.l.b16 %v2548
    %v3337 = vunpack.c.h.b16 %v2548
    %v3338 = vunpack.c.l.b16 %v2549
    %v3339 = vunpack.c.h.b16 %v2549
    %v3340 = vpack.c.b16 %v2832, %v2828
    %v3341 = vpack.c.b16 %v2833, %v2829
    %v3342 = vpack.c.b16 %v2834, %v2830
    %v3343 = vpack.c.b16 %v2835, %v2831
    %v3344 = vpack.c.b16 %v2840, %v2836
    %v3345 = vpack.c.b16 %v2841, %v2837
    %v3346 = vpack.c.b16 %v2842, %v2838
    %v3347 = vpack.c.b16 %v2843, %v2839
    %v3348 = vpack.c.b16 %v2848, %v2844
    %v3349 = vpack.c.b16 %v2849, %v2845
    %v3350 = vpack.c.b16 %v2850, %v2846
    %v3351 = vpack.c.b16 %v2851, %v2847
    %v3352 = vpack.c.b16 %v2856, %v2852
    %v3353 = vpack.c.b16 %v2857, %v2853
    %v3354 = vpack.c.b16 %v2858, %v2854
    %v3355 = vpack.c.b16 %v2859, %v2855
    %v3356 = vpack.c.b16 %v2864, %v2860
    %v3357 = vpack.c.b16 %v2865, %v2861
    %v3358 = vpack.c.b16 %v2866, %v2862
    %v3359 = vpack.c.b16 %v2867, %v2863
    %v3360 = vpack.c.b16 %v2872, %v2868
    %v3361 = vpack.c.b16 %v2873, %v2869
    %v3362 = vpack.c.b16 %v2874, %v2870
    %v3363 = vpack.c.b16 %v2875, %v2871
    %v3364 = vpack.c.b16 %v2880, %v2876
    %v3365 = vpack.c.b16 %v2881, %v2877
    %v3366 = vpack.c.b16 %v2882, %v2878
    %v3367 = vpack.c.b16 %v2883, %v2879
    %v3368 = vpack.c.b16 %v2888, %v2884
    %v3369 = vpack.c.b16 %v2889, %v2885
    %v3370 = vpack.c.b16 %v2890, %v2886
    %v3371 = vpack.c.b16 %v2891, %v2887
    %v3372 = vpack.c.b16 %v2896, %v2892
    %v3373 = vpack.c.b16 %v2897, %v2893
    %v3374 = vpack.c.b16 %v2898, %v2894
    %v3375 = vpack.c.b16 %v2899, %v2895
    %v3376 = vpack.c.b16 %v2904, %v2900
    %v3377 = vpack.c.b16 %v2905, %v2901
    %v3378 = vpack.c.b16 %v2906, %v2902
    %v3379 = vpack.c.b16 %v2907, %v2903
    %v3380 = vpack.c.b16 %v2912, %v2908
    %v3381 = vpack.c.b16 %v2913, %v2909
    %v3382 = vpack.c.b16 %v2914, %v2910
    %v3383 = vpack.c.b16 %v2915, %v2911
    %v3384 = vpack.c.b16 %v2920, %v2916
    %v3385 = vpack.c.b16 %v2921, %v2917
    %v3386 = vpack.c.b16 %v2922, %v2918
    %v3387 = vpack.c.b16 %v2923, %v2919
    %v3388 = vpack.c.b16 %v2928, %v2924
    %v3389 = vpack.c.b16 %v2929, %v2925
    %v3390 = vpack.c.b16 %v2930, %v2926
    %v3391 = vpack.c.b16 %v2931, %v2927
    %v3392 = vpack.c.b16 %v2936, %v2932
    %v3393 = vpack.c.b16 %v2937, %v2933
    %v3394 = vpack.c.b16 %v2938, %v2934
    %v3395 = vpack.c.b16 %v2939, %v2935
    %v3396 = vpack.c.b16 %v2944, %v2940
    %v3397 = vpack.c.b16 %v2945, %v2941
    %v3398 = vpack.c.b16 %v2946, %v2942
    %v3399 = vpack.c.b16 %v2947, %v2943
    %v3400 = vpack.c.b16 %v2952, %v2948
    %v3401 = vpack.c.b16 %v2953, %v2949
    %v3402 = vpack.c.b16 %v2954, %v2950
    %v3403 = vpack.c.b16 %v2955, %v2951
    %v3404 = vpack.c.b16 %v2960, %v2956
    %v3405 = vpack.c.b16 %v2961, %v2957
    %v3406 = vpack.c.b16 %v2962, %v2958
    %v3407 = vpack.c.b16 %v2963, %v2959
    %v3408 = vpack.c.b16 %v2968, %v2964
    %v3409 = vpack.c.b16 %v2969, %v2965
    %v3410 = vpack.c.b16 %v2970, %v2966
    %v3411 = vpack.c.b16 %v2971, %v2967
    %v3412 = vpack.c.b16 %v2976, %v2972
    %v3413 = vpack.c.b16 %v2977, %v2973
    %v3414 = vpack.c.b16 %v2978, %v2974
    %v3415 = vpack.c.b16 %v2979, %v2975
    %v3416 = vpack.c.b16 %v2984, %v2980
    %v3417 = vpack.c.b16 %v2985, %v2981
    %v3418 = vpack.c.b16 %v2986, %v2982
    %v3419 = vpack.c.b16 %v2987, %v2983
    %v3420 = vpack.c.b16 %v2992, %v2988
    %v3421 = vpack.c.b16 %v2993, %v2989
    %v3422 = vpack.c.b16 %v2994, %v2990
    %v3423 = vpack.c.b16 %v2995, %v2991
    %v3424 = vpack.c.b16 %v3000, %v2996
    %v3425 = vpack.c.b16 %v3001, %v2997
    %v3426 = vpack.c.b16 %v3002, %v2998
    %v3427 = vpack.c.b16 %v3003, %v2999
    %v3428 = vpack.c.b16 %v3008, %v3004
    %v3429 = vpack.c.b16 %v3009, %v3005
    %v3430 = vpack.c.b16 %v3010, %v3006
    %v3431 = vpack.c.b16 %v3011, %v3007
    %v3432 = vpack.c.b16 %v3016, %v3012
    %v3433 = vpack.c.b16 %v3017, %v3013
    %v3434 = vpack.c.b16 %v3018, %v3014
    %v3435 = vpack.c.b16 %v3019, %v3015
    %v3436 = vpack.c.b16 %v3024, %v3020
    %v3437 = vpack.c.b16 %v3025, %v3021
    %v3438 = vpack.c.b16 %v3026, %v3022
    %v3439 = vpack.c.b16 %v3027, %v3023
    %v3440 = vpack.c.b16 %v3032, %v3028
    %v3441 = vpack.c.b16 %v3033, %v3029
    %v3442 = vpack.c.b16 %v3034, %v3030
    %v3443 = vpack.c.b16 %v3035, %v3031
    %v3444 = vpack.c.b16 %v3040, %v3036
    %v3445 = vpack.c.b16 %v3041, %v3037
    %v3446 = vpack.c.b16 %v3042, %v3038
    %v3447 = vpack.c.b16 %v3043, %v3039
    %v3448 = vpack.c.b16 %v3048, %v3044
    %v3449 = vpack.c.b16 %v3049, %v3045
    %v3450 = vpack.c.b16 %v3050, %v3046
    %v3451 = vpack.c.b16 %v3051, %v3047
    %v3452 = vpack.c.b16 %v3056, %v3052
    %v3453 = vpack.c.b16 %v3057, %v3053
    %v3454 = vpack.c.b16 %v3058, %v3054
    %v3455 = vpack.c.b16 %v3059, %v3055
    %v3456 = vpack.c.b16 %v3064, %v3060
    %v3457 = vpack.c.b16 %v3065, %v3061
    %v3458 = vpack.c.b16 %v3066, %v3062
    %v3459 = vpack.c.b16 %v3067, %v3063
    %v3460 = vpack.c.b16 %v3072, %v3068
    %v3461 = vpack.c.b16 %v3073, %v3069
    %v3462 = vpack.c.b16 %v3074, %v3070
    %v3463 = vpack.c.b16 %v3075, %v3071
    %v3464 = vpack.c.b16 %v3080, %v3076
    %v3465 = vpack.c.b16 %v3081, %v3077
    %v3466 = vpack.c.b16 %v3082, %v3078
    %v3467 = vpack.c.b16 %v3083, %v3079
    %v3468 = vpack.c.b16 %v3088, %v3084
    %v3469 = vpack.c.b16 %v3089, %v3085
    %v3470 = vpack.c.b16 %v3090, %v3086
    %v3471 = vpack.c.b16 %v3091, %v3087
    %v3472 = vpack.c.b16 %v3096, %v3092
    %v3473 = vpack.c.b16 %v3097, %v3093
    %v3474 = vpack.c.b16 %v3098, %v3094
    %v3475 = vpack.c.b16 %v3099, %v3095
    %v3476 = vpack.c.b16 %v3104, %v3100
    %v3477 = vpack.c.b16 %v3105, %v3101
    %v3478 = vpack.c.b16 %v3106, %v3102
    %v3479 = vpack.c.b16 %v3107, %v3103
    %v3480 = vpack.c.b16 %v3112, %v3108
    %v3481 = vpack.c.b16 %v3113, %v3109
    %v3482 = vpack.c.b16 %v3114, %v3110
    %v3483 = vpack.c.b16 %v3115, %v3111
    %v3484 = vpack.c.b16 %v3120, %v3116
    %v3485 = vpack.c.b16 %v3121, %v3117
    %v3486 = vpack.c.b16 %v3122, %v3118
    %v3487 = vpack.c.b16 %v3123, %v3119
    %v3488 = vpack.c.b16 %v3128, %v3124
    %v3489 = vpack.c.b16 %v3129, %v3125
    %v3490 = vpack.c.b16 %v3130, %v3126
    %v3491 = vpack.c.b16 %v3131, %v3127
    %v3492 = vpack.c.b16 %v3136, %v3132
    %v3493 = vpack.c.b16 %v3137, %v3133
    %v3494 = vpack.c.b16 %v3138, %v3134
    %v3495 = vpack.c.b16 %v3139, %v3135
    %v3496 = vpack.c.b16 %v3144, %v3140
    %v3497 = vpack.c.b16 %v3145, %v3141
    %v3498 = vpack.c.b16 %v3146, %v3142
    %v3499 = vpack.c.b16 %v3147, %v3143
    %v3500 = vpack.c.b16 %v3152, %v3148
    %v3501 = vpack.c.b16 %v3153, %v3149
    %v3502 = vpack.c.b16 %v3154, %v3150
    %v3503 = vpack.c.b16 %v3155, %v3151
    %v3504 = vpack.c.b16 %v3160, %v3156
    %v3505 = vpack.c.b16 %v3161, %v3157
    %v3506 = vpack.c.b16 %v3162, %v3158
    %v3507 = vpack.c.b16 %v3163, %v3159
    %v3508 = vpack.c.b16 %v3168, %v3164
    %v3509 = vpack.c.b16 %v3169, %v3165
    %v3510 = vpack.c.b16 %v3170, %v3166
    %v3511 = vpack.c.b16 %v3171, %v3167
    %v3512 = vpack.c.b16 %v3176, %v3172
    %v3513 = vpack.c.b16 %v3177, %v3173
    %v3514 = vpack.c.b16 %v3178, %v3174
    %v3515 = vpack.c.b16 %v3179, %v3175
    %v3516 = vpack.c.b16 %v3184, %v3180
    %v3517 = vpack.c.b16 %v3185, %v3181
    %v3518 = vpack.c.b16 %v3186, %v3182
    %v3519 = vpack.c.b16 %v3187, %v3183
    %v3520 = vpack.c.b16 %v3192, %v3188
    %v3521 = vpack.c.b16 %v3193, %v3189
    %v3522 = vpack.c.b16 %v3194, %v3190
    %v3523 = vpack.c.b16 %v3195, %v3191
    %v3524 = vpack.c.b16 %v3200, %v3196
    %v3525 = vpack.c.b16 %v3201, %v3197
    %v3526 = vpack.c.b16 %v3202, %v3198
    %v3527 = vpack.c.b16 %v3203, %v3199
    %v3528 = vpack.c.b16 %v3208, %v3204
    %v3529 = vpack.c.b16 %v3209, %v3205
    %v3530 = vpack.c.b16 %v3210, %v3206
    %v3531 = vpack.c.b16 %v3211, %v3207
    %v3532 = vpack.c.b16 %v3216, %v3212
    %v3533 = vpack.c.b16 %v3217, %v3213
    %v3534 = vpack.c.b16 %v3218, %v3214
    %v3535 = vpack.c.b16 %v3219, %v3215
    %v3536 = vpack.c.b16 %v3224, %v3220
    %v3537 = vpack.c.b16 %v3225, %v3221
    %v3538 = vpack.c.b16 %v3226, %v3222
    %v3539 = vpack.c.b16 %v3227, %v3223
    %v3540 = vpack.c.b16 %v3232, %v3228
    %v3541 = vpack.c.b16 %v3233, %v3229
    %v3542 = vpack.c.b16 %v3234, %v3230
    %v3543 = vpack.c.b16 %v3235, %v3231
    %v3544 = vpack.c.b16 %v3240, %v3236
    %v3545 = vpack.c.b16 %v3241, %v3237
    %v3546 = vpack.c.b16 %v3242, %v3238
    %v3547 = vpack.c.b16 %v3243, %v3239
    %v3548 = vpack.c.b16 %v3248, %v3244
    %v3549 = vpack.c.b16 %v3249, %v3245
    %v3550 = vpack.c.b16 %v3250, %v3246
    %v3551 = vpack.c.b16 %v3251, %v3247
    %v3552 = vpack.c.b16 %v3256, %v3252
    %v3553 = vpack.c.b16 %v3257, %v3253
    %v3554 = vpack.c.b16 %v3258, %v3254
    %v3555 = vpack.c.b16 %v3259, %v3255
    %v3556 = vpack.c.b16 %v3264, %v3260
    %v3557 = vpack.c.b16 %v3265, %v3261
    %v3558 = vpack.c.b16 %v3266, %v3262
    %v3559 = vpack.c.b16 %v3267, %v3263
    %v3560 = vpack.c.b16 %v3272, %v3268
    %v3561 = vpack.c.b16 %v3273, %v3269
    %v3562 = vpack.c.b16 %v3274, %v3270
    %v3563 = vpack.c.b16 %v3275, %v3271
    %v3564 = vpack.c.b16 %v3280, %v3276
    %v3565 = vpack.c.b16 %v3281, %v3277
    %v3566 = vpack.c.b16 %v3282, %v3278
    %v3567 = vpack.c.b16 %v3283, %v3279
    %v3568 = vpack.c.b16 %v3288, %v3284
    %v3569 = vpack.c.b16 %v3289, %v3285
    %v3570 = vpack.c.b16 %v3290, %v3286
    %v3571 = vpack.c.b16 %v3291, %v3287
    %v3572 = vpack.c.b16 %v3296, %v3292
    %v3573 = vpack.c.b16 %v3297, %v3293
    %v3574 = vpack.c.b16 %v3298, %v3294
    %v3575 = vpack.c.b16 %v3299, %v3295
    %v3576 = vpack.c.b16 %v3304, %v3300
    %v3577 = vpack.c.b16 %v3305, %v3301
    %v3578 = vpack.c.b16 %v3306, %v3302
    %v3579 = vpack.c.b16 %v3307, %v3303
    %v3580 = vpack.c.b16 %v3312, %v3308
    %v3581 = vpack.c.b16 %v3313, %v3309
    %v3582 = vpack.c.b16 %v3314, %v3310
    %v3583 = vpack.c.b16 %v3315, %v3311
    %v3584 = vpack.c.b16 %v3320, %v3316
    %v3585 = vpack.c.b16 %v3321, %v3317
    %v3586 = vpack.c.b16 %v3322, %v3318
    %v3587 = vpack.c.b16 %v3323, %v3319
    %v3588 = vpack.c.b16 %v3328, %v3324
    %v3589 = vpack.c.b16 %v3329, %v3325
    %v3590 = vpack.c.b16 %v3330, %v3326
    %v3591 = vpack.c.b16 %v3331, %v3327
    %v3592 = vpack.c.b16 %v3336, %v3332
    %v3593 = vpack.c.b16 %v3337, %v3333
    %v3594 = vpack.c.b16 %v3338, %v3334
    %v3595 = vpack.c.b16 %v3339, %v3335
    %3852 = vmatprep.subr.bf16.mxu0 %v3369
    %3853 = vmatpush1.bf16.msra.mxu0 %v3368
    %3854 = vmatprep.subr.bf16.mxu0 %v3365
    %3855 = vmatpush1.bf16.msra.mxu0 %v3364
    %3856 = vmatprep.subr.bf16.mxu0 %v3361
    %3857 = vmatpush1.bf16.msra.mxu0 %v3360
    %3858 = vmatprep.subr.bf16.mxu0 %v3357
    %3859 = vmatpush1.bf16.msra.mxu0 %v3356
    %3860 = vmatprep.subr.bf16.mxu0 %v3353
    %3861 = vmatpush1.bf16.msra.mxu0 %v3352
    %3862 = vmatprep.subr.bf16.mxu0 %v3349
    %3863 = vmatpush1.bf16.msra.mxu0 %v3348
    %3864 = vmatprep.subr.bf16.mxu0 %v3345
    %3865 = vmatpush1.bf16.msra.mxu0 %v3344
    %3866 = vmatprep.subr.bf16.mxu0 %v3341
    %3867 = vmatpush1.bf16.msra.mxu0 %v3340
    %3868 = vmatprep.subr.bf16.mxu0 %v3401
    %3869 = vmatpush2.bf16.msra.mxu0 %v3400
    %3870 = vmatprep.subr.bf16.mxu0 %v3397
    %3871 = vmatpush2.bf16.msra.mxu0 %v3396
    %3872 = vmatprep.subr.bf16.mxu0 %v3393
    %3873 = vmatpush2.bf16.msra.mxu0 %v3392
    %3874 = vmatprep.subr.bf16.mxu0 %v3389
    %3875 = vmatpush2.bf16.msra.mxu0 %v3388
    %3876 = vmatprep.subr.bf16.mxu0 %v3385
    %3877 = vmatpush2.bf16.msra.mxu0 %v3384
    %3878 = vmatprep.subr.bf16.mxu0 %v3381
    %3879 = vmatpush2.bf16.msra.mxu0 %v3380
    %3880 = vmatprep.subr.bf16.mxu0 %v3377
    %3881 = vmatpush2.bf16.msra.mxu0 %v3376
    %3882 = vmatprep.subr.bf16.mxu0 %v3373
    %3883 = vmatpush2.bf16.msra.mxu0 %v3372
    %3884 = vmatprep.mubr.bf16.mxu0 %v2224
    %3885 = vmatmul.mubr.bf16.gmra.mxu0 %v2223
    %v3886 = vpop.f32.mrf.mxu0
    %v3887 = vadd.f32 %v2555, %v3886
    %v3888 = vpop.f32.mrf.mxu0
    %v3889 = vadd.f32 %v2559, %v3888
    %v3890 = vpop.f32.mrf.mxu0
    %v3891 = vadd.f32 %v2555, %v3890
    %v3892 = vpop.f32.mrf.mxu0
    %v3893 = vadd.f32 %v2559, %v3892
    %3894 = vmatprep.mubr.bf16.mxu0 %v2232
    %3895 = vmatmul.mubr.bf16.gmra.mxu0 %v2231
    %v3896 = vpop.f32.mrf.mxu0
    %v3897 = vadd.f32 %v2555, %v3896
    %v3898 = vpop.f32.mrf.mxu0
    %v3899 = vadd.f32 %v2559, %v3898
    %v3900 = vpop.f32.mrf.mxu0
    %v3901 = vadd.f32 %v2555, %v3900
    %v3902 = vpop.f32.mrf.mxu0
    %v3903 = vadd.f32 %v2559, %v3902
    %3904 = vmatprep.mubr.bf16.mxu0 %v2240
    %3905 = vmatmul.mubr.bf16.gmra.mxu0 %v2239
    %v3906 = vpop.f32.mrf.mxu0
    %v3907 = vadd.f32 %v2555, %v3906
    %v3908 = vpop.f32.mrf.mxu0
    %v3909 = vadd.f32 %v2559, %v3908
    %v3910 = vpop.f32.mrf.mxu0
    %v3911 = vadd.f32 %v2555, %v3910
    %v3912 = vpop.f32.mrf.mxu0
    %v3913 = vadd.f32 %v2559, %v3912
    %3914 = vmatprep.mubr.bf16.mxu0 %v2248
    %3915 = vmatmul.mubr.bf16.gmra.mxu0 %v2247
    %v3916 = vpop.f32.mrf.mxu0
    %v3917 = vadd.f32 %v2555, %v3916
    %v3918 = vpop.f32.mrf.mxu0
    %v3919 = vadd.f32 %v2559, %v3918
    %v3920 = vpop.f32.mrf.mxu0
    %v3921 = vadd.f32 %v2555, %v3920
    %v3922 = vpop.f32.mrf.mxu0
    %v3923 = vadd.f32 %v2559, %v3922
    %3924 = vmatprep.mubr.bf16.mxu0 %v2256
    %3925 = vmatmul.mubr.bf16.gmra.mxu0 %v2255
    %v3926 = vpop.f32.mrf.mxu0
    %v3927 = vadd.f32 %v2555, %v3926
    %v3928 = vpop.f32.mrf.mxu0
    %v3929 = vadd.f32 %v2559, %v3928
    %v3930 = vpop.f32.mrf.mxu0
    %v3931 = vadd.f32 %v2555, %v3930
    %v3932 = vpop.f32.mrf.mxu0
    %v3933 = vadd.f32 %v2559, %v3932
    %3934 = vmatprep.mubr.bf16.mxu0 %v2264
    %3935 = vmatmul.mubr.bf16.gmra.mxu0 %v2263
    %v3936 = vpop.f32.mrf.mxu0
    %v3937 = vadd.f32 %v2555, %v3936
    %v3938 = vpop.f32.mrf.mxu0
    %v3939 = vadd.f32 %v2559, %v3938
    %v3940 = vpop.f32.mrf.mxu0
    %v3941 = vadd.f32 %v2555, %v3940
    %v3942 = vpop.f32.mrf.mxu0
    %v3943 = vadd.f32 %v2559, %v3942
    %3944 = vmatprep.mubr.bf16.mxu0 %v2272
    %3945 = vmatmul.mubr.bf16.gmra.mxu0 %v2271
    %v3946 = vpop.f32.mrf.mxu0
    %v3947 = vadd.f32 %v2555, %v3946
    %v3948 = vpop.f32.mrf.mxu0
    %v3949 = vadd.f32 %v2559, %v3948
    %v3950 = vpop.f32.mrf.mxu0
    %v3951 = vadd.f32 %v2555, %v3950
    %v3952 = vpop.f32.mrf.mxu0
    %v3953 = vadd.f32 %v2559, %v3952
    %3954 = vmatprep.mubr.bf16.mxu0 %v2280
    %3955 = vmatmul.mubr.bf16.gmra.mxu0 %v2279
    %v3956 = vpop.f32.mrf.mxu0
    %v3957 = vadd.f32 %v2555, %v3956
    %v3958 = vpop.f32.mrf.mxu0
    %v3959 = vadd.f32 %v2559, %v3958
    %v3960 = vpop.f32.mrf.mxu0
    %v3961 = vadd.f32 %v2555, %v3960
    %v3962 = vpop.f32.mrf.mxu0
    %v3963 = vadd.f32 %v2559, %v3962
    %3964 = vdwg.mxu0
    %3965 = vmatprep.subr.bf16.mxu0 %v3433
    %3966 = vmatpush1.bf16.msra.mxu0 %v3432
    %3967 = vmatprep.subr.bf16.mxu0 %v3429
    %3968 = vmatpush1.bf16.msra.mxu0 %v3428
    %3969 = vmatprep.subr.bf16.mxu0 %v3425
    %3970 = vmatpush1.bf16.msra.mxu0 %v3424
    %3971 = vmatprep.subr.bf16.mxu0 %v3421
    %3972 = vmatpush1.bf16.msra.mxu0 %v3420
    %3973 = vmatprep.subr.bf16.mxu0 %v3417
    %3974 = vmatpush1.bf16.msra.mxu0 %v3416
    %3975 = vmatprep.subr.bf16.mxu0 %v3413
    %3976 = vmatpush1.bf16.msra.mxu0 %v3412
    %3977 = vmatprep.subr.bf16.mxu0 %v3409
    %3978 = vmatpush1.bf16.msra.mxu0 %v3408
    %3979 = vmatprep.subr.bf16.mxu0 %v3405
    %3980 = vmatpush1.bf16.msra.mxu0 %v3404
    %3981 = vmatprep.subr.bf16.mxu0 %v3465
    %3982 = vmatpush2.bf16.msra.mxu0 %v3464
    %3983 = vmatprep.subr.bf16.mxu0 %v3461
    %3984 = vmatpush2.bf16.msra.mxu0 %v3460
    %3985 = vmatprep.subr.bf16.mxu0 %v3457
    %3986 = vmatpush2.bf16.msra.mxu0 %v3456
    %3987 = vmatprep.subr.bf16.mxu0 %v3453
    %3988 = vmatpush2.bf16.msra.mxu0 %v3452
    %3989 = vmatprep.subr.bf16.mxu0 %v3449
    %3990 = vmatpush2.bf16.msra.mxu0 %v3448
    %3991 = vmatprep.subr.bf16.mxu0 %v3445
    %3992 = vmatpush2.bf16.msra.mxu0 %v3444
    %3993 = vmatprep.subr.bf16.mxu0 %v3441
    %3994 = vmatpush2.bf16.msra.mxu0 %v3440
    %3995 = vmatprep.subr.bf16.mxu0 %v3437
    %3996 = vmatpush2.bf16.msra.mxu0 %v3436
    %3997 = vmatprep.mubr.bf16.mxu0 %v2226
    %3998 = vmatmul.mubr.bf16.gmra.mxu0 %v2225
    %v3999 = vpop.f32.mrf.mxu0
    %v4000 = vadd.f32 %v3887, %v3999
    %v4001 = vpop.f32.mrf.mxu0
    %v4002 = vadd.f32 %v3889, %v4001
    %v4003 = vpop.f32.mrf.mxu0
    %v4004 = vadd.f32 %v3891, %v4003
    %v4005 = vpop.f32.mrf.mxu0
    %v4006 = vadd.f32 %v3893, %v4005
    %4007 = vmatprep.mubr.bf16.mxu0 %v2234
    %4008 = vmatmul.mubr.bf16.gmra.mxu0 %v2233
    %v4009 = vpop.f32.mrf.mxu0
    %v4010 = vadd.f32 %v3897, %v4009
    %v4011 = vpop.f32.mrf.mxu0
    %v4012 = vadd.f32 %v3899, %v4011
    %v4013 = vpop.f32.mrf.mxu0
    %v4014 = vadd.f32 %v3901, %v4013
    %v4015 = vpop.f32.mrf.mxu0
    %v4016 = vadd.f32 %v3903, %v4015
    %4017 = vmatprep.mubr.bf16.mxu0 %v2242
    %4018 = vmatmul.mubr.bf16.gmra.mxu0 %v2241
    %v4019 = vpop.f32.mrf.mxu0
    %v4020 = vadd.f32 %v3907, %v4019
    %v4021 = vpop.f32.mrf.mxu0
    %v4022 = vadd.f32 %v3909, %v4021
    %v4023 = vpop.f32.mrf.mxu0
    %v4024 = vadd.f32 %v3911, %v4023
    %v4025 = vpop.f32.mrf.mxu0
    %v4026 = vadd.f32 %v3913, %v4025
    %4027 = vmatprep.mubr.bf16.mxu0 %v2250
    %4028 = vmatmul.mubr.bf16.gmra.mxu0 %v2249
    %v4029 = vpop.f32.mrf.mxu0
    %v4030 = vadd.f32 %v3917, %v4029
    %v4031 = vpop.f32.mrf.mxu0
    %v4032 = vadd.f32 %v3919, %v4031
    %v4033 = vpop.f32.mrf.mxu0
    %v4034 = vadd.f32 %v3921, %v4033
    %v4035 = vpop.f32.mrf.mxu0
    %v4036 = vadd.f32 %v3923, %v4035
    %4037 = vmatprep.mubr.bf16.mxu0 %v2258
    %4038 = vmatmul.mubr.bf16.gmra.mxu0 %v2257
    %v4039 = vpop.f32.mrf.mxu0
    %v4040 = vadd.f32 %v3927, %v4039
    %v4041 = vpop.f32.mrf.mxu0
    %v4042 = vadd.f32 %v3929, %v4041
    %v4043 = vpop.f32.mrf.mxu0
    %v4044 = vadd.f32 %v3931, %v4043
    %v4045 = vpop.f32.mrf.mxu0
    %v4046 = vadd.f32 %v3933, %v4045
    %4047 = vmatprep.mubr.bf16.mxu0 %v2266
    %4048 = vmatmul.mubr.bf16.gmra.mxu0 %v2265
    %v4049 = vpop.f32.mrf.mxu0
    %v4050 = vadd.f32 %v3937, %v4049
    %v4051 = vpop.f32.mrf.mxu0
    %v4052 = vadd.f32 %v3939, %v4051
    %v4053 = vpop.f32.mrf.mxu0
    %v4054 = vadd.f32 %v3941, %v4053
    %v4055 = vpop.f32.mrf.mxu0
    %v4056 = vadd.f32 %v3943, %v4055
    %4057 = vmatprep.mubr.bf16.mxu0 %v2274
    %4058 = vmatmul.mubr.bf16.gmra.mxu0 %v2273
    %v4059 = vpop.f32.mrf.mxu0
    %v4060 = vadd.f32 %v3947, %v4059
    %v4061 = vpop.f32.mrf.mxu0
    %v4062 = vadd.f32 %v3949, %v4061
    %v4063 = vpop.f32.mrf.mxu0
    %v4064 = vadd.f32 %v3951, %v4063
    %v4065 = vpop.f32.mrf.mxu0
    %v4066 = vadd.f32 %v3953, %v4065
    %4067 = vmatprep.mubr.bf16.mxu0 %v2282
    %4068 = vmatmul.mubr.bf16.gmra.mxu0 %v2281
    %v4069 = vpop.f32.mrf.mxu0
    %v4070 = vadd.f32 %v3957, %v4069
    %v4071 = vpop.f32.mrf.mxu0
    %v4072 = vadd.f32 %v3959, %v4071
    %v4073 = vpop.f32.mrf.mxu0
    %v4074 = vadd.f32 %v3961, %v4073
    %v4075 = vpop.f32.mrf.mxu0
    %v4076 = vadd.f32 %v3963, %v4075
    %4077 = vdwg.mxu0
    %4078 = vmatprep.subr.bf16.mxu0 %v3497
    %4079 = vmatpush1.bf16.msra.mxu0 %v3496
    %4080 = vmatprep.subr.bf16.mxu0 %v3493
    %4081 = vmatpush1.bf16.msra.mxu0 %v3492
    %4082 = vmatprep.subr.bf16.mxu0 %v3489
    %4083 = vmatpush1.bf16.msra.mxu0 %v3488
    %4084 = vmatprep.subr.bf16.mxu0 %v3485
    %4085 = vmatpush1.bf16.msra.mxu0 %v3484
    %4086 = vmatprep.subr.bf16.mxu0 %v3481
    %4087 = vmatpush1.bf16.msra.mxu0 %v3480
    %4088 = vmatprep.subr.bf16.mxu0 %v3477
    %4089 = vmatpush1.bf16.msra.mxu0 %v3476
    %4090 = vmatprep.subr.bf16.mxu0 %v3473
    %4091 = vmatpush1.bf16.msra.mxu0 %v3472
    %4092 = vmatprep.subr.bf16.mxu0 %v3469
    %4093 = vmatpush1.bf16.msra.mxu0 %v3468
    %4094 = vmatprep.subr.bf16.mxu0 %v3529
    %4095 = vmatpush2.bf16.msra.mxu0 %v3528
    %4096 = vmatprep.subr.bf16.mxu0 %v3525
    %4097 = vmatpush2.bf16.msra.mxu0 %v3524
    %4098 = vmatprep.subr.bf16.mxu0 %v3521
    %4099 = vmatpush2.bf16.msra.mxu0 %v3520
    %4100 = vmatprep.subr.bf16.mxu0 %v3517
    %4101 = vmatpush2.bf16.msra.mxu0 %v3516
    %4102 = vmatprep.subr.bf16.mxu0 %v3513
    %4103 = vmatpush2.bf16.msra.mxu0 %v3512
    %4104 = vmatprep.subr.bf16.mxu0 %v3509
    %4105 = vmatpush2.bf16.msra.mxu0 %v3508
    %4106 = vmatprep.subr.bf16.mxu0 %v3505
    %4107 = vmatpush2.bf16.msra.mxu0 %v3504
    %4108 = vmatprep.subr.bf16.mxu0 %v3501
    %4109 = vmatpush2.bf16.msra.mxu0 %v3500
    %4110 = vmatprep.mubr.bf16.mxu0 %v2228
    %4111 = vmatmul.mubr.bf16.gmra.mxu0 %v2227
    %v4112 = vpop.f32.mrf.mxu0
    %v4113 = vadd.f32 %v4000, %v4112
    %v4114 = vpop.f32.mrf.mxu0
    %v4115 = vadd.f32 %v4002, %v4114
    %v4116 = vpop.f32.mrf.mxu0
    %v4117 = vadd.f32 %v4004, %v4116
    %v4118 = vpop.f32.mrf.mxu0
    %v4119 = vadd.f32 %v4006, %v4118
    %4120 = vmatprep.mubr.bf16.mxu0 %v2236
    %4121 = vmatmul.mubr.bf16.gmra.mxu0 %v2235
    %v4122 = vpop.f32.mrf.mxu0
    %v4123 = vadd.f32 %v4010, %v4122
    %v4124 = vpop.f32.mrf.mxu0
    %v4125 = vadd.f32 %v4012, %v4124
    %v4126 = vpop.f32.mrf.mxu0
    %v4127 = vadd.f32 %v4014, %v4126
    %v4128 = vpop.f32.mrf.mxu0
    %v4129 = vadd.f32 %v4016, %v4128
    %4130 = vmatprep.mubr.bf16.mxu0 %v2244
    %4131 = vmatmul.mubr.bf16.gmra.mxu0 %v2243
    %v4132 = vpop.f32.mrf.mxu0
    %v4133 = vadd.f32 %v4020, %v4132
    %v4134 = vpop.f32.mrf.mxu0
    %v4135 = vadd.f32 %v4022, %v4134
    %v4136 = vpop.f32.mrf.mxu0
    %v4137 = vadd.f32 %v4024, %v4136
    %v4138 = vpop.f32.mrf.mxu0
    %v4139 = vadd.f32 %v4026, %v4138
    %4140 = vmatprep.mubr.bf16.mxu0 %v2252
    %4141 = vmatmul.mubr.bf16.gmra.mxu0 %v2251
    %v4142 = vpop.f32.mrf.mxu0
    %v4143 = vadd.f32 %v4030, %v4142
    %v4144 = vpop.f32.mrf.mxu0
    %v4145 = vadd.f32 %v4032, %v4144
    %v4146 = vpop.f32.mrf.mxu0
    %v4147 = vadd.f32 %v4034, %v4146
    %v4148 = vpop.f32.mrf.mxu0
    %v4149 = vadd.f32 %v4036, %v4148
    %4150 = vmatprep.mubr.bf16.mxu0 %v2260
    %4151 = vmatmul.mubr.bf16.gmra.mxu0 %v2259
    %v4152 = vpop.f32.mrf.mxu0
    %v4153 = vadd.f32 %v4040, %v4152
    %v4154 = vpop.f32.mrf.mxu0
    %v4155 = vadd.f32 %v4042, %v4154
    %v4156 = vpop.f32.mrf.mxu0
    %v4157 = vadd.f32 %v4044, %v4156
    %v4158 = vpop.f32.mrf.mxu0
    %v4159 = vadd.f32 %v4046, %v4158
    %4160 = vmatprep.mubr.bf16.mxu0 %v2268
    %4161 = vmatmul.mubr.bf16.gmra.mxu0 %v2267
    %v4162 = vpop.f32.mrf.mxu0
    %v4163 = vadd.f32 %v4050, %v4162
    %v4164 = vpop.f32.mrf.mxu0
    %v4165 = vadd.f32 %v4052, %v4164
    %v4166 = vpop.f32.mrf.mxu0
    %v4167 = vadd.f32 %v4054, %v4166
    %v4168 = vpop.f32.mrf.mxu0
    %v4169 = vadd.f32 %v4056, %v4168
    %4170 = vmatprep.mubr.bf16.mxu0 %v2276
    %4171 = vmatmul.mubr.bf16.gmra.mxu0 %v2275
    %v4172 = vpop.f32.mrf.mxu0
    %v4173 = vadd.f32 %v4060, %v4172
    %v4174 = vpop.f32.mrf.mxu0
    %v4175 = vadd.f32 %v4062, %v4174
    %v4176 = vpop.f32.mrf.mxu0
    %v4177 = vadd.f32 %v4064, %v4176
    %v4178 = vpop.f32.mrf.mxu0
    %v4179 = vadd.f32 %v4066, %v4178
    %4180 = vmatprep.mubr.bf16.mxu0 %v2284
    %4181 = vmatmul.mubr.bf16.gmra.mxu0 %v2283
    %v4182 = vpop.f32.mrf.mxu0
    %v4183 = vadd.f32 %v4070, %v4182
    %v4184 = vpop.f32.mrf.mxu0
    %v4185 = vadd.f32 %v4072, %v4184
    %v4186 = vpop.f32.mrf.mxu0
    %v4187 = vadd.f32 %v4074, %v4186
    %v4188 = vpop.f32.mrf.mxu0
    %v4189 = vadd.f32 %v4076, %v4188
    %4190 = vdwg.mxu0
    %4191 = vmatprep.subr.bf16.mxu0 %v3561
    %4192 = vmatpush1.bf16.msra.mxu0 %v3560
    %4193 = vmatprep.subr.bf16.mxu0 %v3557
    %4194 = vmatpush1.bf16.msra.mxu0 %v3556
    %4195 = vmatprep.subr.bf16.mxu0 %v3553
    %4196 = vmatpush1.bf16.msra.mxu0 %v3552
    %4197 = vmatprep.subr.bf16.mxu0 %v3549
    %4198 = vmatpush1.bf16.msra.mxu0 %v3548
    %4199 = vmatprep.subr.bf16.mxu0 %v3545
    %4200 = vmatpush1.bf16.msra.mxu0 %v3544
    %4201 = vmatprep.subr.bf16.mxu0 %v3541
    %4202 = vmatpush1.bf16.msra.mxu0 %v3540
    %4203 = vmatprep.subr.bf16.mxu0 %v3537
    %4204 = vmatpush1.bf16.msra.mxu0 %v3536
    %4205 = vmatprep.subr.bf16.mxu0 %v3533
    %4206 = vmatpush1.bf16.msra.mxu0 %v3532
    %4207 = vmatprep.subr.bf16.mxu0 %v3593
    %4208 = vmatpush2.bf16.msra.mxu0 %v3592
    %4209 = vmatprep.subr.bf16.mxu0 %v3589
    %4210 = vmatpush2.bf16.msra.mxu0 %v3588
    %4211 = vmatprep.subr.bf16.mxu0 %v3585
    %4212 = vmatpush2.bf16.msra.mxu0 %v3584
    %4213 = vmatprep.subr.bf16.mxu0 %v3581
    %4214 = vmatpush2.bf16.msra.mxu0 %v3580
    %4215 = vmatprep.subr.bf16.mxu0 %v3577
    %4216 = vmatpush2.bf16.msra.mxu0 %v3576
    %4217 = vmatprep.subr.bf16.mxu0 %v3573
    %4218 = vmatpush2.bf16.msra.mxu0 %v3572
    %4219 = vmatprep.subr.bf16.mxu0 %v3569
    %4220 = vmatpush2.bf16.msra.mxu0 %v3568
    %4221 = vmatprep.subr.bf16.mxu0 %v3565
    %4222 = vmatpush2.bf16.msra.mxu0 %v3564
    %4223 = vmatprep.mubr.bf16.mxu0 %v2230
    %4224 = vmatmul.mubr.bf16.gmra.mxu0 %v2229
    %v4225 = vpop.f32.mrf.mxu0
    %v4226 = vadd.f32 %v4113, %v4225
    %v4227 = vpop.f32.mrf.mxu0
    %v4228 = vadd.f32 %v4115, %v4227
    %v4229 = vpop.f32.mrf.mxu0
    %v4230 = vadd.f32 %v4117, %v4229
    %v4231 = vpop.f32.mrf.mxu0
    %v4232 = vadd.f32 %v4119, %v4231
    %4233 = vmatprep.mubr.bf16.mxu0 %v2238
    %4234 = vmatmul.mubr.bf16.gmra.mxu0 %v2237
    %v4235 = vpop.f32.mrf.mxu0
    %v4236 = vadd.f32 %v4123, %v4235
    %v4237 = vpop.f32.mrf.mxu0
    %v4238 = vadd.f32 %v4125, %v4237
    %v4239 = vpop.f32.mrf.mxu0
    %v4240 = vadd.f32 %v4127, %v4239
    %v4241 = vpop.f32.mrf.mxu0
    %v4242 = vadd.f32 %v4129, %v4241
    %4243 = vmatprep.mubr.bf16.mxu0 %v2246
    %4244 = vmatmul.mubr.bf16.gmra.mxu0 %v2245
    %v4245 = vpop.f32.mrf.mxu0
    %v4246 = vadd.f32 %v4133, %v4245
    %v4247 = vpop.f32.mrf.mxu0
    %v4248 = vadd.f32 %v4135, %v4247
    %v4249 = vpop.f32.mrf.mxu0
    %v4250 = vadd.f32 %v4137, %v4249
    %v4251 = vpop.f32.mrf.mxu0
    %v4252 = vadd.f32 %v4139, %v4251
    %4253 = vmatprep.mubr.bf16.mxu0 %v2254
    %4254 = vmatmul.mubr.bf16.gmra.mxu0 %v2253
    %v4255 = vpop.f32.mrf.mxu0
    %v4256 = vadd.f32 %v4143, %v4255
    %v4257 = vpop.f32.mrf.mxu0
    %v4258 = vadd.f32 %v4145, %v4257
    %v4259 = vpop.f32.mrf.mxu0
    %v4260 = vadd.f32 %v4147, %v4259
    %v4261 = vpop.f32.mrf.mxu0
    %v4262 = vadd.f32 %v4149, %v4261
    %4263 = vmatprep.mubr.bf16.mxu0 %v2262
    %4264 = vmatmul.mubr.bf16.gmra.mxu0 %v2261
    %v4265 = vpop.f32.mrf.mxu0
    %v4266 = vadd.f32 %v4153, %v4265
    %v4267 = vpop.f32.mrf.mxu0
    %v4268 = vadd.f32 %v4155, %v4267
    %v4269 = vpop.f32.mrf.mxu0
    %v4270 = vadd.f32 %v4157, %v4269
    %v4271 = vpop.f32.mrf.mxu0
    %v4272 = vadd.f32 %v4159, %v4271
    %4273 = vmatprep.mubr.bf16.mxu0 %v2270
    %4274 = vmatmul.mubr.bf16.gmra.mxu0 %v2269
    %v4275 = vpop.f32.mrf.mxu0
    %v4276 = vadd.f32 %v4163, %v4275
    %v4277 = vpop.f32.mrf.mxu0
    %v4278 = vadd.f32 %v4165, %v4277
    %v4279 = vpop.f32.mrf.mxu0
    %v4280 = vadd.f32 %v4167, %v4279
    %v4281 = vpop.f32.mrf.mxu0
    %v4282 = vadd.f32 %v4169, %v4281
    %4283 = vmatprep.mubr.bf16.mxu0 %v2278
    %4284 = vmatmul.mubr.bf16.gmra.mxu0 %v2277
    %v4285 = vpop.f32.mrf.mxu0
    %v4286 = vadd.f32 %v4173, %v4285
    %v4287 = vpop.f32.mrf.mxu0
    %v4288 = vadd.f32 %v4175, %v4287
    %v4289 = vpop.f32.mrf.mxu0
    %v4290 = vadd.f32 %v4177, %v4289
    %v4291 = vpop.f32.mrf.mxu0
    %v4292 = vadd.f32 %v4179, %v4291
    %4293 = vmatprep.mubr.bf16.mxu0 %v2286
    %4294 = vmatmul.mubr.bf16.gmra.mxu0 %v2285
    %v4295 = vpop.f32.mrf.mxu0
    %v4296 = vadd.f32 %v4183, %v4295
    %v4297 = vpop.f32.mrf.mxu0
    %v4298 = vadd.f32 %v4185, %v4297
    %v4299 = vpop.f32.mrf.mxu0
    %v4300 = vadd.f32 %v4187, %v4299
    %v4301 = vpop.f32.mrf.mxu0
    %v4302 = vadd.f32 %v4189, %v4301
    %4303 = vdwg.mxu0
    %4304 = vmatprep.subr.bf16.mxu0 %v3371
    %4305 = vmatpush1.bf16.msra.mxu0 %v3370
    %4306 = vmatprep.subr.bf16.mxu0 %v3367
    %4307 = vmatpush1.bf16.msra.mxu0 %v3366
    %4308 = vmatprep.subr.bf16.mxu0 %v3363
    %4309 = vmatpush1.bf16.msra.mxu0 %v3362
    %4310 = vmatprep.subr.bf16.mxu0 %v3359
    %4311 = vmatpush1.bf16.msra.mxu0 %v3358
    %4312 = vmatprep.subr.bf16.mxu0 %v3355
    %4313 = vmatpush1.bf16.msra.mxu0 %v3354
    %4314 = vmatprep.subr.bf16.mxu0 %v3351
    %4315 = vmatpush1.bf16.msra.mxu0 %v3350
    %4316 = vmatprep.subr.bf16.mxu0 %v3347
    %4317 = vmatpush1.bf16.msra.mxu0 %v3346
    %4318 = vmatprep.subr.bf16.mxu0 %v3343
    %4319 = vmatpush1.bf16.msra.mxu0 %v3342
    %4320 = vmatprep.subr.bf16.mxu0 %v3403
    %4321 = vmatpush2.bf16.msra.mxu0 %v3402
    %4322 = vmatprep.subr.bf16.mxu0 %v3399
    %4323 = vmatpush2.bf16.msra.mxu0 %v3398
    %4324 = vmatprep.subr.bf16.mxu0 %v3395
    %4325 = vmatpush2.bf16.msra.mxu0 %v3394
    %4326 = vmatprep.subr.bf16.mxu0 %v3391
    %4327 = vmatpush2.bf16.msra.mxu0 %v3390
    %4328 = vmatprep.subr.bf16.mxu0 %v3387
    %4329 = vmatpush2.bf16.msra.mxu0 %v3386
    %4330 = vmatprep.subr.bf16.mxu0 %v3383
    %4331 = vmatpush2.bf16.msra.mxu0 %v3382
    %4332 = vmatprep.subr.bf16.mxu0 %v3379
    %4333 = vmatpush2.bf16.msra.mxu0 %v3378
    %4334 = vmatprep.subr.bf16.mxu0 %v3375
    %4335 = vmatpush2.bf16.msra.mxu0 %v3374
    %4336 = vmatprep.mubr.bf16.mxu0 %v2224
    %4337 = vmatmul.mubr.bf16.gmra.mxu0 %v2223
    %v4338 = vpop.f32.mrf.mxu0
    %v4339 = vadd.f32 %v2563, %v4338
    %v4340 = vpop.f32.mrf.mxu0
    %v4341 = vadd.f32 %v2567, %v4340
    %v4342 = vpop.f32.mrf.mxu0
    %v4343 = vadd.f32 %v2563, %v4342
    %v4344 = vpop.f32.mrf.mxu0
    %v4345 = vadd.f32 %v2567, %v4344
    %4346 = vmatprep.mubr.bf16.mxu0 %v2232
    %4347 = vmatmul.mubr.bf16.gmra.mxu0 %v2231
    %v4348 = vpop.f32.mrf.mxu0
    %v4349 = vadd.f32 %v2563, %v4348
    %v4350 = vpop.f32.mrf.mxu0
    %v4351 = vadd.f32 %v2567, %v4350
    %v4352 = vpop.f32.mrf.mxu0
    %v4353 = vadd.f32 %v2563, %v4352
    %v4354 = vpop.f32.mrf.mxu0
    %v4355 = vadd.f32 %v2567, %v4354
    %4356 = vmatprep.mubr.bf16.mxu0 %v2240
    %4357 = vmatmul.mubr.bf16.gmra.mxu0 %v2239
    %v4358 = vpop.f32.mrf.mxu0
    %v4359 = vadd.f32 %v2563, %v4358
    %v4360 = vpop.f32.mrf.mxu0
    %v4361 = vadd.f32 %v2567, %v4360
    %v4362 = vpop.f32.mrf.mxu0
    %v4363 = vadd.f32 %v2563, %v4362
    %v4364 = vpop.f32.mrf.mxu0
    %v4365 = vadd.f32 %v2567, %v4364
    %4366 = vmatprep.mubr.bf16.mxu0 %v2248
    %4367 = vmatmul.mubr.bf16.gmra.mxu0 %v2247
    %v4368 = vpop.f32.mrf.mxu0
    %v4369 = vadd.f32 %v2563, %v4368
    %v4370 = vpop.f32.mrf.mxu0
    %v4371 = vadd.f32 %v2567, %v4370
    %v4372 = vpop.f32.mrf.mxu0
    %v4373 = vadd.f32 %v2563, %v4372
    %v4374 = vpop.f32.mrf.mxu0
    %v4375 = vadd.f32 %v2567, %v4374
    %4376 = vmatprep.mubr.bf16.mxu0 %v2256
    %4377 = vmatmul.mubr.bf16.gmra.mxu0 %v2255
    %v4378 = vpop.f32.mrf.mxu0
    %v4379 = vadd.f32 %v2563, %v4378
    %v4380 = vpop.f32.mrf.mxu0
    %v4381 = vadd.f32 %v2567, %v4380
    %v4382 = vpop.f32.mrf.mxu0
    %v4383 = vadd.f32 %v2563, %v4382
    %v4384 = vpop.f32.mrf.mxu0
    %v4385 = vadd.f32 %v2567, %v4384
    %4386 = vmatprep.mubr.bf16.mxu0 %v2264
    %4387 = vmatmul.mubr.bf16.gmra.mxu0 %v2263
    %v4388 = vpop.f32.mrf.mxu0
    %v4389 = vadd.f32 %v2563, %v4388
    %v4390 = vpop.f32.mrf.mxu0
    %v4391 = vadd.f32 %v2567, %v4390
    %v4392 = vpop.f32.mrf.mxu0
    %v4393 = vadd.f32 %v2563, %v4392
    %v4394 = vpop.f32.mrf.mxu0
    %v4395 = vadd.f32 %v2567, %v4394
    %4396 = vmatprep.mubr.bf16.mxu0 %v2272
    %4397 = vmatmul.mubr.bf16.gmra.mxu0 %v2271
    %v4398 = vpop.f32.mrf.mxu0
    %v4399 = vadd.f32 %v2563, %v4398
    %v4400 = vpop.f32.mrf.mxu0
    %v4401 = vadd.f32 %v2567, %v4400
    %v4402 = vpop.f32.mrf.mxu0
    %v4403 = vadd.f32 %v2563, %v4402
    %v4404 = vpop.f32.mrf.mxu0
    %v4405 = vadd.f32 %v2567, %v4404
    %4406 = vmatprep.mubr.bf16.mxu0 %v2280
    %4407 = vmatmul.mubr.bf16.gmra.mxu0 %v2279
    %v4408 = vpop.f32.mrf.mxu0
    %v4409 = vadd.f32 %v2563, %v4408
    %v4410 = vpop.f32.mrf.mxu0
    %v4411 = vadd.f32 %v2567, %v4410
    %v4412 = vpop.f32.mrf.mxu0
    %v4413 = vadd.f32 %v2563, %v4412
    %v4414 = vpop.f32.mrf.mxu0
    %v4415 = vadd.f32 %v2567, %v4414
    %4416 = vdwg.mxu0
    %4417 = vmatprep.subr.bf16.mxu0 %v3435
    %4418 = vmatpush1.bf16.msra.mxu0 %v3434
    %4419 = vmatprep.subr.bf16.mxu0 %v3431
    %4420 = vmatpush1.bf16.msra.mxu0 %v3430
    %4421 = vmatprep.subr.bf16.mxu0 %v3427
    %4422 = vmatpush1.bf16.msra.mxu0 %v3426
    %4423 = vmatprep.subr.bf16.mxu0 %v3423
    %4424 = vmatpush1.bf16.msra.mxu0 %v3422
    %4425 = vmatprep.subr.bf16.mxu0 %v3419
    %4426 = vmatpush1.bf16.msra.mxu0 %v3418
    %4427 = vmatprep.subr.bf16.mxu0 %v3415
    %4428 = vmatpush1.bf16.msra.mxu0 %v3414
    %4429 = vmatprep.subr.bf16.mxu0 %v3411
    %4430 = vmatpush1.bf16.msra.mxu0 %v3410
    %4431 = vmatprep.subr.bf16.mxu0 %v3407
    %4432 = vmatpush1.bf16.msra.mxu0 %v3406
    %4433 = vmatprep.subr.bf16.mxu0 %v3467
    %4434 = vmatpush2.bf16.msra.mxu0 %v3466
    %4435 = vmatprep.subr.bf16.mxu0 %v3463
    %4436 = vmatpush2.bf16.msra.mxu0 %v3462
    %4437 = vmatprep.subr.bf16.mxu0 %v3459
    %4438 = vmatpush2.bf16.msra.mxu0 %v3458
    %4439 = vmatprep.subr.bf16.mxu0 %v3455
    %4440 = vmatpush2.bf16.msra.mxu0 %v3454
    %4441 = vmatprep.subr.bf16.mxu0 %v3451
    %4442 = vmatpush2.bf16.msra.mxu0 %v3450
    %4443 = vmatprep.subr.bf16.mxu0 %v3447
    %4444 = vmatpush2.bf16.msra.mxu0 %v3446
    %4445 = vmatprep.subr.bf16.mxu0 %v3443
    %4446 = vmatpush2.bf16.msra.mxu0 %v3442
    %4447 = vmatprep.subr.bf16.mxu0 %v3439
    %4448 = vmatpush2.bf16.msra.mxu0 %v3438
    %4449 = vmatprep.mubr.bf16.mxu0 %v2226
    %4450 = vmatmul.mubr.bf16.gmra.mxu0 %v2225
    %v4451 = vpop.f32.mrf.mxu0
    %v4452 = vadd.f32 %v4339, %v4451
    %v4453 = vpop.f32.mrf.mxu0
    %v4454 = vadd.f32 %v4341, %v4453
    %v4455 = vpop.f32.mrf.mxu0
    %v4456 = vadd.f32 %v4343, %v4455
    %v4457 = vpop.f32.mrf.mxu0
    %v4458 = vadd.f32 %v4345, %v4457
    %4459 = vmatprep.mubr.bf16.mxu0 %v2234
    %4460 = vmatmul.mubr.bf16.gmra.mxu0 %v2233
    %v4461 = vpop.f32.mrf.mxu0
    %v4462 = vadd.f32 %v4349, %v4461
    %v4463 = vpop.f32.mrf.mxu0
    %v4464 = vadd.f32 %v4351, %v4463
    %v4465 = vpop.f32.mrf.mxu0
    %v4466 = vadd.f32 %v4353, %v4465
    %v4467 = vpop.f32.mrf.mxu0
    %v4468 = vadd.f32 %v4355, %v4467
    %4469 = vmatprep.mubr.bf16.mxu0 %v2242
    %4470 = vmatmul.mubr.bf16.gmra.mxu0 %v2241
    %v4471 = vpop.f32.mrf.mxu0
    %v4472 = vadd.f32 %v4359, %v4471
    %v4473 = vpop.f32.mrf.mxu0
    %v4474 = vadd.f32 %v4361, %v4473
    %v4475 = vpop.f32.mrf.mxu0
    %v4476 = vadd.f32 %v4363, %v4475
    %v4477 = vpop.f32.mrf.mxu0
    %v4478 = vadd.f32 %v4365, %v4477
    %4479 = vmatprep.mubr.bf16.mxu0 %v2250
    %4480 = vmatmul.mubr.bf16.gmra.mxu0 %v2249
    %v4481 = vpop.f32.mrf.mxu0
    %v4482 = vadd.f32 %v4369, %v4481
    %v4483 = vpop.f32.mrf.mxu0
    %v4484 = vadd.f32 %v4371, %v4483
    %v4485 = vpop.f32.mrf.mxu0
    %v4486 = vadd.f32 %v4373, %v4485
    %v4487 = vpop.f32.mrf.mxu0
    %v4488 = vadd.f32 %v4375, %v4487
    %4489 = vmatprep.mubr.bf16.mxu0 %v2258
    %4490 = vmatmul.mubr.bf16.gmra.mxu0 %v2257
    %v4491 = vpop.f32.mrf.mxu0
    %v4492 = vadd.f32 %v4379, %v4491
    %v4493 = vpop.f32.mrf.mxu0
    %v4494 = vadd.f32 %v4381, %v4493
    %v4495 = vpop.f32.mrf.mxu0
    %v4496 = vadd.f32 %v4383, %v4495
    %v4497 = vpop.f32.mrf.mxu0
    %v4498 = vadd.f32 %v4385, %v4497
    %4499 = vmatprep.mubr.bf16.mxu0 %v2266
    %4500 = vmatmul.mubr.bf16.gmra.mxu0 %v2265
    %v4501 = vpop.f32.mrf.mxu0
    %v4502 = vadd.f32 %v4389, %v4501
    %v4503 = vpop.f32.mrf.mxu0
    %v4504 = vadd.f32 %v4391, %v4503
    %v4505 = vpop.f32.mrf.mxu0
    %v4506 = vadd.f32 %v4393, %v4505
    %v4507 = vpop.f32.mrf.mxu0
    %v4508 = vadd.f32 %v4395, %v4507
    %4509 = vmatprep.mubr.bf16.mxu0 %v2274
    %4510 = vmatmul.mubr.bf16.gmra.mxu0 %v2273
    %v4511 = vpop.f32.mrf.mxu0
    %v4512 = vadd.f32 %v4399, %v4511
    %v4513 = vpop.f32.mrf.mxu0
    %v4514 = vadd.f32 %v4401, %v4513
    %v4515 = vpop.f32.mrf.mxu0
    %v4516 = vadd.f32 %v4403, %v4515
    %v4517 = vpop.f32.mrf.mxu0
    %v4518 = vadd.f32 %v4405, %v4517
    %4519 = vmatprep.mubr.bf16.mxu0 %v2282
    %4520 = vmatmul.mubr.bf16.gmra.mxu0 %v2281
    %v4521 = vpop.f32.mrf.mxu0
    %v4522 = vadd.f32 %v4409, %v4521
    %v4523 = vpop.f32.mrf.mxu0
    %v4524 = vadd.f32 %v4411, %v4523
    %v4525 = vpop.f32.mrf.mxu0
    %v4526 = vadd.f32 %v4413, %v4525
    %v4527 = vpop.f32.mrf.mxu0
    %v4528 = vadd.f32 %v4415, %v4527
    %4529 = vdwg.mxu0
    %4530 = vmatprep.subr.bf16.mxu0 %v3499
    %4531 = vmatpush1.bf16.msra.mxu0 %v3498
    %4532 = vmatprep.subr.bf16.mxu0 %v3495
    %4533 = vmatpush1.bf16.msra.mxu0 %v3494
    %4534 = vmatprep.subr.bf16.mxu0 %v3491
    %4535 = vmatpush1.bf16.msra.mxu0 %v3490
    %4536 = vmatprep.subr.bf16.mxu0 %v3487
    %4537 = vmatpush1.bf16.msra.mxu0 %v3486
    %4538 = vmatprep.subr.bf16.mxu0 %v3483
    %4539 = vmatpush1.bf16.msra.mxu0 %v3482
    %4540 = vmatprep.subr.bf16.mxu0 %v3479
    %4541 = vmatpush1.bf16.msra.mxu0 %v3478
    %4542 = vmatprep.subr.bf16.mxu0 %v3475
    %4543 = vmatpush1.bf16.msra.mxu0 %v3474
    %4544 = vmatprep.subr.bf16.mxu0 %v3471
    %4545 = vmatpush1.bf16.msra.mxu0 %v3470
    %4546 = vmatprep.subr.bf16.mxu0 %v3531
    %4547 = vmatpush2.bf16.msra.mxu0 %v3530
    %4548 = vmatprep.subr.bf16.mxu0 %v3527
    %4549 = vmatpush2.bf16.msra.mxu0 %v3526
    %4550 = vmatprep.subr.bf16.mxu0 %v3523
    %4551 = vmatpush2.bf16.msra.mxu0 %v3522
    %4552 = vmatprep.subr.bf16.mxu0 %v3519
    %4553 = vmatpush2.bf16.msra.mxu0 %v3518
    %4554 = vmatprep.subr.bf16.mxu0 %v3515
    %4555 = vmatpush2.bf16.msra.mxu0 %v3514
    %4556 = vmatprep.subr.bf16.mxu0 %v3511
    %4557 = vmatpush2.bf16.msra.mxu0 %v3510
    %4558 = vmatprep.subr.bf16.mxu0 %v3507
    %4559 = vmatpush2.bf16.msra.mxu0 %v3506
    %4560 = vmatprep.subr.bf16.mxu0 %v3503
    %4561 = vmatpush2.bf16.msra.mxu0 %v3502
    %4562 = vmatprep.mubr.bf16.mxu0 %v2228
    %4563 = vmatmul.mubr.bf16.gmra.mxu0 %v2227
    %v4564 = vpop.f32.mrf.mxu0
    %v4565 = vadd.f32 %v4452, %v4564
    %v4566 = vpop.f32.mrf.mxu0
    %v4567 = vadd.f32 %v4454, %v4566
    %v4568 = vpop.f32.mrf.mxu0
    %v4569 = vadd.f32 %v4456, %v4568
    %v4570 = vpop.f32.mrf.mxu0
    %v4571 = vadd.f32 %v4458, %v4570
    %4572 = vmatprep.mubr.bf16.mxu0 %v2236
    %4573 = vmatmul.mubr.bf16.gmra.mxu0 %v2235
    %v4574 = vpop.f32.mrf.mxu0
    %v4575 = vadd.f32 %v4462, %v4574
    %v4576 = vpop.f32.mrf.mxu0
    %v4577 = vadd.f32 %v4464, %v4576
    %v4578 = vpop.f32.mrf.mxu0
    %v4579 = vadd.f32 %v4466, %v4578
    %v4580 = vpop.f32.mrf.mxu0
    %v4581 = vadd.f32 %v4468, %v4580
    %4582 = vmatprep.mubr.bf16.mxu0 %v2244
    %4583 = vmatmul.mubr.bf16.gmra.mxu0 %v2243
    %v4584 = vpop.f32.mrf.mxu0
    %v4585 = vadd.f32 %v4472, %v4584
    %v4586 = vpop.f32.mrf.mxu0
    %v4587 = vadd.f32 %v4474, %v4586
    %v4588 = vpop.f32.mrf.mxu0
    %v4589 = vadd.f32 %v4476, %v4588
    %v4590 = vpop.f32.mrf.mxu0
    %v4591 = vadd.f32 %v4478, %v4590
    %4592 = vmatprep.mubr.bf16.mxu0 %v2252
    %4593 = vmatmul.mubr.bf16.gmra.mxu0 %v2251
    %v4594 = vpop.f32.mrf.mxu0
    %v4595 = vadd.f32 %v4482, %v4594
    %v4596 = vpop.f32.mrf.mxu0
    %v4597 = vadd.f32 %v4484, %v4596
    %v4598 = vpop.f32.mrf.mxu0
    %v4599 = vadd.f32 %v4486, %v4598
    %v4600 = vpop.f32.mrf.mxu0
    %v4601 = vadd.f32 %v4488, %v4600
    %4602 = vmatprep.mubr.bf16.mxu0 %v2260
    %4603 = vmatmul.mubr.bf16.gmra.mxu0 %v2259
    %v4604 = vpop.f32.mrf.mxu0
    %v4605 = vadd.f32 %v4492, %v4604
    %v4606 = vpop.f32.mrf.mxu0
    %v4607 = vadd.f32 %v4494, %v4606
    %v4608 = vpop.f32.mrf.mxu0
    %v4609 = vadd.f32 %v4496, %v4608
    %v4610 = vpop.f32.mrf.mxu0
    %v4611 = vadd.f32 %v4498, %v4610
    %4612 = vmatprep.mubr.bf16.mxu0 %v2268
    %4613 = vmatmul.mubr.bf16.gmra.mxu0 %v2267
    %v4614 = vpop.f32.mrf.mxu0
    %v4615 = vadd.f32 %v4502, %v4614
    %v4616 = vpop.f32.mrf.mxu0
    %v4617 = vadd.f32 %v4504, %v4616
    %v4618 = vpop.f32.mrf.mxu0
    %v4619 = vadd.f32 %v4506, %v4618
    %v4620 = vpop.f32.mrf.mxu0
    %v4621 = vadd.f32 %v4508, %v4620
    %4622 = vmatprep.mubr.bf16.mxu0 %v2276
    %4623 = vmatmul.mubr.bf16.gmra.mxu0 %v2275
    %v4624 = vpop.f32.mrf.mxu0
    %v4625 = vadd.f32 %v4512, %v4624
    %v4626 = vpop.f32.mrf.mxu0
    %v4627 = vadd.f32 %v4514, %v4626
    %v4628 = vpop.f32.mrf.mxu0
    %v4629 = vadd.f32 %v4516, %v4628
    %v4630 = vpop.f32.mrf.mxu0
    %v4631 = vadd.f32 %v4518, %v4630
    %4632 = vmatprep.mubr.bf16.mxu0 %v2284
    %4633 = vmatmul.mubr.bf16.gmra.mxu0 %v2283
    %v4634 = vpop.f32.mrf.mxu0
    %v4635 = vadd.f32 %v4522, %v4634
    %v4636 = vpop.f32.mrf.mxu0
    %v4637 = vadd.f32 %v4524, %v4636
    %v4638 = vpop.f32.mrf.mxu0
    %v4639 = vadd.f32 %v4526, %v4638
    %v4640 = vpop.f32.mrf.mxu0
    %v4641 = vadd.f32 %v4528, %v4640
    %4642 = vdwg.mxu0
    %4643 = vmatprep.subr.bf16.mxu0 %v3563
    %4644 = vmatpush1.bf16.msra.mxu0 %v3562
    %4645 = vmatprep.subr.bf16.mxu0 %v3559
    %4646 = vmatpush1.bf16.msra.mxu0 %v3558
    %4647 = vmatprep.subr.bf16.mxu0 %v3555
    %4648 = vmatpush1.bf16.msra.mxu0 %v3554
    %4649 = vmatprep.subr.bf16.mxu0 %v3551
    %4650 = vmatpush1.bf16.msra.mxu0 %v3550
    %4651 = vmatprep.subr.bf16.mxu0 %v3547
    %4652 = vmatpush1.bf16.msra.mxu0 %v3546
    %4653 = vmatprep.subr.bf16.mxu0 %v3543
    %4654 = vmatpush1.bf16.msra.mxu0 %v3542
    %4655 = vmatprep.subr.bf16.mxu0 %v3539
    %4656 = vmatpush1.bf16.msra.mxu0 %v3538
    %4657 = vmatprep.subr.bf16.mxu0 %v3535
    %4658 = vmatpush1.bf16.msra.mxu0 %v3534
    %4659 = vmatprep.subr.bf16.mxu0 %v3595
    %4660 = vmatpush2.bf16.msra.mxu0 %v3594
    %4661 = vmatprep.subr.bf16.mxu0 %v3591
    %4662 = vmatpush2.bf16.msra.mxu0 %v3590
    %4663 = vmatprep.subr.bf16.mxu0 %v3587
    %4664 = vmatpush2.bf16.msra.mxu0 %v3586
    %4665 = vmatprep.subr.bf16.mxu0 %v3583
    %4666 = vmatpush2.bf16.msra.mxu0 %v3582
    %4667 = vmatprep.subr.bf16.mxu0 %v3579
    %4668 = vmatpush2.bf16.msra.mxu0 %v3578
    %4669 = vmatprep.subr.bf16.mxu0 %v3575
    %4670 = vmatpush2.bf16.msra.mxu0 %v3574
    %4671 = vmatprep.subr.bf16.mxu0 %v3571
    %4672 = vmatpush2.bf16.msra.mxu0 %v3570
    %4673 = vmatprep.subr.bf16.mxu0 %v3567
    %4674 = vmatpush2.bf16.msra.mxu0 %v3566
    %4675 = vmatprep.mubr.bf16.mxu0 %v2230
    %4676 = vmatmul.mubr.bf16.gmra.mxu0 %v2229
    %v4677 = vpop.f32.mrf.mxu0
    %v4678 = vadd.f32 %v4565, %v4677
    %v4679 = vpop.f32.mrf.mxu0
    %v4680 = vadd.f32 %v4567, %v4679
    %v4681 = vpop.f32.mrf.mxu0
    %v4682 = vadd.f32 %v4569, %v4681
    %v4683 = vpop.f32.mrf.mxu0
    %v4684 = vadd.f32 %v4571, %v4683
    %4685 = vmatprep.mubr.bf16.mxu0 %v2238
    %4686 = vmatmul.mubr.bf16.gmra.mxu0 %v2237
    %v4687 = vpop.f32.mrf.mxu0
    %v4688 = vadd.f32 %v4575, %v4687
    %v4689 = vpop.f32.mrf.mxu0
    %v4690 = vadd.f32 %v4577, %v4689
    %v4691 = vpop.f32.mrf.mxu0
    %v4692 = vadd.f32 %v4579, %v4691
    %v4693 = vpop.f32.mrf.mxu0
    %v4694 = vadd.f32 %v4581, %v4693
    %4695 = vmatprep.mubr.bf16.mxu0 %v2246
    %4696 = vmatmul.mubr.bf16.gmra.mxu0 %v2245
    %v4697 = vpop.f32.mrf.mxu0
    %v4698 = vadd.f32 %v4585, %v4697
    %v4699 = vpop.f32.mrf.mxu0
    %v4700 = vadd.f32 %v4587, %v4699
    %v4701 = vpop.f32.mrf.mxu0
    %v4702 = vadd.f32 %v4589, %v4701
    %v4703 = vpop.f32.mrf.mxu0
    %v4704 = vadd.f32 %v4591, %v4703
    %4705 = vmatprep.mubr.bf16.mxu0 %v2254
    %4706 = vmatmul.mubr.bf16.gmra.mxu0 %v2253
    %v4707 = vpop.f32.mrf.mxu0
    %v4708 = vadd.f32 %v4595, %v4707
    %v4709 = vpop.f32.mrf.mxu0
    %v4710 = vadd.f32 %v4597, %v4709
    %v4711 = vpop.f32.mrf.mxu0
    %v4712 = vadd.f32 %v4599, %v4711
    %v4713 = vpop.f32.mrf.mxu0
    %v4714 = vadd.f32 %v4601, %v4713
    %4715 = vmatprep.mubr.bf16.mxu0 %v2262
    %4716 = vmatmul.mubr.bf16.gmra.mxu0 %v2261
    %v4717 = vpop.f32.mrf.mxu0
    %v4718 = vadd.f32 %v4605, %v4717
    %v4719 = vpop.f32.mrf.mxu0
    %v4720 = vadd.f32 %v4607, %v4719
    %v4721 = vpop.f32.mrf.mxu0
    %v4722 = vadd.f32 %v4609, %v4721
    %v4723 = vpop.f32.mrf.mxu0
    %v4724 = vadd.f32 %v4611, %v4723
    %4725 = vmatprep.mubr.bf16.mxu0 %v2270
    %4726 = vmatmul.mubr.bf16.gmra.mxu0 %v2269
    %v4727 = vpop.f32.mrf.mxu0
    %v4728 = vadd.f32 %v4615, %v4727
    %v4729 = vpop.f32.mrf.mxu0
    %v4730 = vadd.f32 %v4617, %v4729
    %v4731 = vpop.f32.mrf.mxu0
    %v4732 = vadd.f32 %v4619, %v4731
    %v4733 = vpop.f32.mrf.mxu0
    %v4734 = vadd.f32 %v4621, %v4733
    %4735 = vmatprep.mubr.bf16.mxu0 %v2278
    %4736 = vmatmul.mubr.bf16.gmra.mxu0 %v2277
    %v4737 = vpop.f32.mrf.mxu0
    %v4738 = vadd.f32 %v4625, %v4737
    %v4739 = vpop.f32.mrf.mxu0
    %v4740 = vadd.f32 %v4627, %v4739
    %v4741 = vpop.f32.mrf.mxu0
    %v4742 = vadd.f32 %v4629, %v4741
    %v4743 = vpop.f32.mrf.mxu0
    %v4744 = vadd.f32 %v4631, %v4743
    %4745 = vmatprep.mubr.bf16.mxu0 %v2286
    %4746 = vmatmul.mubr.bf16.gmra.mxu0 %v2285
    %v4747 = vpop.f32.mrf.mxu0
    %v4748 = vadd.f32 %v4635, %v4747
    %v4749 = vpop.f32.mrf.mxu0
    %v4750 = vadd.f32 %v4637, %v4749
    %v4751 = vpop.f32.mrf.mxu0
    %v4752 = vadd.f32 %v4639, %v4751
    %v4753 = vpop.f32.mrf.mxu0
    %v4754 = vadd.f32 %v4641, %v4753
    %4755 = vdwg.mxu0
    %v4756 = vmax.f32 %v4226, 0.0
    %v4757 = vmax.f32 %v4228, 0.0
    %v4758 = vmax.f32 %v4678, 0.0
    %v4759 = vmax.f32 %v4680, 0.0
    %v4760 = vmax.f32 %v4230, 0.0
    %v4761 = vmax.f32 %v4232, 0.0
    %v4762 = vmax.f32 %v4682, 0.0
    %v4763 = vmax.f32 %v4684, 0.0
    %v4764 = vmax.f32 %v4236, 0.0
    %v4765 = vmax.f32 %v4238, 0.0
    %v4766 = vmax.f32 %v4688, 0.0
    %v4767 = vmax.f32 %v4690, 0.0
    %v4768 = vmax.f32 %v4240, 0.0
    %v4769 = vmax.f32 %v4242, 0.0
    %v4770 = vmax.f32 %v4692, 0.0
    %v4771 = vmax.f32 %v4694, 0.0
    %v4772 = vmax.f32 %v4246, 0.0
    %v4773 = vmax.f32 %v4248, 0.0
    %v4774 = vmax.f32 %v4698, 0.0
    %v4775 = vmax.f32 %v4700, 0.0
    %v4776 = vmax.f32 %v4250, 0.0
    %v4777 = vmax.f32 %v4252, 0.0
    %v4778 = vmax.f32 %v4702, 0.0
    %v4779 = vmax.f32 %v4704, 0.0
    %v4780 = vmax.f32 %v4256, 0.0
    %v4781 = vmax.f32 %v4258, 0.0
    %v4782 = vmax.f32 %v4708, 0.0
    %v4783 = vmax.f32 %v4710, 0.0
    %v4784 = vmax.f32 %v4260, 0.0
    %v4785 = vmax.f32 %v4262, 0.0
    %v4786 = vmax.f32 %v4712, 0.0
    %v4787 = vmax.f32 %v4714, 0.0
    %v4788 = vmax.f32 %v4266, 0.0
    %v4789 = vmax.f32 %v4268, 0.0
    %v4790 = vmax.f32 %v4718, 0.0
    %v4791 = vmax.f32 %v4720, 0.0
    %v4792 = vmax.f32 %v4270, 0.0
    %v4793 = vmax.f32 %v4272, 0.0
    %v4794 = vmax.f32 %v4722, 0.0
    %v4795 = vmax.f32 %v4724, 0.0
    %v4796 = vmax.f32 %v4276, 0.0
    %v4797 = vmax.f32 %v4278, 0.0
    %v4798 = vmax.f32 %v4728, 0.0
    %v4799 = vmax.f32 %v4730, 0.0
    %v4800 = vmax.f32 %v4280, 0.0
    %v4801 = vmax.f32 %v4282, 0.0
    %v4802 = vmax.f32 %v4732, 0.0
    %v4803 = vmax.f32 %v4734, 0.0
    %v4804 = vmax.f32 %v4286, 0.0
    %v4805 = vmax.f32 %v4288, 0.0
    %v4806 = vmax.f32 %v4738, 0.0
    %v4807 = vmax.f32 %v4740, 0.0
    %v4808 = vmax.f32 %v4290, 0.0
    %v4809 = vmax.f32 %v4292, 0.0
    %v4810 = vmax.f32 %v4742, 0.0
    %v4811 = vmax.f32 %v4744, 0.0
    %v4812 = vmax.f32 %v4296, 0.0
    %v4813 = vmax.f32 %v4298, 0.0
    %v4814 = vmax.f32 %v4748, 0.0
    %v4815 = vmax.f32 %v4750, 0.0
    %v4816 = vmax.f32 %v4300, 0.0
    %v4817 = vmax.f32 %v4302, 0.0
    %v4818 = vmax.f32 %v4752, 0.0
    %v4819 = vmax.f32 %v4754, 0.0
    %v4820 = vpack.c.bf16 %v4760, %v4756
    %v4821 = vpack.c.bf16 %v4761, %v4757
    %v4822 = vpack.c.bf16 %v4762, %v4758
    %v4823 = vpack.c.bf16 %v4763, %v4759
    %v4824 = vpack.c.bf16 %v4768, %v4764
    %v4825 = vpack.c.bf16 %v4769, %v4765
    %v4826 = vpack.c.bf16 %v4770, %v4766
    %v4827 = vpack.c.bf16 %v4771, %v4767
    %v4828 = vpack.c.bf16 %v4776, %v4772
    %v4829 = vpack.c.bf16 %v4777, %v4773
    %v4830 = vpack.c.bf16 %v4778, %v4774
    %v4831 = vpack.c.bf16 %v4779, %v4775
    %v4832 = vpack.c.bf16 %v4784, %v4780
    %v4833 = vpack.c.bf16 %v4785, %v4781
    %v4834 = vpack.c.bf16 %v4786, %v4782
    %v4835 = vpack.c.bf16 %v4787, %v4783
    %v4836 = vpack.c.bf16 %v4792, %v4788
    %v4837 = vpack.c.bf16 %v4793, %v4789
    %v4838 = vpack.c.bf16 %v4794, %v4790
    %v4839 = vpack.c.bf16 %v4795, %v4791
    %v4840 = vpack.c.bf16 %v4800, %v4796
    %v4841 = vpack.c.bf16 %v4801, %v4797
    %v4842 = vpack.c.bf16 %v4802, %v4798
    %v4843 = vpack.c.bf16 %v4803, %v4799
    %v4844 = vpack.c.bf16 %v4808, %v4804
    %v4845 = vpack.c.bf16 %v4809, %v4805
    %v4846 = vpack.c.bf16 %v4810, %v4806
    %v4847 = vpack.c.bf16 %v4811, %v4807
    %v4848 = vpack.c.bf16 %v4816, %v4812
    %v4849 = vpack.c.bf16 %v4817, %v4813
    %v4850 = vpack.c.bf16 %v4818, %v4814
    %v4851 = vpack.c.bf16 %v4819, %v4815
    // Predicated region
    $region100: #{tpu_custom_call.1} parent=1 // pred_check
      %p4852 = pneg %p76
    $region101: #{tpu_custom_call.1} parent=1 // pred_check_branch
      %4854 = sbr.rel (%p4852) target = $region103
    $region102: #{tpu_custom_call.1} parent=1 // pred_region
      %s4855 = scalar_lea.sflag [#allocation8], 1
      %s4856 = smul.u32 4, 64
      %s4857 = smul.u32 %s4856, 4
      %s4858 = sshll.u32 %s4857, 4
      %4859 = dma.done %s4855, %s4858
    $region103: #{tpu_custom_call.1} parent=1 // pred_fallthru
      _
    %v4860 = vld [vmem:[#allocation4] sm:$0xff]
    %v4861 = vld [vmem:[#allocation4 + $0x8] sm:$0xff]
    %v4862 = vld [vmem:[#allocation4 + $0x10] sm:$0xff]
    %v4863 = vld [vmem:[#allocation4 + $0x18] sm:$0xff]
    %v4864 = vld [vmem:[#allocation4 + $0x20] sm:$0xff]
    %v4865 = vld [vmem:[#allocation4 + $0x28] sm:$0xff]
    %v4866 = vld [vmem:[#allocation4 + $0x30] sm:$0xff]
    %v4867 = vld [vmem:[#allocation4 + $0x38] sm:$0xff]
    %v4868 = vld [vmem:[#allocation4 + $0x40] sm:$0xff]
    %v4869 = vld [vmem:[#allocation4 + $0x48] sm:$0xff]
    %v4870 = vld [vmem:[#allocation4 + $0x50] sm:$0xff]
    %v4871 = vld [vmem:[#allocation4 + $0x58] sm:$0xff]
    %v4872 = vld [vmem:[#allocation4 + $0x60] sm:$0xff]
    %v4873 = vld [vmem:[#allocation4 + $0x68] sm:$0xff]
    %v4874 = vld [vmem:[#allocation4 + $0x70] sm:$0xff]
    %v4875 = vld [vmem:[#allocation4 + $0x78] sm:$0xff]
    %v4876 = vld [vmem:[#allocation4 + $0x80] sm:$0xff]
    %v4877 = vld [vmem:[#allocation4 + $0x88] sm:$0xff]
    %v4878 = vld [vmem:[#allocation4 + $0x90] sm:$0xff]
    %v4879 = vld [vmem:[#allocation4 + $0x98] sm:$0xff]
    %v4880 = vld [vmem:[#allocation4 + $0xa0] sm:$0xff]
    %v4881 = vld [vmem:[#allocation4 + $0xa8] sm:$0xff]
    %v4882 = vld [vmem:[#allocation4 + $0xb0] sm:$0xff]
    %v4883 = vld [vmem:[#allocation4 + $0xb8] sm:$0xff]
    %v4884 = vld [vmem:[#allocation4 + $0xc0] sm:$0xff]
    %v4885 = vld [vmem:[#allocation4 + $0xc8] sm:$0xff]
    %v4886 = vld [vmem:[#allocation4 + $0xd0] sm:$0xff]
    %v4887 = vld [vmem:[#allocation4 + $0xd8] sm:$0xff]
    %v4888 = vld [vmem:[#allocation4 + $0xe0] sm:$0xff]
    %v4889 = vld [vmem:[#allocation4 + $0xe8] sm:$0xff]
    %v4890 = vld [vmem:[#allocation4 + $0xf0] sm:$0xff]
    %v4891 = vld [vmem:[#allocation4 + $0xf8] sm:$0xff]
    %v4892 = vld [vmem:[#allocation4 + $0x100] sm:$0xff]
    %v4893 = vld [vmem:[#allocation4 + $0x108] sm:$0xff]
    %v4894 = vld [vmem:[#allocation4 + $0x110] sm:$0xff]
    %v4895 = vld [vmem:[#allocation4 + $0x118] sm:$0xff]
    %v4896 = vld [vmem:[#allocation4 + $0x120] sm:$0xff]
    %v4897 = vld [vmem:[#allocation4 + $0x128] sm:$0xff]
    %v4898 = vld [vmem:[#allocation4 + $0x130] sm:$0xff]
    %v4899 = vld [vmem:[#allocation4 + $0x138] sm:$0xff]
    %v4900 = vld [vmem:[#allocation4 + $0x140] sm:$0xff]
    %v4901 = vld [vmem:[#allocation4 + $0x148] sm:$0xff]
    %v4902 = vld [vmem:[#allocation4 + $0x150] sm:$0xff]
    %v4903 = vld [vmem:[#allocation4 + $0x158] sm:$0xff]
    %v4904 = vld [vmem:[#allocation4 + $0x160] sm:$0xff]
    %v4905 = vld [vmem:[#allocation4 + $0x168] sm:$0xff]
    %v4906 = vld [vmem:[#allocation4 + $0x170] sm:$0xff]
    %v4907 = vld [vmem:[#allocation4 + $0x178] sm:$0xff]
    %v4908 = vld [vmem:[#allocation4 + $0x180] sm:$0xff]
    %v4909 = vld [vmem:[#allocation4 + $0x188] sm:$0xff]
    %v4910 = vld [vmem:[#allocation4 + $0x190] sm:$0xff]
    %v4911 = vld [vmem:[#allocation4 + $0x198] sm:$0xff]
    %v4912 = vld [vmem:[#allocation4 + $0x1a0] sm:$0xff]
    %v4913 = vld [vmem:[#allocation4 + $0x1a8] sm:$0xff]
    %v4914 = vld [vmem:[#allocation4 + $0x1b0] sm:$0xff]
    %v4915 = vld [vmem:[#allocation4 + $0x1b8] sm:$0xff]
    %v4916 = vld [vmem:[#allocation4 + $0x1c0] sm:$0xff]
    %v4917 = vld [vmem:[#allocation4 + $0x1c8] sm:$0xff]
    %v4918 = vld [vmem:[#allocation4 + $0x1d0] sm:$0xff]
    %v4919 = vld [vmem:[#allocation4 + $0x1d8] sm:$0xff]
    %v4920 = vld [vmem:[#allocation4 + $0x1e0] sm:$0xff]
    %v4921 = vld [vmem:[#allocation4 + $0x1e8] sm:$0xff]
    %v4922 = vld [vmem:[#allocation4 + $0x1f0] sm:$0xff]
    %v4923 = vld [vmem:[#allocation4 + $0x1f8] sm:$0xff]
    %v4924 = vld [vmem:[#allocation4 + $0x200] sm:$0xff]
    %v4925 = vld [vmem:[#allocation4 + $0x208] sm:$0xff]
    %v4926 = vld [vmem:[#allocation4 + $0x210] sm:$0xff]
    %v4927 = vld [vmem:[#allocation4 + $0x218] sm:$0xff]
    %v4928 = vld [vmem:[#allocation4 + $0x220] sm:$0xff]
    %v4929 = vld [vmem:[#allocation4 + $0x228] sm:$0xff]
    %v4930 = vld [vmem:[#allocation4 + $0x230] sm:$0xff]
    %v4931 = vld [vmem:[#allocation4 + $0x238] sm:$0xff]
    %v4932 = vld [vmem:[#allocation4 + $0x240] sm:$0xff]
    %v4933 = vld [vmem:[#allocation4 + $0x248] sm:$0xff]
    %v4934 = vld [vmem:[#allocation4 + $0x250] sm:$0xff]
    %v4935 = vld [vmem:[#allocation4 + $0x258] sm:$0xff]
    %v4936 = vld [vmem:[#allocation4 + $0x260] sm:$0xff]
    %v4937 = vld [vmem:[#allocation4 + $0x268] sm:$0xff]
    %v4938 = vld [vmem:[#allocation4 + $0x270] sm:$0xff]
    %v4939 = vld [vmem:[#allocation4 + $0x278] sm:$0xff]
    %v4940 = vld [vmem:[#allocation4 + $0x280] sm:$0xff]
    %v4941 = vld [vmem:[#allocation4 + $0x288] sm:$0xff]
    %v4942 = vld [vmem:[#allocation4 + $0x290] sm:$0xff]
    %v4943 = vld [vmem:[#allocation4 + $0x298] sm:$0xff]
    %v4944 = vld [vmem:[#allocation4 + $0x2a0] sm:$0xff]
    %v4945 = vld [vmem:[#allocation4 + $0x2a8] sm:$0xff]
    %v4946 = vld [vmem:[#allocation4 + $0x2b0] sm:$0xff]
    %v4947 = vld [vmem:[#allocation4 + $0x2b8] sm:$0xff]
    %v4948 = vld [vmem:[#allocation4 + $0x2c0] sm:$0xff]
    %v4949 = vld [vmem:[#allocation4 + $0x2c8] sm:$0xff]
    %v4950 = vld [vmem:[#allocation4 + $0x2d0] sm:$0xff]
    %v4951 = vld [vmem:[#allocation4 + $0x2d8] sm:$0xff]
    %v4952 = vld [vmem:[#allocation4 + $0x2e0] sm:$0xff]
    %v4953 = vld [vmem:[#allocation4 + $0x2e8] sm:$0xff]
    %v4954 = vld [vmem:[#allocation4 + $0x2f0] sm:$0xff]
    %v4955 = vld [vmem:[#allocation4 + $0x2f8] sm:$0xff]
    %v4956 = vld [vmem:[#allocation4 + $0x300] sm:$0xff]
    %v4957 = vld [vmem:[#allocation4 + $0x308] sm:$0xff]
    %v4958 = vld [vmem:[#allocation4 + $0x310] sm:$0xff]
    %v4959 = vld [vmem:[#allocation4 + $0x318] sm:$0xff]
    %v4960 = vld [vmem:[#allocation4 + $0x320] sm:$0xff]
    %v4961 = vld [vmem:[#allocation4 + $0x328] sm:$0xff]
    %v4962 = vld [vmem:[#allocation4 + $0x330] sm:$0xff]
    %v4963 = vld [vmem:[#allocation4 + $0x338] sm:$0xff]
    %v4964 = vld [vmem:[#allocation4 + $0x340] sm:$0xff]
    %v4965 = vld [vmem:[#allocation4 + $0x348] sm:$0xff]
    %v4966 = vld [vmem:[#allocation4 + $0x350] sm:$0xff]
    %v4967 = vld [vmem:[#allocation4 + $0x358] sm:$0xff]
    %v4968 = vld [vmem:[#allocation4 + $0x360] sm:$0xff]
    %v4969 = vld [vmem:[#allocation4 + $0x368] sm:$0xff]
    %v4970 = vld [vmem:[#allocation4 + $0x370] sm:$0xff]
    %v4971 = vld [vmem:[#allocation4 + $0x378] sm:$0xff]
    %v4972 = vld [vmem:[#allocation4 + $0x380] sm:$0xff]
    %v4973 = vld [vmem:[#allocation4 + $0x388] sm:$0xff]
    %v4974 = vld [vmem:[#allocation4 + $0x390] sm:$0xff]
    %v4975 = vld [vmem:[#allocation4 + $0x398] sm:$0xff]
    %v4976 = vld [vmem:[#allocation4 + $0x3a0] sm:$0xff]
    %v4977 = vld [vmem:[#allocation4 + $0x3a8] sm:$0xff]
    %v4978 = vld [vmem:[#allocation4 + $0x3b0] sm:$0xff]
    %v4979 = vld [vmem:[#allocation4 + $0x3b8] sm:$0xff]
    %v4980 = vld [vmem:[#allocation4 + $0x3c0] sm:$0xff]
    %v4981 = vld [vmem:[#allocation4 + $0x3c8] sm:$0xff]
    %v4982 = vld [vmem:[#allocation4 + $0x3d0] sm:$0xff]
    %v4983 = vld [vmem:[#allocation4 + $0x3d8] sm:$0xff]
    %v4984 = vld [vmem:[#allocation4 + $0x3e0] sm:$0xff]
    %v4985 = vld [vmem:[#allocation4 + $0x3e8] sm:$0xff]
    %v4986 = vld [vmem:[#allocation4 + $0x3f0] sm:$0xff]
    %v4987 = vld [vmem:[#allocation4 + $0x3f8] sm:$0xff]
    %v4988 = vld [vmem:[%s6] sm:$0xf]
    %v4990 = vlaneseq
    %v4991 = vshrl.u32 %v4990, 7
    %v4992 = vsub.s32 0, %v4991
    %v4993 = vrot.slane %v4988, %v4992
    %v4994 = vlaneseq
    %v4995 = vshrl.u32 %v4994, 7
    %v4996 = vsub.s32 1, %v4995
    %v4997 = vrot.slane %v4988, %v4996
    %v4998 = vlaneseq
    %v4999 = vshrl.u32 %v4998, 7
    %v5000 = vsub.s32 2, %v4999
    %v5001 = vrot.slane %v4988, %v5000
    %v5002 = vlaneseq
    %v5003 = vshrl.u32 %v5002, 7
    %v5004 = vsub.s32 3, %v5003
    %v5005 = vrot.slane %v4988, %v5004
    %v5138 = vunpack.c.l.b16 %v4860
    %v5139 = vunpack.c.h.b16 %v4860
    %v5140 = vunpack.c.l.b16 %v4861
    %v5141 = vunpack.c.h.b16 %v4861
    %v5142 = vunpack.c.l.b16 %v4862
    %v5143 = vunpack.c.h.b16 %v4862
    %v5144 = vunpack.c.l.b16 %v4863
    %v5145 = vunpack.c.h.b16 %v4863
    %v5146 = vunpack.c.l.b16 %v4864
    %v5147 = vunpack.c.h.b16 %v4864
    %v5148 = vunpack.c.l.b16 %v4865
    %v5149 = vunpack.c.h.b16 %v4865
    %v5150 = vunpack.c.l.b16 %v4866
    %v5151 = vunpack.c.h.b16 %v4866
    %v5152 = vunpack.c.l.b16 %v4867
    %v5153 = vunpack.c.h.b16 %v4867
    %v5154 = vunpack.c.l.b16 %v4868
    %v5155 = vunpack.c.h.b16 %v4868
    %v5156 = vunpack.c.l.b16 %v4869
    %v5157 = vunpack.c.h.b16 %v4869
    %v5158 = vunpack.c.l.b16 %v4870
    %v5159 = vunpack.c.h.b16 %v4870
    %v5160 = vunpack.c.l.b16 %v4871
    %v5161 = vunpack.c.h.b16 %v4871
    %v5162 = vunpack.c.l.b16 %v4872
    %v5163 = vunpack.c.h.b16 %v4872
    %v5164 = vunpack.c.l.b16 %v4873
    %v5165 = vunpack.c.h.b16 %v4873
    %v5166 = vunpack.c.l.b16 %v4874
    %v5167 = vunpack.c.h.b16 %v4874
    %v5168 = vunpack.c.l.b16 %v4875
    %v5169 = vunpack.c.h.b16 %v4875
    %v5170 = vunpack.c.l.b16 %v4876
    %v5171 = vunpack.c.h.b16 %v4876
    %v5172 = vunpack.c.l.b16 %v4877
    %v5173 = vunpack.c.h.b16 %v4877
    %v5174 = vunpack.c.l.b16 %v4878
    %v5175 = vunpack.c.h.b16 %v4878
    %v5176 = vunpack.c.l.b16 %v4879
    %v5177 = vunpack.c.h.b16 %v4879
    %v5178 = vunpack.c.l.b16 %v4880
    %v5179 = vunpack.c.h.b16 %v4880
    %v5180 = vunpack.c.l.b16 %v4881
    %v5181 = vunpack.c.h.b16 %v4881
    %v5182 = vunpack.c.l.b16 %v4882
    %v5183 = vunpack.c.h.b16 %v4882
    %v5184 = vunpack.c.l.b16 %v4883
    %v5185 = vunpack.c.h.b16 %v4883
    %v5186 = vunpack.c.l.b16 %v4884
    %v5187 = vunpack.c.h.b16 %v4884
    %v5188 = vunpack.c.l.b16 %v4885
    %v5189 = vunpack.c.h.b16 %v4885
    %v5190 = vunpack.c.l.b16 %v4886
    %v5191 = vunpack.c.h.b16 %v4886
    %v5192 = vunpack.c.l.b16 %v4887
    %v5193 = vunpack.c.h.b16 %v4887
    %v5194 = vunpack.c.l.b16 %v4888
    %v5195 = vunpack.c.h.b16 %v4888
    %v5196 = vunpack.c.l.b16 %v4889
    %v5197 = vunpack.c.h.b16 %v4889
    %v5198 = vunpack.c.l.b16 %v4890
    %v5199 = vunpack.c.h.b16 %v4890
    %v5200 = vunpack.c.l.b16 %v4891
    %v5201 = vunpack.c.h.b16 %v4891
    %v5202 = vunpack.c.l.b16 %v4892
    %v5203 = vunpack.c.h.b16 %v4892
    %v5204 = vunpack.c.l.b16 %v4893
    %v5205 = vunpack.c.h.b16 %v4893
    %v5206 = vunpack.c.l.b16 %v4894
    %v5207 = vunpack.c.h.b16 %v4894
    %v5208 = vunpack.c.l.b16 %v4895
    %v5209 = vunpack.c.h.b16 %v4895
    %v5210 = vunpack.c.l.b16 %v4896
    %v5211 = vunpack.c.h.b16 %v4896
    %v5212 = vunpack.c.l.b16 %v4897
    %v5213 = vunpack.c.h.b16 %v4897
    %v5214 = vunpack.c.l.b16 %v4898
    %v5215 = vunpack.c.h.b16 %v4898
    %v5216 = vunpack.c.l.b16 %v4899
    %v5217 = vunpack.c.h.b16 %v4899
    %v5218 = vunpack.c.l.b16 %v4900
    %v5219 = vunpack.c.h.b16 %v4900
    %v5220 = vunpack.c.l.b16 %v4901
    %v5221 = vunpack.c.h.b16 %v4901
    %v5222 = vunpack.c.l.b16 %v4902
    %v5223 = vunpack.c.h.b16 %v4902
    %v5224 = vunpack.c.l.b16 %v4903
    %v5225 = vunpack.c.h.b16 %v4903
    %v5226 = vunpack.c.l.b16 %v4904
    %v5227 = vunpack.c.h.b16 %v4904
    %v5228 = vunpack.c.l.b16 %v4905
    %v5229 = vunpack.c.h.b16 %v4905
    %v5230 = vunpack.c.l.b16 %v4906
    %v5231 = vunpack.c.h.b16 %v4906
    %v5232 = vunpack.c.l.b16 %v4907
    %v5233 = vunpack.c.h.b16 %v4907
    %v5234 = vunpack.c.l.b16 %v4908
    %v5235 = vunpack.c.h.b16 %v4908
    %v5236 = vunpack.c.l.b16 %v4909
    %v5237 = vunpack.c.h.b16 %v4909
    %v5238 = vunpack.c.l.b16 %v4910
    %v5239 = vunpack.c.h.b16 %v4910
    %v5240 = vunpack.c.l.b16 %v4911
    %v5241 = vunpack.c.h.b16 %v4911
    %v5242 = vunpack.c.l.b16 %v4912
    %v5243 = vunpack.c.h.b16 %v4912
    %v5244 = vunpack.c.l.b16 %v4913
    %v5245 = vunpack.c.h.b16 %v4913
    %v5246 = vunpack.c.l.b16 %v4914
    %v5247 = vunpack.c.h.b16 %v4914
    %v5248 = vunpack.c.l.b16 %v4915
    %v5249 = vunpack.c.h.b16 %v4915
    %v5250 = vunpack.c.l.b16 %v4916
    %v5251 = vunpack.c.h.b16 %v4916
    %v5252 = vunpack.c.l.b16 %v4917
    %v5253 = vunpack.c.h.b16 %v4917
    %v5254 = vunpack.c.l.b16 %v4918
    %v5255 = vunpack.c.h.b16 %v4918
    %v5256 = vunpack.c.l.b16 %v4919
    %v5257 = vunpack.c.h.b16 %v4919
    %v5258 = vunpack.c.l.b16 %v4920
    %v5259 = vunpack.c.h.b16 %v4920
    %v5260 = vunpack.c.l.b16 %v4921
    %v5261 = vunpack.c.h.b16 %v4921
    %v5262 = vunpack.c.l.b16 %v4922
    %v5263 = vunpack.c.h.b16 %v4922
    %v5264 = vunpack.c.l.b16 %v4923
    %v5265 = vunpack.c.h.b16 %v4923
    %v5266 = vunpack.c.l.b16 %v4924
    %v5267 = vunpack.c.h.b16 %v4924
    %v5268 = vunpack.c.l.b16 %v4925
    %v5269 = vunpack.c.h.b16 %v4925
    %v5270 = vunpack.c.l.b16 %v4926
    %v5271 = vunpack.c.h.b16 %v4926
    %v5272 = vunpack.c.l.b16 %v4927
    %v5273 = vunpack.c.h.b16 %v4927
    %v5274 = vunpack.c.l.b16 %v4928
    %v5275 = vunpack.c.h.b16 %v4928
    %v5276 = vunpack.c.l.b16 %v4929
    %v5277 = vunpack.c.h.b16 %v4929
    %v5278 = vunpack.c.l.b16 %v4930
    %v5279 = vunpack.c.h.b16 %v4930
    %v5280 = vunpack.c.l.b16 %v4931
    %v5281 = vunpack.c.h.b16 %v4931
    %v5282 = vunpack.c.l.b16 %v4932
    %v5283 = vunpack.c.h.b16 %v4932
    %v5284 = vunpack.c.l.b16 %v4933
    %v5285 = vunpack.c.h.b16 %v4933
    %v5286 = vunpack.c.l.b16 %v4934
    %v5287 = vunpack.c.h.b16 %v4934
    %v5288 = vunpack.c.l.b16 %v4935
    %v5289 = vunpack.c.h.b16 %v4935
    %v5290 = vunpack.c.l.b16 %v4936
    %v5291 = vunpack.c.h.b16 %v4936
    %v5292 = vunpack.c.l.b16 %v4937
    %v5293 = vunpack.c.h.b16 %v4937
    %v5294 = vunpack.c.l.b16 %v4938
    %v5295 = vunpack.c.h.b16 %v4938
    %v5296 = vunpack.c.l.b16 %v4939
    %v5297 = vunpack.c.h.b16 %v4939
    %v5298 = vunpack.c.l.b16 %v4940
    %v5299 = vunpack.c.h.b16 %v4940
    %v5300 = vunpack.c.l.b16 %v4941
    %v5301 = vunpack.c.h.b16 %v4941
    %v5302 = vunpack.c.l.b16 %v4942
    %v5303 = vunpack.c.h.b16 %v4942
    %v5304 = vunpack.c.l.b16 %v4943
    %v5305 = vunpack.c.h.b16 %v4943
    %v5306 = vunpack.c.l.b16 %v4944
    %v5307 = vunpack.c.h.b16 %v4944
    %v5308 = vunpack.c.l.b16 %v4945
    %v5309 = vunpack.c.h.b16 %v4945
    %v5310 = vunpack.c.l.b16 %v4946
    %v5311 = vunpack.c.h.b16 %v4946
    %v5312 = vunpack.c.l.b16 %v4947
    %v5313 = vunpack.c.h.b16 %v4947
    %v5314 = vunpack.c.l.b16 %v4948
    %v5315 = vunpack.c.h.b16 %v4948
    %v5316 = vunpack.c.l.b16 %v4949
    %v5317 = vunpack.c.h.b16 %v4949
    %v5318 = vunpack.c.l.b16 %v4950
    %v5319 = vunpack.c.h.b16 %v4950
    %v5320 = vunpack.c.l.b16 %v4951
    %v5321 = vunpack.c.h.b16 %v4951
    %v5322 = vunpack.c.l.b16 %v4952
    %v5323 = vunpack.c.h.b16 %v4952
    %v5324 = vunpack.c.l.b16 %v4953
    %v5325 = vunpack.c.h.b16 %v4953
    %v5326 = vunpack.c.l.b16 %v4954
    %v5327 = vunpack.c.h.b16 %v4954
    %v5328 = vunpack.c.l.b16 %v4955
    %v5329 = vunpack.c.h.b16 %v4955
    %v5330 = vunpack.c.l.b16 %v4956
    %v5331 = vunpack.c.h.b16 %v4956
    %v5332 = vunpack.c.l.b16 %v4957
    %v5333 = vunpack.c.h.b16 %v4957
    %v5334 = vunpack.c.l.b16 %v4958
    %v5335 = vunpack.c.h.b16 %v4958
    %v5336 = vunpack.c.l.b16 %v4959
    %v5337 = vunpack.c.h.b16 %v4959
    %v5338 = vunpack.c.l.b16 %v4960
    %v5339 = vunpack.c.h.b16 %v4960
    %v5340 = vunpack.c.l.b16 %v4961
    %v5341 = vunpack.c.h.b16 %v4961
    %v5342 = vunpack.c.l.b16 %v4962
    %v5343 = vunpack.c.h.b16 %v4962
    %v5344 = vunpack.c.l.b16 %v4963
    %v5345 = vunpack.c.h.b16 %v4963
    %v5346 = vunpack.c.l.b16 %v4964
    %v5347 = vunpack.c.h.b16 %v4964
    %v5348 = vunpack.c.l.b16 %v4965
    %v5349 = vunpack.c.h.b16 %v4965
    %v5350 = vunpack.c.l.b16 %v4966
    %v5351 = vunpack.c.h.b16 %v4966
    %v5352 = vunpack.c.l.b16 %v4967
    %v5353 = vunpack.c.h.b16 %v4967
    %v5354 = vunpack.c.l.b16 %v4968
    %v5355 = vunpack.c.h.b16 %v4968
    %v5356 = vunpack.c.l.b16 %v4969
    %v5357 = vunpack.c.h.b16 %v4969
    %v5358 = vunpack.c.l.b16 %v4970
    %v5359 = vunpack.c.h.b16 %v4970
    %v5360 = vunpack.c.l.b16 %v4971
    %v5361 = vunpack.c.h.b16 %v4971
    %v5362 = vunpack.c.l.b16 %v4972
    %v5363 = vunpack.c.h.b16 %v4972
    %v5364 = vunpack.c.l.b16 %v4973
    %v5365 = vunpack.c.h.b16 %v4973
    %v5366 = vunpack.c.l.b16 %v4974
    %v5367 = vunpack.c.h.b16 %v4974
    %v5368 = vunpack.c.l.b16 %v4975
    %v5369 = vunpack.c.h.b16 %v4975
    %v5370 = vunpack.c.l.b16 %v4976
    %v5371 = vunpack.c.h.b16 %v4976
    %v5372 = vunpack.c.l.b16 %v4977
    %v5373 = vunpack.c.h.b16 %v4977
    %v5374 = vunpack.c.l.b16 %v4978
    %v5375 = vunpack.c.h.b16 %v4978
    %v5376 = vunpack.c.l.b16 %v4979
    %v5377 = vunpack.c.h.b16 %v4979
    %v5378 = vunpack.c.l.b16 %v4980
    %v5379 = vunpack.c.h.b16 %v4980
    %v5380 = vunpack.c.l.b16 %v4981
    %v5381 = vunpack.c.h.b16 %v4981
    %v5382 = vunpack.c.l.b16 %v4982
    %v5383 = vunpack.c.h.b16 %v4982
    %v5384 = vunpack.c.l.b16 %v4983
    %v5385 = vunpack.c.h.b16 %v4983
    %v5386 = vunpack.c.l.b16 %v4984
    %v5387 = vunpack.c.h.b16 %v4984
    %v5388 = vunpack.c.l.b16 %v4985
    %v5389 = vunpack.c.h.b16 %v4985
    %v5390 = vunpack.c.l.b16 %v4986
    %v5391 = vunpack.c.h.b16 %v4986
    %v5392 = vunpack.c.l.b16 %v4987
    %v5393 = vunpack.c.h.b16 %v4987
    %v5394 = vpack.c.b16 %v5142, %v5138
    %v5395 = vpack.c.b16 %v5143, %v5139
    %v5396 = vpack.c.b16 %v5144, %v5140
    %v5397 = vpack.c.b16 %v5145, %v5141
    %v5398 = vpack.c.b16 %v5150, %v5146
    %v5399 = vpack.c.b16 %v5151, %v5147
    %v5400 = vpack.c.b16 %v5152, %v5148
    %v5401 = vpack.c.b16 %v5153, %v5149
    %v5402 = vpack.c.b16 %v5158, %v5154
    %v5403 = vpack.c.b16 %v5159, %v5155
    %v5404 = vpack.c.b16 %v5160, %v5156
    %v5405 = vpack.c.b16 %v5161, %v5157
    %v5406 = vpack.c.b16 %v5166, %v5162
    %v5407 = vpack.c.b16 %v5167, %v5163
    %v5408 = vpack.c.b16 %v5168, %v5164
    %v5409 = vpack.c.b16 %v5169, %v5165
    %v5410 = vpack.c.b16 %v5174, %v5170
    %v5411 = vpack.c.b16 %v5175, %v5171
    %v5412 = vpack.c.b16 %v5176, %v5172
    %v5413 = vpack.c.b16 %v5177, %v5173
    %v5414 = vpack.c.b16 %v5182, %v5178
    %v5415 = vpack.c.b16 %v5183, %v5179
    %v5416 = vpack.c.b16 %v5184, %v5180
    %v5417 = vpack.c.b16 %v5185, %v5181
    %v5418 = vpack.c.b16 %v5190, %v5186
    %v5419 = vpack.c.b16 %v5191, %v5187
    %v5420 = vpack.c.b16 %v5192, %v5188
    %v5421 = vpack.c.b16 %v5193, %v5189
    %v5422 = vpack.c.b16 %v5198, %v5194
    %v5423 = vpack.c.b16 %v5199, %v5195
    %v5424 = vpack.c.b16 %v5200, %v5196
    %v5425 = vpack.c.b16 %v5201, %v5197
    %v5426 = vpack.c.b16 %v5206, %v5202
    %v5427 = vpack.c.b16 %v5207, %v5203
    %v5428 = vpack.c.b16 %v5208, %v5204
    %v5429 = vpack.c.b16 %v5209, %v5205
    %v5430 = vpack.c.b16 %v5214, %v5210
    %v5431 = vpack.c.b16 %v5215, %v5211
    %v5432 = vpack.c.b16 %v5216, %v5212
    %v5433 = vpack.c.b16 %v5217, %v5213
    %v5434 = vpack.c.b16 %v5222, %v5218
    %v5435 = vpack.c.b16 %v5223, %v5219
    %v5436 = vpack.c.b16 %v5224, %v5220
    %v5437 = vpack.c.b16 %v5225, %v5221
    %v5438 = vpack.c.b16 %v5230, %v5226
    %v5439 = vpack.c.b16 %v5231, %v5227
    %v5440 = vpack.c.b16 %v5232, %v5228
    %v5441 = vpack.c.b16 %v5233, %v5229
    %v5442 = vpack.c.b16 %v5238, %v5234
    %v5443 = vpack.c.b16 %v5239, %v5235
    %v5444 = vpack.c.b16 %v5240, %v5236
    %v5445 = vpack.c.b16 %v5241, %v5237
    %v5446 = vpack.c.b16 %v5246, %v5242
    %v5447 = vpack.c.b16 %v5247, %v5243
    %v5448 = vpack.c.b16 %v5248, %v5244
    %v5449 = vpack.c.b16 %v5249, %v5245
    %v5450 = vpack.c.b16 %v5254, %v5250
    %v5451 = vpack.c.b16 %v5255, %v5251
    %v5452 = vpack.c.b16 %v5256, %v5252
    %v5453 = vpack.c.b16 %v5257, %v5253
    %v5454 = vpack.c.b16 %v5262, %v5258
    %v5455 = vpack.c.b16 %v5263, %v5259
    %v5456 = vpack.c.b16 %v5264, %v5260
    %v5457 = vpack.c.b16 %v5265, %v5261
    %v5458 = vpack.c.b16 %v5270, %v5266
    %v5459 = vpack.c.b16 %v5271, %v5267
    %v5460 = vpack.c.b16 %v5272, %v5268
    %v5461 = vpack.c.b16 %v5273, %v5269
    %v5462 = vpack.c.b16 %v5278, %v5274
    %v5463 = vpack.c.b16 %v5279, %v5275
    %v5464 = vpack.c.b16 %v5280, %v5276
    %v5465 = vpack.c.b16 %v5281, %v5277
    %v5466 = vpack.c.b16 %v5286, %v5282
    %v5467 = vpack.c.b16 %v5287, %v5283
    %v5468 = vpack.c.b16 %v5288, %v5284
    %v5469 = vpack.c.b16 %v5289, %v5285
    %v5470 = vpack.c.b16 %v5294, %v5290
    %v5471 = vpack.c.b16 %v5295, %v5291
    %v5472 = vpack.c.b16 %v5296, %v5292
    %v5473 = vpack.c.b16 %v5297, %v5293
    %v5474 = vpack.c.b16 %v5302, %v5298
    %v5475 = vpack.c.b16 %v5303, %v5299
    %v5476 = vpack.c.b16 %v5304, %v5300
    %v5477 = vpack.c.b16 %v5305, %v5301
    %v5478 = vpack.c.b16 %v5310, %v5306
    %v5479 = vpack.c.b16 %v5311, %v5307
    %v5480 = vpack.c.b16 %v5312, %v5308
    %v5481 = vpack.c.b16 %v5313, %v5309
    %v5482 = vpack.c.b16 %v5318, %v5314
    %v5483 = vpack.c.b16 %v5319, %v5315
    %v5484 = vpack.c.b16 %v5320, %v5316
    %v5485 = vpack.c.b16 %v5321, %v5317
    %v5486 = vpack.c.b16 %v5326, %v5322
    %v5487 = vpack.c.b16 %v5327, %v5323
    %v5488 = vpack.c.b16 %v5328, %v5324
    %v5489 = vpack.c.b16 %v5329, %v5325
    %v5490 = vpack.c.b16 %v5334, %v5330
    %v5491 = vpack.c.b16 %v5335, %v5331
    %v5492 = vpack.c.b16 %v5336, %v5332
    %v5493 = vpack.c.b16 %v5337, %v5333
    %v5494 = vpack.c.b16 %v5342, %v5338
    %v5495 = vpack.c.b16 %v5343, %v5339
    %v5496 = vpack.c.b16 %v5344, %v5340
    %v5497 = vpack.c.b16 %v5345, %v5341
    %v5498 = vpack.c.b16 %v5350, %v5346
    %v5499 = vpack.c.b16 %v5351, %v5347
    %v5500 = vpack.c.b16 %v5352, %v5348
    %v5501 = vpack.c.b16 %v5353, %v5349
    %v5502 = vpack.c.b16 %v5358, %v5354
    %v5503 = vpack.c.b16 %v5359, %v5355
    %v5504 = vpack.c.b16 %v5360, %v5356
    %v5505 = vpack.c.b16 %v5361, %v5357
    %v5506 = vpack.c.b16 %v5366, %v5362
    %v5507 = vpack.c.b16 %v5367, %v5363
    %v5508 = vpack.c.b16 %v5368, %v5364
    %v5509 = vpack.c.b16 %v5369, %v5365
    %v5510 = vpack.c.b16 %v5374, %v5370
    %v5511 = vpack.c.b16 %v5375, %v5371
    %v5512 = vpack.c.b16 %v5376, %v5372
    %v5513 = vpack.c.b16 %v5377, %v5373
    %v5514 = vpack.c.b16 %v5382, %v5378
    %v5515 = vpack.c.b16 %v5383, %v5379
    %v5516 = vpack.c.b16 %v5384, %v5380
    %v5517 = vpack.c.b16 %v5385, %v5381
    %v5518 = vpack.c.b16 %v5390, %v5386
    %v5519 = vpack.c.b16 %v5391, %v5387
    %v5520 = vpack.c.b16 %v5392, %v5388
    %v5521 = vpack.c.b16 %v5393, %v5389
    %5650 = vmatprep.subr.bf16.mxu0 %v5423
    %5651 = vmatpush1.bf16.msra.mxu0 %v5422
    %5652 = vmatprep.subr.bf16.mxu0 %v5419
    %5653 = vmatpush1.bf16.msra.mxu0 %v5418
    %5654 = vmatprep.subr.bf16.mxu0 %v5415
    %5655 = vmatpush1.bf16.msra.mxu0 %v5414
    %5656 = vmatprep.subr.bf16.mxu0 %v5411
    %5657 = vmatpush1.bf16.msra.mxu0 %v5410
    %5658 = vmatprep.subr.bf16.mxu0 %v5407
    %5659 = vmatpush1.bf16.msra.mxu0 %v5406
    %5660 = vmatprep.subr.bf16.mxu0 %v5403
    %5661 = vmatpush1.bf16.msra.mxu0 %v5402
    %5662 = vmatprep.subr.bf16.mxu0 %v5399
    %5663 = vmatpush1.bf16.msra.mxu0 %v5398
    %5664 = vmatprep.subr.bf16.mxu0 %v5395
    %5665 = vmatpush1.bf16.msra.mxu0 %v5394
    %5666 = vmatprep.subr.bf16.mxu0 %v5455
    %5667 = vmatpush2.bf16.msra.mxu0 %v5454
    %5668 = vmatprep.subr.bf16.mxu0 %v5451
    %5669 = vmatpush2.bf16.msra.mxu0 %v5450
    %5670 = vmatprep.subr.bf16.mxu0 %v5447
    %5671 = vmatpush2.bf16.msra.mxu0 %v5446
    %5672 = vmatprep.subr.bf16.mxu0 %v5443
    %5673 = vmatpush2.bf16.msra.mxu0 %v5442
    %5674 = vmatprep.subr.bf16.mxu0 %v5439
    %5675 = vmatpush2.bf16.msra.mxu0 %v5438
    %5676 = vmatprep.subr.bf16.mxu0 %v5435
    %5677 = vmatpush2.bf16.msra.mxu0 %v5434
    %5678 = vmatprep.subr.bf16.mxu0 %v5431
    %5679 = vmatpush2.bf16.msra.mxu0 %v5430
    %5680 = vmatprep.subr.bf16.mxu0 %v5427
    %5681 = vmatpush2.bf16.msra.mxu0 %v5426
    %5682 = vmatprep.mubr.bf16.mxu0 %v4821
    %5683 = vmatmul.mubr.bf16.gmra.mxu0 %v4820
    %v5684 = vpop.f32.mrf.mxu0
    %v5685 = vadd.f32 %v4993, %v5684
    %v5686 = vpop.f32.mrf.mxu0
    %v5687 = vadd.f32 %v4997, %v5686
    %v5688 = vpop.f32.mrf.mxu0
    %v5689 = vadd.f32 %v4993, %v5688
    %v5690 = vpop.f32.mrf.mxu0
    %v5691 = vadd.f32 %v4997, %v5690
    %5692 = vmatprep.mubr.bf16.mxu0 %v4825
    %5693 = vmatmul.mubr.bf16.gmra.mxu0 %v4824
    %v5694 = vpop.f32.mrf.mxu0
    %v5695 = vadd.f32 %v4993, %v5694
    %v5696 = vpop.f32.mrf.mxu0
    %v5697 = vadd.f32 %v4997, %v5696
    %v5698 = vpop.f32.mrf.mxu0
    %v5699 = vadd.f32 %v4993, %v5698
    %v5700 = vpop.f32.mrf.mxu0
    %v5701 = vadd.f32 %v4997, %v5700
    %5702 = vmatprep.mubr.bf16.mxu0 %v4829
    %5703 = vmatmul.mubr.bf16.gmra.mxu0 %v4828
    %v5704 = vpop.f32.mrf.mxu0
    %v5705 = vadd.f32 %v4993, %v5704
    %v5706 = vpop.f32.mrf.mxu0
    %v5707 = vadd.f32 %v4997, %v5706
    %v5708 = vpop.f32.mrf.mxu0
    %v5709 = vadd.f32 %v4993, %v5708
    %v5710 = vpop.f32.mrf.mxu0
    %v5711 = vadd.f32 %v4997, %v5710
    %5712 = vmatprep.mubr.bf16.mxu0 %v4833
    %5713 = vmatmul.mubr.bf16.gmra.mxu0 %v4832
    %v5714 = vpop.f32.mrf.mxu0
    %v5715 = vadd.f32 %v4993, %v5714
    %v5716 = vpop.f32.mrf.mxu0
    %v5717 = vadd.f32 %v4997, %v5716
    %v5718 = vpop.f32.mrf.mxu0
    %v5719 = vadd.f32 %v4993, %v5718
    %v5720 = vpop.f32.mrf.mxu0
    %v5721 = vadd.f32 %v4997, %v5720
    %5722 = vmatprep.mubr.bf16.mxu0 %v4837
    %5723 = vmatmul.mubr.bf16.gmra.mxu0 %v4836
    %v5724 = vpop.f32.mrf.mxu0
    %v5725 = vadd.f32 %v4993, %v5724
    %v5726 = vpop.f32.mrf.mxu0
    %v5727 = vadd.f32 %v4997, %v5726
    %v5728 = vpop.f32.mrf.mxu0
    %v5729 = vadd.f32 %v4993, %v5728
    %v5730 = vpop.f32.mrf.mxu0
    %v5731 = vadd.f32 %v4997, %v5730
    %5732 = vmatprep.mubr.bf16.mxu0 %v4841
    %5733 = vmatmul.mubr.bf16.gmra.mxu0 %v4840
    %v5734 = vpop.f32.mrf.mxu0
    %v5735 = vadd.f32 %v4993, %v5734
    %v5736 = vpop.f32.mrf.mxu0
    %v5737 = vadd.f32 %v4997, %v5736
    %v5738 = vpop.f32.mrf.mxu0
    %v5739 = vadd.f32 %v4993, %v5738
    %v5740 = vpop.f32.mrf.mxu0
    %v5741 = vadd.f32 %v4997, %v5740
    %5742 = vmatprep.mubr.bf16.mxu0 %v4845
    %5743 = vmatmul.mubr.bf16.gmra.mxu0 %v4844
    %v5744 = vpop.f32.mrf.mxu0
    %v5745 = vadd.f32 %v4993, %v5744
    %v5746 = vpop.f32.mrf.mxu0
    %v5747 = vadd.f32 %v4997, %v5746
    %v5748 = vpop.f32.mrf.mxu0
    %v5749 = vadd.f32 %v4993, %v5748
    %v5750 = vpop.f32.mrf.mxu0
    %v5751 = vadd.f32 %v4997, %v5750
    %5752 = vmatprep.mubr.bf16.mxu0 %v4849
    %5753 = vmatmul.mubr.bf16.gmra.mxu0 %v4848
    %v5754 = vpop.f32.mrf.mxu0
    %v5755 = vadd.f32 %v4993, %v5754
    %v5756 = vpop.f32.mrf.mxu0
    %v5757 = vadd.f32 %v4997, %v5756
    %v5758 = vpop.f32.mrf.mxu0
    %v5759 = vadd.f32 %v4993, %v5758
    %v5760 = vpop.f32.mrf.mxu0
    %v5761 = vadd.f32 %v4997, %v5760
    %5762 = vdwg.mxu0
    %5763 = vmatprep.subr.bf16.mxu0 %v5487
    %5764 = vmatpush1.bf16.msra.mxu0 %v5486
    %5765 = vmatprep.subr.bf16.mxu0 %v5483
    %5766 = vmatpush1.bf16.msra.mxu0 %v5482
    %5767 = vmatprep.subr.bf16.mxu0 %v5479
    %5768 = vmatpush1.bf16.msra.mxu0 %v5478
    %5769 = vmatprep.subr.bf16.mxu0 %v5475
    %5770 = vmatpush1.bf16.msra.mxu0 %v5474
    %5771 = vmatprep.subr.bf16.mxu0 %v5471
    %5772 = vmatpush1.bf16.msra.mxu0 %v5470
    %5773 = vmatprep.subr.bf16.mxu0 %v5467
    %5774 = vmatpush1.bf16.msra.mxu0 %v5466
    %5775 = vmatprep.subr.bf16.mxu0 %v5463
    %5776 = vmatpush1.bf16.msra.mxu0 %v5462
    %5777 = vmatprep.subr.bf16.mxu0 %v5459
    %5778 = vmatpush1.bf16.msra.mxu0 %v5458
    %5779 = vmatprep.subr.bf16.mxu0 %v5519
    %5780 = vmatpush2.bf16.msra.mxu0 %v5518
    %5781 = vmatprep.subr.bf16.mxu0 %v5515
    %5782 = vmatpush2.bf16.msra.mxu0 %v5514
    %5783 = vmatprep.subr.bf16.mxu0 %v5511
    %5784 = vmatpush2.bf16.msra.mxu0 %v5510
    %5785 = vmatprep.subr.bf16.mxu0 %v5507
    %5786 = vmatpush2.bf16.msra.mxu0 %v5506
    %5787 = vmatprep.subr.bf16.mxu0 %v5503
    %5788 = vmatpush2.bf16.msra.mxu0 %v5502
    %5789 = vmatprep.subr.bf16.mxu0 %v5499
    %5790 = vmatpush2.bf16.msra.mxu0 %v5498
    %5791 = vmatprep.subr.bf16.mxu0 %v5495
    %5792 = vmatpush2.bf16.msra.mxu0 %v5494
    %5793 = vmatprep.subr.bf16.mxu0 %v5491
    %5794 = vmatpush2.bf16.msra.mxu0 %v5490
    %5795 = vmatprep.mubr.bf16.mxu0 %v4823
    %5796 = vmatmul.mubr.bf16.gmra.mxu0 %v4822
    %v5797 = vpop.f32.mrf.mxu0
    %v5798 = vadd.f32 %v5685, %v5797
    %v5799 = vpop.f32.mrf.mxu0
    %v5800 = vadd.f32 %v5687, %v5799
    %v5801 = vpop.f32.mrf.mxu0
    %v5802 = vadd.f32 %v5689, %v5801
    %v5803 = vpop.f32.mrf.mxu0
    %v5804 = vadd.f32 %v5691, %v5803
    %5805 = vmatprep.mubr.bf16.mxu0 %v4827
    %5806 = vmatmul.mubr.bf16.gmra.mxu0 %v4826
    %v5807 = vpop.f32.mrf.mxu0
    %v5808 = vadd.f32 %v5695, %v5807
    %v5809 = vpop.f32.mrf.mxu0
    %v5810 = vadd.f32 %v5697, %v5809
    %v5811 = vpop.f32.mrf.mxu0
    %v5812 = vadd.f32 %v5699, %v5811
    %v5813 = vpop.f32.mrf.mxu0
    %v5814 = vadd.f32 %v5701, %v5813
    %5815 = vmatprep.mubr.bf16.mxu0 %v4831
    %5816 = vmatmul.mubr.bf16.gmra.mxu0 %v4830
    %v5817 = vpop.f32.mrf.mxu0
    %v5818 = vadd.f32 %v5705, %v5817
    %v5819 = vpop.f32.mrf.mxu0
    %v5820 = vadd.f32 %v5707, %v5819
    %v5821 = vpop.f32.mrf.mxu0
    %v5822 = vadd.f32 %v5709, %v5821
    %v5823 = vpop.f32.mrf.mxu0
    %v5824 = vadd.f32 %v5711, %v5823
    %5825 = vmatprep.mubr.bf16.mxu0 %v4835
    %5826 = vmatmul.mubr.bf16.gmra.mxu0 %v4834
    %v5827 = vpop.f32.mrf.mxu0
    %v5828 = vadd.f32 %v5715, %v5827
    %v5829 = vpop.f32.mrf.mxu0
    %v5830 = vadd.f32 %v5717, %v5829
    %v5831 = vpop.f32.mrf.mxu0
    %v5832 = vadd.f32 %v5719, %v5831
    %v5833 = vpop.f32.mrf.mxu0
    %v5834 = vadd.f32 %v5721, %v5833
    %5835 = vmatprep.mubr.bf16.mxu0 %v4839
    %5836 = vmatmul.mubr.bf16.gmra.mxu0 %v4838
    %v5837 = vpop.f32.mrf.mxu0
    %v5838 = vadd.f32 %v5725, %v5837
    %v5839 = vpop.f32.mrf.mxu0
    %v5840 = vadd.f32 %v5727, %v5839
    %v5841 = vpop.f32.mrf.mxu0
    %v5842 = vadd.f32 %v5729, %v5841
    %v5843 = vpop.f32.mrf.mxu0
    %v5844 = vadd.f32 %v5731, %v5843
    %5845 = vmatprep.mubr.bf16.mxu0 %v4843
    %5846 = vmatmul.mubr.bf16.gmra.mxu0 %v4842
    %v5847 = vpop.f32.mrf.mxu0
    %v5848 = vadd.f32 %v5735, %v5847
    %v5849 = vpop.f32.mrf.mxu0
    %v5850 = vadd.f32 %v5737, %v5849
    %v5851 = vpop.f32.mrf.mxu0
    %v5852 = vadd.f32 %v5739, %v5851
    %v5853 = vpop.f32.mrf.mxu0
    %v5854 = vadd.f32 %v5741, %v5853
    %5855 = vmatprep.mubr.bf16.mxu0 %v4847
    %5856 = vmatmul.mubr.bf16.gmra.mxu0 %v4846
    %v5857 = vpop.f32.mrf.mxu0
    %v5858 = vadd.f32 %v5745, %v5857
    %v5859 = vpop.f32.mrf.mxu0
    %v5860 = vadd.f32 %v5747, %v5859
    %v5861 = vpop.f32.mrf.mxu0
    %v5862 = vadd.f32 %v5749, %v5861
    %v5863 = vpop.f32.mrf.mxu0
    %v5864 = vadd.f32 %v5751, %v5863
    %5865 = vmatprep.mubr.bf16.mxu0 %v4851
    %5866 = vmatmul.mubr.bf16.gmra.mxu0 %v4850
    %v5867 = vpop.f32.mrf.mxu0
    %v5868 = vadd.f32 %v5755, %v5867
    %v5869 = vpop.f32.mrf.mxu0
    %v5870 = vadd.f32 %v5757, %v5869
    %v5871 = vpop.f32.mrf.mxu0
    %v5872 = vadd.f32 %v5759, %v5871
    %v5873 = vpop.f32.mrf.mxu0
    %v5874 = vadd.f32 %v5761, %v5873
    %5875 = vdwg.mxu0
    %5876 = vmatprep.subr.bf16.mxu0 %v5425
    %5877 = vmatpush1.bf16.msra.mxu0 %v5424
    %5878 = vmatprep.subr.bf16.mxu0 %v5421
    %5879 = vmatpush1.bf16.msra.mxu0 %v5420
    %5880 = vmatprep.subr.bf16.mxu0 %v5417
    %5881 = vmatpush1.bf16.msra.mxu0 %v5416
    %5882 = vmatprep.subr.bf16.mxu0 %v5413
    %5883 = vmatpush1.bf16.msra.mxu0 %v5412
    %5884 = vmatprep.subr.bf16.mxu0 %v5409
    %5885 = vmatpush1.bf16.msra.mxu0 %v5408
    %5886 = vmatprep.subr.bf16.mxu0 %v5405
    %5887 = vmatpush1.bf16.msra.mxu0 %v5404
    %5888 = vmatprep.subr.bf16.mxu0 %v5401
    %5889 = vmatpush1.bf16.msra.mxu0 %v5400
    %5890 = vmatprep.subr.bf16.mxu0 %v5397
    %5891 = vmatpush1.bf16.msra.mxu0 %v5396
    %5892 = vmatprep.subr.bf16.mxu0 %v5457
    %5893 = vmatpush2.bf16.msra.mxu0 %v5456
    %5894 = vmatprep.subr.bf16.mxu0 %v5453
    %5895 = vmatpush2.bf16.msra.mxu0 %v5452
    %5896 = vmatprep.subr.bf16.mxu0 %v5449
    %5897 = vmatpush2.bf16.msra.mxu0 %v5448
    %5898 = vmatprep.subr.bf16.mxu0 %v5445
    %5899 = vmatpush2.bf16.msra.mxu0 %v5444
    %5900 = vmatprep.subr.bf16.mxu0 %v5441
    %5901 = vmatpush2.bf16.msra.mxu0 %v5440
    %5902 = vmatprep.subr.bf16.mxu0 %v5437
    %5903 = vmatpush2.bf16.msra.mxu0 %v5436
    %5904 = vmatprep.subr.bf16.mxu0 %v5433
    %5905 = vmatpush2.bf16.msra.mxu0 %v5432
    %5906 = vmatprep.subr.bf16.mxu0 %v5429
    %5907 = vmatpush2.bf16.msra.mxu0 %v5428
    %5908 = vmatprep.mubr.bf16.mxu0 %v4821
    %5909 = vmatmul.mubr.bf16.gmra.mxu0 %v4820
    %v5910 = vpop.f32.mrf.mxu0
    %v5911 = vadd.f32 %v5001, %v5910
    %v5912 = vpop.f32.mrf.mxu0
    %v5913 = vadd.f32 %v5005, %v5912
    %v5914 = vpop.f32.mrf.mxu0
    %v5915 = vadd.f32 %v5001, %v5914
    %v5916 = vpop.f32.mrf.mxu0
    %v5917 = vadd.f32 %v5005, %v5916
    %5918 = vmatprep.mubr.bf16.mxu0 %v4825
    %5919 = vmatmul.mubr.bf16.gmra.mxu0 %v4824
    %v5920 = vpop.f32.mrf.mxu0
    %v5921 = vadd.f32 %v5001, %v5920
    %v5922 = vpop.f32.mrf.mxu0
    %v5923 = vadd.f32 %v5005, %v5922
    %v5924 = vpop.f32.mrf.mxu0
    %v5925 = vadd.f32 %v5001, %v5924
    %v5926 = vpop.f32.mrf.mxu0
    %v5927 = vadd.f32 %v5005, %v5926
    %5928 = vmatprep.mubr.bf16.mxu0 %v4829
    %5929 = vmatmul.mubr.bf16.gmra.mxu0 %v4828
    %v5930 = vpop.f32.mrf.mxu0
    %v5931 = vadd.f32 %v5001, %v5930
    %v5932 = vpop.f32.mrf.mxu0
    %v5933 = vadd.f32 %v5005, %v5932
    %v5934 = vpop.f32.mrf.mxu0
    %v5935 = vadd.f32 %v5001, %v5934
    %v5936 = vpop.f32.mrf.mxu0
    %v5937 = vadd.f32 %v5005, %v5936
    %5938 = vmatprep.mubr.bf16.mxu0 %v4833
    %5939 = vmatmul.mubr.bf16.gmra.mxu0 %v4832
    %v5940 = vpop.f32.mrf.mxu0
    %v5941 = vadd.f32 %v5001, %v5940
    %v5942 = vpop.f32.mrf.mxu0
    %v5943 = vadd.f32 %v5005, %v5942
    %v5944 = vpop.f32.mrf.mxu0
    %v5945 = vadd.f32 %v5001, %v5944
    %v5946 = vpop.f32.mrf.mxu0
    %v5947 = vadd.f32 %v5005, %v5946
    %5948 = vmatprep.mubr.bf16.mxu0 %v4837
    %5949 = vmatmul.mubr.bf16.gmra.mxu0 %v4836
    %v5950 = vpop.f32.mrf.mxu0
    %v5951 = vadd.f32 %v5001, %v5950
    %v5952 = vpop.f32.mrf.mxu0
    %v5953 = vadd.f32 %v5005, %v5952
    %v5954 = vpop.f32.mrf.mxu0
    %v5955 = vadd.f32 %v5001, %v5954
    %v5956 = vpop.f32.mrf.mxu0
    %v5957 = vadd.f32 %v5005, %v5956
    %5958 = vmatprep.mubr.bf16.mxu0 %v4841
    %5959 = vmatmul.mubr.bf16.gmra.mxu0 %v4840
    %v5960 = vpop.f32.mrf.mxu0
    %v5961 = vadd.f32 %v5001, %v5960
    %v5962 = vpop.f32.mrf.mxu0
    %v5963 = vadd.f32 %v5005, %v5962
    %v5964 = vpop.f32.mrf.mxu0
    %v5965 = vadd.f32 %v5001, %v5964
    %v5966 = vpop.f32.mrf.mxu0
    %v5967 = vadd.f32 %v5005, %v5966
    %5968 = vmatprep.mubr.bf16.mxu0 %v4845
    %5969 = vmatmul.mubr.bf16.gmra.mxu0 %v4844
    %v5970 = vpop.f32.mrf.mxu0
    %v5971 = vadd.f32 %v5001, %v5970
    %v5972 = vpop.f32.mrf.mxu0
    %v5973 = vadd.f32 %v5005, %v5972
    %v5974 = vpop.f32.mrf.mxu0
    %v5975 = vadd.f32 %v5001, %v5974
    %v5976 = vpop.f32.mrf.mxu0
    %v5977 = vadd.f32 %v5005, %v5976
    %5978 = vmatprep.mubr.bf16.mxu0 %v4849
    %5979 = vmatmul.mubr.bf16.gmra.mxu0 %v4848
    %v5980 = vpop.f32.mrf.mxu0
    %v5981 = vadd.f32 %v5001, %v5980
    %v5982 = vpop.f32.mrf.mxu0
    %v5983 = vadd.f32 %v5005, %v5982
    %v5984 = vpop.f32.mrf.mxu0
    %v5985 = vadd.f32 %v5001, %v5984
    %v5986 = vpop.f32.mrf.mxu0
    %v5987 = vadd.f32 %v5005, %v5986
    %5988 = vdwg.mxu0
    %5989 = vmatprep.subr.bf16.mxu0 %v5489
    %5990 = vmatpush1.bf16.msra.mxu0 %v5488
    %5991 = vmatprep.subr.bf16.mxu0 %v5485
    %5992 = vmatpush1.bf16.msra.mxu0 %v5484
    %5993 = vmatprep.subr.bf16.mxu0 %v5481
    %5994 = vmatpush1.bf16.msra.mxu0 %v5480
    %5995 = vmatprep.subr.bf16.mxu0 %v5477
    %5996 = vmatpush1.bf16.msra.mxu0 %v5476
    %5997 = vmatprep.subr.bf16.mxu0 %v5473
    %5998 = vmatpush1.bf16.msra.mxu0 %v5472
    %5999 = vmatprep.subr.bf16.mxu0 %v5469
    %6000 = vmatpush1.bf16.msra.mxu0 %v5468
    %6001 = vmatprep.subr.bf16.mxu0 %v5465
    %6002 = vmatpush1.bf16.msra.mxu0 %v5464
    %6003 = vmatprep.subr.bf16.mxu0 %v5461
    %6004 = vmatpush1.bf16.msra.mxu0 %v5460
    %6005 = vmatprep.subr.bf16.mxu0 %v5521
    %6006 = vmatpush2.bf16.msra.mxu0 %v5520
    %6007 = vmatprep.subr.bf16.mxu0 %v5517
    %6008 = vmatpush2.bf16.msra.mxu0 %v5516
    %6009 = vmatprep.subr.bf16.mxu0 %v5513
    %6010 = vmatpush2.bf16.msra.mxu0 %v5512
    %6011 = vmatprep.subr.bf16.mxu0 %v5509
    %6012 = vmatpush2.bf16.msra.mxu0 %v5508
    %6013 = vmatprep.subr.bf16.mxu0 %v5505
    %6014 = vmatpush2.bf16.msra.mxu0 %v5504
    %6015 = vmatprep.subr.bf16.mxu0 %v5501
    %6016 = vmatpush2.bf16.msra.mxu0 %v5500
    %6017 = vmatprep.subr.bf16.mxu0 %v5497
    %6018 = vmatpush2.bf16.msra.mxu0 %v5496
    %6019 = vmatprep.subr.bf16.mxu0 %v5493
    %6020 = vmatpush2.bf16.msra.mxu0 %v5492
    %6021 = vmatprep.mubr.bf16.mxu0 %v4823
    %6022 = vmatmul.mubr.bf16.gmra.mxu0 %v4822
    %v6023 = vpop.f32.mrf.mxu0
    %v6024 = vadd.f32 %v5911, %v6023
    %v6025 = vpop.f32.mrf.mxu0
    %v6026 = vadd.f32 %v5913, %v6025
    %v6027 = vpop.f32.mrf.mxu0
    %v6028 = vadd.f32 %v5915, %v6027
    %v6029 = vpop.f32.mrf.mxu0
    %v6030 = vadd.f32 %v5917, %v6029
    %6031 = vmatprep.mubr.bf16.mxu0 %v4827
    %6032 = vmatmul.mubr.bf16.gmra.mxu0 %v4826
    %v6033 = vpop.f32.mrf.mxu0
    %v6034 = vadd.f32 %v5921, %v6033
    %v6035 = vpop.f32.mrf.mxu0
    %v6036 = vadd.f32 %v5923, %v6035
    %v6037 = vpop.f32.mrf.mxu0
    %v6038 = vadd.f32 %v5925, %v6037
    %v6039 = vpop.f32.mrf.mxu0
    %v6040 = vadd.f32 %v5927, %v6039
    %6041 = vmatprep.mubr.bf16.mxu0 %v4831
    %6042 = vmatmul.mubr.bf16.gmra.mxu0 %v4830
    %v6043 = vpop.f32.mrf.mxu0
    %v6044 = vadd.f32 %v5931, %v6043
    %v6045 = vpop.f32.mrf.mxu0
    %v6046 = vadd.f32 %v5933, %v6045
    %v6047 = vpop.f32.mrf.mxu0
    %v6048 = vadd.f32 %v5935, %v6047
    %v6049 = vpop.f32.mrf.mxu0
    %v6050 = vadd.f32 %v5937, %v6049
    %6051 = vmatprep.mubr.bf16.mxu0 %v4835
    %6052 = vmatmul.mubr.bf16.gmra.mxu0 %v4834
    %v6053 = vpop.f32.mrf.mxu0
    %v6054 = vadd.f32 %v5941, %v6053
    %v6055 = vpop.f32.mrf.mxu0
    %v6056 = vadd.f32 %v5943, %v6055
    %v6057 = vpop.f32.mrf.mxu0
    %v6058 = vadd.f32 %v5945, %v6057
    %v6059 = vpop.f32.mrf.mxu0
    %v6060 = vadd.f32 %v5947, %v6059
    %6061 = vmatprep.mubr.bf16.mxu0 %v4839
    %6062 = vmatmul.mubr.bf16.gmra.mxu0 %v4838
    %v6063 = vpop.f32.mrf.mxu0
    %v6064 = vadd.f32 %v5951, %v6063
    %v6065 = vpop.f32.mrf.mxu0
    %v6066 = vadd.f32 %v5953, %v6065
    %v6067 = vpop.f32.mrf.mxu0
    %v6068 = vadd.f32 %v5955, %v6067
    %v6069 = vpop.f32.mrf.mxu0
    %v6070 = vadd.f32 %v5957, %v6069
    %6071 = vmatprep.mubr.bf16.mxu0 %v4843
    %6072 = vmatmul.mubr.bf16.gmra.mxu0 %v4842
    %v6073 = vpop.f32.mrf.mxu0
    %v6074 = vadd.f32 %v5961, %v6073
    %v6075 = vpop.f32.mrf.mxu0
    %v6076 = vadd.f32 %v5963, %v6075
    %v6077 = vpop.f32.mrf.mxu0
    %v6078 = vadd.f32 %v5965, %v6077
    %v6079 = vpop.f32.mrf.mxu0
    %v6080 = vadd.f32 %v5967, %v6079
    %6081 = vmatprep.mubr.bf16.mxu0 %v4847
    %6082 = vmatmul.mubr.bf16.gmra.mxu0 %v4846
    %v6083 = vpop.f32.mrf.mxu0
    %v6084 = vadd.f32 %v5971, %v6083
    %v6085 = vpop.f32.mrf.mxu0
    %v6086 = vadd.f32 %v5973, %v6085
    %v6087 = vpop.f32.mrf.mxu0
    %v6088 = vadd.f32 %v5975, %v6087
    %v6089 = vpop.f32.mrf.mxu0
    %v6090 = vadd.f32 %v5977, %v6089
    %6091 = vmatprep.mubr.bf16.mxu0 %v4851
    %6092 = vmatmul.mubr.bf16.gmra.mxu0 %v4850
    %v6093 = vpop.f32.mrf.mxu0
    %v6094 = vadd.f32 %v5981, %v6093
    %v6095 = vpop.f32.mrf.mxu0
    %v6096 = vadd.f32 %v5983, %v6095
    %v6097 = vpop.f32.mrf.mxu0
    %v6098 = vadd.f32 %v5985, %v6097
    %v6099 = vpop.f32.mrf.mxu0
    %v6100 = vadd.f32 %v5987, %v6099
    %6101 = vdwg.mxu0
    %v6102 = vmax.f32 %v5798, 0.0
    %v6103 = vmax.f32 %v5800, 0.0
    %v6104 = vmax.f32 %v6024, 0.0
    %v6105 = vmax.f32 %v6026, 0.0
    %v6106 = vmax.f32 %v5802, 0.0
    %v6107 = vmax.f32 %v5804, 0.0
    %v6108 = vmax.f32 %v6028, 0.0
    %v6109 = vmax.f32 %v6030, 0.0
    %v6110 = vmax.f32 %v5808, 0.0
    %v6111 = vmax.f32 %v5810, 0.0
    %v6112 = vmax.f32 %v6034, 0.0
    %v6113 = vmax.f32 %v6036, 0.0
    %v6114 = vmax.f32 %v5812, 0.0
    %v6115 = vmax.f32 %v5814, 0.0
    %v6116 = vmax.f32 %v6038, 0.0
    %v6117 = vmax.f32 %v6040, 0.0
    %v6118 = vmax.f32 %v5818, 0.0
    %v6119 = vmax.f32 %v5820, 0.0
    %v6120 = vmax.f32 %v6044, 0.0
    %v6121 = vmax.f32 %v6046, 0.0
    %v6122 = vmax.f32 %v5822, 0.0
    %v6123 = vmax.f32 %v5824, 0.0
    %v6124 = vmax.f32 %v6048, 0.0
    %v6125 = vmax.f32 %v6050, 0.0
    %v6126 = vmax.f32 %v5828, 0.0
    %v6127 = vmax.f32 %v5830, 0.0
    %v6128 = vmax.f32 %v6054, 0.0
    %v6129 = vmax.f32 %v6056, 0.0
    %v6130 = vmax.f32 %v5832, 0.0
    %v6131 = vmax.f32 %v5834, 0.0
    %v6132 = vmax.f32 %v6058, 0.0
    %v6133 = vmax.f32 %v6060, 0.0
    %v6134 = vmax.f32 %v5838, 0.0
    %v6135 = vmax.f32 %v5840, 0.0
    %v6136 = vmax.f32 %v6064, 0.0
    %v6137 = vmax.f32 %v6066, 0.0
    %v6138 = vmax.f32 %v5842, 0.0
    %v6139 = vmax.f32 %v5844, 0.0
    %v6140 = vmax.f32 %v6068, 0.0
    %v6141 = vmax.f32 %v6070, 0.0
    %v6142 = vmax.f32 %v5848, 0.0
    %v6143 = vmax.f32 %v5850, 0.0
    %v6144 = vmax.f32 %v6074, 0.0
    %v6145 = vmax.f32 %v6076, 0.0
    %v6146 = vmax.f32 %v5852, 0.0
    %v6147 = vmax.f32 %v5854, 0.0
    %v6148 = vmax.f32 %v6078, 0.0
    %v6149 = vmax.f32 %v6080, 0.0
    %v6150 = vmax.f32 %v5858, 0.0
    %v6151 = vmax.f32 %v5860, 0.0
    %v6152 = vmax.f32 %v6084, 0.0
    %v6153 = vmax.f32 %v6086, 0.0
    %v6154 = vmax.f32 %v5862, 0.0
    %v6155 = vmax.f32 %v5864, 0.0
    %v6156 = vmax.f32 %v6088, 0.0
    %v6157 = vmax.f32 %v6090, 0.0
    %v6158 = vmax.f32 %v5868, 0.0
    %v6159 = vmax.f32 %v5870, 0.0
    %v6160 = vmax.f32 %v6094, 0.0
    %v6161 = vmax.f32 %v6096, 0.0
    %v6162 = vmax.f32 %v5872, 0.0
    %v6163 = vmax.f32 %v5874, 0.0
    %v6164 = vmax.f32 %v6098, 0.0
    %v6165 = vmax.f32 %v6100, 0.0
    %v6166 = vpack.c.bf16 %v6106, %v6102
    %v6167 = vpack.c.bf16 %v6107, %v6103
    %v6168 = vpack.c.bf16 %v6108, %v6104
    %v6169 = vpack.c.bf16 %v6109, %v6105
    %v6170 = vpack.c.bf16 %v6114, %v6110
    %v6171 = vpack.c.bf16 %v6115, %v6111
    %v6172 = vpack.c.bf16 %v6116, %v6112
    %v6173 = vpack.c.bf16 %v6117, %v6113
    %v6174 = vpack.c.bf16 %v6122, %v6118
    %v6175 = vpack.c.bf16 %v6123, %v6119
    %v6176 = vpack.c.bf16 %v6124, %v6120
    %v6177 = vpack.c.bf16 %v6125, %v6121
    %v6178 = vpack.c.bf16 %v6130, %v6126
    %v6179 = vpack.c.bf16 %v6131, %v6127
    %v6180 = vpack.c.bf16 %v6132, %v6128
    %v6181 = vpack.c.bf16 %v6133, %v6129
    %v6182 = vpack.c.bf16 %v6138, %v6134
    %v6183 = vpack.c.bf16 %v6139, %v6135
    %v6184 = vpack.c.bf16 %v6140, %v6136
    %v6185 = vpack.c.bf16 %v6141, %v6137
    %v6186 = vpack.c.bf16 %v6146, %v6142
    %v6187 = vpack.c.bf16 %v6147, %v6143
    %v6188 = vpack.c.bf16 %v6148, %v6144
    %v6189 = vpack.c.bf16 %v6149, %v6145
    %v6190 = vpack.c.bf16 %v6154, %v6150
    %v6191 = vpack.c.bf16 %v6155, %v6151
    %v6192 = vpack.c.bf16 %v6156, %v6152
    %v6193 = vpack.c.bf16 %v6157, %v6153
    %v6194 = vpack.c.bf16 %v6162, %v6158
    %v6195 = vpack.c.bf16 %v6163, %v6159
    %v6196 = vpack.c.bf16 %v6164, %v6160
    %v6197 = vpack.c.bf16 %v6165, %v6161
    // Predicated region
    $region104: #{tpu_custom_call.1} parent=1 // pred_check
      %p6198 = pneg %p76
    $region105: #{tpu_custom_call.1} parent=1 // pred_check_branch
      %6200 = sbr.rel (%p6198) target = $region107
    $region106: #{tpu_custom_call.1} parent=1 // pred_region
      %s6201 = scalar_lea.sflag [#allocation8], 2
      %s6202 = smul.u32 4, 64
      %s6203 = smul.u32 %s6202, 2
      %s6204 = sshll.u32 %s6203, 4
      %6205 = dma.done %s6201, %s6204
    $region107: #{tpu_custom_call.1} parent=1 // pred_fallthru
      _
    %v6206 = vld [vmem:[#allocation5] sm:$0xff]
    %v6207 = vld [vmem:[#allocation5 + $0x8] sm:$0xff]
    %v6208 = vld [vmem:[#allocation5 + $0x10] sm:$0xff]
    %v6209 = vld [vmem:[#allocation5 + $0x18] sm:$0xff]
    %v6210 = vld [vmem:[#allocation5 + $0x20] sm:$0xff]
    %v6211 = vld [vmem:[#allocation5 + $0x28] sm:$0xff]
    %v6212 = vld [vmem:[#allocation5 + $0x30] sm:$0xff]
    %v6213 = vld [vmem:[#allocation5 + $0x38] sm:$0xff]
    %v6214 = vld [vmem:[#allocation5 + $0x40] sm:$0xff]
    %v6215 = vld [vmem:[#allocation5 + $0x48] sm:$0xff]
    %v6216 = vld [vmem:[#allocation5 + $0x50] sm:$0xff]
    %v6217 = vld [vmem:[#allocation5 + $0x58] sm:$0xff]
    %v6218 = vld [vmem:[#allocation5 + $0x60] sm:$0xff]
    %v6219 = vld [vmem:[#allocation5 + $0x68] sm:$0xff]
    %v6220 = vld [vmem:[#allocation5 + $0x70] sm:$0xff]
    %v6221 = vld [vmem:[#allocation5 + $0x78] sm:$0xff]
    %v6222 = vld [vmem:[#allocation5 + $0x80] sm:$0xff]
    %v6223 = vld [vmem:[#allocation5 + $0x88] sm:$0xff]
    %v6224 = vld [vmem:[#allocation5 + $0x90] sm:$0xff]
    %v6225 = vld [vmem:[#allocation5 + $0x98] sm:$0xff]
    %v6226 = vld [vmem:[#allocation5 + $0xa0] sm:$0xff]
    %v6227 = vld [vmem:[#allocation5 + $0xa8] sm:$0xff]
    %v6228 = vld [vmem:[#allocation5 + $0xb0] sm:$0xff]
    %v6229 = vld [vmem:[#allocation5 + $0xb8] sm:$0xff]
    %v6230 = vld [vmem:[#allocation5 + $0xc0] sm:$0xff]
    %v6231 = vld [vmem:[#allocation5 + $0xc8] sm:$0xff]
    %v6232 = vld [vmem:[#allocation5 + $0xd0] sm:$0xff]
    %v6233 = vld [vmem:[#allocation5 + $0xd8] sm:$0xff]
    %v6234 = vld [vmem:[#allocation5 + $0xe0] sm:$0xff]
    %v6235 = vld [vmem:[#allocation5 + $0xe8] sm:$0xff]
    %v6236 = vld [vmem:[#allocation5 + $0xf0] sm:$0xff]
    %v6237 = vld [vmem:[#allocation5 + $0xf8] sm:$0xff]
    %v6238 = vld [vmem:[#allocation5 + $0x100] sm:$0xff]
    %v6239 = vld [vmem:[#allocation5 + $0x108] sm:$0xff]
    %v6240 = vld [vmem:[#allocation5 + $0x110] sm:$0xff]
    %v6241 = vld [vmem:[#allocation5 + $0x118] sm:$0xff]
    %v6242 = vld [vmem:[#allocation5 + $0x120] sm:$0xff]
    %v6243 = vld [vmem:[#allocation5 + $0x128] sm:$0xff]
    %v6244 = vld [vmem:[#allocation5 + $0x130] sm:$0xff]
    %v6245 = vld [vmem:[#allocation5 + $0x138] sm:$0xff]
    %v6246 = vld [vmem:[#allocation5 + $0x140] sm:$0xff]
    %v6247 = vld [vmem:[#allocation5 + $0x148] sm:$0xff]
    %v6248 = vld [vmem:[#allocation5 + $0x150] sm:$0xff]
    %v6249 = vld [vmem:[#allocation5 + $0x158] sm:$0xff]
    %v6250 = vld [vmem:[#allocation5 + $0x160] sm:$0xff]
    %v6251 = vld [vmem:[#allocation5 + $0x168] sm:$0xff]
    %v6252 = vld [vmem:[#allocation5 + $0x170] sm:$0xff]
    %v6253 = vld [vmem:[#allocation5 + $0x178] sm:$0xff]
    %v6254 = vld [vmem:[#allocation5 + $0x180] sm:$0xff]
    %v6255 = vld [vmem:[#allocation5 + $0x188] sm:$0xff]
    %v6256 = vld [vmem:[#allocation5 + $0x190] sm:$0xff]
    %v6257 = vld [vmem:[#allocation5 + $0x198] sm:$0xff]
    %v6258 = vld [vmem:[#allocation5 + $0x1a0] sm:$0xff]
    %v6259 = vld [vmem:[#allocation5 + $0x1a8] sm:$0xff]
    %v6260 = vld [vmem:[#allocation5 + $0x1b0] sm:$0xff]
    %v6261 = vld [vmem:[#allocation5 + $0x1b8] sm:$0xff]
    %v6262 = vld [vmem:[#allocation5 + $0x1c0] sm:$0xff]
    %v6263 = vld [vmem:[#allocation5 + $0x1c8] sm:$0xff]
    %v6264 = vld [vmem:[#allocation5 + $0x1d0] sm:$0xff]
    %v6265 = vld [vmem:[#allocation5 + $0x1d8] sm:$0xff]
    %v6266 = vld [vmem:[#allocation5 + $0x1e0] sm:$0xff]
    %v6267 = vld [vmem:[#allocation5 + $0x1e8] sm:$0xff]
    %v6268 = vld [vmem:[#allocation5 + $0x1f0] sm:$0xff]
    %v6269 = vld [vmem:[#allocation5 + $0x1f8] sm:$0xff]
    %v6270 = vld [vmem:[%s8] sm:$0x3]
    %v6272 = vlaneseq
    %v6273 = vshrl.u32 %v6272, 7
    %v6274 = vsub.s32 0, %v6273
    %v6275 = vrot.slane %v6270, %v6274
    %v6276 = vlaneseq
    %v6277 = vshrl.u32 %v6276, 7
    %v6278 = vsub.s32 1, %v6277
    %v6279 = vrot.slane %v6270, %v6278
    %v6346 = vunpack.c.l.b16 %v6206
    %v6347 = vunpack.c.h.b16 %v6206
    %v6348 = vunpack.c.l.b16 %v6207
    %v6349 = vunpack.c.h.b16 %v6207
    %v6350 = vunpack.c.l.b16 %v6208
    %v6351 = vunpack.c.h.b16 %v6208
    %v6352 = vunpack.c.l.b16 %v6209
    %v6353 = vunpack.c.h.b16 %v6209
    %v6354 = vunpack.c.l.b16 %v6210
    %v6355 = vunpack.c.h.b16 %v6210
    %v6356 = vunpack.c.l.b16 %v6211
    %v6357 = vunpack.c.h.b16 %v6211
    %v6358 = vunpack.c.l.b16 %v6212
    %v6359 = vunpack.c.h.b16 %v6212
    %v6360 = vunpack.c.l.b16 %v6213
    %v6361 = vunpack.c.h.b16 %v6213
    %v6362 = vunpack.c.l.b16 %v6214
    %v6363 = vunpack.c.h.b16 %v6214
    %v6364 = vunpack.c.l.b16 %v6215
    %v6365 = vunpack.c.h.b16 %v6215
    %v6366 = vunpack.c.l.b16 %v6216
    %v6367 = vunpack.c.h.b16 %v6216
    %v6368 = vunpack.c.l.b16 %v6217
    %v6369 = vunpack.c.h.b16 %v6217
    %v6370 = vunpack.c.l.b16 %v6218
    %v6371 = vunpack.c.h.b16 %v6218
    %v6372 = vunpack.c.l.b16 %v6219
    %v6373 = vunpack.c.h.b16 %v6219
    %v6374 = vunpack.c.l.b16 %v6220
    %v6375 = vunpack.c.h.b16 %v6220
    %v6376 = vunpack.c.l.b16 %v6221
    %v6377 = vunpack.c.h.b16 %v6221
    %v6378 = vunpack.c.l.b16 %v6222
    %v6379 = vunpack.c.h.b16 %v6222
    %v6380 = vunpack.c.l.b16 %v6223
    %v6381 = vunpack.c.h.b16 %v6223
    %v6382 = vunpack.c.l.b16 %v6224
    %v6383 = vunpack.c.h.b16 %v6224
    %v6384 = vunpack.c.l.b16 %v6225
    %v6385 = vunpack.c.h.b16 %v6225
    %v6386 = vunpack.c.l.b16 %v6226
    %v6387 = vunpack.c.h.b16 %v6226
    %v6388 = vunpack.c.l.b16 %v6227
    %v6389 = vunpack.c.h.b16 %v6227
    %v6390 = vunpack.c.l.b16 %v6228
    %v6391 = vunpack.c.h.b16 %v6228
    %v6392 = vunpack.c.l.b16 %v6229
    %v6393 = vunpack.c.h.b16 %v6229
    %v6394 = vunpack.c.l.b16 %v6230
    %v6395 = vunpack.c.h.b16 %v6230
    %v6396 = vunpack.c.l.b16 %v6231
    %v6397 = vunpack.c.h.b16 %v6231
    %v6398 = vunpack.c.l.b16 %v6232
    %v6399 = vunpack.c.h.b16 %v6232
    %v6400 = vunpack.c.l.b16 %v6233
    %v6401 = vunpack.c.h.b16 %v6233
    %v6402 = vunpack.c.l.b16 %v6234
    %v6403 = vunpack.c.h.b16 %v6234
    %v6404 = vunpack.c.l.b16 %v6235
    %v6405 = vunpack.c.h.b16 %v6235
    %v6406 = vunpack.c.l.b16 %v6236
    %v6407 = vunpack.c.h.b16 %v6236
    %v6408 = vunpack.c.l.b16 %v6237
    %v6409 = vunpack.c.h.b16 %v6237
    %v6410 = vunpack.c.l.b16 %v6238
    %v6411 = vunpack.c.h.b16 %v6238
    %v6412 = vunpack.c.l.b16 %v6239
    %v6413 = vunpack.c.h.b16 %v6239
    %v6414 = vunpack.c.l.b16 %v6240
    %v6415 = vunpack.c.h.b16 %v6240
    %v6416 = vunpack.c.l.b16 %v6241
    %v6417 = vunpack.c.h.b16 %v6241
    %v6418 = vunpack.c.l.b16 %v6242
    %v6419 = vunpack.c.h.b16 %v6242
    %v6420 = vunpack.c.l.b16 %v6243
    %v6421 = vunpack.c.h.b16 %v6243
    %v6422 = vunpack.c.l.b16 %v6244
    %v6423 = vunpack.c.h.b16 %v6244
    %v6424 = vunpack.c.l.b16 %v6245
    %v6425 = vunpack.c.h.b16 %v6245
    %v6426 = vunpack.c.l.b16 %v6246
    %v6427 = vunpack.c.h.b16 %v6246
    %v6428 = vunpack.c.l.b16 %v6247
    %v6429 = vunpack.c.h.b16 %v6247
    %v6430 = vunpack.c.l.b16 %v6248
    %v6431 = vunpack.c.h.b16 %v6248
    %v6432 = vunpack.c.l.b16 %v6249
    %v6433 = vunpack.c.h.b16 %v6249
    %v6434 = vunpack.c.l.b16 %v6250
    %v6435 = vunpack.c.h.b16 %v6250
    %v6436 = vunpack.c.l.b16 %v6251
    %v6437 = vunpack.c.h.b16 %v6251
    %v6438 = vunpack.c.l.b16 %v6252
    %v6439 = vunpack.c.h.b16 %v6252
    %v6440 = vunpack.c.l.b16 %v6253
    %v6441 = vunpack.c.h.b16 %v6253
    %v6442 = vunpack.c.l.b16 %v6254
    %v6443 = vunpack.c.h.b16 %v6254
    %v6444 = vunpack.c.l.b16 %v6255
    %v6445 = vunpack.c.h.b16 %v6255
    %v6446 = vunpack.c.l.b16 %v6256
    %v6447 = vunpack.c.h.b16 %v6256
    %v6448 = vunpack.c.l.b16 %v6257
    %v6449 = vunpack.c.h.b16 %v6257
    %v6450 = vunpack.c.l.b16 %v6258
    %v6451 = vunpack.c.h.b16 %v6258
    %v6452 = vunpack.c.l.b16 %v6259
    %v6453 = vunpack.c.h.b16 %v6259
    %v6454 = vunpack.c.l.b16 %v6260
    %v6455 = vunpack.c.h.b16 %v6260
    %v6456 = vunpack.c.l.b16 %v6261
    %v6457 = vunpack.c.h.b16 %v6261
    %v6458 = vunpack.c.l.b16 %v6262
    %v6459 = vunpack.c.h.b16 %v6262
    %v6460 = vunpack.c.l.b16 %v6263
    %v6461 = vunpack.c.h.b16 %v6263
    %v6462 = vunpack.c.l.b16 %v6264
    %v6463 = vunpack.c.h.b16 %v6264
    %v6464 = vunpack.c.l.b16 %v6265
    %v6465 = vunpack.c.h.b16 %v6265
    %v6466 = vunpack.c.l.b16 %v6266
    %v6467 = vunpack.c.h.b16 %v6266
    %v6468 = vunpack.c.l.b16 %v6267
    %v6469 = vunpack.c.h.b16 %v6267
    %v6470 = vunpack.c.l.b16 %v6268
    %v6471 = vunpack.c.h.b16 %v6268
    %v6472 = vunpack.c.l.b16 %v6269
    %v6473 = vunpack.c.h.b16 %v6269
    %v6474 = vpack.c.b16 %v6348, %v6346
    %v6475 = vpack.c.b16 %v6349, %v6347
    %v6476 = vpack.c.b16 %v6352, %v6350
    %v6477 = vpack.c.b16 %v6353, %v6351
    %v6478 = vpack.c.b16 %v6356, %v6354
    %v6479 = vpack.c.b16 %v6357, %v6355
    %v6480 = vpack.c.b16 %v6360, %v6358
    %v6481 = vpack.c.b16 %v6361, %v6359
    %v6482 = vpack.c.b16 %v6364, %v6362
    %v6483 = vpack.c.b16 %v6365, %v6363
    %v6484 = vpack.c.b16 %v6368, %v6366
    %v6485 = vpack.c.b16 %v6369, %v6367
    %v6486 = vpack.c.b16 %v6372, %v6370
    %v6487 = vpack.c.b16 %v6373, %v6371
    %v6488 = vpack.c.b16 %v6376, %v6374
    %v6489 = vpack.c.b16 %v6377, %v6375
    %v6490 = vpack.c.b16 %v6380, %v6378
    %v6491 = vpack.c.b16 %v6381, %v6379
    %v6492 = vpack.c.b16 %v6384, %v6382
    %v6493 = vpack.c.b16 %v6385, %v6383
    %v6494 = vpack.c.b16 %v6388, %v6386
    %v6495 = vpack.c.b16 %v6389, %v6387
    %v6496 = vpack.c.b16 %v6392, %v6390
    %v6497 = vpack.c.b16 %v6393, %v6391
    %v6498 = vpack.c.b16 %v6396, %v6394
    %v6499 = vpack.c.b16 %v6397, %v6395
    %v6500 = vpack.c.b16 %v6400, %v6398
    %v6501 = vpack.c.b16 %v6401, %v6399
    %v6502 = vpack.c.b16 %v6404, %v6402
    %v6503 = vpack.c.b16 %v6405, %v6403
    %v6504 = vpack.c.b16 %v6408, %v6406
    %v6505 = vpack.c.b16 %v6409, %v6407
    %v6506 = vpack.c.b16 %v6412, %v6410
    %v6507 = vpack.c.b16 %v6413, %v6411
    %v6508 = vpack.c.b16 %v6416, %v6414
    %v6509 = vpack.c.b16 %v6417, %v6415
    %v6510 = vpack.c.b16 %v6420, %v6418
    %v6511 = vpack.c.b16 %v6421, %v6419
    %v6512 = vpack.c.b16 %v6424, %v6422
    %v6513 = vpack.c.b16 %v6425, %v6423
    %v6514 = vpack.c.b16 %v6428, %v6426
    %v6515 = vpack.c.b16 %v6429, %v6427
    %v6516 = vpack.c.b16 %v6432, %v6430
    %v6517 = vpack.c.b16 %v6433, %v6431
    %v6518 = vpack.c.b16 %v6436, %v6434
    %v6519 = vpack.c.b16 %v6437, %v6435
    %v6520 = vpack.c.b16 %v6440, %v6438
    %v6521 = vpack.c.b16 %v6441, %v6439
    %v6522 = vpack.c.b16 %v6444, %v6442
    %v6523 = vpack.c.b16 %v6445, %v6443
    %v6524 = vpack.c.b16 %v6448, %v6446
    %v6525 = vpack.c.b16 %v6449, %v6447
    %v6526 = vpack.c.b16 %v6452, %v6450
    %v6527 = vpack.c.b16 %v6453, %v6451
    %v6528 = vpack.c.b16 %v6456, %v6454
    %v6529 = vpack.c.b16 %v6457, %v6455
    %v6530 = vpack.c.b16 %v6460, %v6458
    %v6531 = vpack.c.b16 %v6461, %v6459
    %v6532 = vpack.c.b16 %v6464, %v6462
    %v6533 = vpack.c.b16 %v6465, %v6463
    %v6534 = vpack.c.b16 %v6468, %v6466
    %v6535 = vpack.c.b16 %v6469, %v6467
    %v6536 = vpack.c.b16 %v6472, %v6470
    %v6537 = vpack.c.b16 %v6473, %v6471
    %6602 = vmatprep.subr.bf16.mxu0 %v6489
    %6603 = vmatpush1.bf16.msra.mxu0 %v6488
    %6604 = vmatprep.subr.bf16.mxu0 %v6487
    %6605 = vmatpush1.bf16.msra.mxu0 %v6486
    %6606 = vmatprep.subr.bf16.mxu0 %v6485
    %6607 = vmatpush1.bf16.msra.mxu0 %v6484
    %6608 = vmatprep.subr.bf16.mxu0 %v6483
    %6609 = vmatpush1.bf16.msra.mxu0 %v6482
    %6610 = vmatprep.subr.bf16.mxu0 %v6481
    %6611 = vmatpush1.bf16.msra.mxu0 %v6480
    %6612 = vmatprep.subr.bf16.mxu0 %v6479
    %6613 = vmatpush1.bf16.msra.mxu0 %v6478
    %6614 = vmatprep.subr.bf16.mxu0 %v6477
    %6615 = vmatpush1.bf16.msra.mxu0 %v6476
    %6616 = vmatprep.subr.bf16.mxu0 %v6475
    %6617 = vmatpush1.bf16.msra.mxu0 %v6474
    %6618 = vmatprep.subr.bf16.mxu0 %v6505
    %6619 = vmatpush2.bf16.msra.mxu0 %v6504
    %6620 = vmatprep.subr.bf16.mxu0 %v6503
    %6621 = vmatpush2.bf16.msra.mxu0 %v6502
    %6622 = vmatprep.subr.bf16.mxu0 %v6501
    %6623 = vmatpush2.bf16.msra.mxu0 %v6500
    %6624 = vmatprep.subr.bf16.mxu0 %v6499
    %6625 = vmatpush2.bf16.msra.mxu0 %v6498
    %6626 = vmatprep.subr.bf16.mxu0 %v6497
    %6627 = vmatpush2.bf16.msra.mxu0 %v6496
    %6628 = vmatprep.subr.bf16.mxu0 %v6495
    %6629 = vmatpush2.bf16.msra.mxu0 %v6494
    %6630 = vmatprep.subr.bf16.mxu0 %v6493
    %6631 = vmatpush2.bf16.msra.mxu0 %v6492
    %6632 = vmatprep.subr.bf16.mxu0 %v6491
    %6633 = vmatpush2.bf16.msra.mxu0 %v6490
    %6634 = vmatprep.mubr.bf16.mxu0 %v6167
    %6635 = vmatmul.mubr.bf16.gmra.mxu0 %v6166
    %v6636 = vpop.f32.mrf.mxu0
    %v6637 = vadd.f32 %v6275, %v6636
    %v6638 = vpop.f32.mrf.mxu0
    %v6639 = vadd.f32 %v6279, %v6638
    %v6640 = vpop.f32.mrf.mxu0
    %v6641 = vadd.f32 %v6275, %v6640
    %v6642 = vpop.f32.mrf.mxu0
    %v6643 = vadd.f32 %v6279, %v6642
    %6644 = vmatprep.mubr.bf16.mxu0 %v6171
    %6645 = vmatmul.mubr.bf16.gmra.mxu0 %v6170
    %v6646 = vpop.f32.mrf.mxu0
    %v6647 = vadd.f32 %v6275, %v6646
    %v6648 = vpop.f32.mrf.mxu0
    %v6649 = vadd.f32 %v6279, %v6648
    %v6650 = vpop.f32.mrf.mxu0
    %v6651 = vadd.f32 %v6275, %v6650
    %v6652 = vpop.f32.mrf.mxu0
    %v6653 = vadd.f32 %v6279, %v6652
    %6654 = vmatprep.mubr.bf16.mxu0 %v6175
    %6655 = vmatmul.mubr.bf16.gmra.mxu0 %v6174
    %v6656 = vpop.f32.mrf.mxu0
    %v6657 = vadd.f32 %v6275, %v6656
    %v6658 = vpop.f32.mrf.mxu0
    %v6659 = vadd.f32 %v6279, %v6658
    %v6660 = vpop.f32.mrf.mxu0
    %v6661 = vadd.f32 %v6275, %v6660
    %v6662 = vpop.f32.mrf.mxu0
    %v6663 = vadd.f32 %v6279, %v6662
    %6664 = vmatprep.mubr.bf16.mxu0 %v6179
    %6665 = vmatmul.mubr.bf16.gmra.mxu0 %v6178
    %v6666 = vpop.f32.mrf.mxu0
    %v6667 = vadd.f32 %v6275, %v6666
    %v6668 = vpop.f32.mrf.mxu0
    %v6669 = vadd.f32 %v6279, %v6668
    %v6670 = vpop.f32.mrf.mxu0
    %v6671 = vadd.f32 %v6275, %v6670
    %v6672 = vpop.f32.mrf.mxu0
    %v6673 = vadd.f32 %v6279, %v6672
    %6674 = vmatprep.mubr.bf16.mxu0 %v6183
    %6675 = vmatmul.mubr.bf16.gmra.mxu0 %v6182
    %v6676 = vpop.f32.mrf.mxu0
    %v6677 = vadd.f32 %v6275, %v6676
    %v6678 = vpop.f32.mrf.mxu0
    %v6679 = vadd.f32 %v6279, %v6678
    %v6680 = vpop.f32.mrf.mxu0
    %v6681 = vadd.f32 %v6275, %v6680
    %v6682 = vpop.f32.mrf.mxu0
    %v6683 = vadd.f32 %v6279, %v6682
    %6684 = vmatprep.mubr.bf16.mxu0 %v6187
    %6685 = vmatmul.mubr.bf16.gmra.mxu0 %v6186
    %v6686 = vpop.f32.mrf.mxu0
    %v6687 = vadd.f32 %v6275, %v6686
    %v6688 = vpop.f32.mrf.mxu0
    %v6689 = vadd.f32 %v6279, %v6688
    %v6690 = vpop.f32.mrf.mxu0
    %v6691 = vadd.f32 %v6275, %v6690
    %v6692 = vpop.f32.mrf.mxu0
    %v6693 = vadd.f32 %v6279, %v6692
    %6694 = vmatprep.mubr.bf16.mxu0 %v6191
    %6695 = vmatmul.mubr.bf16.gmra.mxu0 %v6190
    %v6696 = vpop.f32.mrf.mxu0
    %v6697 = vadd.f32 %v6275, %v6696
    %v6698 = vpop.f32.mrf.mxu0
    %v6699 = vadd.f32 %v6279, %v6698
    %v6700 = vpop.f32.mrf.mxu0
    %v6701 = vadd.f32 %v6275, %v6700
    %v6702 = vpop.f32.mrf.mxu0
    %v6703 = vadd.f32 %v6279, %v6702
    %6704 = vmatprep.mubr.bf16.mxu0 %v6195
    %6705 = vmatmul.mubr.bf16.gmra.mxu0 %v6194
    %v6706 = vpop.f32.mrf.mxu0
    %v6707 = vadd.f32 %v6275, %v6706
    %v6708 = vpop.f32.mrf.mxu0
    %v6709 = vadd.f32 %v6279, %v6708
    %v6710 = vpop.f32.mrf.mxu0
    %v6711 = vadd.f32 %v6275, %v6710
    %v6712 = vpop.f32.mrf.mxu0
    %v6713 = vadd.f32 %v6279, %v6712
    %6714 = vdwg.mxu0
    %6715 = vmatprep.subr.bf16.mxu0 %v6521
    %6716 = vmatpush1.bf16.msra.mxu0 %v6520
    %6717 = vmatprep.subr.bf16.mxu0 %v6519
    %6718 = vmatpush1.bf16.msra.mxu0 %v6518
    %6719 = vmatprep.subr.bf16.mxu0 %v6517
    %6720 = vmatpush1.bf16.msra.mxu0 %v6516
    %6721 = vmatprep.subr.bf16.mxu0 %v6515
    %6722 = vmatpush1.bf16.msra.mxu0 %v6514
    %6723 = vmatprep.subr.bf16.mxu0 %v6513
    %6724 = vmatpush1.bf16.msra.mxu0 %v6512
    %6725 = vmatprep.subr.bf16.mxu0 %v6511
    %6726 = vmatpush1.bf16.msra.mxu0 %v6510
    %6727 = vmatprep.subr.bf16.mxu0 %v6509
    %6728 = vmatpush1.bf16.msra.mxu0 %v6508
    %6729 = vmatprep.subr.bf16.mxu0 %v6507
    %6730 = vmatpush1.bf16.msra.mxu0 %v6506
    %6731 = vmatprep.subr.bf16.mxu0 %v6537
    %6732 = vmatpush2.bf16.msra.mxu0 %v6536
    %6733 = vmatprep.subr.bf16.mxu0 %v6535
    %6734 = vmatpush2.bf16.msra.mxu0 %v6534
    %6735 = vmatprep.subr.bf16.mxu0 %v6533
    %6736 = vmatpush2.bf16.msra.mxu0 %v6532
    %6737 = vmatprep.subr.bf16.mxu0 %v6531
    %6738 = vmatpush2.bf16.msra.mxu0 %v6530
    %6739 = vmatprep.subr.bf16.mxu0 %v6529
    %6740 = vmatpush2.bf16.msra.mxu0 %v6528
    %6741 = vmatprep.subr.bf16.mxu0 %v6527
    %6742 = vmatpush2.bf16.msra.mxu0 %v6526
    %6743 = vmatprep.subr.bf16.mxu0 %v6525
    %6744 = vmatpush2.bf16.msra.mxu0 %v6524
    %6745 = vmatprep.subr.bf16.mxu0 %v6523
    %6746 = vmatpush2.bf16.msra.mxu0 %v6522
    %6747 = vmatprep.mubr.bf16.mxu0 %v6169
    %6748 = vmatmul.mubr.bf16.gmra.mxu0 %v6168
    %v6749 = vpop.f32.mrf.mxu0
    %v6750 = vadd.f32 %v6637, %v6749
    %v6751 = vpop.f32.mrf.mxu0
    %v6752 = vadd.f32 %v6639, %v6751
    %v6753 = vpop.f32.mrf.mxu0
    %v6754 = vadd.f32 %v6641, %v6753
    %v6755 = vpop.f32.mrf.mxu0
    %v6756 = vadd.f32 %v6643, %v6755
    %6757 = vmatprep.mubr.bf16.mxu0 %v6173
    %6758 = vmatmul.mubr.bf16.gmra.mxu0 %v6172
    %v6759 = vpop.f32.mrf.mxu0
    %v6760 = vadd.f32 %v6647, %v6759
    %v6761 = vpop.f32.mrf.mxu0
    %v6762 = vadd.f32 %v6649, %v6761
    %v6763 = vpop.f32.mrf.mxu0
    %v6764 = vadd.f32 %v6651, %v6763
    %v6765 = vpop.f32.mrf.mxu0
    %v6766 = vadd.f32 %v6653, %v6765
    %6767 = vmatprep.mubr.bf16.mxu0 %v6177
    %6768 = vmatmul.mubr.bf16.gmra.mxu0 %v6176
    %v6769 = vpop.f32.mrf.mxu0
    %v6770 = vadd.f32 %v6657, %v6769
    %v6771 = vpop.f32.mrf.mxu0
    %v6772 = vadd.f32 %v6659, %v6771
    %v6773 = vpop.f32.mrf.mxu0
    %v6774 = vadd.f32 %v6661, %v6773
    %v6775 = vpop.f32.mrf.mxu0
    %v6776 = vadd.f32 %v6663, %v6775
    %6777 = vmatprep.mubr.bf16.mxu0 %v6181
    %6778 = vmatmul.mubr.bf16.gmra.mxu0 %v6180
    %v6779 = vpop.f32.mrf.mxu0
    %v6780 = vadd.f32 %v6667, %v6779
    %v6781 = vpop.f32.mrf.mxu0
    %v6782 = vadd.f32 %v6669, %v6781
    %v6783 = vpop.f32.mrf.mxu0
    %v6784 = vadd.f32 %v6671, %v6783
    %v6785 = vpop.f32.mrf.mxu0
    %v6786 = vadd.f32 %v6673, %v6785
    %6787 = vmatprep.mubr.bf16.mxu0 %v6185
    %6788 = vmatmul.mubr.bf16.gmra.mxu0 %v6184
    %v6789 = vpop.f32.mrf.mxu0
    %v6790 = vadd.f32 %v6677, %v6789
    %v6791 = vpop.f32.mrf.mxu0
    %v6792 = vadd.f32 %v6679, %v6791
    %v6793 = vpop.f32.mrf.mxu0
    %v6794 = vadd.f32 %v6681, %v6793
    %v6795 = vpop.f32.mrf.mxu0
    %v6796 = vadd.f32 %v6683, %v6795
    %6797 = vmatprep.mubr.bf16.mxu0 %v6189
    %6798 = vmatmul.mubr.bf16.gmra.mxu0 %v6188
    %v6799 = vpop.f32.mrf.mxu0
    %v6800 = vadd.f32 %v6687, %v6799
    %v6801 = vpop.f32.mrf.mxu0
    %v6802 = vadd.f32 %v6689, %v6801
    %v6803 = vpop.f32.mrf.mxu0
    %v6804 = vadd.f32 %v6691, %v6803
    %v6805 = vpop.f32.mrf.mxu0
    %v6806 = vadd.f32 %v6693, %v6805
    %6807 = vmatprep.mubr.bf16.mxu0 %v6193
    %6808 = vmatmul.mubr.bf16.gmra.mxu0 %v6192
    %v6809 = vpop.f32.mrf.mxu0
    %v6810 = vadd.f32 %v6697, %v6809
    %v6811 = vpop.f32.mrf.mxu0
    %v6812 = vadd.f32 %v6699, %v6811
    %v6813 = vpop.f32.mrf.mxu0
    %v6814 = vadd.f32 %v6701, %v6813
    %v6815 = vpop.f32.mrf.mxu0
    %v6816 = vadd.f32 %v6703, %v6815
    %6817 = vmatprep.mubr.bf16.mxu0 %v6197
    %6818 = vmatmul.mubr.bf16.gmra.mxu0 %v6196
    %v6819 = vpop.f32.mrf.mxu0
    %v6820 = vadd.f32 %v6707, %v6819
    %v6821 = vpop.f32.mrf.mxu0
    %v6822 = vadd.f32 %v6709, %v6821
    %v6823 = vpop.f32.mrf.mxu0
    %v6824 = vadd.f32 %v6711, %v6823
    %v6825 = vpop.f32.mrf.mxu0
    %v6826 = vadd.f32 %v6713, %v6825
    %6827 = vdwg.mxu0
    %v6828 = vmax.f32 %v6750, 0.0
    %v6829 = vmax.f32 %v6752, 0.0
    %v6830 = vmax.f32 %v6754, 0.0
    %v6831 = vmax.f32 %v6756, 0.0
    %v6832 = vmax.f32 %v6760, 0.0
    %v6833 = vmax.f32 %v6762, 0.0
    %v6834 = vmax.f32 %v6764, 0.0
    %v6835 = vmax.f32 %v6766, 0.0
    %v6836 = vmax.f32 %v6770, 0.0
    %v6837 = vmax.f32 %v6772, 0.0
    %v6838 = vmax.f32 %v6774, 0.0
    %v6839 = vmax.f32 %v6776, 0.0
    %v6840 = vmax.f32 %v6780, 0.0
    %v6841 = vmax.f32 %v6782, 0.0
    %v6842 = vmax.f32 %v6784, 0.0
    %v6843 = vmax.f32 %v6786, 0.0
    %v6844 = vmax.f32 %v6790, 0.0
    %v6845 = vmax.f32 %v6792, 0.0
    %v6846 = vmax.f32 %v6794, 0.0
    %v6847 = vmax.f32 %v6796, 0.0
    %v6848 = vmax.f32 %v6800, 0.0
    %v6849 = vmax.f32 %v6802, 0.0
    %v6850 = vmax.f32 %v6804, 0.0
    %v6851 = vmax.f32 %v6806, 0.0
    %v6852 = vmax.f32 %v6810, 0.0
    %v6853 = vmax.f32 %v6812, 0.0
    %v6854 = vmax.f32 %v6814, 0.0
    %v6855 = vmax.f32 %v6816, 0.0
    %v6856 = vmax.f32 %v6820, 0.0
    %v6857 = vmax.f32 %v6822, 0.0
    %v6858 = vmax.f32 %v6824, 0.0
    %v6859 = vmax.f32 %v6826, 0.0
    %v6860 = vpack.c.bf16 %v6830, %v6828
    %v6861 = vpack.c.bf16 %v6831, %v6829
    %v6862 = vpack.c.bf16 %v6834, %v6832
    %v6863 = vpack.c.bf16 %v6835, %v6833
    %v6864 = vpack.c.bf16 %v6838, %v6836
    %v6865 = vpack.c.bf16 %v6839, %v6837
    %v6866 = vpack.c.bf16 %v6842, %v6840
    %v6867 = vpack.c.bf16 %v6843, %v6841
    %v6868 = vpack.c.bf16 %v6846, %v6844
    %v6869 = vpack.c.bf16 %v6847, %v6845
    %v6870 = vpack.c.bf16 %v6850, %v6848
    %v6871 = vpack.c.bf16 %v6851, %v6849
    %v6872 = vpack.c.bf16 %v6854, %v6852
    %v6873 = vpack.c.bf16 %v6855, %v6853
    %v6874 = vpack.c.bf16 %v6858, %v6856
    %v6875 = vpack.c.bf16 %v6859, %v6857
    // Predicated region
    $region108: #{tpu_custom_call.1} parent=1 // pred_check
      %p6876 = pneg %p76
    $region109: #{tpu_custom_call.1} parent=1 // pred_check_branch
      %6878 = sbr.rel (%p6876) target = $region111
    $region110: #{tpu_custom_call.1} parent=1 // pred_region
      %s6879 = scalar_lea.sflag [#allocation8], 3
      %s6880 = smul.u32 4, 32
      %s6881 = smul.u32 %s6880, 2
      %s6882 = sshll.u32 %s6881, 4
      %6883 = dma.done %s6879, %s6882
    $region111: #{tpu_custom_call.1} parent=1 // pred_fallthru
      _
    %v6884 = vld [vmem:[#allocation6] sm:$0xff]
    %v6885 = vld [vmem:[#allocation6 + $0x8] sm:$0xff]
    %v6886 = vld [vmem:[#allocation6 + $0x10] sm:$0xff]
    %v6887 = vld [vmem:[#allocation6 + $0x18] sm:$0xff]
    %v6888 = vld [vmem:[#allocation6 + $0x20] sm:$0xff]
    %v6889 = vld [vmem:[#allocation6 + $0x28] sm:$0xff]
    %v6890 = vld [vmem:[#allocation6 + $0x30] sm:$0xff]
    %v6891 = vld [vmem:[#allocation6 + $0x38] sm:$0xff]
    %v6892 = vld [vmem:[#allocation6 + $0x40] sm:$0xff]
    %v6893 = vld [vmem:[#allocation6 + $0x48] sm:$0xff]
    %v6894 = vld [vmem:[#allocation6 + $0x50] sm:$0xff]
    %v6895 = vld [vmem:[#allocation6 + $0x58] sm:$0xff]
    %v6896 = vld [vmem:[#allocation6 + $0x60] sm:$0xff]
    %v6897 = vld [vmem:[#allocation6 + $0x68] sm:$0xff]
    %v6898 = vld [vmem:[#allocation6 + $0x70] sm:$0xff]
    %v6899 = vld [vmem:[#allocation6 + $0x78] sm:$0xff]
    %v6900 = vld [vmem:[#allocation6 + $0x80] sm:$0xff]
    %v6901 = vld [vmem:[#allocation6 + $0x88] sm:$0xff]
    %v6902 = vld [vmem:[#allocation6 + $0x90] sm:$0xff]
    %v6903 = vld [vmem:[#allocation6 + $0x98] sm:$0xff]
    %v6904 = vld [vmem:[#allocation6 + $0xa0] sm:$0xff]
    %v6905 = vld [vmem:[#allocation6 + $0xa8] sm:$0xff]
    %v6906 = vld [vmem:[#allocation6 + $0xb0] sm:$0xff]
    %v6907 = vld [vmem:[#allocation6 + $0xb8] sm:$0xff]
    %v6908 = vld [vmem:[#allocation6 + $0xc0] sm:$0xff]
    %v6909 = vld [vmem:[#allocation6 + $0xc8] sm:$0xff]
    %v6910 = vld [vmem:[#allocation6 + $0xd0] sm:$0xff]
    %v6911 = vld [vmem:[#allocation6 + $0xd8] sm:$0xff]
    %v6912 = vld [vmem:[#allocation6 + $0xe0] sm:$0xff]
    %v6913 = vld [vmem:[#allocation6 + $0xe8] sm:$0xff]
    %v6914 = vld [vmem:[#allocation6 + $0xf0] sm:$0xff]
    %v6915 = vld [vmem:[#allocation6 + $0xf8] sm:$0xff]
    %v6916 = vld [vmem:[%s10] sm:$0x3]
    %v6918 = vlaneseq
    %v6919 = vshrl.u32 %v6918, 7
    %v6920 = vsub.s32 0, %v6919
    %v6921 = vrot.slane %v6916, %v6920
    %v6922 = vlaneseq
    %v6923 = vshrl.u32 %v6922, 7
    %v6924 = vsub.s32 1, %v6923
    %v6925 = vrot.slane %v6916, %v6924
    %v6960 = vunpack.c.l.b16 %v6884
    %v6961 = vunpack.c.h.b16 %v6884
    %v6962 = vunpack.c.l.b16 %v6885
    %v6963 = vunpack.c.h.b16 %v6885
    %v6964 = vunpack.c.l.b16 %v6886
    %v6965 = vunpack.c.h.b16 %v6886
    %v6966 = vunpack.c.l.b16 %v6887
    %v6967 = vunpack.c.h.b16 %v6887
    %v6968 = vunpack.c.l.b16 %v6888
    %v6969 = vunpack.c.h.b16 %v6888
    %v6970 = vunpack.c.l.b16 %v6889
    %v6971 = vunpack.c.h.b16 %v6889
    %v6972 = vunpack.c.l.b16 %v6890
    %v6973 = vunpack.c.h.b16 %v6890
    %v6974 = vunpack.c.l.b16 %v6891
    %v6975 = vunpack.c.h.b16 %v6891
    %v6976 = vunpack.c.l.b16 %v6892
    %v6977 = vunpack.c.h.b16 %v6892
    %v6978 = vunpack.c.l.b16 %v6893
    %v6979 = vunpack.c.h.b16 %v6893
    %v6980 = vunpack.c.l.b16 %v6894
    %v6981 = vunpack.c.h.b16 %v6894
    %v6982 = vunpack.c.l.b16 %v6895
    %v6983 = vunpack.c.h.b16 %v6895
    %v6984 = vunpack.c.l.b16 %v6896
    %v6985 = vunpack.c.h.b16 %v6896
    %v6986 = vunpack.c.l.b16 %v6897
    %v6987 = vunpack.c.h.b16 %v6897
    %v6988 = vunpack.c.l.b16 %v6898
    %v6989 = vunpack.c.h.b16 %v6898
    %v6990 = vunpack.c.l.b16 %v6899
    %v6991 = vunpack.c.h.b16 %v6899
    %v6992 = vunpack.c.l.b16 %v6900
    %v6993 = vunpack.c.h.b16 %v6900
    %v6994 = vunpack.c.l.b16 %v6901
    %v6995 = vunpack.c.h.b16 %v6901
    %v6996 = vunpack.c.l.b16 %v6902
    %v6997 = vunpack.c.h.b16 %v6902
    %v6998 = vunpack.c.l.b16 %v6903
    %v6999 = vunpack.c.h.b16 %v6903
    %v7000 = vunpack.c.l.b16 %v6904
    %v7001 = vunpack.c.h.b16 %v6904
    %v7002 = vunpack.c.l.b16 %v6905
    %v7003 = vunpack.c.h.b16 %v6905
    %v7004 = vunpack.c.l.b16 %v6906
    %v7005 = vunpack.c.h.b16 %v6906
    %v7006 = vunpack.c.l.b16 %v6907
    %v7007 = vunpack.c.h.b16 %v6907
    %v7008 = vunpack.c.l.b16 %v6908
    %v7009 = vunpack.c.h.b16 %v6908
    %v7010 = vunpack.c.l.b16 %v6909
    %v7011 = vunpack.c.h.b16 %v6909
    %v7012 = vunpack.c.l.b16 %v6910
    %v7013 = vunpack.c.h.b16 %v6910
    %v7014 = vunpack.c.l.b16 %v6911
    %v7015 = vunpack.c.h.b16 %v6911
    %v7016 = vunpack.c.l.b16 %v6912
    %v7017 = vunpack.c.h.b16 %v6912
    %v7018 = vunpack.c.l.b16 %v6913
    %v7019 = vunpack.c.h.b16 %v6913
    %v7020 = vunpack.c.l.b16 %v6914
    %v7021 = vunpack.c.h.b16 %v6914
    %v7022 = vunpack.c.l.b16 %v6915
    %v7023 = vunpack.c.h.b16 %v6915
    %v7024 = vpack.c.b16 %v6962, %v6960
    %v7025 = vpack.c.b16 %v6963, %v6961
    %v7026 = vpack.c.b16 %v6966, %v6964
    %v7027 = vpack.c.b16 %v6967, %v6965
    %v7028 = vpack.c.b16 %v6970, %v6968
    %v7029 = vpack.c.b16 %v6971, %v6969
    %v7030 = vpack.c.b16 %v6974, %v6972
    %v7031 = vpack.c.b16 %v6975, %v6973
    %v7032 = vpack.c.b16 %v6978, %v6976
    %v7033 = vpack.c.b16 %v6979, %v6977
    %v7034 = vpack.c.b16 %v6982, %v6980
    %v7035 = vpack.c.b16 %v6983, %v6981
    %v7036 = vpack.c.b16 %v6986, %v6984
    %v7037 = vpack.c.b16 %v6987, %v6985
    %v7038 = vpack.c.b16 %v6990, %v6988
    %v7039 = vpack.c.b16 %v6991, %v6989
    %v7040 = vpack.c.b16 %v6994, %v6992
    %v7041 = vpack.c.b16 %v6995, %v6993
    %v7042 = vpack.c.b16 %v6998, %v6996
    %v7043 = vpack.c.b16 %v6999, %v6997
    %v7044 = vpack.c.b16 %v7002, %v7000
    %v7045 = vpack.c.b16 %v7003, %v7001
    %v7046 = vpack.c.b16 %v7006, %v7004
    %v7047 = vpack.c.b16 %v7007, %v7005
    %v7048 = vpack.c.b16 %v7010, %v7008
    %v7049 = vpack.c.b16 %v7011, %v7009
    %v7050 = vpack.c.b16 %v7014, %v7012
    %v7051 = vpack.c.b16 %v7015, %v7013
    %v7052 = vpack.c.b16 %v7018, %v7016
    %v7053 = vpack.c.b16 %v7019, %v7017
    %v7054 = vpack.c.b16 %v7022, %v7020
    %v7055 = vpack.c.b16 %v7023, %v7021
    %7088 = vmatprep.subr.bf16.mxu0 %v7039
    %7089 = vmatpush1.bf16.msra.mxu0 %v7038
    %7090 = vmatprep.subr.bf16.mxu0 %v7037
    %7091 = vmatpush1.bf16.msra.mxu0 %v7036
    %7092 = vmatprep.subr.bf16.mxu0 %v7035
    %7093 = vmatpush1.bf16.msra.mxu0 %v7034
    %7094 = vmatprep.subr.bf16.mxu0 %v7033
    %7095 = vmatpush1.bf16.msra.mxu0 %v7032
    %7096 = vmatprep.subr.bf16.mxu0 %v7031
    %7097 = vmatpush1.bf16.msra.mxu0 %v7030
    %7098 = vmatprep.subr.bf16.mxu0 %v7029
    %7099 = vmatpush1.bf16.msra.mxu0 %v7028
    %7100 = vmatprep.subr.bf16.mxu0 %v7027
    %7101 = vmatpush1.bf16.msra.mxu0 %v7026
    %7102 = vmatprep.subr.bf16.mxu0 %v7025
    %7103 = vmatpush1.bf16.msra.mxu0 %v7024
    %7104 = vmatprep.subr.bf16.mxu0 %v7055
    %7105 = vmatpush2.bf16.msra.mxu0 %v7054
    %7106 = vmatprep.subr.bf16.mxu0 %v7053
    %7107 = vmatpush2.bf16.msra.mxu0 %v7052
    %7108 = vmatprep.subr.bf16.mxu0 %v7051
    %7109 = vmatpush2.bf16.msra.mxu0 %v7050
    %7110 = vmatprep.subr.bf16.mxu0 %v7049
    %7111 = vmatpush2.bf16.msra.mxu0 %v7048
    %7112 = vmatprep.subr.bf16.mxu0 %v7047
    %7113 = vmatpush2.bf16.msra.mxu0 %v7046
    %7114 = vmatprep.subr.bf16.mxu0 %v7045
    %7115 = vmatpush2.bf16.msra.mxu0 %v7044
    %7116 = vmatprep.subr.bf16.mxu0 %v7043
    %7117 = vmatpush2.bf16.msra.mxu0 %v7042
    %7118 = vmatprep.subr.bf16.mxu0 %v7041
    %7119 = vmatpush2.bf16.msra.mxu0 %v7040
    %7120 = vmatprep.mubr.bf16.mxu0 %v6861
    %7121 = vmatmul.mubr.bf16.gmra.mxu0 %v6860
    %v7122 = vpop.f32.mrf.mxu0
    %v7123 = vadd.f32 %v6921, %v7122
    %v7124 = vpop.f32.mrf.mxu0
    %v7125 = vadd.f32 %v6925, %v7124
    %v7126 = vpop.f32.mrf.mxu0
    %v7127 = vadd.f32 %v6921, %v7126
    %v7128 = vpop.f32.mrf.mxu0
    %v7129 = vadd.f32 %v6925, %v7128
    %7130 = vmatprep.mubr.bf16.mxu0 %v6863
    %7131 = vmatmul.mubr.bf16.gmra.mxu0 %v6862
    %v7132 = vpop.f32.mrf.mxu0
    %v7133 = vadd.f32 %v6921, %v7132
    %v7134 = vpop.f32.mrf.mxu0
    %v7135 = vadd.f32 %v6925, %v7134
    %v7136 = vpop.f32.mrf.mxu0
    %v7137 = vadd.f32 %v6921, %v7136
    %v7138 = vpop.f32.mrf.mxu0
    %v7139 = vadd.f32 %v6925, %v7138
    %7140 = vmatprep.mubr.bf16.mxu0 %v6865
    %7141 = vmatmul.mubr.bf16.gmra.mxu0 %v6864
    %v7142 = vpop.f32.mrf.mxu0
    %v7143 = vadd.f32 %v6921, %v7142
    %v7144 = vpop.f32.mrf.mxu0
    %v7145 = vadd.f32 %v6925, %v7144
    %v7146 = vpop.f32.mrf.mxu0
    %v7147 = vadd.f32 %v6921, %v7146
    %v7148 = vpop.f32.mrf.mxu0
    %v7149 = vadd.f32 %v6925, %v7148
    %7150 = vmatprep.mubr.bf16.mxu0 %v6867
    %7151 = vmatmul.mubr.bf16.gmra.mxu0 %v6866
    %v7152 = vpop.f32.mrf.mxu0
    %v7153 = vadd.f32 %v6921, %v7152
    %v7154 = vpop.f32.mrf.mxu0
    %v7155 = vadd.f32 %v6925, %v7154
    %v7156 = vpop.f32.mrf.mxu0
    %v7157 = vadd.f32 %v6921, %v7156
    %v7158 = vpop.f32.mrf.mxu0
    %v7159 = vadd.f32 %v6925, %v7158
    %7160 = vmatprep.mubr.bf16.mxu0 %v6869
    %7161 = vmatmul.mubr.bf16.gmra.mxu0 %v6868
    %v7162 = vpop.f32.mrf.mxu0
    %v7163 = vadd.f32 %v6921, %v7162
    %v7164 = vpop.f32.mrf.mxu0
    %v7165 = vadd.f32 %v6925, %v7164
    %v7166 = vpop.f32.mrf.mxu0
    %v7167 = vadd.f32 %v6921, %v7166
    %v7168 = vpop.f32.mrf.mxu0
    %v7169 = vadd.f32 %v6925, %v7168
    %7170 = vmatprep.mubr.bf16.mxu0 %v6871
    %7171 = vmatmul.mubr.bf16.gmra.mxu0 %v6870
    %v7172 = vpop.f32.mrf.mxu0
    %v7173 = vadd.f32 %v6921, %v7172
    %v7174 = vpop.f32.mrf.mxu0
    %v7175 = vadd.f32 %v6925, %v7174
    %v7176 = vpop.f32.mrf.mxu0
    %v7177 = vadd.f32 %v6921, %v7176
    %v7178 = vpop.f32.mrf.mxu0
    %v7179 = vadd.f32 %v6925, %v7178
    %7180 = vmatprep.mubr.bf16.mxu0 %v6873
    %7181 = vmatmul.mubr.bf16.gmra.mxu0 %v6872
    %v7182 = vpop.f32.mrf.mxu0
    %v7183 = vadd.f32 %v6921, %v7182
    %v7184 = vpop.f32.mrf.mxu0
    %v7185 = vadd.f32 %v6925, %v7184
    %v7186 = vpop.f32.mrf.mxu0
    %v7187 = vadd.f32 %v6921, %v7186
    %v7188 = vpop.f32.mrf.mxu0
    %v7189 = vadd.f32 %v6925, %v7188
    %7190 = vmatprep.mubr.bf16.mxu0 %v6875
    %7191 = vmatmul.mubr.bf16.gmra.mxu0 %v6874
    %v7192 = vpop.f32.mrf.mxu0
    %v7193 = vadd.f32 %v6921, %v7192
    %v7194 = vpop.f32.mrf.mxu0
    %v7195 = vadd.f32 %v6925, %v7194
    %v7196 = vpop.f32.mrf.mxu0
    %v7197 = vadd.f32 %v6921, %v7196
    %v7198 = vpop.f32.mrf.mxu0
    %v7199 = vadd.f32 %v6925, %v7198
    %7200 = vdwg.mxu0
    %v7201 = vmax.f32 %v7123, 0.0
    %v7202 = vmax.f32 %v7125, 0.0
    %v7203 = vmax.f32 %v7127, 0.0
    %v7204 = vmax.f32 %v7129, 0.0
    %v7205 = vmax.f32 %v7133, 0.0
    %v7206 = vmax.f32 %v7135, 0.0
    %v7207 = vmax.f32 %v7137, 0.0
    %v7208 = vmax.f32 %v7139, 0.0
    %v7209 = vmax.f32 %v7143, 0.0
    %v7210 = vmax.f32 %v7145, 0.0
    %v7211 = vmax.f32 %v7147, 0.0
    %v7212 = vmax.f32 %v7149, 0.0
    %v7213 = vmax.f32 %v7153, 0.0
    %v7214 = vmax.f32 %v7155, 0.0
    %v7215 = vmax.f32 %v7157, 0.0
    %v7216 = vmax.f32 %v7159, 0.0
    %v7217 = vmax.f32 %v7163, 0.0
    %v7218 = vmax.f32 %v7165, 0.0
    %v7219 = vmax.f32 %v7167, 0.0
    %v7220 = vmax.f32 %v7169, 0.0
    %v7221 = vmax.f32 %v7173, 0.0
    %v7222 = vmax.f32 %v7175, 0.0
    %v7223 = vmax.f32 %v7177, 0.0
    %v7224 = vmax.f32 %v7179, 0.0
    %v7225 = vmax.f32 %v7183, 0.0
    %v7226 = vmax.f32 %v7185, 0.0
    %v7227 = vmax.f32 %v7187, 0.0
    %v7228 = vmax.f32 %v7189, 0.0
    %v7229 = vmax.f32 %v7193, 0.0
    %v7230 = vmax.f32 %v7195, 0.0
    %v7231 = vmax.f32 %v7197, 0.0
    %v7232 = vmax.f32 %v7199, 0.0
    // Predicated region
    $region112: #{tpu_custom_call.1} parent=1 // pred_check
      %p7233 = pneg %p76
    $region113: #{tpu_custom_call.1} parent=1 // pred_check_branch
      %7235 = sbr.rel (%p7233) target = $region115
    $region114: #{tpu_custom_call.1} parent=1 // pred_region
      %s7236 = scalar_lea.sflag [#allocation8], 4
      %s7237 = smul.u32 1, 2
      %s7238 = sshll.u32 %s7237, 4
      %7239 = dma.done %s7236, %s7238
    $region115: #{tpu_custom_call.1} parent=1 // pred_fallthru
      _
    %v7240 = vld [vmem:[#allocation7] sm:$0x3]
    %v7241 = vunpack.c.l.bf16 %v7240
    %v7243 = vlaneseq
    %v7244 = vshrl.u32 %v7243, 7
    %v7245 = vsub.s32 0, %v7244
    %v7246 = vrot.slane %v7241, %v7245
    %v7247 = vlaneseq
    %v7248 = vshrl.u32 %v7247, 7
    %v7249 = vsub.s32 2, %v7248
    %v7250 = vrot.slane %v7241, %v7249
    %v7253 = vlaneseq
    %v7254 = vshrl.u32 %v7253, 7
    %v7255 = vsub.s32 0, %v7254
    %v7256 = vrot.slane %v7246, %v7255
    %v7257 = vlaneseq
    %v7258 = vshrl.u32 %v7257, 7
    %v7259 = vsub.s32 0, %v7258
    %v7260 = vrot.slane %v7250, %v7259
    %v7261 = vmul.f32 %v7201, %v7256
    %v7262 = vmul.f32 %v7202, %v7260
    %v7263 = vmul.f32 %v7203, %v7256
    %v7264 = vmul.f32 %v7204, %v7260
    %v7265 = vmul.f32 %v7205, %v7256
    %v7266 = vmul.f32 %v7206, %v7260
    %v7267 = vmul.f32 %v7207, %v7256
    %v7268 = vmul.f32 %v7208, %v7260
    %v7269 = vmul.f32 %v7209, %v7256
    %v7270 = vmul.f32 %v7210, %v7260
    %v7271 = vmul.f32 %v7211, %v7256
    %v7272 = vmul.f32 %v7212, %v7260
    %v7273 = vmul.f32 %v7213, %v7256
    %v7274 = vmul.f32 %v7214, %v7260
    %v7275 = vmul.f32 %v7215, %v7256
    %v7276 = vmul.f32 %v7216, %v7260
    %v7277 = vmul.f32 %v7217, %v7256
    %v7278 = vmul.f32 %v7218, %v7260
    %v7279 = vmul.f32 %v7219, %v7256
    %v7280 = vmul.f32 %v7220, %v7260
    %v7281 = vmul.f32 %v7221, %v7256
    %v7282 = vmul.f32 %v7222, %v7260
    %v7283 = vmul.f32 %v7223, %v7256
    %v7284 = vmul.f32 %v7224, %v7260
    %v7285 = vmul.f32 %v7225, %v7256
    %v7286 = vmul.f32 %v7226, %v7260
    %v7287 = vmul.f32 %v7227, %v7256
    %v7288 = vmul.f32 %v7228, %v7260
    %v7289 = vmul.f32 %v7229, %v7256
    %v7290 = vmul.f32 %v7230, %v7260
    %v7291 = vmul.f32 %v7231, %v7256
    %v7292 = vmul.f32 %v7232, %v7260
    %v7293 = vadd.f32 %v7261, %v7262
    %7294 = vadd.xlane.f32.xlu0 %v7293
    %v7295 = vpop.xlane.xlu0 %7294
    %v7296 = vadd.f32 %v7263, %v7264
    %7297 = vadd.xlane.f32.xlu0 %v7296
    %v7298 = vpop.xlane.xlu0 %7297
    %v7299 = vadd.f32 %v7265, %v7266
    %7300 = vadd.xlane.f32.xlu0 %v7299
    %v7301 = vpop.xlane.xlu0 %7300
    %v7302 = vadd.f32 %v7267, %v7268
    %7303 = vadd.xlane.f32.xlu0 %v7302
    %v7304 = vpop.xlane.xlu0 %7303
    %v7305 = vadd.f32 %v7269, %v7270
    %7306 = vadd.xlane.f32.xlu0 %v7305
    %v7307 = vpop.xlane.xlu0 %7306
    %v7308 = vadd.f32 %v7271, %v7272
    %7309 = vadd.xlane.f32.xlu0 %v7308
    %v7310 = vpop.xlane.xlu0 %7309
    %v7311 = vadd.f32 %v7273, %v7274
    %7312 = vadd.xlane.f32.xlu0 %v7311
    %v7313 = vpop.xlane.xlu0 %7312
    %v7314 = vadd.f32 %v7275, %v7276
    %7315 = vadd.xlane.f32.xlu0 %v7314
    %v7316 = vpop.xlane.xlu0 %7315
    %v7317 = vadd.f32 %v7277, %v7278
    %7318 = vadd.xlane.f32.xlu0 %v7317
    %v7319 = vpop.xlane.xlu0 %7318
    %v7320 = vadd.f32 %v7279, %v7280
    %7321 = vadd.xlane.f32.xlu0 %v7320
    %v7322 = vpop.xlane.xlu0 %7321
    %v7323 = vadd.f32 %v7281, %v7282
    %7324 = vadd.xlane.f32.xlu0 %v7323
    %v7325 = vpop.xlane.xlu0 %7324
    %v7326 = vadd.f32 %v7283, %v7284
    %7327 = vadd.xlane.f32.xlu0 %v7326
    %v7328 = vpop.xlane.xlu0 %7327
    %v7329 = vadd.f32 %v7285, %v7286
    %7330 = vadd.xlane.f32.xlu0 %v7329
    %v7331 = vpop.xlane.xlu0 %7330
    %v7332 = vadd.f32 %v7287, %v7288
    %7333 = vadd.xlane.f32.xlu0 %v7332
    %v7334 = vpop.xlane.xlu0 %7333
    %v7335 = vadd.f32 %v7289, %v7290
    %7336 = vadd.xlane.f32.xlu0 %v7335
    %v7337 = vpop.xlane.xlu0 %7336
    %v7338 = vadd.f32 %v7291, %v7292
    %7339 = vadd.xlane.f32.xlu0 %v7338
    %v7340 = vpop.xlane.xlu0 %7339
    %v7341 = vld [vmem:[#allocation9] sm:$0x1]
    %v7343 = vlaneseq
    %v7344 = vshrl.u32 %v7343, 7
    %v7345 = vsub.s32 0, %v7344
    %v7346 = vrot.slane %v7341, %v7345
    %v7348 = vadd.f32 %v7295, %v7346
    %v7349 = vadd.f32 %v7298, %v7346
    %v7350 = vadd.f32 %v7301, %v7346
    %v7351 = vadd.f32 %v7304, %v7346
    %v7352 = vadd.f32 %v7307, %v7346
    %v7353 = vadd.f32 %v7310, %v7346
    %v7354 = vadd.f32 %v7313, %v7346
    %v7355 = vadd.f32 %v7316, %v7346
    %v7356 = vadd.f32 %v7319, %v7346
    %v7357 = vadd.f32 %v7322, %v7346
    %v7358 = vadd.f32 %v7325, %v7346
    %v7359 = vadd.f32 %v7328, %v7346
    %v7360 = vadd.f32 %v7331, %v7346
    %v7361 = vadd.f32 %v7334, %v7346
    %v7362 = vadd.f32 %v7337, %v7346
    %v7363 = vadd.f32 %v7340, %v7346
    %vm7364 = vcmask 7168
    %7365 = vst.msk [vmem:[#allocation15] sm:$0xff] %vm7364, %v7348
    %7366 = vst.msk [vmem:[#allocation15 + $0x8] sm:$0xff] %vm7364, %v7349
    %7367 = vst.msk [vmem:[#allocation15 + $0x10] sm:$0xff] %vm7364, %v7350
    %7368 = vst.msk [vmem:[#allocation15 + $0x18] sm:$0xff] %vm7364, %v7351
    %7369 = vst.msk [vmem:[#allocation15 + $0x20] sm:$0xff] %vm7364, %v7352
    %7370 = vst.msk [vmem:[#allocation15 + $0x28] sm:$0xff] %vm7364, %v7353
    %7371 = vst.msk [vmem:[#allocation15 + $0x30] sm:$0xff] %vm7364, %v7354
    %7372 = vst.msk [vmem:[#allocation15 + $0x38] sm:$0xff] %vm7364, %v7355
    %7373 = vst.msk [vmem:[#allocation15 + $0x40] sm:$0xff] %vm7364, %v7356
    %7374 = vst.msk [vmem:[#allocation15 + $0x48] sm:$0xff] %vm7364, %v7357
    %7375 = vst.msk [vmem:[#allocation15 + $0x50] sm:$0xff] %vm7364, %v7358
    %7376 = vst.msk [vmem:[#allocation15 + $0x58] sm:$0xff] %vm7364, %v7359
    %7377 = vst.msk [vmem:[#allocation15 + $0x60] sm:$0xff] %vm7364, %v7360
    %7378 = vst.msk [vmem:[#allocation15 + $0x68] sm:$0xff] %vm7364, %v7361
    %7379 = vst.msk [vmem:[#allocation15 + $0x70] sm:$0xff] %vm7364, %v7362
    %7380 = vst.msk [vmem:[#allocation15 + $0x78] sm:$0xff] %vm7364, %v7363
    // Predicated region
    $region116: #{tpu_custom_call.1} parent=1 // pred_check
      _
    $region117: #{tpu_custom_call.1} parent=1 // pred_check_branch
      %7382 = sbr.rel (0) target = $region119
    $region118: #{tpu_custom_call.1} parent=1 // pred_region
      // Predicated region
      $region120: #{tpu_custom_call.1} parent=118 // pred_check
        _
      $region121: #{tpu_custom_call.1} parent=118 // pred_check_branch
        %7384 = sbr.rel (0) target = $region123
      $region122: #{tpu_custom_call.1} parent=118 // pred_region
        // Predicated region
        $region124: #{tpu_custom_call.1} parent=122 // pred_check
          _
        $region125: #{tpu_custom_call.1} parent=122 // pred_check_branch
          %7386 = sbr.rel target = $region127
        $region126: #{tpu_custom_call.1} parent=122 // pred_region
          // Predicated region
          $region139: #{tpu_custom_call.1} parent=126 // pred_check
            _
          $region140: #{tpu_custom_call.1} parent=126 // pred_check_branch
            %7402 = sbr.rel (0) target = $region142
          $region141: #{tpu_custom_call.1} parent=126 // pred_region
            %s7404 = ssub.s32 4, 1
            loop: start=0, step=1, limit=1
            $region143: #{tpu_custom_call.1} parent=141 // loop_pre_header
              _
            $region144: #{tpu_custom_call.1} parent=141 // loop_header
              %s7406 = sphi 0, %s7410
              %p7407 = scmp.ge.s32.totalorder %s7406, 1
              %s7411 = sphi [#allocation15], [#allocation15]
              %s7412 = sphi %s13, %s13
            $region145: #{tpu_custom_call.1} parent=141 // loop_header_branch
              %7409 = sbr.rel (%p7407) target = $region149
            $region146: #{tpu_custom_call.1} parent=141 // loop_body
              %v7413 = vld [vmem:[%s7411] sm:%s7404]
              %7414 = vst [vmem:[%s7412] sm:%s7404] %v7413
            $region147: #{tpu_custom_call.1} parent=141 // loop_footer
              %s7410 = sadd.s32 1, %s7406
            $region148: #{tpu_custom_call.1} parent=141 // loop_footer_branch
              %7405 = sbr.rel target = $region144
            $region149: #{tpu_custom_call.1} parent=141 // loop_exit
              _
          $region142: #{tpu_custom_call.1} parent=126 // pred_fallthru
            _
        $region127: #{tpu_custom_call.1} parent=122 // pred_fallthru
          _
        // Predicated region
        $region128: #{tpu_custom_call.1} parent=122 // pred_check
          _
        $region129: #{tpu_custom_call.1} parent=122 // pred_check_branch
          %7388 = sbr.rel (0) target = $region131
        $region130: #{tpu_custom_call.1} parent=122 // pred_region
          %s7390 = ssub.s32 4, 1
          loop: start=0, step=1, limit=1
          $region132: #{tpu_custom_call.1} parent=130 // loop_pre_header
            _
          $region133: #{tpu_custom_call.1} parent=130 // loop_header
            %s7392 = sphi 0, %s7396
            %p7393 = scmp.ge.s32.totalorder %s7392, 1
            %s7397 = sphi [#allocation15], [#allocation15]
            %s7398 = sphi %s13, %s13
          $region134: #{tpu_custom_call.1} parent=130 // loop_header_branch
            %7395 = sbr.rel (%p7393) target = $region138
          $region135: #{tpu_custom_call.1} parent=130 // loop_body
            %v7399 = vld [vmem:[%s7397] sm:%s7390]
            %7400 = vst [vmem:[%s7398] sm:%s7390] %v7399
          $region136: #{tpu_custom_call.1} parent=130 // loop_footer
            %s7396 = sadd.s32 1, %s7392
          $region137: #{tpu_custom_call.1} parent=130 // loop_footer_branch
            %7391 = sbr.rel target = $region133
          $region138: #{tpu_custom_call.1} parent=130 // loop_exit
            _
        $region131: #{tpu_custom_call.1} parent=122 // pred_fallthru
          _
      $region123: #{tpu_custom_call.1} parent=118 // pred_fallthru
        _
      %7415 = vnop
    $region119: #{tpu_custom_call.1} parent=1 // pred_fallthru
      _
    // Predicated region
    $region150: #{tpu_custom_call.1} parent=1 // pred_check
      _
    $region151: #{tpu_custom_call.1} parent=1 // pred_check_branch
      %7417 = sbr.rel (0) target = $region153
    $region152: #{tpu_custom_call.1} parent=1 // pred_region
      _
    $region153: #{tpu_custom_call.1} parent=1 // pred_fallthru
      _
    %7418 = vsyncpa [#allocation11], 1
    %7419 = vsyncpa [#allocation13], 1
  %7420 = vsyncmov [#allocation8]
  %s7421 = vpop.sfrf %7420
  %p7422 = scmp.eq.s32.totalorder %s7421, 0
  %p7423 = pneg %p7422
  %7425 = shalt.err (%p7423)
  %s7426 = scalar_lea.sflag [#allocation8], 1
  %7427 = vsyncmov %s7426
  %s7428 = vpop.sfrf %7427
  %p7429 = scmp.eq.s32.totalorder %s7428, 0
  %p7430 = pneg %p7429
  %7432 = shalt.err (%p7430)
  %s7433 = scalar_lea.sflag [#allocation8], 2
  %7434 = vsyncmov %s7433
  %s7435 = vpop.sfrf %7434
  %p7436 = scmp.eq.s32.totalorder %s7435, 0
  %p7437 = pneg %p7436
  %7439 = shalt.err (%p7437)
  %s7440 = scalar_lea.sflag [#allocation8], 3
  %7441 = vsyncmov %s7440
  %s7442 = vpop.sfrf %7441
  %p7443 = scmp.eq.s32.totalorder %s7442, 0
  %p7444 = pneg %p7443
  %7446 = shalt.err (%p7444)
  %s7447 = scalar_lea.sflag [#allocation8], 4
  %7448 = vsyncmov %s7447
  %s7449 = vpop.sfrf %7448
  %p7450 = scmp.eq.s32.totalorder %s7449, 0
  %p7451 = pneg %p7450
  %7453 = shalt.err (%p7451)

</llo_original>
